<compile_context>
chip_gen: v6e
topology: v6e:2x2x1
jax: 0.10.0
libtpu: 0.0.40
codegen_flags: <defaults>
</compile_context>

<pallas_src>
import jax
import jax.numpy as jnp
from jax.experimental import pallas as pl
from jax.experimental.pallas import tpu as pltpu

# ---- hyperparameters (deterministic choices for the optuna `trial`) ----
K_NN = 10          # trial.suggest_int('knn', 10, 20, 2)
K_PAD = 16         # neighbour axis padded to a multiple of 8 sublanes
H2 = 32            # trial.suggest_int('h2', 24, 44, 4)
H3 = 64            # trial.suggest_int('h3', 48, 76, 4)
H4 = 128           # trial.suggest_int('h4', 80, 128, 8)
IN_DIM = 4         # PPF feature dimension (in_dim of the module)
NUM_CLASSES = 10   # out_dim


# ---------------------------------------------------------------------------
# Small tiling helpers
# ---------------------------------------------------------------------------
def _round_up(x, m):
    return ((x + m - 1) // m) * m


def _pick_tile(n, cap=256):
    """Largest tile <= cap, multiple of 8, dividing n, preferring >=2 steps."""
    for t in range(min(cap, n), 7, -8):
        if n % t == 0 and n // t >= 2:
            return t
    return n


# ---------------------------------------------------------------------------
# Pallas kernels
# ---------------------------------------------------------------------------
def ppf_conv1_kernel(feat_ref, w1_ref, b1_ref, w2_ref, b2_ref, out_ref):
    """conv1 messages: Linear -> ReLU -> Linear on raw PPF, max over neighbours.

    feat_ref: (TN, K_PAD, IN_DIM) bf16, out_ref: (TN, H2) f32
    """
    tn, k, fin = feat_ref.shape
    f = feat_ref[...].reshape(tn * k, fin)
    h = jnp.dot(f, w1_ref[...], preferred_element_type=jnp.float32) + b1_ref[...]
    h = jnp.maximum(h, 0.0)
    h = jnp.dot(h.astype(w2_ref.dtype), w2_ref[...],
                preferred_element_type=jnp.float32) + b2_ref[...]
    h = h.reshape(tn, k, h.shape[-1])
    out_ref[...] = jnp.max(h, axis=1).astype(out_ref.dtype)   # 'max' aggregation


def ppf_conv2_kernel(xj_ref, ppf_ref, w1x_ref, w1p_ref, b1_ref,
                     w2_ref, b2_ref, out_ref):
    """conv2 messages: Linear(concat(x_j, ppf)) -> ReLU -> Linear, max over K.

    The concat is never formed: W1 is pre-split into W1x / W1p and the two
    partial matmuls are summed.
    xj_ref: (TN, K_PAD, H2) bf16, ppf_ref: (TN, K_PAD, IN_DIM) bf16,
    out_ref: (TN, H4) f32
    """
    tn, k, hx = xj_ref.shape
    fp = ppf_ref.shape[-1]
    xj = xj_ref[...].reshape(tn * k, hx)
    pf = ppf_ref[...].reshape(tn * k, fp)
    h = (jnp.dot(xj, w1x_ref[...], preferred_element_type=jnp.float32)
         + jnp.dot(pf, w1p_ref[...], preferred_element_type=jnp.float32)
         + b1_ref[...])
    h = jnp.maximum(h, 0.0)
    h = jnp.dot(h.astype(w2_ref.dtype), w2_ref[...],
                preferred_element_type=jnp.float32) + b2_ref[...]
    h = h.reshape(tn, k, h.shape[-1])
    out_ref[...] = jnp.max(h, axis=1).astype(out_ref.dtype)


def pool_classifier_kernel(x_ref, w_ref, b_ref, out_ref, acc_ref):
    """global_max_pool over point tiles of one graph + Linear classifier.

    x_ref: (1, TP, H4), acc_ref: (1, H4) running max, out_ref: (1, 1, C)
    """
    p = pl.program_id(1)

    @pl.when(p == 0)
    def _():
        acc_ref[...] = jnp.full(acc_ref.shape, -jnp.inf, acc_ref.dtype)

    acc_ref[...] = jnp.maximum(acc_ref[...], jnp.max(x_ref[...], axis=1))

    @pl.when(p == pl.num_programs(1) - 1)
    def _():
        logits = (jnp.dot(acc_ref[...], w_ref[...],
                          preferred_element_type=jnp.float32) + b_ref[...])
        out_ref[...] = logits[:, None, :]


# ---------------------------------------------------------------------------
# Wrappers around pallas_call
# ---------------------------------------------------------------------------
def ppf_conv1(feat, w1, b1, w2, b2, tile_n):
    n, k, fin = feat.shape
    h1 = w1.shape[1]
    hout = w2.shape[1]
    assert n % tile_n == 0
    return pl.pallas_call(
        ppf_conv1_kernel,
        out_shape=jax.ShapeDtypeStruct((n, hout), jnp.float32),
        grid=(n // tile_n,),
        in_specs=[
            pl.BlockSpec((tile_n, k, fin), lambda i: (i, 0, 0)),
            pl.BlockSpec((fin, h1), lambda i: (0, 0)),
            pl.BlockSpec((1, h1), lambda i: (0, 0)),
            pl.BlockSpec((h1, hout), lambda i: (0, 0)),
            pl.BlockSpec((1, hout), lambda i: (0, 0)),
        ],
        out_specs=pl.BlockSpec((tile_n, hout), lambda i: (i, 0)),
        compiler_params=pltpu.CompilerParams(dimension_semantics=("parallel",)),
    )(feat, w1, b1, w2, b2)


def ppf_conv2(xj, ppf, w1x, w1p, b1, w2, b2, tile_n):
    n, k, hx = xj.shape
    fp = ppf.shape[-1]
    h1 = w1x.shape[1]
    hout = w2.shape[1]
    assert n % tile_n == 0
    return pl.pallas_call(
        ppf_conv2_kernel,
        out_shape=jax.ShapeDtypeStruct((n, hout), jnp.float32),
        grid=(n // tile_n,),
        in_specs=[
            pl.BlockSpec((tile_n, k, hx), lambda i: (i, 0, 0)),
            pl.BlockSpec((tile_n, k, fp), lambda i: (i, 0, 0)),
            pl.BlockSpec((hx, h1), lambda i: (0, 0)),
            pl.BlockSpec((fp, h1), lambda i: (0, 0)),
            pl.BlockSpec((1, h1), lambda i: (0, 0)),
            pl.BlockSpec((h1, hout), lambda i: (0, 0)),
            pl.BlockSpec((1, hout), lambda i: (0, 0)),
        ],
        out_specs=pl.BlockSpec((tile_n, hout), lambda i: (i, 0)),
        compiler_params=pltpu.CompilerParams(dimension_semantics=("parallel",)),
    )(xj, ppf, w1x, w1p, b1, w2, b2)


def pool_and_classify(x, w, b, num_graphs):
    """global_max_pool(x, batch) + classifier, gridded over (graph, point-tile).

    NOTE: assumes points are sorted by batch with equal-size graphs (true for
    the dense test input); ragged batches would need a segment max.
    """
    n, h = x.shape
    c = w.shape[1]
    npg = n // num_graphs
    xg = x.reshape(num_graphs, npg, h)
    tile_p = _pick_tile(npg) if npg % 8 == 0 else npg
    out = pl.pallas_call(
        pool_classifier_kernel,
        out_shape=jax.ShapeDtypeStruct((num_graphs, 1, c), jnp.float32),
        grid=(num_graphs, npg // tile_p),
        in_specs=[
            pl.BlockSpec((1, tile_p, h), lambda g, p: (g, p, 0)),
            pl.BlockSpec((h, c), lambda g, p: (0, 0)),
            pl.BlockSpec((1, c), lambda g, p: (0, 0)),
        ],
        out_specs=pl.BlockSpec((1, 1, c), lambda g, p: (g, 0, 0)),
        scratch_shapes=[pltpu.VMEM((1, h), jnp.float32)],
        compiler_params=pltpu.CompilerParams(
            dimension_semantics=("parallel", "arbitrary")),
    )(xg, w, b)
    return out[:, 0, :]


# ---------------------------------------------------------------------------
# Plain-JAX glue: knn_graph, point-pair features, parameter init
# ---------------------------------------------------------------------------
def knn_graph_dense(pos, batch, k):
    """knn_graph(pos, k, batch, loop=True) as a dense [N, k] neighbour table."""
    # TODO(synk): O(N^2) dense distances; replace with a tiled Pallas kNN for
    # point clouds beyond a few thousand points.
    d2 = jnp.sum((pos[:, None, :] - pos[None, :, :]) ** 2, axis=-1)   # [N, N]
    same = batch[:, None] == batch[None, :]
    d2 = jnp.where(same, d2, jnp.inf)
    _, idx = jax.lax.top_k(-d2, k)                                    # k smallest
    return idx                                                        # [N, k]


def point_pair_features(pos, normal, nbr):
    """torch_geometric.nn.conv.ppf_conv.point_pair_features, dense [N, K, 4]."""
    pos_i = pos[:, None, :]                    # center   (N, 1, 3)
    pos_j = pos[nbr]                           # neighbor (N, K, 3)
    n_i = jnp.broadcast_to(normal[:, None, :], pos_j.shape)
    n_j = normal[nbr]
    d = pos_j - pos_i                          # pseudo = pos_j - pos_i

    def get_angle(v1, v2):
        cross = jnp.cross(v1, v2)
        return jnp.arctan2(jnp.linalg.norm(cross, axis=-1),
                           jnp.sum(v1 * v2, axis=-1))

    return jnp.stack(
        [jnp.linalg.norm(d, axis=-1),
         get_angle(n_i, d),
         get_angle(n_j, d),
         get_angle(n_i, n_j)],
        axis=-1,
    ).astype(jnp.float32)                      # (N, K, 4)


def linear_params(key, fan_in, fan_out):
    kw, kb = jax.random.split(key)
    bound = 1.0 / jnp.sqrt(jnp.float32(fan_in))
    w = jax.random.uniform(kw, (fan_in, fan_out), jnp.float32, -bound, bound)
    b = jax.random.uniform(kb, (1, fan_out), jnp.float32, -bound, bound)
    return w, b


def init_params(key):
    ks = jax.random.split(key, 5)
    # TODO(synk): torch_geometric.nn.MLP applies BatchNorm between layers by
    # default; omitted here (plain Linear -> ReLU -> Linear).
    mlp1 = (*linear_params(ks[0], IN_DIM, 16), *linear_params(ks[1], 16, H2))
    mlp2 = (*linear_params(ks[2], H2 + IN_DIM, H3), *linear_params(ks[3], H3, H4))
    cls = linear_params(ks[4], H4, NUM_CLASSES)
    return {"mlp1": mlp1, "mlp2": mlp2, "cls": cls}


# ---------------------------------------------------------------------------
# Forward pass (mirrors RotaInvNet.forward)
# ---------------------------------------------------------------------------
def rota_inv_net_forward(params, pos, normal, batch, num_graphs):
    n = pos.shape[0]

    nbr = knn_graph_dense(pos, batch, K_NN)               # (N, 10)
    # Pad the neighbour axis 10 -> 16 by duplicating the nearest neighbour
    # (self, since loop=True).  'max' aggregation is unchanged by duplicates.
    nbr = jnp.concatenate(
        [nbr, jnp.broadcast_to(nbr[:, :1], (n, K_PAD - K_NN))], axis=1)
    ppf = point_pair_features(pos, normal, nbr)           # (N, 16, 4) f32

    # Pad node axis to a tile-friendly size; padded rows are sliced off below.
    n_pad = _round_up(n, 8)
    tile_n = _pick_tile(n_pad)
    if n_pad != n:
        ppf = jnp.pad(ppf, ((0, n_pad - n), (0, 0), (0, 0)))
        nbr = jnp.pad(nbr, ((0, n_pad - n), (0, 0)))

    ppf_bf = ppf.astype(jnp.bfloat16)

    # conv1: x=None -> messages are the raw PPF features
    w1, b1, w2, b2 = params["mlp1"]
    x = ppf_conv1(ppf_bf, w1.astype(jnp.bfloat16), b1,
                  w2.astype(jnp.bfloat16), b2, tile_n)    # (n_pad, H2) f32
    x = jnp.maximum(x, 0.0)                               # torch.relu

    # conv2: messages = concat(x_j, PPF); the concat is folded into the kernel
    # by splitting the first mlp2 weight into W1x / W1p.
    # TODO(synk): the x[nbr] gather is still an XLA gather; it could be folded
    # into the conv2 kernel via scalar-prefetched neighbour indices.
    w1_2, b1_2, w2_2, b2_2 = params["mlp2"]
    xj = x.astype(jnp.bfloat16)[nbr]                      # (n_pad, 16, H2)
    x = ppf_conv2(xj, ppf_bf,
                  w1_2[:H2].astype(jnp.bfloat16),
                  w1_2[H2:].astype(jnp.bfloat16), b1_2,
                  w2_2.astype(jnp.bfloat16), b2_2, tile_n)  # (n_pad, H4) f32
    x = jnp.maximum(x, 0.0)[:n]                           # torch.relu, un-pad

    # global_max_pool + classifier
    w_cls, b_cls = params["cls"]
    return pool_and_classify(x, w_cls, b_cls, num_graphs)   # (B, num_classes)


# ---------------------------------------------------------------------------
if __name__ == "__main__":
    key = jax.random.PRNGKey(0)
    k_pos, k_nrm, k_par = jax.random.split(key, 3)

    B, NPG = 2, 64                 # 2 point clouds, 64 points each
    N = B * NPG
    pos = jax.random.normal(k_pos, (N, 3), jnp.float32)
    normal = jax.random.normal(k_nrm, (N, 3), jnp.float32)
    normal = normal / jnp.linalg.norm(normal, axis=-1, keepdims=True)
    batch = jnp.repeat(jnp.arange(B, dtype=jnp.int32), NPG)

    params = init_params(k_par)
    fwd = jax.jit(rota_inv_net_forward, static_argnames=("num_graphs",))
    out = fwd(params, pos, normal, batch, num_graphs=B)
    out = jax.block_until_ready(out)
    assert out.shape == (B, NUM_CLASSES) and out.dtype == jnp.float32
    print("KERNEL_OK")
</pallas_src>

<mosaic_0001>
module attributes {stable_mosaic.version = 11 : i64} {
  func.func @ppf_conv1_kernel(%arg0: i32, %arg1: memref<64x16x4xbf16, #tpu.memory_space<vmem>>, %arg2: memref<4x16xbf16, #tpu.memory_space<vmem>>, %arg3: memref<1x16xf32, #tpu.memory_space<vmem>>, %arg4: memref<16x32xbf16, #tpu.memory_space<vmem>>, %arg5: memref<1x32xf32, #tpu.memory_space<vmem>>, %arg6: memref<64x32xf32, #tpu.memory_space<vmem>>) attributes {dimension_semantics = [#tpu.dimension_semantics<parallel>], iteration_bounds = array<i64: 2>, scalar_prefetch = 0 : i64, scratch_operands = 0 : i64, tpu.core_type = #tpu.core_type<tc>, window_params = [{transform_indices = @transform_0, window_bounds = array<i64: 64, 16, 4>}, {pipeline_mode = #tpu.pipeline_mode<synchronous>, transform_indices = @transform_1, window_bounds = array<i64: 4, 16>}, {pipeline_mode = #tpu.pipeline_mode<synchronous>, transform_indices = @transform_2, window_bounds = array<i64: 1, 16>}, {pipeline_mode = #tpu.pipeline_mode<synchronous>, transform_indices = @transform_3, window_bounds = array<i64: 16, 32>}, {pipeline_mode = #tpu.pipeline_mode<synchronous>, transform_indices = @transform_4, window_bounds = array<i64: 1, 32>}, {transform_indices = @transform_5, window_bounds = array<i64: 64, 32>}]} {
    %c0 = arith.constant 0 : index
    %c0_0 = arith.constant 0 : index
    %c0_1 = arith.constant 0 : index
    %0 = vector.load %arg1[%c0, %c0_0, %c0_1] : memref<64x16x4xbf16, #tpu.memory_space<vmem>>, vector<64x16x4xbf16>
    %1 = vector.shape_cast %0 : vector<64x16x4xbf16> to vector<1024x4xbf16>
    %c0_2 = arith.constant 0 : index
    %c0_3 = arith.constant 0 : index
    %2 = vector.load %arg2[%c0_2, %c0_3] : memref<4x16xbf16, #tpu.memory_space<vmem>>, vector<4x16xbf16>
    %cst = arith.constant dense<0.000000e+00> : vector<1024x16xf32>
    %3 = tpu.matmul %1, %2, %cst {dimension_numbers = #tpu.dot_dimension_numbers<[1], [0], [0], [1], [0, 0, 1, 1], [], []>} : vector<1024x4xbf16>, vector<4x16xbf16>, vector<1024x16xf32> -> vector<1024x16xf32>
    %c0_4 = arith.constant 0 : index
    %c0_5 = arith.constant 0 : index
    %4 = vector.load %arg3[%c0_4, %c0_5] : memref<1x16xf32, #tpu.memory_space<vmem>>, vector<1x16xf32>
    %5 = vector.broadcast %4 : vector<1x16xf32> to vector<1024x16xf32>
    %6 = arith.addf %3, %5 : vector<1024x16xf32>
    %cst_6 = arith.constant 0.000000e+00 : f32
    %7 = vector.broadcast %cst_6 : f32 to vector<1024x16xf32>
    %8 = arith.maximumf %6, %7 : vector<1024x16xf32>
    %9 = arith.truncf %8 : vector<1024x16xf32> to vector<1024x16xbf16>
    %c0_7 = arith.constant 0 : index
    %c0_8 = arith.constant 0 : index
    %10 = vector.load %arg4[%c0_7, %c0_8] : memref<16x32xbf16, #tpu.memory_space<vmem>>, vector<16x32xbf16>
    %cst_9 = arith.constant dense<0.000000e+00> : vector<1024x32xf32>
    %11 = tpu.matmul %9, %10, %cst_9 {dimension_numbers = #tpu.dot_dimension_numbers<[1], [0], [0], [1], [0, 0, 1, 1], [], []>} : vector<1024x16xbf16>, vector<16x32xbf16>, vector<1024x32xf32> -> vector<1024x32xf32>
    %c0_10 = arith.constant 0 : index
    %c0_11 = arith.constant 0 : index
    %12 = vector.load %arg5[%c0_10, %c0_11] : memref<1x32xf32, #tpu.memory_space<vmem>>, vector<1x32xf32>
    %13 = vector.broadcast %12 : vector<1x32xf32> to vector<1024x32xf32>
    %14 = arith.addf %11, %13 : vector<1024x32xf32>
    %15 = vector.shape_cast %14 : vector<1024x32xf32> to vector<64x16x32xf32>
    %cst_12 = arith.constant dense<0xFF800000> : vector<64x32xf32>
    %16 = vector.multi_reduction <maximumf>, %15, %cst_12 [1] : vector<64x16x32xf32> to vector<64x32xf32>
    %c0_13 = arith.constant 0 : index
    %c0_14 = arith.constant 0 : index
    %17 = vector.load %arg6[%c0_13, %c0_14] : memref<64x32xf32, #tpu.memory_space<vmem>>, vector<64x32xf32>
    tpu.vector_store %arg6[%c0_13, %c0_14], %16 {strides = array<i32>} : memref<64x32xf32, #tpu.memory_space<vmem>>, vector<64x32xf32>,
    return
  }
  func.func @transform_0(%arg0: i32) -> (i32, i32, i32) {
    %c0_i32 = arith.constant 0 : i32
    %c0_i32_0 = arith.constant 0 : i32
    %c0_i32_1 = arith.constant 0 : i32
    return %arg0, %c0_i32, %c0_i32_0 : i32, i32, i32
  }
  func.func @transform_1(%arg0: i32) -> (i32, i32) {
    %c0_i32 = arith.constant 0 : i32
    %c0_i32_0 = arith.constant 0 : i32
    %c0_i32_1 = arith.constant 0 : i32
    return %c0_i32, %c0_i32_0 : i32, i32
  }
  func.func @transform_2(%arg0: i32) -> (i32, i32) {
    %c0_i32 = arith.constant 0 : i32
    %c0_i32_0 = arith.constant 0 : i32
    %c0_i32_1 = arith.constant 0 : i32
    return %c0_i32, %c0_i32_0 : i32, i32
  }
  func.func @transform_3(%arg0: i32) -> (i32, i32) {
    %c0_i32 = arith.constant 0 : i32
    %c0_i32_0 = arith.constant 0 : i32
    %c0_i32_1 = arith.constant 0 : i32
    return %c0_i32, %c0_i32_0 : i32, i32
  }
  func.func @transform_4(%arg0: i32) -> (i32, i32) {
    %c0_i32 = arith.constant 0 : i32
    %c0_i32_0 = arith.constant 0 : i32
    %c0_i32_1 = arith.constant 0 : i32
    return %c0_i32, %c0_i32_0 : i32, i32
  }
  func.func @transform_5(%arg0: i32) -> (i32, i32) {
    %c0_i32 = arith.constant 0 : i32
    %c0_i32_0 = arith.constant 0 : i32
    return %arg0, %c0_i32 : i32, i32
  }
}

module attributes {stable_mosaic.version = 11 : i64} {
  func.func @ppf_conv2_kernel(%arg0: i32, %arg1: memref<64x16x32xbf16, #tpu.memory_space<vmem>>, %arg2: memref<64x16x4xbf16, #tpu.memory_space<vmem>>, %arg3: memref<32x64xbf16, #tpu.memory_space<vmem>>, %arg4: memref<4x64xbf16, #tpu.memory_space<vmem>>, %arg5: memref<1x64xf32, #tpu.memory_space<vmem>>, %arg6: memref<64x128xbf16, #tpu.memory_space<vmem>>, %arg7: memref<1x128xf32, #tpu.memory_space<vmem>>, %arg8: memref<64x128xf32, #tpu.memory_space<vmem>>) attributes {dimension_semantics = [#tpu.dimension_semantics<parallel>], iteration_bounds = array<i64: 2>, scalar_prefetch = 0 : i64, scratch_operands = 0 : i64, tpu.core_type = #tpu.core_type<tc>, window_params = [{transform_indices = @transform_0, window_bounds = array<i64: 64, 16, 32>}, {transform_indices = @transform_1, window_bounds = array<i64: 64, 16, 4>}, {pipeline_mode = #tpu.pipeline_mode<synchronous>, transform_indices = @transform_2, window_bounds = array<i64: 32, 64>}, {pipeline_mode = #tpu.pipeline_mode<synchronous>, transform_indices = @transform_3, window_bounds = array<i64: 4, 64>}, {pipeline_mode = #tpu.pipeline_mode<synchronous>, transform_indices = @transform_4, window_bounds = array<i64: 1, 64>}, {pipeline_mode = #tpu.pipeline_mode<synchronous>, transform_indices = @transform_5, window_bounds = array<i64: 64, 128>}, {pipeline_mode = #tpu.pipeline_mode<synchronous>, transform_indices = @transform_6, window_bounds = array<i64: 1, 128>}, {transform_indices = @transform_7, window_bounds = array<i64: 64, 128>}]} {
    %c0 = arith.constant 0 : index
    %c0_0 = arith.constant 0 : index
    %c0_1 = arith.constant 0 : index
    %0 = vector.load %arg1[%c0, %c0_0, %c0_1] : memref<64x16x32xbf16, #tpu.memory_space<vmem>>, vector<64x16x32xbf16>
    %1 = vector.shape_cast %0 : vector<64x16x32xbf16> to vector<1024x32xbf16>
    %c0_2 = arith.constant 0 : index
    %c0_3 = arith.constant 0 : index
    %c0_4 = arith.constant 0 : index
    %2 = vector.load %arg2[%c0_2, %c0_3, %c0_4] : memref<64x16x4xbf16, #tpu.memory_space<vmem>>, vector<64x16x4xbf16>
    %3 = vector.shape_cast %2 : vector<64x16x4xbf16> to vector<1024x4xbf16>
    %c0_5 = arith.constant 0 : index
    %c0_6 = arith.constant 0 : index
    %4 = vector.load %arg3[%c0_5, %c0_6] : memref<32x64xbf16, #tpu.memory_space<vmem>>, vector<32x64xbf16>
    %cst = arith.constant dense<0.000000e+00> : vector<1024x64xf32>
    %5 = tpu.matmul %1, %4, %cst {dimension_numbers = #tpu.dot_dimension_numbers<[1], [0], [0], [1], [0, 0, 1, 1], [], []>} : vector<1024x32xbf16>, vector<32x64xbf16>, vector<1024x64xf32> -> vector<1024x64xf32>
    %c0_7 = arith.constant 0 : index
    %c0_8 = arith.constant 0 : index
    %6 = vector.load %arg4[%c0_7, %c0_8] : memref<4x64xbf16, #tpu.memory_space<vmem>>, vector<4x64xbf16>
    %cst_9 = arith.constant dense<0.000000e+00> : vector<1024x64xf32>
    %7 = tpu.matmul %3, %6, %cst_9 {dimension_numbers = #tpu.dot_dimension_numbers<[1], [0], [0], [1], [0, 0, 1, 1], [], []>} : vector<1024x4xbf16>, vector<4x64xbf16>, vector<1024x64xf32> -> vector<1024x64xf32>
    %8 = arith.addf %5, %7 : vector<1024x64xf32>
    %c0_10 = arith.constant 0 : index
    %c0_11 = arith.constant 0 : index
    %9 = vector.load %arg5[%c0_10, %c0_11] : memref<1x64xf32, #tpu.memory_space<vmem>>, vector<1x64xf32>
    %10 = vector.broadcast %9 : vector<1x64xf32> to vector<1024x64xf32>
    %11 = arith.addf %8, %10 : vector<1024x64xf32>
    %cst_12 = arith.constant 0.000000e+00 : f32
    %12 = vector.broadcast %cst_12 : f32 to vector<1024x64xf32>
    %13 = arith.maximumf %11, %12 : vector<1024x64xf32>
    %14 = arith.truncf %13 : vector<1024x64xf32> to vector<1024x64xbf16>
    %c0_13 = arith.constant 0 : index
    %c0_14 = arith.constant 0 : index
    %15 = vector.load %arg6[%c0_13, %c0_14] : memref<64x128xbf16, #tpu.memory_space<vmem>>, vector<64x128xbf16>
    %cst_15 = arith.constant dense<0.000000e+00> : vector<1024x128xf32>
    %16 = tpu.matmul %14, %15, %cst_15 {dimension_numbers = #tpu.dot_dimension_numbers<[1], [0], [0], [1], [0, 0, 1, 1], [], []>} : vector<1024x64xbf16>, vector<64x128xbf16>, vector<1024x128xf32> -> vector<1024x128xf32>
    %c0_16 = arith.constant 0 : index
    %c0_17 = arith.constant 0 : index
    %17 = vector.load %arg7[%c0_16, %c0_17] : memref<1x128xf32, #tpu.memory_space<vmem>>, vector<1x128xf32>
    %18 = vector.broadcast %17 : vector<1x128xf32> to vector<1024x128xf32>
    %19 = arith.addf %16, %18 : vector<1024x128xf32>
    %20 = vector.shape_cast %19 : vector<1024x128xf32> to vector<64x16x128xf32>
    %cst_18 = arith.constant dense<0xFF800000> : vector<64x128xf32>
    %21 = vector.multi_reduction <maximumf>, %20, %cst_18 [1] : vector<64x16x128xf32> to vector<64x128xf32>
    %c0_19 = arith.constant 0 : index
    %c0_20 = arith.constant 0 : index
    %22 = vector.load %arg8[%c0_19, %c0_20] : memref<64x128xf32, #tpu.memory_space<vmem>>, vector<64x128xf32>
    tpu.vector_store %arg8[%c0_19, %c0_20], %21 {strides = array<i32>} : memref<64x128xf32, #tpu.memory_space<vmem>>, vector<64x128xf32>,
    return
  }
  func.func @transform_0(%arg0: i32) -> (i32, i32, i32) {
    %c0_i32 = arith.constant 0 : i32
    %c0_i32_0 = arith.constant 0 : i32
    %c0_i32_1 = arith.constant 0 : i32
    return %arg0, %c0_i32, %c0_i32_0 : i32, i32, i32
  }
  func.func @transform_1(%arg0: i32) -> (i32, i32, i32) {
    %c0_i32 = arith.constant 0 : i32
    %c0_i32_0 = arith.constant 0 : i32
    %c0_i32_1 = arith.constant 0 : i32
    return %arg0, %c0_i32, %c0_i32_0 : i32, i32, i32
  }
  func.func @transform_2(%arg0: i32) -> (i32, i32) {
    %c0_i32 = arith.constant 0 : i32
    %c0_i32_0 = arith.constant 0 : i32
    %c0_i32_1 = arith.constant 0 : i32
    return %c0_i32, %c0_i32_0 : i32, i32
  }
  func.func @transform_3(%arg0: i32) -> (i32, i32) {
    %c0_i32 = arith.constant 0 : i32
    %c0_i32_0 = arith.constant 0 : i32
    %c0_i32_1 = arith.constant 0 : i32
    return %c0_i32, %c0_i32_0 : i32, i32
  }
  func.func @transform_4(%arg0: i32) -> (i32, i32) {
    %c0_i32 = arith.constant 0 : i32
    %c0_i32_0 = arith.constant 0 : i32
    %c0_i32_1 = arith.constant 0 : i32
    return %c0_i32, %c0_i32_0 : i32, i32
  }
  func.func @transform_5(%arg0: i32) -> (i32, i32) {
    %c0_i32 = arith.constant 0 : i32
    %c0_i32_0 = arith.constant 0 : i32
    %c0_i32_1 = arith.constant 0 : i32
    return %c0_i32, %c0_i32_0 : i32, i32
  }
  func.func @transform_6(%arg0: i32) -> (i32, i32) {
    %c0_i32 = arith.constant 0 : i32
    %c0_i32_0 = arith.constant 0 : i32
    %c0_i32_1 = arith.constant 0 : i32
    return %c0_i32, %c0_i32_0 : i32, i32
  }
  func.func @transform_7(%arg0: i32) -> (i32, i32) {
    %c0_i32 = arith.constant 0 : i32
    %c0_i32_0 = arith.constant 0 : i32
    return %arg0, %c0_i32 : i32, i32
  }
}

module attributes {stable_mosaic.version = 11 : i64} {
  func.func @pool_classifier_kernel(%arg0: i32, %arg1: i32, %arg2: memref<1x32x128xf32, #tpu.memory_space<vmem>>, %arg3: memref<128x10xf32, #tpu.memory_space<vmem>>, %arg4: memref<1x10xf32, #tpu.memory_space<vmem>>, %arg5: memref<1x1x10xf32, #tpu.memory_space<vmem>>, %arg6: memref<1x128xf32, #tpu.memory_space<vmem>>) attributes {dimension_semantics = [#tpu.dimension_semantics<parallel>, #tpu.dimension_semantics<arbitrary>], iteration_bounds = array<i64: 2, 2>, scalar_prefetch = 0 : i64, scratch_operands = 1 : i64, tpu.core_type = #tpu.core_type<tc>, window_params = [{transform_indices = @transform_0, window_bounds = array<i64: 1, 32, 128>}, {pipeline_mode = #tpu.pipeline_mode<synchronous>, transform_indices = @transform_1, window_bounds = array<i64: 128, 10>}, {pipeline_mode = #tpu.pipeline_mode<synchronous>, transform_indices = @transform_2, window_bounds = array<i64: 1, 10>}, {transform_indices = @transform_3, window_bounds = array<i64: 1, 1, 10>}]} {
    %c0_i32 = arith.constant 0 : i32
    %0 = arith.cmpi eq, %arg1, %c0_i32 : i32
    %1 = arith.extui %0 : i1 to i32
    %c0_i32_0 = arith.constant 0 : i32
    %2 = arith.cmpi ne, %1, %c0_i32_0 : i32
    scf.if %2 {
      %cst_8 = arith.constant 0xFF800000 : f32
      %11 = vector.broadcast %cst_8 : f32 to vector<1x128xf32>
      %c0_9 = arith.constant 0 : index
      %c0_10 = arith.constant 0 : index
      %12 = vector.load %arg6[%c0_9, %c0_10] : memref<1x128xf32, #tpu.memory_space<vmem>>, vector<1x128xf32>
      tpu.vector_store %arg6[%c0_9, %c0_10], %11 {strides = array<i32>} : memref<1x128xf32, #tpu.memory_space<vmem>>, vector<1x128xf32>,
    } else {
    }
    %c0 = arith.constant 0 : index
    %c0_1 = arith.constant 0 : index
    %3 = vector.load %arg6[%c0, %c0_1] : memref<1x128xf32, #tpu.memory_space<vmem>>, vector<1x128xf32>
    %c0_2 = arith.constant 0 : index
    %c0_3 = arith.constant 0 : index
    %c0_4 = arith.constant 0 : index
    %4 = vector.load %arg2[%c0_2, %c0_3, %c0_4] : memref<1x32x128xf32, #tpu.memory_space<vmem>>, vector<1x32x128xf32>
    %cst = arith.constant dense<0xFF800000> : vector<1x128xf32>
    %5 = vector.multi_reduction <maximumf>, %4, %cst [1] : vector<1x32x128xf32> to vector<1x128xf32>
    %6 = arith.maximumf %3, %5 : vector<1x128xf32>
    %c0_5 = arith.constant 0 : index
    %c0_6 = arith.constant 0 : index
    %7 = vector.load %arg6[%c0_5, %c0_6] : memref<1x128xf32, #tpu.memory_space<vmem>>, vector<1x128xf32>
    tpu.vector_store %arg6[%c0_5, %c0_6], %6 {strides = array<i32>} : memref<1x128xf32, #tpu.memory_space<vmem>>, vector<1x128xf32>,
    %c1_i32 = arith.constant 1 : i32
    %8 = arith.cmpi eq, %arg1, %c1_i32 : i32
    %9 = arith.extui %8 : i1 to i32
    %c0_i32_7 = arith.constant 0 : i32
    %10 = arith.cmpi ne, %9, %c0_i32_7 : i32
    scf.if %10 {
      %c0_8 = arith.constant 0 : index
      %c0_9 = arith.constant 0 : index
      %11 = vector.load %arg6[%c0_8, %c0_9] : memref<1x128xf32, #tpu.memory_space<vmem>>, vector<1x128xf32>
      %c0_10 = arith.constant 0 : index
      %c0_11 = arith.constant 0 : index
      %12 = vector.load %arg3[%c0_10, %c0_11] : memref<128x10xf32, #tpu.memory_space<vmem>>, vector<128x10xf32>
      %cst_12 = arith.constant dense<0.000000e+00> : vector<1x10xf32>
      %13 = tpu.matmul %11, %12, %cst_12 {dimension_numbers = #tpu.dot_dimension_numbers<[1], [0], [0], [1], [0, 0, 1, 1], [], []>} : vector<1x128xf32>, vector<128x10xf32>, vector<1x10xf32> -> vector<1x10xf32>
      %c0_13 = arith.constant 0 : index
      %c0_14 = arith.constant 0 : index
      %14 = vector.load %arg4[%c0_13, %c0_14] : memref<1x10xf32, #tpu.memory_space<vmem>>, vector<1x10xf32>
      %15 = arith.addf %13, %14 : vector<1x10xf32>
      %16 = vector.shape_cast %15 : vector<1x10xf32> to vector<1x1x10xf32>
      %c0_15 = arith.constant 0 : index
      %c0_16 = arith.constant 0 : index
      %c0_17 = arith.constant 0 : index
      %17 = vector.load %arg5[%c0_15, %c0_16, %c0_17] : memref<1x1x10xf32, #tpu.memory_space<vmem>>, vector<1x1x10xf32>
      tpu.vector_store %arg5[%c0_15, %c0_16, %c0_17], %16 {strides = array<i32>} : memref<1x1x10xf32, #tpu.memory_space<vmem>>, vector<1x1x10xf32>,
    } else {
    }
    return
  }
  func.func @transform_0(%arg0: i32, %arg1: i32) -> (i32, i32, i32) {
    %c0_i32 = arith.constant 0 : i32
    %c0_i32_0 = arith.constant 0 : i32
    return %arg0, %arg1, %c0_i32 : i32, i32, i32
  }
  func.func @transform_1(%arg0: i32, %arg1: i32) -> (i32, i32) {
    %c0_i32 = arith.constant 0 : i32
    %c0_i32_0 = arith.constant 0 : i32
    %c0_i32_1 = arith.constant 0 : i32
    return %c0_i32, %c0_i32_0 : i32, i32
  }
  func.func @transform_2(%arg0: i32, %arg1: i32) -> (i32, i32) {
    %c0_i32 = arith.constant 0 : i32
    %c0_i32_0 = arith.constant 0 : i32
    %c0_i32_1 = arith.constant 0 : i32
    return %c0_i32, %c0_i32_0 : i32, i32
  }
  func.func @transform_3(%arg0: i32, %arg1: i32) -> (i32, i32, i32) {
    %c0_i32 = arith.constant 0 : i32
    %c0_i32_0 = arith.constant 0 : i32
    %c0_i32_1 = arith.constant 0 : i32
    return %arg0, %c0_i32, %c0_i32_0 : i32, i32, i32
  }
}

</mosaic_0001>

<llo_original>
// kernel: rota_inv_net_forward.3
$region0: #{rota_inv_net_forward.3}
  #allocation0 [shape = 'u32[]', space=smem, size = 0x4, offset = 0x4, fixed_abs, tag = 'smem constant byte address 0x4 - core index']
  #allocation1 [shape = 'u32[144,128]{1,0:T(1,128)}', space=vmem, size = 0x12000, scoped, tag = 'internal scratch']
  %s0 = inlined_call_operand.vmem [shape: bf16[128,16,4], index: 0, kind: input, shape index: {}]
  %s1 = inlined_call_operand.vmem [shape: bf16[4,16], index: 1, kind: input, shape index: {}]
  %s2 = inlined_call_operand.vmem [shape: f32[1,16], index: 2, kind: input, shape index: {}]
  %s3 = inlined_call_operand.vmem [shape: bf16[16,32], index: 3, kind: input, shape index: {}]
  %s4 = inlined_call_operand.vmem [shape: f32[1,32], index: 4, kind: input, shape index: {}]
  %s5 = inlined_call_operand.vmem [shape: f32[128,32], index: 5, kind: output, shape index: {}]
  %s6 = sld [smem:[#allocation0]]
  $region53: #{rota_inv_net_forward.3} parent=0
    _
  %s8 = ssub.s32 1, %s6
  %s9 = scalar_select 0, %s8, %s6
  loop: start=0, step=1, limit=4
  $region2: #{rota_inv_net_forward.3} parent=0 // loop_pre_header
    _
  $region3: #{rota_inv_net_forward.3} parent=0 // loop_header
    %s11 = sphi 0, %s15
    %p12 = scmp.ge.s32.totalorder %s11, 4
    %s21 = sphi 0, %s23
    %s24 = sphi 0, %s21
    %s25 = sphi 0, %s24
    %s41 = sphi 0, %s25
    %s45 = sphi 0, %s45
    %s47 = sphi 0, %s45
    %s48 = sphi 0, %s47
    %s62 = sphi 0, %s48
    %s66 = sphi 0, %s66
    %s68 = sphi 0, %s66
    %s69 = sphi 0, %s68
    %s83 = sphi 0, %s69
    %s87 = sphi 0, %s87
    %s89 = sphi 0, %s87
    %s90 = sphi 0, %s89
    %s104 = sphi 0, %s90
    %s108 = sphi 0, %s108
    %s110 = sphi 0, %s108
    %s111 = sphi 0, %s110
    %s125 = sphi 0, %s111
    %s131 = sphi 0, %s133
    %s134 = sphi 0, %s131
    %s135 = sphi 0, %s134
    %s151 = sphi 0, %s135
  $region4: #{rota_inv_net_forward.3} parent=0 // loop_header_branch
    %14 = sbr.rel (%p12) target = $region8
  $region5: #{rota_inv_net_forward.3} parent=0 // loop_body
    %s16 = ssub.s32 %s11, 1
    %s17 = ssub.s32 %s11, 2
    %s18 = sadd.s32 %s11, 1
    %s19 = ssub.s32 %s11, %s18
    %p20 = scmp.eq.s32.totalorder %s19, 0
    %s22 = sadd.s32 %s21, 1
    %s23 = scalar_select %p20, %s21, %s22
    %p26 = pneg %p20
    %p27 = scmp.eq.s32.totalorder %s11, 1
    %p28 = por %p26, %p27
    %p29 = scmp.ne.s32.totalorder %s21, %s24
    %p30 = scmp.eq.s32.totalorder %s11, 0
    %p31 = por %p29, %p30
    %p32 = scmp.ne.s32.totalorder %s21, %s24
    %p33 = scmp.eq.s32.totalorder %s16, 1
    %p34 = por %p32, %p33
    %p35 = scmp.ne.s32.totalorder %s24, %s25
    %p36 = scmp.eq.s32.totalorder %s16, 0
    %p37 = por %p35, %p36
    %p38 = scmp.ne.s32.totalorder %s24, %s25
    %p39 = scmp.eq.s32.totalorder %s17, 1
    %p40 = por %p38, %p39
    %p42 = scmp.ne.s32.totalorder %s25, %s41
    %p43 = scmp.eq.s32.totalorder %s17, 0
    %p44 = por %p42, %p43
    %s46 = sadd.s32 %s45, 1
    %p49 = scmp.eq.s32.totalorder %s11, 1
    %p50 = scmp.ne.s32.totalorder %s45, %s47
    %p51 = scmp.eq.s32.totalorder %s11, 0
    %p52 = por %p50, %p51
    %p53 = scmp.ne.s32.totalorder %s45, %s47
    %p54 = scmp.eq.s32.totalorder %s16, 1
    %p55 = por %p53, %p54
    %p56 = scmp.ne.s32.totalorder %s47, %s48
    %p57 = scmp.eq.s32.totalorder %s16, 0
    %p58 = por %p56, %p57
    %p59 = scmp.ne.s32.totalorder %s47, %s48
    %p60 = scmp.eq.s32.totalorder %s17, 1
    %p61 = por %p59, %p60
    %p63 = scmp.ne.s32.totalorder %s48, %s62
    %p64 = scmp.eq.s32.totalorder %s17, 0
    %p65 = por %p63, %p64
    %s67 = sadd.s32 %s66, 1
    %p70 = scmp.eq.s32.totalorder %s11, 1
    %p71 = scmp.ne.s32.totalorder %s66, %s68
    %p72 = scmp.eq.s32.totalorder %s11, 0
    %p73 = por %p71, %p72
    %p74 = scmp.ne.s32.totalorder %s66, %s68
    %p75 = scmp.eq.s32.totalorder %s16, 1
    %p76 = por %p74, %p75
    %p77 = scmp.ne.s32.totalorder %s68, %s69
    %p78 = scmp.eq.s32.totalorder %s16, 0
    %p79 = por %p77, %p78
    %p80 = scmp.ne.s32.totalorder %s68, %s69
    %p81 = scmp.eq.s32.totalorder %s17, 1
    %p82 = por %p80, %p81
    %p84 = scmp.ne.s32.totalorder %s69, %s83
    %p85 = scmp.eq.s32.totalorder %s17, 0
    %p86 = por %p84, %p85
    %s88 = sadd.s32 %s87, 1
    %p91 = scmp.eq.s32.totalorder %s11, 1
    %p92 = scmp.ne.s32.totalorder %s87, %s89
    %p93 = scmp.eq.s32.totalorder %s11, 0
    %p94 = por %p92, %p93
    %p95 = scmp.ne.s32.totalorder %s87, %s89
    %p96 = scmp.eq.s32.totalorder %s16, 1
    %p97 = por %p95, %p96
    %p98 = scmp.ne.s32.totalorder %s89, %s90
    %p99 = scmp.eq.s32.totalorder %s16, 0
    %p100 = por %p98, %p99
    %p101 = scmp.ne.s32.totalorder %s89, %s90
    %p102 = scmp.eq.s32.totalorder %s17, 1
    %p103 = por %p101, %p102
    %p105 = scmp.ne.s32.totalorder %s90, %s104
    %p106 = scmp.eq.s32.totalorder %s17, 0
    %p107 = por %p105, %p106
    %s109 = sadd.s32 %s108, 1
    %p112 = scmp.eq.s32.totalorder %s11, 1
    %p113 = scmp.ne.s32.totalorder %s108, %s110
    %p114 = scmp.eq.s32.totalorder %s11, 0
    %p115 = por %p113, %p114
    %p116 = scmp.ne.s32.totalorder %s108, %s110
    %p117 = scmp.eq.s32.totalorder %s16, 1
    %p118 = por %p116, %p117
    %p119 = scmp.ne.s32.totalorder %s110, %s111
    %p120 = scmp.eq.s32.totalorder %s16, 0
    %p121 = por %p119, %p120
    %p122 = scmp.ne.s32.totalorder %s110, %s111
    %p123 = scmp.eq.s32.totalorder %s17, 1
    %p124 = por %p122, %p123
    %p126 = scmp.ne.s32.totalorder %s111, %s125
    %p127 = scmp.eq.s32.totalorder %s17, 0
    %p128 = por %p126, %p127
    %s129 = ssub.s32 %s11, %s18
    %p130 = scmp.eq.s32.totalorder %s129, 0
    %s132 = sadd.s32 %s131, 1
    %s133 = scalar_select %p130, %s131, %s132
    %p136 = pneg %p130
    %p137 = scmp.eq.s32.totalorder %s11, 1
    %p138 = por %p136, %p137
    %p139 = scmp.ne.s32.totalorder %s131, %s134
    %p140 = scmp.eq.s32.totalorder %s11, 0
    %p141 = por %p139, %p140
    %p142 = scmp.ne.s32.totalorder %s131, %s134
    %p143 = scmp.eq.s32.totalorder %s16, 1
    %p144 = por %p142, %p143
    %p145 = scmp.ne.s32.totalorder %s134, %s135
    %p146 = scmp.eq.s32.totalorder %s16, 0
    %p147 = por %p145, %p146
    %p148 = scmp.ne.s32.totalorder %s134, %s135
    %p149 = scmp.eq.s32.totalorder %s17, 1
    %p150 = por %p148, %p149
    %p152 = scmp.ne.s32.totalorder %s135, %s151
    %p153 = scmp.eq.s32.totalorder %s17, 0
    %p154 = por %p152, %p153
    %p155 = scmp.le.s32.totalorder 1, %s11
    %p156 = scmp.lt.s32.totalorder %s11, 3
    %p157 = pnand %p155, %p156
    %p158 = pneg %p157
    // Predicated region
    $region9: #{rota_inv_net_forward.3} parent=5 // pred_check
      _
    $region10: #{rota_inv_net_forward.3} parent=5 // pred_check_branch
      %160 = sbr.rel (%p157) target = $region12
    $region11: #{rota_inv_net_forward.3} parent=5 // pred_region
      %s161 = ssub.s32 %s11, 1
      // Predicated region
      $region13: #{rota_inv_net_forward.3} parent=11 // pred_check
        %p162 = pneg %p58
      $region14: #{rota_inv_net_forward.3} parent=11 // pred_check_branch
        %164 = sbr.rel (%p162) target = $region16
      $region15: #{rota_inv_net_forward.3} parent=11 // pred_region
        _
      $region16: #{rota_inv_net_forward.3} parent=11 // pred_fallthru
        _
      // Predicated region
      $region17: #{rota_inv_net_forward.3} parent=11 // pred_check
        %p165 = pneg %p79
      $region18: #{rota_inv_net_forward.3} parent=11 // pred_check_branch
        %167 = sbr.rel (%p165) target = $region20
      $region19: #{rota_inv_net_forward.3} parent=11 // pred_region
        _
      $region20: #{rota_inv_net_forward.3} parent=11 // pred_fallthru
        _
      // Predicated region
      $region21: #{rota_inv_net_forward.3} parent=11 // pred_check
        %p168 = pneg %p100
      $region22: #{rota_inv_net_forward.3} parent=11 // pred_check_branch
        %170 = sbr.rel (%p168) target = $region24
      $region23: #{rota_inv_net_forward.3} parent=11 // pred_region
        _
      $region24: #{rota_inv_net_forward.3} parent=11 // pred_fallthru
        _
      // Predicated region
      $region25: #{rota_inv_net_forward.3} parent=11 // pred_check
        %p171 = pneg %p121
      $region26: #{rota_inv_net_forward.3} parent=11 // pred_check_branch
        %173 = sbr.rel (%p171) target = $region28
      $region27: #{rota_inv_net_forward.3} parent=11 // pred_region
        _
      $region28: #{rota_inv_net_forward.3} parent=11 // pred_fallthru
        _
    $region12: #{rota_inv_net_forward.3} parent=5 // pred_fallthru
      _
    %p174 = scmp.lt.s32.totalorder %s11, 2
    // Predicated region
    $region29: #{rota_inv_net_forward.3} parent=5 // pred_check
      %p175 = pneg %p174
    $region30: #{rota_inv_net_forward.3} parent=5 // pred_check_branch
      %177 = sbr.rel (%p175) target = $region32
    $region31: #{rota_inv_net_forward.3} parent=5 // pred_region
      // Predicated region
      $region33: #{rota_inv_net_forward.3} parent=31 // pred_check
        %p178 = pneg %p31
      $region34: #{rota_inv_net_forward.3} parent=31 // pred_check_branch
        %180 = sbr.rel (%p178) target = $region36
      $region35: #{rota_inv_net_forward.3} parent=31 // pred_region
        %s181 = smul.u32 64, %s11
        %p182 = scmp.lt.s32.totalorder %s181, 127
        %s183 = scalar_select %p182, %s181, 127
        %s184 = smul.addr %s183, 2
        %s185 = smul.addr %s184, 4
        %s186 = scalar_lea.vmem %s0, %s185
        %s187 = smul.u32 64, %s11
      $region36: #{rota_inv_net_forward.3} parent=31 // pred_fallthru
        _
    $region32: #{rota_inv_net_forward.3} parent=5 // pred_fallthru
      _
    %p188 = scmp.le.s32.totalorder 1, %s11
    %p189 = scmp.lt.s32.totalorder %s11, 3
    %p190 = pnand %p188, %p189
    %p191 = pneg %p190
    // Predicated region
    $region37: #{rota_inv_net_forward.3} parent=5 // pred_check
      _
    $region38: #{rota_inv_net_forward.3} parent=5 // pred_check_branch
      %193 = sbr.rel (%p190) target = $region40
    $region39: #{rota_inv_net_forward.3} parent=5 // pred_region
      %s194 = ssub.s32 %s11, 1
      %s195 = smul.u32 64, %s16
      %p196 = scmp.lt.s32.totalorder %s195, 127
      %s197 = scalar_select %p196, %s195, 127
      %s198 = smul.addr %s197, 2
      %s199 = smul.addr %s198, 4
      %s200 = scalar_lea.vmem %s0, %s199
      %p201 = pneg %p37
      %p202 = pneg %p34
      %p203 = pneg %p58
      %p204 = pneg %p55
      %p205 = pneg %p79
      %p206 = pneg %p76
      %p207 = pneg %p100
      %p208 = pneg %p97
      %p209 = pneg %p121
      %p210 = pneg %p118
      %p211 = pneg %p147
      %p212 = pneg %p144
      %s213 = smul.u32 8, %s16
      %p214 = scmp.lt.s32.totalorder %s213, 15
      %s215 = scalar_select %p214, %s213, 15
      %s216 = smul.addr %s215, 8
      %s217 = scalar_lea.vmem %s5, %s216
      %s218 = smul.u32 64, %s16
      %p219 = scmp.lt.s32.totalorder %s218, 127
      %s220 = scalar_select %p219, %s218, 127
      %s221 = smul.addr %s220, 2
      %s222 = smul.addr %s221, 4
      %s223 = scalar_lea.vmem %s0, %s222
      %s224 = smul.u32 64, %s16
      %s225 = smul.u32 8, %s16
      %p226 = scmp.lt.s32.totalorder %s225, 15
      %s227 = scalar_select %p226, %s225, 15
      %s228 = smul.addr %s227, 8
      %s229 = scalar_lea.vmem %s5, %s228
      %s230 = smul.u32 8, %s16
      %v232 = vld [vmem:[%s223] sm:$0xf]
      %v233 = vld [vmem:[%s223 + $0x4] sm:$0xf]
      %v234 = vld [vmem:[%s223 + $0x8] sm:$0xf]
      %v235 = vld [vmem:[%s223 + $0xc] sm:$0xf]
      %v236 = vld [vmem:[%s223 + $0x10] sm:$0xf]
      %v237 = vld [vmem:[%s223 + $0x14] sm:$0xf]
      %v238 = vld [vmem:[%s223 + $0x18] sm:$0xf]
      %v239 = vld [vmem:[%s223 + $0x1c] sm:$0xf]
      %v240 = vld [vmem:[%s223 + $0x20] sm:$0xf]
      %v241 = vld [vmem:[%s223 + $0x24] sm:$0xf]
      %v242 = vld [vmem:[%s223 + $0x28] sm:$0xf]
      %v243 = vld [vmem:[%s223 + $0x2c] sm:$0xf]
      %v244 = vld [vmem:[%s223 + $0x30] sm:$0xf]
      %v245 = vld [vmem:[%s223 + $0x34] sm:$0xf]
      %v246 = vld [vmem:[%s223 + $0x38] sm:$0xf]
      %v247 = vld [vmem:[%s223 + $0x3c] sm:$0xf]
      %v248 = vld [vmem:[%s223 + $0x40] sm:$0xf]
      %v249 = vld [vmem:[%s223 + $0x44] sm:$0xf]
      %v250 = vld [vmem:[%s223 + $0x48] sm:$0xf]
      %v251 = vld [vmem:[%s223 + $0x4c] sm:$0xf]
      %v252 = vld [vmem:[%s223 + $0x50] sm:$0xf]
      %v253 = vld [vmem:[%s223 + $0x54] sm:$0xf]
      %v254 = vld [vmem:[%s223 + $0x58] sm:$0xf]
      %v255 = vld [vmem:[%s223 + $0x5c] sm:$0xf]
      %v256 = vld [vmem:[%s223 + $0x60] sm:$0xf]
      %v257 = vld [vmem:[%s223 + $0x64] sm:$0xf]
      %v258 = vld [vmem:[%s223 + $0x68] sm:$0xf]
      %v259 = vld [vmem:[%s223 + $0x6c] sm:$0xf]
      %v260 = vld [vmem:[%s223 + $0x70] sm:$0xf]
      %v261 = vld [vmem:[%s223 + $0x74] sm:$0xf]
      %v262 = vld [vmem:[%s223 + $0x78] sm:$0xf]
      %v263 = vld [vmem:[%s223 + $0x7c] sm:$0xf]
      %v264 = vld [vmem:[%s223 + $0x80] sm:$0xf]
      %v265 = vld [vmem:[%s223 + $0x84] sm:$0xf]
      %v266 = vld [vmem:[%s223 + $0x88] sm:$0xf]
      %v267 = vld [vmem:[%s223 + $0x8c] sm:$0xf]
      %v268 = vld [vmem:[%s223 + $0x90] sm:$0xf]
      %v269 = vld [vmem:[%s223 + $0x94] sm:$0xf]
      %v270 = vld [vmem:[%s223 + $0x98] sm:$0xf]
      %v271 = vld [vmem:[%s223 + $0x9c] sm:$0xf]
      %v272 = vld [vmem:[%s223 + $0xa0] sm:$0xf]
      %v273 = vld [vmem:[%s223 + $0xa4] sm:$0xf]
      %v274 = vld [vmem:[%s223 + $0xa8] sm:$0xf]
      %v275 = vld [vmem:[%s223 + $0xac] sm:$0xf]
      %v276 = vld [vmem:[%s223 + $0xb0] sm:$0xf]
      %v277 = vld [vmem:[%s223 + $0xb4] sm:$0xf]
      %v278 = vld [vmem:[%s223 + $0xb8] sm:$0xf]
      %v279 = vld [vmem:[%s223 + $0xbc] sm:$0xf]
      %v280 = vld [vmem:[%s223 + $0xc0] sm:$0xf]
      %v281 = vld [vmem:[%s223 + $0xc4] sm:$0xf]
      %v282 = vld [vmem:[%s223 + $0xc8] sm:$0xf]
      %v283 = vld [vmem:[%s223 + $0xcc] sm:$0xf]
      %v284 = vld [vmem:[%s223 + $0xd0] sm:$0xf]
      %v285 = vld [vmem:[%s223 + $0xd4] sm:$0xf]
      %v286 = vld [vmem:[%s223 + $0xd8] sm:$0xf]
      %v287 = vld [vmem:[%s223 + $0xdc] sm:$0xf]
      %v288 = vld [vmem:[%s223 + $0xe0] sm:$0xf]
      %v289 = vld [vmem:[%s223 + $0xe4] sm:$0xf]
      %v290 = vld [vmem:[%s223 + $0xe8] sm:$0xf]
      %v291 = vld [vmem:[%s223 + $0xec] sm:$0xf]
      %v292 = vld [vmem:[%s223 + $0xf0] sm:$0xf]
      %v293 = vld [vmem:[%s223 + $0xf4] sm:$0xf]
      %v294 = vld [vmem:[%s223 + $0xf8] sm:$0xf]
      %v295 = vld [vmem:[%s223 + $0xfc] sm:$0xf]
      %v296 = vld [vmem:[%s223 + $0x100] sm:$0xf]
      %v297 = vld [vmem:[%s223 + $0x104] sm:$0xf]
      %v298 = vld [vmem:[%s223 + $0x108] sm:$0xf]
      %v299 = vld [vmem:[%s223 + $0x10c] sm:$0xf]
      %v300 = vld [vmem:[%s223 + $0x110] sm:$0xf]
      %v301 = vld [vmem:[%s223 + $0x114] sm:$0xf]
      %v302 = vld [vmem:[%s223 + $0x118] sm:$0xf]
      %v303 = vld [vmem:[%s223 + $0x11c] sm:$0xf]
      %v304 = vld [vmem:[%s223 + $0x120] sm:$0xf]
      %v305 = vld [vmem:[%s223 + $0x124] sm:$0xf]
      %v306 = vld [vmem:[%s223 + $0x128] sm:$0xf]
      %v307 = vld [vmem:[%s223 + $0x12c] sm:$0xf]
      %v308 = vld [vmem:[%s223 + $0x130] sm:$0xf]
      %v309 = vld [vmem:[%s223 + $0x134] sm:$0xf]
      %v310 = vld [vmem:[%s223 + $0x138] sm:$0xf]
      %v311 = vld [vmem:[%s223 + $0x13c] sm:$0xf]
      %v312 = vld [vmem:[%s223 + $0x140] sm:$0xf]
      %v313 = vld [vmem:[%s223 + $0x144] sm:$0xf]
      %v314 = vld [vmem:[%s223 + $0x148] sm:$0xf]
      %v315 = vld [vmem:[%s223 + $0x14c] sm:$0xf]
      %v316 = vld [vmem:[%s223 + $0x150] sm:$0xf]
      %v317 = vld [vmem:[%s223 + $0x154] sm:$0xf]
      %v318 = vld [vmem:[%s223 + $0x158] sm:$0xf]
      %v319 = vld [vmem:[%s223 + $0x15c] sm:$0xf]
      %v320 = vld [vmem:[%s223 + $0x160] sm:$0xf]
      %v321 = vld [vmem:[%s223 + $0x164] sm:$0xf]
      %v322 = vld [vmem:[%s223 + $0x168] sm:$0xf]
      %v323 = vld [vmem:[%s223 + $0x16c] sm:$0xf]
      %v324 = vld [vmem:[%s223 + $0x170] sm:$0xf]
      %v325 = vld [vmem:[%s223 + $0x174] sm:$0xf]
      %v326 = vld [vmem:[%s223 + $0x178] sm:$0xf]
      %v327 = vld [vmem:[%s223 + $0x17c] sm:$0xf]
      %v328 = vld [vmem:[%s223 + $0x180] sm:$0xf]
      %v329 = vld [vmem:[%s223 + $0x184] sm:$0xf]
      %v330 = vld [vmem:[%s223 + $0x188] sm:$0xf]
      %v331 = vld [vmem:[%s223 + $0x18c] sm:$0xf]
      %v332 = vld [vmem:[%s223 + $0x190] sm:$0xf]
      %v333 = vld [vmem:[%s223 + $0x194] sm:$0xf]
      %v334 = vld [vmem:[%s223 + $0x198] sm:$0xf]
      %v335 = vld [vmem:[%s223 + $0x19c] sm:$0xf]
      %v336 = vld [vmem:[%s223 + $0x1a0] sm:$0xf]
      %v337 = vld [vmem:[%s223 + $0x1a4] sm:$0xf]
      %v338 = vld [vmem:[%s223 + $0x1a8] sm:$0xf]
      %v339 = vld [vmem:[%s223 + $0x1ac] sm:$0xf]
      %v340 = vld [vmem:[%s223 + $0x1b0] sm:$0xf]
      %v341 = vld [vmem:[%s223 + $0x1b4] sm:$0xf]
      %v342 = vld [vmem:[%s223 + $0x1b8] sm:$0xf]
      %v343 = vld [vmem:[%s223 + $0x1bc] sm:$0xf]
      %v344 = vld [vmem:[%s223 + $0x1c0] sm:$0xf]
      %v345 = vld [vmem:[%s223 + $0x1c4] sm:$0xf]
      %v346 = vld [vmem:[%s223 + $0x1c8] sm:$0xf]
      %v347 = vld [vmem:[%s223 + $0x1cc] sm:$0xf]
      %v348 = vld [vmem:[%s223 + $0x1d0] sm:$0xf]
      %v349 = vld [vmem:[%s223 + $0x1d4] sm:$0xf]
      %v350 = vld [vmem:[%s223 + $0x1d8] sm:$0xf]
      %v351 = vld [vmem:[%s223 + $0x1dc] sm:$0xf]
      %v352 = vld [vmem:[%s223 + $0x1e0] sm:$0xf]
      %v353 = vld [vmem:[%s223 + $0x1e4] sm:$0xf]
      %v354 = vld [vmem:[%s223 + $0x1e8] sm:$0xf]
      %v355 = vld [vmem:[%s223 + $0x1ec] sm:$0xf]
      %v356 = vld [vmem:[%s223 + $0x1f0] sm:$0xf]
      %v357 = vld [vmem:[%s223 + $0x1f4] sm:$0xf]
      %v358 = vld [vmem:[%s223 + $0x1f8] sm:$0xf]
      %v359 = vld [vmem:[%s223 + $0x1fc] sm:$0xf]
      %v360 = vld [vmem:[%s1] sm:$0x3]
      %v361 = vld [vmem:[%s2] sm:$0x1]
      %v363 = vlaneseq
      %v364 = vshrl.u32 %v363, 7
      %v365 = vsub.s32 0, %v364
      %v366 = vrot.slane %v361, %v365
      %v496 = vunpack.c.l.b16 %v232
      %v497 = vunpack.c.l.b16 %v233
      %v498 = vunpack.c.l.b16 %v234
      %v499 = vunpack.c.l.b16 %v235
      %v500 = vunpack.c.l.b16 %v236
      %v501 = vunpack.c.l.b16 %v237
      %v502 = vunpack.c.l.b16 %v238
      %v503 = vunpack.c.l.b16 %v239
      %v504 = vunpack.c.l.b16 %v240
      %v505 = vunpack.c.l.b16 %v241
      %v506 = vunpack.c.l.b16 %v242
      %v507 = vunpack.c.l.b16 %v243
      %v508 = vunpack.c.l.b16 %v244
      %v509 = vunpack.c.l.b16 %v245
      %v510 = vunpack.c.l.b16 %v246
      %v511 = vunpack.c.l.b16 %v247
      %v512 = vunpack.c.l.b16 %v248
      %v513 = vunpack.c.l.b16 %v249
      %v514 = vunpack.c.l.b16 %v250
      %v515 = vunpack.c.l.b16 %v251
      %v516 = vunpack.c.l.b16 %v252
      %v517 = vunpack.c.l.b16 %v253
      %v518 = vunpack.c.l.b16 %v254
      %v519 = vunpack.c.l.b16 %v255
      %v520 = vunpack.c.l.b16 %v256
      %v521 = vunpack.c.l.b16 %v257
      %v522 = vunpack.c.l.b16 %v258
      %v523 = vunpack.c.l.b16 %v259
      %v524 = vunpack.c.l.b16 %v260
      %v525 = vunpack.c.l.b16 %v261
      %v526 = vunpack.c.l.b16 %v262
      %v527 = vunpack.c.l.b16 %v263
      %v528 = vunpack.c.l.b16 %v264
      %v529 = vunpack.c.l.b16 %v265
      %v530 = vunpack.c.l.b16 %v266
      %v531 = vunpack.c.l.b16 %v267
      %v532 = vunpack.c.l.b16 %v268
      %v533 = vunpack.c.l.b16 %v269
      %v534 = vunpack.c.l.b16 %v270
      %v535 = vunpack.c.l.b16 %v271
      %v536 = vunpack.c.l.b16 %v272
      %v537 = vunpack.c.l.b16 %v273
      %v538 = vunpack.c.l.b16 %v274
      %v539 = vunpack.c.l.b16 %v275
      %v540 = vunpack.c.l.b16 %v276
      %v541 = vunpack.c.l.b16 %v277
      %v542 = vunpack.c.l.b16 %v278
      %v543 = vunpack.c.l.b16 %v279
      %v544 = vunpack.c.l.b16 %v280
      %v545 = vunpack.c.l.b16 %v281
      %v546 = vunpack.c.l.b16 %v282
      %v547 = vunpack.c.l.b16 %v283
      %v548 = vunpack.c.l.b16 %v284
      %v549 = vunpack.c.l.b16 %v285
      %v550 = vunpack.c.l.b16 %v286
      %v551 = vunpack.c.l.b16 %v287
      %v552 = vunpack.c.l.b16 %v288
      %v553 = vunpack.c.l.b16 %v289
      %v554 = vunpack.c.l.b16 %v290
      %v555 = vunpack.c.l.b16 %v291
      %v556 = vunpack.c.l.b16 %v292
      %v557 = vunpack.c.l.b16 %v293
      %v558 = vunpack.c.l.b16 %v294
      %v559 = vunpack.c.l.b16 %v295
      %v560 = vunpack.c.l.b16 %v296
      %v561 = vunpack.c.l.b16 %v297
      %v562 = vunpack.c.l.b16 %v298
      %v563 = vunpack.c.l.b16 %v299
      %v564 = vunpack.c.l.b16 %v300
      %v565 = vunpack.c.l.b16 %v301
      %v566 = vunpack.c.l.b16 %v302
      %v567 = vunpack.c.l.b16 %v303
      %v568 = vunpack.c.l.b16 %v304
      %v569 = vunpack.c.l.b16 %v305
      %v570 = vunpack.c.l.b16 %v306
      %v571 = vunpack.c.l.b16 %v307
      %v572 = vunpack.c.l.b16 %v308
      %v573 = vunpack.c.l.b16 %v309
      %v574 = vunpack.c.l.b16 %v310
      %v575 = vunpack.c.l.b16 %v311
      %v576 = vunpack.c.l.b16 %v312
      %v577 = vunpack.c.l.b16 %v313
      %v578 = vunpack.c.l.b16 %v314
      %v579 = vunpack.c.l.b16 %v315
      %v580 = vunpack.c.l.b16 %v316
      %v581 = vunpack.c.l.b16 %v317
      %v582 = vunpack.c.l.b16 %v318
      %v583 = vunpack.c.l.b16 %v319
      %v584 = vunpack.c.l.b16 %v320
      %v585 = vunpack.c.l.b16 %v321
      %v586 = vunpack.c.l.b16 %v322
      %v587 = vunpack.c.l.b16 %v323
      %v588 = vunpack.c.l.b16 %v324
      %v589 = vunpack.c.l.b16 %v325
      %v590 = vunpack.c.l.b16 %v326
      %v591 = vunpack.c.l.b16 %v327
      %v592 = vunpack.c.l.b16 %v328
      %v593 = vunpack.c.l.b16 %v329
      %v594 = vunpack.c.l.b16 %v330
      %v595 = vunpack.c.l.b16 %v331
      %v596 = vunpack.c.l.b16 %v332
      %v597 = vunpack.c.l.b16 %v333
      %v598 = vunpack.c.l.b16 %v334
      %v599 = vunpack.c.l.b16 %v335
      %v600 = vunpack.c.l.b16 %v336
      %v601 = vunpack.c.l.b16 %v337
      %v602 = vunpack.c.l.b16 %v338
      %v603 = vunpack.c.l.b16 %v339
      %v604 = vunpack.c.l.b16 %v340
      %v605 = vunpack.c.l.b16 %v341
      %v606 = vunpack.c.l.b16 %v342
      %v607 = vunpack.c.l.b16 %v343
      %v608 = vunpack.c.l.b16 %v344
      %v609 = vunpack.c.l.b16 %v345
      %v610 = vunpack.c.l.b16 %v346
      %v611 = vunpack.c.l.b16 %v347
      %v612 = vunpack.c.l.b16 %v348
      %v613 = vunpack.c.l.b16 %v349
      %v614 = vunpack.c.l.b16 %v350
      %v615 = vunpack.c.l.b16 %v351
      %v616 = vunpack.c.l.b16 %v352
      %v617 = vunpack.c.l.b16 %v353
      %v618 = vunpack.c.l.b16 %v354
      %v619 = vunpack.c.l.b16 %v355
      %v620 = vunpack.c.l.b16 %v356
      %v621 = vunpack.c.l.b16 %v357
      %v622 = vunpack.c.l.b16 %v358
      %v623 = vunpack.c.l.b16 %v359
      %v624 = vpack.c.b16 %v497, %v496
      %v625 = vpack.c.b16 %v499, %v498
      %v626 = vpack.c.b16 %v501, %v500
      %v627 = vpack.c.b16 %v503, %v502
      %v628 = vpack.c.b16 %v505, %v504
      %v629 = vpack.c.b16 %v507, %v506
      %v630 = vpack.c.b16 %v509, %v508
      %v631 = vpack.c.b16 %v511, %v510
      %v632 = vpack.c.b16 %v513, %v512
      %v633 = vpack.c.b16 %v515, %v514
      %v634 = vpack.c.b16 %v517, %v516
      %v635 = vpack.c.b16 %v519, %v518
      %v636 = vpack.c.b16 %v521, %v520
      %v637 = vpack.c.b16 %v523, %v522
      %v638 = vpack.c.b16 %v525, %v524
      %v639 = vpack.c.b16 %v527, %v526
      %v640 = vpack.c.b16 %v529, %v528
      %v641 = vpack.c.b16 %v531, %v530
      %v642 = vpack.c.b16 %v533, %v532
      %v643 = vpack.c.b16 %v535, %v534
      %v644 = vpack.c.b16 %v537, %v536
      %v645 = vpack.c.b16 %v539, %v538
      %v646 = vpack.c.b16 %v541, %v540
      %v647 = vpack.c.b16 %v543, %v542
      %v648 = vpack.c.b16 %v545, %v544
      %v649 = vpack.c.b16 %v547, %v546
      %v650 = vpack.c.b16 %v549, %v548
      %v651 = vpack.c.b16 %v551, %v550
      %v652 = vpack.c.b16 %v553, %v552
      %v653 = vpack.c.b16 %v555, %v554
      %v654 = vpack.c.b16 %v557, %v556
      %v655 = vpack.c.b16 %v559, %v558
      %v656 = vpack.c.b16 %v561, %v560
      %v657 = vpack.c.b16 %v563, %v562
      %v658 = vpack.c.b16 %v565, %v564
      %v659 = vpack.c.b16 %v567, %v566
      %v660 = vpack.c.b16 %v569, %v568
      %v661 = vpack.c.b16 %v571, %v570
      %v662 = vpack.c.b16 %v573, %v572
      %v663 = vpack.c.b16 %v575, %v574
      %v664 = vpack.c.b16 %v577, %v576
      %v665 = vpack.c.b16 %v579, %v578
      %v666 = vpack.c.b16 %v581, %v580
      %v667 = vpack.c.b16 %v583, %v582
      %v668 = vpack.c.b16 %v585, %v584
      %v669 = vpack.c.b16 %v587, %v586
      %v670 = vpack.c.b16 %v589, %v588
      %v671 = vpack.c.b16 %v591, %v590
      %v672 = vpack.c.b16 %v593, %v592
      %v673 = vpack.c.b16 %v595, %v594
      %v674 = vpack.c.b16 %v597, %v596
      %v675 = vpack.c.b16 %v599, %v598
      %v676 = vpack.c.b16 %v601, %v600
      %v677 = vpack.c.b16 %v603, %v602
      %v678 = vpack.c.b16 %v605, %v604
      %v679 = vpack.c.b16 %v607, %v606
      %v680 = vpack.c.b16 %v609, %v608
      %v681 = vpack.c.b16 %v611, %v610
      %v682 = vpack.c.b16 %v613, %v612
      %v683 = vpack.c.b16 %v615, %v614
      %v684 = vpack.c.b16 %v617, %v616
      %v685 = vpack.c.b16 %v619, %v618
      %v686 = vpack.c.b16 %v621, %v620
      %v687 = vpack.c.b16 %v623, %v622
      %vm688 = vcmask 31744
      %v690 = vsel %vm688, %v624, 0
      %v693 = vsel %vm688, %v625, 0
      %v696 = vsel %vm688, %v626, 0
      %v699 = vsel %vm688, %v627, 0
      %v702 = vsel %vm688, %v628, 0
      %v705 = vsel %vm688, %v629, 0
      %v708 = vsel %vm688, %v630, 0
      %v711 = vsel %vm688, %v631, 0
      %v714 = vsel %vm688, %v632, 0
      %v717 = vsel %vm688, %v633, 0
      %v720 = vsel %vm688, %v634, 0
      %v723 = vsel %vm688, %v635, 0
      %v726 = vsel %vm688, %v636, 0
      %v729 = vsel %vm688, %v637, 0
      %v732 = vsel %vm688, %v638, 0
      %v735 = vsel %vm688, %v639, 0
      %v738 = vsel %vm688, %v640, 0
      %v741 = vsel %vm688, %v641, 0
      %v744 = vsel %vm688, %v642, 0
      %v747 = vsel %vm688, %v643, 0
      %v750 = vsel %vm688, %v644, 0
      %v753 = vsel %vm688, %v645, 0
      %v756 = vsel %vm688, %v646, 0
      %v759 = vsel %vm688, %v647, 0
      %v762 = vsel %vm688, %v648, 0
      %v765 = vsel %vm688, %v649, 0
      %v768 = vsel %vm688, %v650, 0
      %v771 = vsel %vm688, %v651, 0
      %v774 = vsel %vm688, %v652, 0
      %v777 = vsel %vm688, %v653, 0
      %v780 = vsel %vm688, %v654, 0
      %v783 = vsel %vm688, %v655, 0
      %v786 = vsel %vm688, %v656, 0
      %v789 = vsel %vm688, %v657, 0
      %v792 = vsel %vm688, %v658, 0
      %v795 = vsel %vm688, %v659, 0
      %v798 = vsel %vm688, %v660, 0
      %v801 = vsel %vm688, %v661, 0
      %v804 = vsel %vm688, %v662, 0
      %v807 = vsel %vm688, %v663, 0
      %v810 = vsel %vm688, %v664, 0
      %v813 = vsel %vm688, %v665, 0
      %v816 = vsel %vm688, %v666, 0
      %v819 = vsel %vm688, %v667, 0
      %v822 = vsel %vm688, %v668, 0
      %v825 = vsel %vm688, %v669, 0
      %v828 = vsel %vm688, %v670, 0
      %v831 = vsel %vm688, %v671, 0
      %v834 = vsel %vm688, %v672, 0
      %v837 = vsel %vm688, %v673, 0
      %v840 = vsel %vm688, %v674, 0
      %v843 = vsel %vm688, %v675, 0
      %v846 = vsel %vm688, %v676, 0
      %v849 = vsel %vm688, %v677, 0
      %v852 = vsel %vm688, %v678, 0
      %v855 = vsel %vm688, %v679, 0
      %v858 = vsel %vm688, %v680, 0
      %v861 = vsel %vm688, %v681, 0
      %v864 = vsel %vm688, %v682, 0
      %v867 = vsel %vm688, %v683, 0
      %v870 = vsel %vm688, %v684, 0
      %v873 = vsel %vm688, %v685, 0
      %v876 = vsel %vm688, %v686, 0
      %v879 = vsel %vm688, %v687, 0
      %vm881 = vcmask 1041408
      %v883 = vsel %vm881, %v360, 0
      %885 = vmatprep.subr.bf16.mxu0 0
      %886 = vmatpush1.bf16.msra.mxu0 0
      %887 = vmatprep.subr.bf16.mxu0 0
      %888 = vmatpush1.bf16.msra.mxu0 0
      %889 = vmatprep.subr.bf16.mxu0 0
      %890 = vmatpush1.bf16.msra.mxu0 0
      %891 = vmatprep.subr.bf16.mxu0 0
      %892 = vmatpush1.bf16.msra.mxu0 0
      %893 = vmatprep.subr.bf16.mxu0 0
      %894 = vmatpush1.bf16.msra.mxu0 0
      %895 = vmatprep.subr.bf16.mxu0 0
      %896 = vmatpush1.bf16.msra.mxu0 0
      %897 = vmatprep.subr.bf16.mxu0 0
      %898 = vmatpush1.bf16.msra.mxu0 0
      %899 = vmatprep.subr.bf16.mxu0 0
      %900 = vmatpush1.bf16.msra.mxu0 %v883
      %901 = vmatprep.subr.bf16.mxu0 0
      %902 = vmatpush2.bf16.msra.mxu0 0
      %903 = vmatprep.subr.bf16.mxu0 0
      %904 = vmatpush2.bf16.msra.mxu0 0
      %905 = vmatprep.subr.bf16.mxu0 0
      %906 = vmatpush2.bf16.msra.mxu0 0
      %907 = vmatprep.subr.bf16.mxu0 0
      %908 = vmatpush2.bf16.msra.mxu0 0
      %909 = vmatprep.subr.bf16.mxu0 0
      %910 = vmatpush2.bf16.msra.mxu0 0
      %911 = vmatprep.subr.bf16.mxu0 0
      %912 = vmatpush2.bf16.msra.mxu0 0
      %913 = vmatprep.subr.bf16.mxu0 0
      %914 = vmatpush2.bf16.msra.mxu0 0
      %915 = vmatprep.subr.bf16.mxu0 0
      %916 = vmatpush2.bf16.msra.mxu0 0
      %917 = vmatprep.mubr.bf16.mxu0 0
      %918 = vmatmul.mubr.bf16.gmra.mxu0 %v690
      %v919 = vpop.f32.mrf.mxu0
      %v920 = vadd.f32 %v366, %v919
      %v921 = vpop.f32.mrf.mxu0
      %v922 = vpop.f32.mrf.mxu0
      %v923 = vadd.f32 %v366, %v922
      %v924 = vpop.f32.mrf.mxu0
      %925 = vmatprep.mubr.bf16.mxu0 0
      %926 = vmatmul.mubr.bf16.gmra.mxu0 %v693
      %v927 = vpop.f32.mrf.mxu0
      %v928 = vadd.f32 %v366, %v927
      %v929 = vpop.f32.mrf.mxu0
      %v930 = vpop.f32.mrf.mxu0
      %v931 = vadd.f32 %v366, %v930
      %v932 = vpop.f32.mrf.mxu0
      %933 = vmatprep.mubr.bf16.mxu0 0
      %934 = vmatmul.mubr.bf16.gmra.mxu0 %v696
      %v935 = vpop.f32.mrf.mxu0
      %v936 = vadd.f32 %v366, %v935
      %v937 = vpop.f32.mrf.mxu0
      %v938 = vpop.f32.mrf.mxu0
      %v939 = vadd.f32 %v366, %v938
      %v940 = vpop.f32.mrf.mxu0
      %941 = vmatprep.mubr.bf16.mxu0 0
      %942 = vmatmul.mubr.bf16.gmra.mxu0 %v699
      %v943 = vpop.f32.mrf.mxu0
      %v944 = vadd.f32 %v366, %v943
      %v945 = vpop.f32.mrf.mxu0
      %v946 = vpop.f32.mrf.mxu0
      %v947 = vadd.f32 %v366, %v946
      %v948 = vpop.f32.mrf.mxu0
      %949 = vmatprep.mubr.bf16.mxu0 0
      %950 = vmatmul.mubr.bf16.gmra.mxu0 %v702
      %v951 = vpop.f32.mrf.mxu0
      %v952 = vadd.f32 %v366, %v951
      %v953 = vpop.f32.mrf.mxu0
      %v954 = vpop.f32.mrf.mxu0
      %v955 = vadd.f32 %v366, %v954
      %v956 = vpop.f32.mrf.mxu0
      %957 = vmatprep.mubr.bf16.mxu0 0
      %958 = vmatmul.mubr.bf16.gmra.mxu0 %v705
      %v959 = vpop.f32.mrf.mxu0
      %v960 = vadd.f32 %v366, %v959
      %v961 = vpop.f32.mrf.mxu0
      %v962 = vpop.f32.mrf.mxu0
      %v963 = vadd.f32 %v366, %v962
      %v964 = vpop.f32.mrf.mxu0
      %965 = vmatprep.mubr.bf16.mxu0 0
      %966 = vmatmul.mubr.bf16.gmra.mxu0 %v708
      %v967 = vpop.f32.mrf.mxu0
      %v968 = vadd.f32 %v366, %v967
      %v969 = vpop.f32.mrf.mxu0
      %v970 = vpop.f32.mrf.mxu0
      %v971 = vadd.f32 %v366, %v970
      %v972 = vpop.f32.mrf.mxu0
      %973 = vmatprep.mubr.bf16.mxu0 0
      %974 = vmatmul.mubr.bf16.gmra.mxu0 %v711
      %v975 = vpop.f32.mrf.mxu0
      %v976 = vadd.f32 %v366, %v975
      %v977 = vpop.f32.mrf.mxu0
      %v978 = vpop.f32.mrf.mxu0
      %v979 = vadd.f32 %v366, %v978
      %v980 = vpop.f32.mrf.mxu0
      %981 = vmatprep.mubr.bf16.mxu0 0
      %982 = vmatmul.mubr.bf16.gmra.mxu0 %v714
      %v983 = vpop.f32.mrf.mxu0
      %v984 = vadd.f32 %v366, %v983
      %v985 = vpop.f32.mrf.mxu0
      %v986 = vpop.f32.mrf.mxu0
      %v987 = vadd.f32 %v366, %v986
      %v988 = vpop.f32.mrf.mxu0
      %989 = vmatprep.mubr.bf16.mxu0 0
      %990 = vmatmul.mubr.bf16.gmra.mxu0 %v717
      %v991 = vpop.f32.mrf.mxu0
      %v992 = vadd.f32 %v366, %v991
      %v993 = vpop.f32.mrf.mxu0
      %v994 = vpop.f32.mrf.mxu0
      %v995 = vadd.f32 %v366, %v994
      %v996 = vpop.f32.mrf.mxu0
      %997 = vmatprep.mubr.bf16.mxu0 0
      %998 = vmatmul.mubr.bf16.gmra.mxu0 %v720
      %v999 = vpop.f32.mrf.mxu0
      %v1000 = vadd.f32 %v366, %v999
      %v1001 = vpop.f32.mrf.mxu0
      %v1002 = vpop.f32.mrf.mxu0
      %v1003 = vadd.f32 %v366, %v1002
      %v1004 = vpop.f32.mrf.mxu0
      %1005 = vmatprep.mubr.bf16.mxu0 0
      %1006 = vmatmul.mubr.bf16.gmra.mxu0 %v723
      %v1007 = vpop.f32.mrf.mxu0
      %v1008 = vadd.f32 %v366, %v1007
      %v1009 = vpop.f32.mrf.mxu0
      %v1010 = vpop.f32.mrf.mxu0
      %v1011 = vadd.f32 %v366, %v1010
      %v1012 = vpop.f32.mrf.mxu0
      %1013 = vmatprep.mubr.bf16.mxu0 0
      %1014 = vmatmul.mubr.bf16.gmra.mxu0 %v726
      %v1015 = vpop.f32.mrf.mxu0
      %v1016 = vadd.f32 %v366, %v1015
      %v1017 = vpop.f32.mrf.mxu0
      %v1018 = vpop.f32.mrf.mxu0
      %v1019 = vadd.f32 %v366, %v1018
      %v1020 = vpop.f32.mrf.mxu0
      %1021 = vmatprep.mubr.bf16.mxu0 0
      %1022 = vmatmul.mubr.bf16.gmra.mxu0 %v729
      %v1023 = vpop.f32.mrf.mxu0
      %v1024 = vadd.f32 %v366, %v1023
      %v1025 = vpop.f32.mrf.mxu0
      %v1026 = vpop.f32.mrf.mxu0
      %v1027 = vadd.f32 %v366, %v1026
      %v1028 = vpop.f32.mrf.mxu0
      %1029 = vmatprep.mubr.bf16.mxu0 0
      %1030 = vmatmul.mubr.bf16.gmra.mxu0 %v732
      %v1031 = vpop.f32.mrf.mxu0
      %v1032 = vadd.f32 %v366, %v1031
      %v1033 = vpop.f32.mrf.mxu0
      %v1034 = vpop.f32.mrf.mxu0
      %v1035 = vadd.f32 %v366, %v1034
      %v1036 = vpop.f32.mrf.mxu0
      %1037 = vmatprep.mubr.bf16.mxu0 0
      %1038 = vmatmul.mubr.bf16.gmra.mxu0 %v735
      %v1039 = vpop.f32.mrf.mxu0
      %v1040 = vadd.f32 %v366, %v1039
      %v1041 = vpop.f32.mrf.mxu0
      %v1042 = vpop.f32.mrf.mxu0
      %v1043 = vadd.f32 %v366, %v1042
      %v1044 = vpop.f32.mrf.mxu0
      %1045 = vmatprep.mubr.bf16.mxu0 0
      %1046 = vmatmul.mubr.bf16.gmra.mxu0 %v738
      %v1047 = vpop.f32.mrf.mxu0
      %v1048 = vadd.f32 %v366, %v1047
      %v1049 = vpop.f32.mrf.mxu0
      %v1050 = vpop.f32.mrf.mxu0
      %v1051 = vadd.f32 %v366, %v1050
      %v1052 = vpop.f32.mrf.mxu0
      %1053 = vmatprep.mubr.bf16.mxu0 0
      %1054 = vmatmul.mubr.bf16.gmra.mxu0 %v741
      %v1055 = vpop.f32.mrf.mxu0
      %v1056 = vadd.f32 %v366, %v1055
      %v1057 = vpop.f32.mrf.mxu0
      %v1058 = vpop.f32.mrf.mxu0
      %v1059 = vadd.f32 %v366, %v1058
      %v1060 = vpop.f32.mrf.mxu0
      %1061 = vmatprep.mubr.bf16.mxu0 0
      %1062 = vmatmul.mubr.bf16.gmra.mxu0 %v744
      %v1063 = vpop.f32.mrf.mxu0
      %v1064 = vadd.f32 %v366, %v1063
      %v1065 = vpop.f32.mrf.mxu0
      %v1066 = vpop.f32.mrf.mxu0
      %v1067 = vadd.f32 %v366, %v1066
      %v1068 = vpop.f32.mrf.mxu0
      %1069 = vmatprep.mubr.bf16.mxu0 0
      %1070 = vmatmul.mubr.bf16.gmra.mxu0 %v747
      %v1071 = vpop.f32.mrf.mxu0
      %v1072 = vadd.f32 %v366, %v1071
      %v1073 = vpop.f32.mrf.mxu0
      %v1074 = vpop.f32.mrf.mxu0
      %v1075 = vadd.f32 %v366, %v1074
      %v1076 = vpop.f32.mrf.mxu0
      %1077 = vmatprep.mubr.bf16.mxu0 0
      %1078 = vmatmul.mubr.bf16.gmra.mxu0 %v750
      %v1079 = vpop.f32.mrf.mxu0
      %v1080 = vadd.f32 %v366, %v1079
      %v1081 = vpop.f32.mrf.mxu0
      %v1082 = vpop.f32.mrf.mxu0
      %v1083 = vadd.f32 %v366, %v1082
      %v1084 = vpop.f32.mrf.mxu0
      %1085 = vmatprep.mubr.bf16.mxu0 0
      %1086 = vmatmul.mubr.bf16.gmra.mxu0 %v753
      %v1087 = vpop.f32.mrf.mxu0
      %v1088 = vadd.f32 %v366, %v1087
      %v1089 = vpop.f32.mrf.mxu0
      %v1090 = vpop.f32.mrf.mxu0
      %v1091 = vadd.f32 %v366, %v1090
      %v1092 = vpop.f32.mrf.mxu0
      %1093 = vmatprep.mubr.bf16.mxu0 0
      %1094 = vmatmul.mubr.bf16.gmra.mxu0 %v756
      %v1095 = vpop.f32.mrf.mxu0
      %v1096 = vadd.f32 %v366, %v1095
      %v1097 = vpop.f32.mrf.mxu0
      %v1098 = vpop.f32.mrf.mxu0
      %v1099 = vadd.f32 %v366, %v1098
      %v1100 = vpop.f32.mrf.mxu0
      %1101 = vmatprep.mubr.bf16.mxu0 0
      %1102 = vmatmul.mubr.bf16.gmra.mxu0 %v759
      %v1103 = vpop.f32.mrf.mxu0
      %v1104 = vadd.f32 %v366, %v1103
      %v1105 = vpop.f32.mrf.mxu0
      %v1106 = vpop.f32.mrf.mxu0
      %v1107 = vadd.f32 %v366, %v1106
      %v1108 = vpop.f32.mrf.mxu0
      %1109 = vmatprep.mubr.bf16.mxu0 0
      %1110 = vmatmul.mubr.bf16.gmra.mxu0 %v762
      %v1111 = vpop.f32.mrf.mxu0
      %v1112 = vadd.f32 %v366, %v1111
      %v1113 = vpop.f32.mrf.mxu0
      %v1114 = vpop.f32.mrf.mxu0
      %v1115 = vadd.f32 %v366, %v1114
      %v1116 = vpop.f32.mrf.mxu0
      %1117 = vmatprep.mubr.bf16.mxu0 0
      %1118 = vmatmul.mubr.bf16.gmra.mxu0 %v765
      %v1119 = vpop.f32.mrf.mxu0
      %v1120 = vadd.f32 %v366, %v1119
      %v1121 = vpop.f32.mrf.mxu0
      %v1122 = vpop.f32.mrf.mxu0
      %v1123 = vadd.f32 %v366, %v1122
      %v1124 = vpop.f32.mrf.mxu0
      %1125 = vmatprep.mubr.bf16.mxu0 0
      %1126 = vmatmul.mubr.bf16.gmra.mxu0 %v768
      %v1127 = vpop.f32.mrf.mxu0
      %v1128 = vadd.f32 %v366, %v1127
      %v1129 = vpop.f32.mrf.mxu0
      %v1130 = vpop.f32.mrf.mxu0
      %v1131 = vadd.f32 %v366, %v1130
      %v1132 = vpop.f32.mrf.mxu0
      %1133 = vmatprep.mubr.bf16.mxu0 0
      %1134 = vmatmul.mubr.bf16.gmra.mxu0 %v771
      %v1135 = vpop.f32.mrf.mxu0
      %v1136 = vadd.f32 %v366, %v1135
      %v1137 = vpop.f32.mrf.mxu0
      %v1138 = vpop.f32.mrf.mxu0
      %v1139 = vadd.f32 %v366, %v1138
      %v1140 = vpop.f32.mrf.mxu0
      %1141 = vmatprep.mubr.bf16.mxu0 0
      %1142 = vmatmul.mubr.bf16.gmra.mxu0 %v774
      %v1143 = vpop.f32.mrf.mxu0
      %v1144 = vadd.f32 %v366, %v1143
      %v1145 = vpop.f32.mrf.mxu0
      %v1146 = vpop.f32.mrf.mxu0
      %v1147 = vadd.f32 %v366, %v1146
      %v1148 = vpop.f32.mrf.mxu0
      %1149 = vmatprep.mubr.bf16.mxu0 0
      %1150 = vmatmul.mubr.bf16.gmra.mxu0 %v777
      %v1151 = vpop.f32.mrf.mxu0
      %v1152 = vadd.f32 %v366, %v1151
      %v1153 = vpop.f32.mrf.mxu0
      %v1154 = vpop.f32.mrf.mxu0
      %v1155 = vadd.f32 %v366, %v1154
      %v1156 = vpop.f32.mrf.mxu0
      %1157 = vmatprep.mubr.bf16.mxu0 0
      %1158 = vmatmul.mubr.bf16.gmra.mxu0 %v780
      %v1159 = vpop.f32.mrf.mxu0
      %v1160 = vadd.f32 %v366, %v1159
      %v1161 = vpop.f32.mrf.mxu0
      %v1162 = vpop.f32.mrf.mxu0
      %v1163 = vadd.f32 %v366, %v1162
      %v1164 = vpop.f32.mrf.mxu0
      %1165 = vmatprep.mubr.bf16.mxu0 0
      %1166 = vmatmul.mubr.bf16.gmra.mxu0 %v783
      %v1167 = vpop.f32.mrf.mxu0
      %v1168 = vadd.f32 %v366, %v1167
      %v1169 = vpop.f32.mrf.mxu0
      %v1170 = vpop.f32.mrf.mxu0
      %v1171 = vadd.f32 %v366, %v1170
      %v1172 = vpop.f32.mrf.mxu0
      %1173 = vmatprep.mubr.bf16.mxu0 0
      %1174 = vmatmul.mubr.bf16.gmra.mxu0 %v786
      %v1175 = vpop.f32.mrf.mxu0
      %v1176 = vadd.f32 %v366, %v1175
      %v1177 = vpop.f32.mrf.mxu0
      %v1178 = vpop.f32.mrf.mxu0
      %v1179 = vadd.f32 %v366, %v1178
      %v1180 = vpop.f32.mrf.mxu0
      %1181 = vmatprep.mubr.bf16.mxu0 0
      %1182 = vmatmul.mubr.bf16.gmra.mxu0 %v789
      %v1183 = vpop.f32.mrf.mxu0
      %v1184 = vadd.f32 %v366, %v1183
      %v1185 = vpop.f32.mrf.mxu0
      %v1186 = vpop.f32.mrf.mxu0
      %v1187 = vadd.f32 %v366, %v1186
      %v1188 = vpop.f32.mrf.mxu0
      %1189 = vmatprep.mubr.bf16.mxu0 0
      %1190 = vmatmul.mubr.bf16.gmra.mxu0 %v792
      %v1191 = vpop.f32.mrf.mxu0
      %v1192 = vadd.f32 %v366, %v1191
      %v1193 = vpop.f32.mrf.mxu0
      %v1194 = vpop.f32.mrf.mxu0
      %v1195 = vadd.f32 %v366, %v1194
      %v1196 = vpop.f32.mrf.mxu0
      %1197 = vmatprep.mubr.bf16.mxu0 0
      %1198 = vmatmul.mubr.bf16.gmra.mxu0 %v795
      %v1199 = vpop.f32.mrf.mxu0
      %v1200 = vadd.f32 %v366, %v1199
      %v1201 = vpop.f32.mrf.mxu0
      %v1202 = vpop.f32.mrf.mxu0
      %v1203 = vadd.f32 %v366, %v1202
      %v1204 = vpop.f32.mrf.mxu0
      %1205 = vmatprep.mubr.bf16.mxu0 0
      %1206 = vmatmul.mubr.bf16.gmra.mxu0 %v798
      %v1207 = vpop.f32.mrf.mxu0
      %v1208 = vadd.f32 %v366, %v1207
      %v1209 = vpop.f32.mrf.mxu0
      %v1210 = vpop.f32.mrf.mxu0
      %v1211 = vadd.f32 %v366, %v1210
      %v1212 = vpop.f32.mrf.mxu0
      %1213 = vmatprep.mubr.bf16.mxu0 0
      %1214 = vmatmul.mubr.bf16.gmra.mxu0 %v801
      %v1215 = vpop.f32.mrf.mxu0
      %v1216 = vadd.f32 %v366, %v1215
      %v1217 = vpop.f32.mrf.mxu0
      %v1218 = vpop.f32.mrf.mxu0
      %v1219 = vadd.f32 %v366, %v1218
      %v1220 = vpop.f32.mrf.mxu0
      %1221 = vmatprep.mubr.bf16.mxu0 0
      %1222 = vmatmul.mubr.bf16.gmra.mxu0 %v804
      %v1223 = vpop.f32.mrf.mxu0
      %v1224 = vadd.f32 %v366, %v1223
      %v1225 = vpop.f32.mrf.mxu0
      %v1226 = vpop.f32.mrf.mxu0
      %v1227 = vadd.f32 %v366, %v1226
      %v1228 = vpop.f32.mrf.mxu0
      %1229 = vmatprep.mubr.bf16.mxu0 0
      %1230 = vmatmul.mubr.bf16.gmra.mxu0 %v807
      %v1231 = vpop.f32.mrf.mxu0
      %v1232 = vadd.f32 %v366, %v1231
      %v1233 = vpop.f32.mrf.mxu0
      %v1234 = vpop.f32.mrf.mxu0
      %v1235 = vadd.f32 %v366, %v1234
      %v1236 = vpop.f32.mrf.mxu0
      %1237 = vmatprep.mubr.bf16.mxu0 0
      %1238 = vmatmul.mubr.bf16.gmra.mxu0 %v810
      %v1239 = vpop.f32.mrf.mxu0
      %v1240 = vadd.f32 %v366, %v1239
      %v1241 = vpop.f32.mrf.mxu0
      %v1242 = vpop.f32.mrf.mxu0
      %v1243 = vadd.f32 %v366, %v1242
      %v1244 = vpop.f32.mrf.mxu0
      %1245 = vmatprep.mubr.bf16.mxu0 0
      %1246 = vmatmul.mubr.bf16.gmra.mxu0 %v813
      %v1247 = vpop.f32.mrf.mxu0
      %v1248 = vadd.f32 %v366, %v1247
      %v1249 = vpop.f32.mrf.mxu0
      %v1250 = vpop.f32.mrf.mxu0
      %v1251 = vadd.f32 %v366, %v1250
      %v1252 = vpop.f32.mrf.mxu0
      %1253 = vmatprep.mubr.bf16.mxu0 0
      %1254 = vmatmul.mubr.bf16.gmra.mxu0 %v816
      %v1255 = vpop.f32.mrf.mxu0
      %v1256 = vadd.f32 %v366, %v1255
      %v1257 = vpop.f32.mrf.mxu0
      %v1258 = vpop.f32.mrf.mxu0
      %v1259 = vadd.f32 %v366, %v1258
      %v1260 = vpop.f32.mrf.mxu0
      %1261 = vmatprep.mubr.bf16.mxu0 0
      %1262 = vmatmul.mubr.bf16.gmra.mxu0 %v819
      %v1263 = vpop.f32.mrf.mxu0
      %v1264 = vadd.f32 %v366, %v1263
      %v1265 = vpop.f32.mrf.mxu0
      %v1266 = vpop.f32.mrf.mxu0
      %v1267 = vadd.f32 %v366, %v1266
      %v1268 = vpop.f32.mrf.mxu0
      %1269 = vmatprep.mubr.bf16.mxu0 0
      %1270 = vmatmul.mubr.bf16.gmra.mxu0 %v822
      %v1271 = vpop.f32.mrf.mxu0
      %v1272 = vadd.f32 %v366, %v1271
      %v1273 = vpop.f32.mrf.mxu0
      %v1274 = vpop.f32.mrf.mxu0
      %v1275 = vadd.f32 %v366, %v1274
      %v1276 = vpop.f32.mrf.mxu0
      %1277 = vmatprep.mubr.bf16.mxu0 0
      %1278 = vmatmul.mubr.bf16.gmra.mxu0 %v825
      %v1279 = vpop.f32.mrf.mxu0
      %v1280 = vadd.f32 %v366, %v1279
      %v1281 = vpop.f32.mrf.mxu0
      %v1282 = vpop.f32.mrf.mxu0
      %v1283 = vadd.f32 %v366, %v1282
      %v1284 = vpop.f32.mrf.mxu0
      %1285 = vmatprep.mubr.bf16.mxu0 0
      %1286 = vmatmul.mubr.bf16.gmra.mxu0 %v828
      %v1287 = vpop.f32.mrf.mxu0
      %v1288 = vadd.f32 %v366, %v1287
      %v1289 = vpop.f32.mrf.mxu0
      %v1290 = vpop.f32.mrf.mxu0
      %v1291 = vadd.f32 %v366, %v1290
      %v1292 = vpop.f32.mrf.mxu0
      %1293 = vmatprep.mubr.bf16.mxu0 0
      %1294 = vmatmul.mubr.bf16.gmra.mxu0 %v831
      %v1295 = vpop.f32.mrf.mxu0
      %v1296 = vadd.f32 %v366, %v1295
      %v1297 = vpop.f32.mrf.mxu0
      %v1298 = vpop.f32.mrf.mxu0
      %v1299 = vadd.f32 %v366, %v1298
      %v1300 = vpop.f32.mrf.mxu0
      %1301 = vmatprep.mubr.bf16.mxu0 0
      %1302 = vmatmul.mubr.bf16.gmra.mxu0 %v834
      %v1303 = vpop.f32.mrf.mxu0
      %v1304 = vadd.f32 %v366, %v1303
      %v1305 = vpop.f32.mrf.mxu0
      %v1306 = vpop.f32.mrf.mxu0
      %v1307 = vadd.f32 %v366, %v1306
      %v1308 = vpop.f32.mrf.mxu0
      %1309 = vmatprep.mubr.bf16.mxu0 0
      %1310 = vmatmul.mubr.bf16.gmra.mxu0 %v837
      %v1311 = vpop.f32.mrf.mxu0
      %v1312 = vadd.f32 %v366, %v1311
      %v1313 = vpop.f32.mrf.mxu0
      %v1314 = vpop.f32.mrf.mxu0
      %v1315 = vadd.f32 %v366, %v1314
      %v1316 = vpop.f32.mrf.mxu0
      %1317 = vmatprep.mubr.bf16.mxu0 0
      %1318 = vmatmul.mubr.bf16.gmra.mxu0 %v840
      %v1319 = vpop.f32.mrf.mxu0
      %v1320 = vadd.f32 %v366, %v1319
      %v1321 = vpop.f32.mrf.mxu0
      %v1322 = vpop.f32.mrf.mxu0
      %v1323 = vadd.f32 %v366, %v1322
      %v1324 = vpop.f32.mrf.mxu0
      %1325 = vmatprep.mubr.bf16.mxu0 0
      %1326 = vmatmul.mubr.bf16.gmra.mxu0 %v843
      %v1327 = vpop.f32.mrf.mxu0
      %v1328 = vadd.f32 %v366, %v1327
      %v1329 = vpop.f32.mrf.mxu0
      %v1330 = vpop.f32.mrf.mxu0
      %v1331 = vadd.f32 %v366, %v1330
      %v1332 = vpop.f32.mrf.mxu0
      %1333 = vmatprep.mubr.bf16.mxu0 0
      %1334 = vmatmul.mubr.bf16.gmra.mxu0 %v846
      %v1335 = vpop.f32.mrf.mxu0
      %v1336 = vadd.f32 %v366, %v1335
      %v1337 = vpop.f32.mrf.mxu0
      %v1338 = vpop.f32.mrf.mxu0
      %v1339 = vadd.f32 %v366, %v1338
      %v1340 = vpop.f32.mrf.mxu0
      %1341 = vmatprep.mubr.bf16.mxu0 0
      %1342 = vmatmul.mubr.bf16.gmra.mxu0 %v849
      %v1343 = vpop.f32.mrf.mxu0
      %v1344 = vadd.f32 %v366, %v1343
      %v1345 = vpop.f32.mrf.mxu0
      %v1346 = vpop.f32.mrf.mxu0
      %v1347 = vadd.f32 %v366, %v1346
      %v1348 = vpop.f32.mrf.mxu0
      %1349 = vmatprep.mubr.bf16.mxu0 0
      %1350 = vmatmul.mubr.bf16.gmra.mxu0 %v852
      %v1351 = vpop.f32.mrf.mxu0
      %v1352 = vadd.f32 %v366, %v1351
      %v1353 = vpop.f32.mrf.mxu0
      %v1354 = vpop.f32.mrf.mxu0
      %v1355 = vadd.f32 %v366, %v1354
      %v1356 = vpop.f32.mrf.mxu0
      %1357 = vmatprep.mubr.bf16.mxu0 0
      %1358 = vmatmul.mubr.bf16.gmra.mxu0 %v855
      %v1359 = vpop.f32.mrf.mxu0
      %v1360 = vadd.f32 %v366, %v1359
      %v1361 = vpop.f32.mrf.mxu0
      %v1362 = vpop.f32.mrf.mxu0
      %v1363 = vadd.f32 %v366, %v1362
      %v1364 = vpop.f32.mrf.mxu0
      %1365 = vmatprep.mubr.bf16.mxu0 0
      %1366 = vmatmul.mubr.bf16.gmra.mxu0 %v858
      %v1367 = vpop.f32.mrf.mxu0
      %v1368 = vadd.f32 %v366, %v1367
      %v1369 = vpop.f32.mrf.mxu0
      %v1370 = vpop.f32.mrf.mxu0
      %v1371 = vadd.f32 %v366, %v1370
      %v1372 = vpop.f32.mrf.mxu0
      %1373 = vmatprep.mubr.bf16.mxu0 0
      %1374 = vmatmul.mubr.bf16.gmra.mxu0 %v861
      %v1375 = vpop.f32.mrf.mxu0
      %v1376 = vadd.f32 %v366, %v1375
      %v1377 = vpop.f32.mrf.mxu0
      %v1378 = vpop.f32.mrf.mxu0
      %v1379 = vadd.f32 %v366, %v1378
      %v1380 = vpop.f32.mrf.mxu0
      %1381 = vmatprep.mubr.bf16.mxu0 0
      %1382 = vmatmul.mubr.bf16.gmra.mxu0 %v864
      %v1383 = vpop.f32.mrf.mxu0
      %v1384 = vadd.f32 %v366, %v1383
      %v1385 = vpop.f32.mrf.mxu0
      %v1386 = vpop.f32.mrf.mxu0
      %v1387 = vadd.f32 %v366, %v1386
      %v1388 = vpop.f32.mrf.mxu0
      %1389 = vmatprep.mubr.bf16.mxu0 0
      %1390 = vmatmul.mubr.bf16.gmra.mxu0 %v867
      %v1391 = vpop.f32.mrf.mxu0
      %v1392 = vadd.f32 %v366, %v1391
      %v1393 = vpop.f32.mrf.mxu0
      %v1394 = vpop.f32.mrf.mxu0
      %v1395 = vadd.f32 %v366, %v1394
      %v1396 = vpop.f32.mrf.mxu0
      %1397 = vmatprep.mubr.bf16.mxu0 0
      %1398 = vmatmul.mubr.bf16.gmra.mxu0 %v870
      %v1399 = vpop.f32.mrf.mxu0
      %v1400 = vadd.f32 %v366, %v1399
      %v1401 = vpop.f32.mrf.mxu0
      %v1402 = vpop.f32.mrf.mxu0
      %v1403 = vadd.f32 %v366, %v1402
      %v1404 = vpop.f32.mrf.mxu0
      %1405 = vmatprep.mubr.bf16.mxu0 0
      %1406 = vmatmul.mubr.bf16.gmra.mxu0 %v873
      %v1407 = vpop.f32.mrf.mxu0
      %v1408 = vadd.f32 %v366, %v1407
      %v1409 = vpop.f32.mrf.mxu0
      %v1410 = vpop.f32.mrf.mxu0
      %v1411 = vadd.f32 %v366, %v1410
      %v1412 = vpop.f32.mrf.mxu0
      %1413 = vmatprep.mubr.bf16.mxu0 0
      %1414 = vmatmul.mubr.bf16.gmra.mxu0 %v876
      %v1415 = vpop.f32.mrf.mxu0
      %v1416 = vadd.f32 %v366, %v1415
      %v1417 = vpop.f32.mrf.mxu0
      %v1418 = vpop.f32.mrf.mxu0
      %v1419 = vadd.f32 %v366, %v1418
      %v1420 = vpop.f32.mrf.mxu0
      %1421 = vmatprep.mubr.bf16.mxu0 0
      %1422 = vmatmul.mubr.bf16.gmra.mxu0 %v879
      %v1423 = vpop.f32.mrf.mxu0
      %v1424 = vadd.f32 %v366, %v1423
      %v1425 = vpop.f32.mrf.mxu0
      %v1426 = vpop.f32.mrf.mxu0
      %v1427 = vadd.f32 %v366, %v1426
      %v1428 = vpop.f32.mrf.mxu0
      %1429 = vdwg.mxu0
      %v1430 = vmax.f32 %v920, 0.0
      %v1431 = vmax.f32 %v923, 0.0
      %v1432 = vmax.f32 %v928, 0.0
      %v1433 = vmax.f32 %v931, 0.0
      %v1434 = vmax.f32 %v936, 0.0
      %v1435 = vmax.f32 %v939, 0.0
      %v1436 = vmax.f32 %v944, 0.0
      %v1437 = vmax.f32 %v947, 0.0
      %v1438 = vmax.f32 %v952, 0.0
      %v1439 = vmax.f32 %v955, 0.0
      %v1440 = vmax.f32 %v960, 0.0
      %v1441 = vmax.f32 %v963, 0.0
      %v1442 = vmax.f32 %v968, 0.0
      %v1443 = vmax.f32 %v971, 0.0
      %v1444 = vmax.f32 %v976, 0.0
      %v1445 = vmax.f32 %v979, 0.0
      %v1446 = vmax.f32 %v984, 0.0
      %v1447 = vmax.f32 %v987, 0.0
      %v1448 = vmax.f32 %v992, 0.0
      %v1449 = vmax.f32 %v995, 0.0
      %v1450 = vmax.f32 %v1000, 0.0
      %v1451 = vmax.f32 %v1003, 0.0
      %v1452 = vmax.f32 %v1008, 0.0
      %v1453 = vmax.f32 %v1011, 0.0
      %v1454 = vmax.f32 %v1016, 0.0
      %v1455 = vmax.f32 %v1019, 0.0
      %v1456 = vmax.f32 %v1024, 0.0
      %v1457 = vmax.f32 %v1027, 0.0
      %v1458 = vmax.f32 %v1032, 0.0
      %v1459 = vmax.f32 %v1035, 0.0
      %v1460 = vmax.f32 %v1040, 0.0
      %v1461 = vmax.f32 %v1043, 0.0
      %v1462 = vmax.f32 %v1048, 0.0
      %v1463 = vmax.f32 %v1051, 0.0
      %v1464 = vmax.f32 %v1056, 0.0
      %v1465 = vmax.f32 %v1059, 0.0
      %v1466 = vmax.f32 %v1064, 0.0
      %v1467 = vmax.f32 %v1067, 0.0
      %v1468 = vmax.f32 %v1072, 0.0
      %v1469 = vmax.f32 %v1075, 0.0
      %v1470 = vmax.f32 %v1080, 0.0
      %v1471 = vmax.f32 %v1083, 0.0
      %v1472 = vmax.f32 %v1088, 0.0
      %v1473 = vmax.f32 %v1091, 0.0
      %v1474 = vmax.f32 %v1096, 0.0
      %v1475 = vmax.f32 %v1099, 0.0
      %v1476 = vmax.f32 %v1104, 0.0
      %v1477 = vmax.f32 %v1107, 0.0
      %v1478 = vmax.f32 %v1112, 0.0
      %v1479 = vmax.f32 %v1115, 0.0
      %v1480 = vmax.f32 %v1120, 0.0
      %v1481 = vmax.f32 %v1123, 0.0
      %v1482 = vmax.f32 %v1128, 0.0
      %v1483 = vmax.f32 %v1131, 0.0
      %v1484 = vmax.f32 %v1136, 0.0
      %v1485 = vmax.f32 %v1139, 0.0
      %v1486 = vmax.f32 %v1144, 0.0
      %v1487 = vmax.f32 %v1147, 0.0
      %v1488 = vmax.f32 %v1152, 0.0
      %v1489 = vmax.f32 %v1155, 0.0
      %v1490 = vmax.f32 %v1160, 0.0
      %v1491 = vmax.f32 %v1163, 0.0
      %v1492 = vmax.f32 %v1168, 0.0
      %v1493 = vmax.f32 %v1171, 0.0
      %v1494 = vmax.f32 %v1176, 0.0
      %v1495 = vmax.f32 %v1179, 0.0
      %v1496 = vmax.f32 %v1184, 0.0
      %v1497 = vmax.f32 %v1187, 0.0
      %v1498 = vmax.f32 %v1192, 0.0
      %v1499 = vmax.f32 %v1195, 0.0
      %v1500 = vmax.f32 %v1200, 0.0
      %v1501 = vmax.f32 %v1203, 0.0
      %v1502 = vmax.f32 %v1208, 0.0
      %v1503 = vmax.f32 %v1211, 0.0
      %v1504 = vmax.f32 %v1216, 0.0
      %v1505 = vmax.f32 %v1219, 0.0
      %v1506 = vmax.f32 %v1224, 0.0
      %v1507 = vmax.f32 %v1227, 0.0
      %v1508 = vmax.f32 %v1232, 0.0
      %v1509 = vmax.f32 %v1235, 0.0
      %v1510 = vmax.f32 %v1240, 0.0
      %v1511 = vmax.f32 %v1243, 0.0
      %v1512 = vmax.f32 %v1248, 0.0
      %v1513 = vmax.f32 %v1251, 0.0
      %v1514 = vmax.f32 %v1256, 0.0
      %v1515 = vmax.f32 %v1259, 0.0
      %v1516 = vmax.f32 %v1264, 0.0
      %v1517 = vmax.f32 %v1267, 0.0
      %v1518 = vmax.f32 %v1272, 0.0
      %v1519 = vmax.f32 %v1275, 0.0
      %v1520 = vmax.f32 %v1280, 0.0
      %v1521 = vmax.f32 %v1283, 0.0
      %v1522 = vmax.f32 %v1288, 0.0
      %v1523 = vmax.f32 %v1291, 0.0
      %v1524 = vmax.f32 %v1296, 0.0
      %v1525 = vmax.f32 %v1299, 0.0
      %v1526 = vmax.f32 %v1304, 0.0
      %v1527 = vmax.f32 %v1307, 0.0
      %v1528 = vmax.f32 %v1312, 0.0
      %v1529 = vmax.f32 %v1315, 0.0
      %v1530 = vmax.f32 %v1320, 0.0
      %v1531 = vmax.f32 %v1323, 0.0
      %v1532 = vmax.f32 %v1328, 0.0
      %v1533 = vmax.f32 %v1331, 0.0
      %v1534 = vmax.f32 %v1336, 0.0
      %v1535 = vmax.f32 %v1339, 0.0
      %v1536 = vmax.f32 %v1344, 0.0
      %v1537 = vmax.f32 %v1347, 0.0
      %v1538 = vmax.f32 %v1352, 0.0
      %v1539 = vmax.f32 %v1355, 0.0
      %v1540 = vmax.f32 %v1360, 0.0
      %v1541 = vmax.f32 %v1363, 0.0
      %v1542 = vmax.f32 %v1368, 0.0
      %v1543 = vmax.f32 %v1371, 0.0
      %v1544 = vmax.f32 %v1376, 0.0
      %v1545 = vmax.f32 %v1379, 0.0
      %v1546 = vmax.f32 %v1384, 0.0
      %v1547 = vmax.f32 %v1387, 0.0
      %v1548 = vmax.f32 %v1392, 0.0
      %v1549 = vmax.f32 %v1395, 0.0
      %v1550 = vmax.f32 %v1400, 0.0
      %v1551 = vmax.f32 %v1403, 0.0
      %v1552 = vmax.f32 %v1408, 0.0
      %v1553 = vmax.f32 %v1411, 0.0
      %v1554 = vmax.f32 %v1416, 0.0
      %v1555 = vmax.f32 %v1419, 0.0
      %v1556 = vmax.f32 %v1424, 0.0
      %v1557 = vmax.f32 %v1427, 0.0
      %v1558 = vpack.c.bf16 %v1431, %v1430
      %v1559 = vpack.c.bf16 %v1433, %v1432
      %v1560 = vpack.c.bf16 %v1435, %v1434
      %v1561 = vpack.c.bf16 %v1437, %v1436
      %v1562 = vpack.c.bf16 %v1439, %v1438
      %v1563 = vpack.c.bf16 %v1441, %v1440
      %v1564 = vpack.c.bf16 %v1443, %v1442
      %v1565 = vpack.c.bf16 %v1445, %v1444
      %v1566 = vpack.c.bf16 %v1447, %v1446
      %v1567 = vpack.c.bf16 %v1449, %v1448
      %v1568 = vpack.c.bf16 %v1451, %v1450
      %v1569 = vpack.c.bf16 %v1453, %v1452
      %v1570 = vpack.c.bf16 %v1455, %v1454
      %v1571 = vpack.c.bf16 %v1457, %v1456
      %v1572 = vpack.c.bf16 %v1459, %v1458
      %v1573 = vpack.c.bf16 %v1461, %v1460
      %v1574 = vpack.c.bf16 %v1463, %v1462
      %v1575 = vpack.c.bf16 %v1465, %v1464
      %v1576 = vpack.c.bf16 %v1467, %v1466
      %v1577 = vpack.c.bf16 %v1469, %v1468
      %v1578 = vpack.c.bf16 %v1471, %v1470
      %v1579 = vpack.c.bf16 %v1473, %v1472
      %v1580 = vpack.c.bf16 %v1475, %v1474
      %v1581 = vpack.c.bf16 %v1477, %v1476
      %v1582 = vpack.c.bf16 %v1479, %v1478
      %v1583 = vpack.c.bf16 %v1481, %v1480
      %v1584 = vpack.c.bf16 %v1483, %v1482
      %v1585 = vpack.c.bf16 %v1485, %v1484
      %v1586 = vpack.c.bf16 %v1487, %v1486
      %v1587 = vpack.c.bf16 %v1489, %v1488
      %v1588 = vpack.c.bf16 %v1491, %v1490
      %v1589 = vpack.c.bf16 %v1493, %v1492
      %v1590 = vpack.c.bf16 %v1495, %v1494
      %v1591 = vpack.c.bf16 %v1497, %v1496
      %v1592 = vpack.c.bf16 %v1499, %v1498
      %v1593 = vpack.c.bf16 %v1501, %v1500
      %v1594 = vpack.c.bf16 %v1503, %v1502
      %v1595 = vpack.c.bf16 %v1505, %v1504
      %v1596 = vpack.c.bf16 %v1507, %v1506
      %v1597 = vpack.c.bf16 %v1509, %v1508
      %v1598 = vpack.c.bf16 %v1511, %v1510
      %v1599 = vpack.c.bf16 %v1513, %v1512
      %v1600 = vpack.c.bf16 %v1515, %v1514
      %v1601 = vpack.c.bf16 %v1517, %v1516
      %v1602 = vpack.c.bf16 %v1519, %v1518
      %v1603 = vpack.c.bf16 %v1521, %v1520
      %v1604 = vpack.c.bf16 %v1523, %v1522
      %v1605 = vpack.c.bf16 %v1525, %v1524
      %v1606 = vpack.c.bf16 %v1527, %v1526
      %v1607 = vpack.c.bf16 %v1529, %v1528
      %v1608 = vpack.c.bf16 %v1531, %v1530
      %v1609 = vpack.c.bf16 %v1533, %v1532
      %v1610 = vpack.c.bf16 %v1535, %v1534
      %v1611 = vpack.c.bf16 %v1537, %v1536
      %v1612 = vpack.c.bf16 %v1539, %v1538
      %v1613 = vpack.c.bf16 %v1541, %v1540
      %v1614 = vpack.c.bf16 %v1543, %v1542
      %v1615 = vpack.c.bf16 %v1545, %v1544
      %v1616 = vpack.c.bf16 %v1547, %v1546
      %v1617 = vpack.c.bf16 %v1549, %v1548
      %v1618 = vpack.c.bf16 %v1551, %v1550
      %v1619 = vpack.c.bf16 %v1553, %v1552
      %v1620 = vpack.c.bf16 %v1555, %v1554
      %v1621 = vpack.c.bf16 %v1557, %v1556
      %v1622 = vld [vmem:[%s3] sm:$0xf]
      %v1623 = vld [vmem:[%s3 + $0x4] sm:$0xf]
      %v1624 = vld [vmem:[%s4] sm:$0x1]
      %v1626 = vlaneseq
      %v1627 = vshrl.u32 %v1626, 7
      %v1628 = vsub.s32 0, %v1627
      %v1629 = vrot.slane %v1624, %v1628
      %v1633 = vunpack.c.l.b16 %v1622
      %v1634 = vunpack.c.l.b16 %v1623
      %v1635 = vpack.c.b16 %v1634, %v1633
      %vm1637 = vcmask 130048
      %v1639 = vsel %vm1637, %v1558, 0
      %v1642 = vsel %vm1637, %v1559, 0
      %v1645 = vsel %vm1637, %v1560, 0
      %v1648 = vsel %vm1637, %v1561, 0
      %v1651 = vsel %vm1637, %v1562, 0
      %v1654 = vsel %vm1637, %v1563, 0
      %v1657 = vsel %vm1637, %v1564, 0
      %v1660 = vsel %vm1637, %v1565, 0
      %v1663 = vsel %vm1637, %v1566, 0
      %v1666 = vsel %vm1637, %v1567, 0
      %v1669 = vsel %vm1637, %v1568, 0
      %v1672 = vsel %vm1637, %v1569, 0
      %v1675 = vsel %vm1637, %v1570, 0
      %v1678 = vsel %vm1637, %v1571, 0
      %v1681 = vsel %vm1637, %v1572, 0
      %v1684 = vsel %vm1637, %v1573, 0
      %v1687 = vsel %vm1637, %v1574, 0
      %v1690 = vsel %vm1637, %v1575, 0
      %v1693 = vsel %vm1637, %v1576, 0
      %v1696 = vsel %vm1637, %v1577, 0
      %v1699 = vsel %vm1637, %v1578, 0
      %v1702 = vsel %vm1637, %v1579, 0
      %v1705 = vsel %vm1637, %v1580, 0
      %v1708 = vsel %vm1637, %v1581, 0
      %v1711 = vsel %vm1637, %v1582, 0
      %v1714 = vsel %vm1637, %v1583, 0
      %v1717 = vsel %vm1637, %v1584, 0
      %v1720 = vsel %vm1637, %v1585, 0
      %v1723 = vsel %vm1637, %v1586, 0
      %v1726 = vsel %vm1637, %v1587, 0
      %v1729 = vsel %vm1637, %v1588, 0
      %v1732 = vsel %vm1637, %v1589, 0
      %v1735 = vsel %vm1637, %v1590, 0
      %v1738 = vsel %vm1637, %v1591, 0
      %v1741 = vsel %vm1637, %v1592, 0
      %v1744 = vsel %vm1637, %v1593, 0
      %v1747 = vsel %vm1637, %v1594, 0
      %v1750 = vsel %vm1637, %v1595, 0
      %v1753 = vsel %vm1637, %v1596, 0
      %v1756 = vsel %vm1637, %v1597, 0
      %v1759 = vsel %vm1637, %v1598, 0
      %v1762 = vsel %vm1637, %v1599, 0
      %v1765 = vsel %vm1637, %v1600, 0
      %v1768 = vsel %vm1637, %v1601, 0
      %v1771 = vsel %vm1637, %v1602, 0
      %v1774 = vsel %vm1637, %v1603, 0
      %v1777 = vsel %vm1637, %v1604, 0
      %v1780 = vsel %vm1637, %v1605, 0
      %v1783 = vsel %vm1637, %v1606, 0
      %v1786 = vsel %vm1637, %v1607, 0
      %v1789 = vsel %vm1637, %v1608, 0
      %v1792 = vsel %vm1637, %v1609, 0
      %v1795 = vsel %vm1637, %v1610, 0
      %v1798 = vsel %vm1637, %v1611, 0
      %v1801 = vsel %vm1637, %v1612, 0
      %v1804 = vsel %vm1637, %v1613, 0
      %v1807 = vsel %vm1637, %v1614, 0
      %v1810 = vsel %vm1637, %v1615, 0
      %v1813 = vsel %vm1637, %v1616, 0
      %v1816 = vsel %vm1637, %v1617, 0
      %v1819 = vsel %vm1637, %v1618, 0
      %v1822 = vsel %vm1637, %v1619, 0
      %v1825 = vsel %vm1637, %v1620, 0
      %v1828 = vsel %vm1637, %v1621, 0
      %1830 = vmatprep.subr.bf16.mxu0 0
      %1831 = vmatpush1.bf16.msra.mxu0 0
      %1832 = vmatprep.subr.bf16.mxu0 0
      %1833 = vmatpush1.bf16.msra.mxu0 0
      %1834 = vmatprep.subr.bf16.mxu0 0
      %1835 = vmatpush1.bf16.msra.mxu0 0
      %1836 = vmatprep.subr.bf16.mxu0 0
      %1837 = vmatpush1.bf16.msra.mxu0 0
      %1838 = vmatprep.subr.bf16.mxu0 0
      %1839 = vmatpush1.bf16.msra.mxu0 0
      %1840 = vmatprep.subr.bf16.mxu0 0
      %1841 = vmatpush1.bf16.msra.mxu0 0
      %1842 = vmatprep.subr.bf16.mxu0 0
      %1843 = vmatpush1.bf16.msra.mxu0 0
      %1844 = vmatprep.subr.bf16.mxu0 0
      %1845 = vmatpush1.bf16.msra.mxu0 %v1635
      %1846 = vmatprep.subr.bf16.mxu0 0
      %1847 = vmatpush2.bf16.msra.mxu0 0
      %1848 = vmatprep.subr.bf16.mxu0 0
      %1849 = vmatpush2.bf16.msra.mxu0 0
      %1850 = vmatprep.subr.bf16.mxu0 0
      %1851 = vmatpush2.bf16.msra.mxu0 0
      %1852 = vmatprep.subr.bf16.mxu0 0
      %1853 = vmatpush2.bf16.msra.mxu0 0
      %1854 = vmatprep.subr.bf16.mxu0 0
      %1855 = vmatpush2.bf16.msra.mxu0 0
      %1856 = vmatprep.subr.bf16.mxu0 0
      %1857 = vmatpush2.bf16.msra.mxu0 0
      %1858 = vmatprep.subr.bf16.mxu0 0
      %1859 = vmatpush2.bf16.msra.mxu0 0
      %1860 = vmatprep.subr.bf16.mxu0 0
      %1861 = vmatpush2.bf16.msra.mxu0 0
      %1862 = vmatprep.mubr.bf16.mxu0 0
      %1863 = vmatmul.mubr.bf16.gmra.mxu0 %v1639
      %v1864 = vpop.f32.mrf.mxu0
      %v1865 = vadd.f32 %v1629, %v1864
      %v1866 = vpop.f32.mrf.mxu0
      %v1867 = vpop.f32.mrf.mxu0
      %v1868 = vadd.f32 %v1629, %v1867
      %v1869 = vpop.f32.mrf.mxu0
      %1870 = vmatprep.mubr.bf16.mxu0 0
      %1871 = vmatmul.mubr.bf16.gmra.mxu0 %v1642
      %v1872 = vpop.f32.mrf.mxu0
      %v1873 = vadd.f32 %v1629, %v1872
      %v1874 = vpop.f32.mrf.mxu0
      %v1875 = vpop.f32.mrf.mxu0
      %v1876 = vadd.f32 %v1629, %v1875
      %v1877 = vpop.f32.mrf.mxu0
      %1878 = vmatprep.mubr.bf16.mxu0 0
      %1879 = vmatmul.mubr.bf16.gmra.mxu0 %v1645
      %v1880 = vpop.f32.mrf.mxu0
      %v1881 = vadd.f32 %v1629, %v1880
      %v1882 = vpop.f32.mrf.mxu0
      %v1883 = vpop.f32.mrf.mxu0
      %v1884 = vadd.f32 %v1629, %v1883
      %v1885 = vpop.f32.mrf.mxu0
      %1886 = vmatprep.mubr.bf16.mxu0 0
      %1887 = vmatmul.mubr.bf16.gmra.mxu0 %v1648
      %v1888 = vpop.f32.mrf.mxu0
      %v1889 = vadd.f32 %v1629, %v1888
      %v1890 = vpop.f32.mrf.mxu0
      %v1891 = vpop.f32.mrf.mxu0
      %v1892 = vadd.f32 %v1629, %v1891
      %v1893 = vpop.f32.mrf.mxu0
      %1894 = vmatprep.mubr.bf16.mxu0 0
      %1895 = vmatmul.mubr.bf16.gmra.mxu0 %v1651
      %v1896 = vpop.f32.mrf.mxu0
      %v1897 = vadd.f32 %v1629, %v1896
      %v1898 = vpop.f32.mrf.mxu0
      %v1899 = vpop.f32.mrf.mxu0
      %v1900 = vadd.f32 %v1629, %v1899
      %v1901 = vpop.f32.mrf.mxu0
      %1902 = vmatprep.mubr.bf16.mxu0 0
      %1903 = vmatmul.mubr.bf16.gmra.mxu0 %v1654
      %v1904 = vpop.f32.mrf.mxu0
      %v1905 = vadd.f32 %v1629, %v1904
      %v1906 = vpop.f32.mrf.mxu0
      %v1907 = vpop.f32.mrf.mxu0
      %v1908 = vadd.f32 %v1629, %v1907
      %v1909 = vpop.f32.mrf.mxu0
      %1910 = vmatprep.mubr.bf16.mxu0 0
      %1911 = vmatmul.mubr.bf16.gmra.mxu0 %v1657
      %v1912 = vpop.f32.mrf.mxu0
      %v1913 = vadd.f32 %v1629, %v1912
      %v1914 = vpop.f32.mrf.mxu0
      %v1915 = vpop.f32.mrf.mxu0
      %v1916 = vadd.f32 %v1629, %v1915
      %v1917 = vpop.f32.mrf.mxu0
      %1918 = vmatprep.mubr.bf16.mxu0 0
      %1919 = vmatmul.mubr.bf16.gmra.mxu0 %v1660
      %v1920 = vpop.f32.mrf.mxu0
      %v1921 = vadd.f32 %v1629, %v1920
      %v1922 = vpop.f32.mrf.mxu0
      %v1923 = vpop.f32.mrf.mxu0
      %v1924 = vadd.f32 %v1629, %v1923
      %v1925 = vpop.f32.mrf.mxu0
      %1926 = vmatprep.mubr.bf16.mxu0 0
      %1927 = vmatmul.mubr.bf16.gmra.mxu0 %v1663
      %v1928 = vpop.f32.mrf.mxu0
      %v1929 = vadd.f32 %v1629, %v1928
      %v1930 = vpop.f32.mrf.mxu0
      %v1931 = vpop.f32.mrf.mxu0
      %v1932 = vadd.f32 %v1629, %v1931
      %v1933 = vpop.f32.mrf.mxu0
      %1934 = vmatprep.mubr.bf16.mxu0 0
      %1935 = vmatmul.mubr.bf16.gmra.mxu0 %v1666
      %v1936 = vpop.f32.mrf.mxu0
      %v1937 = vadd.f32 %v1629, %v1936
      %v1938 = vpop.f32.mrf.mxu0
      %v1939 = vpop.f32.mrf.mxu0
      %v1940 = vadd.f32 %v1629, %v1939
      %v1941 = vpop.f32.mrf.mxu0
      %1942 = vmatprep.mubr.bf16.mxu0 0
      %1943 = vmatmul.mubr.bf16.gmra.mxu0 %v1669
      %v1944 = vpop.f32.mrf.mxu0
      %v1945 = vadd.f32 %v1629, %v1944
      %v1946 = vpop.f32.mrf.mxu0
      %v1947 = vpop.f32.mrf.mxu0
      %v1948 = vadd.f32 %v1629, %v1947
      %v1949 = vpop.f32.mrf.mxu0
      %1950 = vmatprep.mubr.bf16.mxu0 0
      %1951 = vmatmul.mubr.bf16.gmra.mxu0 %v1672
      %v1952 = vpop.f32.mrf.mxu0
      %v1953 = vadd.f32 %v1629, %v1952
      %v1954 = vpop.f32.mrf.mxu0
      %v1955 = vpop.f32.mrf.mxu0
      %v1956 = vadd.f32 %v1629, %v1955
      %v1957 = vpop.f32.mrf.mxu0
      %1958 = vmatprep.mubr.bf16.mxu0 0
      %1959 = vmatmul.mubr.bf16.gmra.mxu0 %v1675
      %v1960 = vpop.f32.mrf.mxu0
      %v1961 = vadd.f32 %v1629, %v1960
      %v1962 = vpop.f32.mrf.mxu0
      %v1963 = vpop.f32.mrf.mxu0
      %v1964 = vadd.f32 %v1629, %v1963
      %v1965 = vpop.f32.mrf.mxu0
      %1966 = vmatprep.mubr.bf16.mxu0 0
      %1967 = vmatmul.mubr.bf16.gmra.mxu0 %v1678
      %v1968 = vpop.f32.mrf.mxu0
      %v1969 = vadd.f32 %v1629, %v1968
      %v1970 = vpop.f32.mrf.mxu0
      %v1971 = vpop.f32.mrf.mxu0
      %v1972 = vadd.f32 %v1629, %v1971
      %v1973 = vpop.f32.mrf.mxu0
      %1974 = vmatprep.mubr.bf16.mxu0 0
      %1975 = vmatmul.mubr.bf16.gmra.mxu0 %v1681
      %v1976 = vpop.f32.mrf.mxu0
      %v1977 = vadd.f32 %v1629, %v1976
      %v1978 = vpop.f32.mrf.mxu0
      %v1979 = vpop.f32.mrf.mxu0
      %v1980 = vadd.f32 %v1629, %v1979
      %v1981 = vpop.f32.mrf.mxu0
      %1982 = vmatprep.mubr.bf16.mxu0 0
      %1983 = vmatmul.mubr.bf16.gmra.mxu0 %v1684
      %v1984 = vpop.f32.mrf.mxu0
      %v1985 = vadd.f32 %v1629, %v1984
      %v1986 = vpop.f32.mrf.mxu0
      %v1987 = vpop.f32.mrf.mxu0
      %v1988 = vadd.f32 %v1629, %v1987
      %v1989 = vpop.f32.mrf.mxu0
      %1990 = vmatprep.mubr.bf16.mxu0 0
      %1991 = vmatmul.mubr.bf16.gmra.mxu0 %v1687
      %v1992 = vpop.f32.mrf.mxu0
      %v1993 = vadd.f32 %v1629, %v1992
      %v1994 = vpop.f32.mrf.mxu0
      %v1995 = vpop.f32.mrf.mxu0
      %v1996 = vadd.f32 %v1629, %v1995
      %v1997 = vpop.f32.mrf.mxu0
      %1998 = vmatprep.mubr.bf16.mxu0 0
      %1999 = vmatmul.mubr.bf16.gmra.mxu0 %v1690
      %v2000 = vpop.f32.mrf.mxu0
      %v2001 = vadd.f32 %v1629, %v2000
      %v2002 = vpop.f32.mrf.mxu0
      %v2003 = vpop.f32.mrf.mxu0
      %v2004 = vadd.f32 %v1629, %v2003
      %v2005 = vpop.f32.mrf.mxu0
      %2006 = vmatprep.mubr.bf16.mxu0 0
      %2007 = vmatmul.mubr.bf16.gmra.mxu0 %v1693
      %v2008 = vpop.f32.mrf.mxu0
      %v2009 = vadd.f32 %v1629, %v2008
      %v2010 = vpop.f32.mrf.mxu0
      %v2011 = vpop.f32.mrf.mxu0
      %v2012 = vadd.f32 %v1629, %v2011
      %v2013 = vpop.f32.mrf.mxu0
      %2014 = vmatprep.mubr.bf16.mxu0 0
      %2015 = vmatmul.mubr.bf16.gmra.mxu0 %v1696
      %v2016 = vpop.f32.mrf.mxu0
      %v2017 = vadd.f32 %v1629, %v2016
      %v2018 = vpop.f32.mrf.mxu0
      %v2019 = vpop.f32.mrf.mxu0
      %v2020 = vadd.f32 %v1629, %v2019
      %v2021 = vpop.f32.mrf.mxu0
      %2022 = vmatprep.mubr.bf16.mxu0 0
      %2023 = vmatmul.mubr.bf16.gmra.mxu0 %v1699
      %v2024 = vpop.f32.mrf.mxu0
      %v2025 = vadd.f32 %v1629, %v2024
      %v2026 = vpop.f32.mrf.mxu0
      %v2027 = vpop.f32.mrf.mxu0
      %v2028 = vadd.f32 %v1629, %v2027
      %v2029 = vpop.f32.mrf.mxu0
      %2030 = vmatprep.mubr.bf16.mxu0 0
      %2031 = vmatmul.mubr.bf16.gmra.mxu0 %v1702
      %v2032 = vpop.f32.mrf.mxu0
      %v2033 = vadd.f32 %v1629, %v2032
      %v2034 = vpop.f32.mrf.mxu0
      %v2035 = vpop.f32.mrf.mxu0
      %v2036 = vadd.f32 %v1629, %v2035
      %v2037 = vpop.f32.mrf.mxu0
      %2038 = vmatprep.mubr.bf16.mxu0 0
      %2039 = vmatmul.mubr.bf16.gmra.mxu0 %v1705
      %v2040 = vpop.f32.mrf.mxu0
      %v2041 = vadd.f32 %v1629, %v2040
      %v2042 = vpop.f32.mrf.mxu0
      %v2043 = vpop.f32.mrf.mxu0
      %v2044 = vadd.f32 %v1629, %v2043
      %v2045 = vpop.f32.mrf.mxu0
      %2046 = vmatprep.mubr.bf16.mxu0 0
      %2047 = vmatmul.mubr.bf16.gmra.mxu0 %v1708
      %v2048 = vpop.f32.mrf.mxu0
      %v2049 = vadd.f32 %v1629, %v2048
      %v2050 = vpop.f32.mrf.mxu0
      %v2051 = vpop.f32.mrf.mxu0
      %v2052 = vadd.f32 %v1629, %v2051
      %v2053 = vpop.f32.mrf.mxu0
      %2054 = vmatprep.mubr.bf16.mxu0 0
      %2055 = vmatmul.mubr.bf16.gmra.mxu0 %v1711
      %v2056 = vpop.f32.mrf.mxu0
      %v2057 = vadd.f32 %v1629, %v2056
      %v2058 = vpop.f32.mrf.mxu0
      %v2059 = vpop.f32.mrf.mxu0
      %v2060 = vadd.f32 %v1629, %v2059
      %v2061 = vpop.f32.mrf.mxu0
      %2062 = vmatprep.mubr.bf16.mxu0 0
      %2063 = vmatmul.mubr.bf16.gmra.mxu0 %v1714
      %v2064 = vpop.f32.mrf.mxu0
      %v2065 = vadd.f32 %v1629, %v2064
      %v2066 = vpop.f32.mrf.mxu0
      %v2067 = vpop.f32.mrf.mxu0
      %v2068 = vadd.f32 %v1629, %v2067
      %v2069 = vpop.f32.mrf.mxu0
      %2070 = vmatprep.mubr.bf16.mxu0 0
      %2071 = vmatmul.mubr.bf16.gmra.mxu0 %v1717
      %v2072 = vpop.f32.mrf.mxu0
      %v2073 = vadd.f32 %v1629, %v2072
      %v2074 = vpop.f32.mrf.mxu0
      %v2075 = vpop.f32.mrf.mxu0
      %v2076 = vadd.f32 %v1629, %v2075
      %v2077 = vpop.f32.mrf.mxu0
      %2078 = vmatprep.mubr.bf16.mxu0 0
      %2079 = vmatmul.mubr.bf16.gmra.mxu0 %v1720
      %v2080 = vpop.f32.mrf.mxu0
      %v2081 = vadd.f32 %v1629, %v2080
      %v2082 = vpop.f32.mrf.mxu0
      %v2083 = vpop.f32.mrf.mxu0
      %v2084 = vadd.f32 %v1629, %v2083
      %v2085 = vpop.f32.mrf.mxu0
      %2086 = vmatprep.mubr.bf16.mxu0 0
      %2087 = vmatmul.mubr.bf16.gmra.mxu0 %v1723
      %v2088 = vpop.f32.mrf.mxu0
      %v2089 = vadd.f32 %v1629, %v2088
      %v2090 = vpop.f32.mrf.mxu0
      %v2091 = vpop.f32.mrf.mxu0
      %v2092 = vadd.f32 %v1629, %v2091
      %v2093 = vpop.f32.mrf.mxu0
      %2094 = vmatprep.mubr.bf16.mxu0 0
      %2095 = vmatmul.mubr.bf16.gmra.mxu0 %v1726
      %v2096 = vpop.f32.mrf.mxu0
      %v2097 = vadd.f32 %v1629, %v2096
      %v2098 = vpop.f32.mrf.mxu0
      %v2099 = vpop.f32.mrf.mxu0
      %v2100 = vadd.f32 %v1629, %v2099
      %v2101 = vpop.f32.mrf.mxu0
      %2102 = vmatprep.mubr.bf16.mxu0 0
      %2103 = vmatmul.mubr.bf16.gmra.mxu0 %v1729
      %v2104 = vpop.f32.mrf.mxu0
      %v2105 = vadd.f32 %v1629, %v2104
      %v2106 = vpop.f32.mrf.mxu0
      %v2107 = vpop.f32.mrf.mxu0
      %v2108 = vadd.f32 %v1629, %v2107
      %v2109 = vpop.f32.mrf.mxu0
      %2110 = vmatprep.mubr.bf16.mxu0 0
      %2111 = vmatmul.mubr.bf16.gmra.mxu0 %v1732
      %v2112 = vpop.f32.mrf.mxu0
      %v2113 = vadd.f32 %v1629, %v2112
      %v2114 = vpop.f32.mrf.mxu0
      %v2115 = vpop.f32.mrf.mxu0
      %v2116 = vadd.f32 %v1629, %v2115
      %v2117 = vpop.f32.mrf.mxu0
      %2118 = vmatprep.mubr.bf16.mxu0 0
      %2119 = vmatmul.mubr.bf16.gmra.mxu0 %v1735
      %v2120 = vpop.f32.mrf.mxu0
      %v2121 = vadd.f32 %v1629, %v2120
      %v2122 = vpop.f32.mrf.mxu0
      %v2123 = vpop.f32.mrf.mxu0
      %v2124 = vadd.f32 %v1629, %v2123
      %v2125 = vpop.f32.mrf.mxu0
      %2126 = vmatprep.mubr.bf16.mxu0 0
      %2127 = vmatmul.mubr.bf16.gmra.mxu0 %v1738
      %v2128 = vpop.f32.mrf.mxu0
      %v2129 = vadd.f32 %v1629, %v2128
      %v2130 = vpop.f32.mrf.mxu0
      %v2131 = vpop.f32.mrf.mxu0
      %v2132 = vadd.f32 %v1629, %v2131
      %v2133 = vpop.f32.mrf.mxu0
      %2134 = vmatprep.mubr.bf16.mxu0 0
      %2135 = vmatmul.mubr.bf16.gmra.mxu0 %v1741
      %v2136 = vpop.f32.mrf.mxu0
      %v2137 = vadd.f32 %v1629, %v2136
      %v2138 = vpop.f32.mrf.mxu0
      %v2139 = vpop.f32.mrf.mxu0
      %v2140 = vadd.f32 %v1629, %v2139
      %v2141 = vpop.f32.mrf.mxu0
      %2142 = vmatprep.mubr.bf16.mxu0 0
      %2143 = vmatmul.mubr.bf16.gmra.mxu0 %v1744
      %v2144 = vpop.f32.mrf.mxu0
      %v2145 = vadd.f32 %v1629, %v2144
      %v2146 = vpop.f32.mrf.mxu0
      %v2147 = vpop.f32.mrf.mxu0
      %v2148 = vadd.f32 %v1629, %v2147
      %v2149 = vpop.f32.mrf.mxu0
      %2150 = vmatprep.mubr.bf16.mxu0 0
      %2151 = vmatmul.mubr.bf16.gmra.mxu0 %v1747
      %v2152 = vpop.f32.mrf.mxu0
      %v2153 = vadd.f32 %v1629, %v2152
      %v2154 = vpop.f32.mrf.mxu0
      %v2155 = vpop.f32.mrf.mxu0
      %v2156 = vadd.f32 %v1629, %v2155
      %v2157 = vpop.f32.mrf.mxu0
      %2158 = vmatprep.mubr.bf16.mxu0 0
      %2159 = vmatmul.mubr.bf16.gmra.mxu0 %v1750
      %v2160 = vpop.f32.mrf.mxu0
      %v2161 = vadd.f32 %v1629, %v2160
      %v2162 = vpop.f32.mrf.mxu0
      %v2163 = vpop.f32.mrf.mxu0
      %v2164 = vadd.f32 %v1629, %v2163
      %v2165 = vpop.f32.mrf.mxu0
      %2166 = vmatprep.mubr.bf16.mxu0 0
      %2167 = vmatmul.mubr.bf16.gmra.mxu0 %v1753
      %v2168 = vpop.f32.mrf.mxu0
      %v2169 = vadd.f32 %v1629, %v2168
      %v2170 = vpop.f32.mrf.mxu0
      %v2171 = vpop.f32.mrf.mxu0
      %v2172 = vadd.f32 %v1629, %v2171
      %v2173 = vpop.f32.mrf.mxu0
      %2174 = vmatprep.mubr.bf16.mxu0 0
      %2175 = vmatmul.mubr.bf16.gmra.mxu0 %v1756
      %v2176 = vpop.f32.mrf.mxu0
      %v2177 = vadd.f32 %v1629, %v2176
      %v2178 = vpop.f32.mrf.mxu0
      %v2179 = vpop.f32.mrf.mxu0
      %v2180 = vadd.f32 %v1629, %v2179
      %v2181 = vpop.f32.mrf.mxu0
      %2182 = vmatprep.mubr.bf16.mxu0 0
      %2183 = vmatmul.mubr.bf16.gmra.mxu0 %v1759
      %v2184 = vpop.f32.mrf.mxu0
      %v2185 = vadd.f32 %v1629, %v2184
      %v2186 = vpop.f32.mrf.mxu0
      %v2187 = vpop.f32.mrf.mxu0
      %v2188 = vadd.f32 %v1629, %v2187
      %v2189 = vpop.f32.mrf.mxu0
      %2190 = vmatprep.mubr.bf16.mxu0 0
      %2191 = vmatmul.mubr.bf16.gmra.mxu0 %v1762
      %v2192 = vpop.f32.mrf.mxu0
      %v2193 = vadd.f32 %v1629, %v2192
      %v2194 = vpop.f32.mrf.mxu0
      %v2195 = vpop.f32.mrf.mxu0
      %v2196 = vadd.f32 %v1629, %v2195
      %v2197 = vpop.f32.mrf.mxu0
      %2198 = vmatprep.mubr.bf16.mxu0 0
      %2199 = vmatmul.mubr.bf16.gmra.mxu0 %v1765
      %v2200 = vpop.f32.mrf.mxu0
      %v2201 = vadd.f32 %v1629, %v2200
      %v2202 = vpop.f32.mrf.mxu0
      %v2203 = vpop.f32.mrf.mxu0
      %v2204 = vadd.f32 %v1629, %v2203
      %v2205 = vpop.f32.mrf.mxu0
      %2206 = vmatprep.mubr.bf16.mxu0 0
      %2207 = vmatmul.mubr.bf16.gmra.mxu0 %v1768
      %v2208 = vpop.f32.mrf.mxu0
      %v2209 = vadd.f32 %v1629, %v2208
      %v2210 = vpop.f32.mrf.mxu0
      %v2211 = vpop.f32.mrf.mxu0
      %v2212 = vadd.f32 %v1629, %v2211
      %v2213 = vpop.f32.mrf.mxu0
      %2214 = vmatprep.mubr.bf16.mxu0 0
      %2215 = vmatmul.mubr.bf16.gmra.mxu0 %v1771
      %v2216 = vpop.f32.mrf.mxu0
      %v2217 = vadd.f32 %v1629, %v2216
      %v2218 = vpop.f32.mrf.mxu0
      %v2219 = vpop.f32.mrf.mxu0
      %v2220 = vadd.f32 %v1629, %v2219
      %v2221 = vpop.f32.mrf.mxu0
      %2222 = vmatprep.mubr.bf16.mxu0 0
      %2223 = vmatmul.mubr.bf16.gmra.mxu0 %v1774
      %v2224 = vpop.f32.mrf.mxu0
      %v2225 = vadd.f32 %v1629, %v2224
      %v2226 = vpop.f32.mrf.mxu0
      %v2227 = vpop.f32.mrf.mxu0
      %v2228 = vadd.f32 %v1629, %v2227
      %v2229 = vpop.f32.mrf.mxu0
      %2230 = vmatprep.mubr.bf16.mxu0 0
      %2231 = vmatmul.mubr.bf16.gmra.mxu0 %v1777
      %v2232 = vpop.f32.mrf.mxu0
      %v2233 = vadd.f32 %v1629, %v2232
      %v2234 = vpop.f32.mrf.mxu0
      %v2235 = vpop.f32.mrf.mxu0
      %v2236 = vadd.f32 %v1629, %v2235
      %v2237 = vpop.f32.mrf.mxu0
      %2238 = vmatprep.mubr.bf16.mxu0 0
      %2239 = vmatmul.mubr.bf16.gmra.mxu0 %v1780
      %v2240 = vpop.f32.mrf.mxu0
      %v2241 = vadd.f32 %v1629, %v2240
      %v2242 = vpop.f32.mrf.mxu0
      %v2243 = vpop.f32.mrf.mxu0
      %v2244 = vadd.f32 %v1629, %v2243
      %v2245 = vpop.f32.mrf.mxu0
      %2246 = vmatprep.mubr.bf16.mxu0 0
      %2247 = vmatmul.mubr.bf16.gmra.mxu0 %v1783
      %v2248 = vpop.f32.mrf.mxu0
      %v2249 = vadd.f32 %v1629, %v2248
      %v2250 = vpop.f32.mrf.mxu0
      %v2251 = vpop.f32.mrf.mxu0
      %v2252 = vadd.f32 %v1629, %v2251
      %v2253 = vpop.f32.mrf.mxu0
      %2254 = vmatprep.mubr.bf16.mxu0 0
      %2255 = vmatmul.mubr.bf16.gmra.mxu0 %v1786
      %v2256 = vpop.f32.mrf.mxu0
      %v2257 = vadd.f32 %v1629, %v2256
      %v2258 = vpop.f32.mrf.mxu0
      %v2259 = vpop.f32.mrf.mxu0
      %v2260 = vadd.f32 %v1629, %v2259
      %v2261 = vpop.f32.mrf.mxu0
      %2262 = vmatprep.mubr.bf16.mxu0 0
      %2263 = vmatmul.mubr.bf16.gmra.mxu0 %v1789
      %v2264 = vpop.f32.mrf.mxu0
      %v2265 = vadd.f32 %v1629, %v2264
      %v2266 = vpop.f32.mrf.mxu0
      %v2267 = vpop.f32.mrf.mxu0
      %v2268 = vadd.f32 %v1629, %v2267
      %v2269 = vpop.f32.mrf.mxu0
      %2270 = vmatprep.mubr.bf16.mxu0 0
      %2271 = vmatmul.mubr.bf16.gmra.mxu0 %v1792
      %v2272 = vpop.f32.mrf.mxu0
      %v2273 = vadd.f32 %v1629, %v2272
      %v2274 = vpop.f32.mrf.mxu0
      %v2275 = vpop.f32.mrf.mxu0
      %v2276 = vadd.f32 %v1629, %v2275
      %v2277 = vpop.f32.mrf.mxu0
      %2278 = vmatprep.mubr.bf16.mxu0 0
      %2279 = vmatmul.mubr.bf16.gmra.mxu0 %v1795
      %v2280 = vpop.f32.mrf.mxu0
      %v2281 = vadd.f32 %v1629, %v2280
      %v2282 = vpop.f32.mrf.mxu0
      %v2283 = vpop.f32.mrf.mxu0
      %v2284 = vadd.f32 %v1629, %v2283
      %v2285 = vpop.f32.mrf.mxu0
      %2286 = vmatprep.mubr.bf16.mxu0 0
      %2287 = vmatmul.mubr.bf16.gmra.mxu0 %v1798
      %v2288 = vpop.f32.mrf.mxu0
      %v2289 = vadd.f32 %v1629, %v2288
      %v2290 = vpop.f32.mrf.mxu0
      %v2291 = vpop.f32.mrf.mxu0
      %v2292 = vadd.f32 %v1629, %v2291
      %v2293 = vpop.f32.mrf.mxu0
      %2294 = vmatprep.mubr.bf16.mxu0 0
      %2295 = vmatmul.mubr.bf16.gmra.mxu0 %v1801
      %v2296 = vpop.f32.mrf.mxu0
      %v2297 = vadd.f32 %v1629, %v2296
      %v2298 = vpop.f32.mrf.mxu0
      %v2299 = vpop.f32.mrf.mxu0
      %v2300 = vadd.f32 %v1629, %v2299
      %v2301 = vpop.f32.mrf.mxu0
      %2302 = vmatprep.mubr.bf16.mxu0 0
      %2303 = vmatmul.mubr.bf16.gmra.mxu0 %v1804
      %v2304 = vpop.f32.mrf.mxu0
      %v2305 = vadd.f32 %v1629, %v2304
      %v2306 = vpop.f32.mrf.mxu0
      %v2307 = vpop.f32.mrf.mxu0
      %v2308 = vadd.f32 %v1629, %v2307
      %v2309 = vpop.f32.mrf.mxu0
      %2310 = vmatprep.mubr.bf16.mxu0 0
      %2311 = vmatmul.mubr.bf16.gmra.mxu0 %v1807
      %v2312 = vpop.f32.mrf.mxu0
      %v2313 = vadd.f32 %v1629, %v2312
      %v2314 = vpop.f32.mrf.mxu0
      %v2315 = vpop.f32.mrf.mxu0
      %v2316 = vadd.f32 %v1629, %v2315
      %v2317 = vpop.f32.mrf.mxu0
      %2318 = vmatprep.mubr.bf16.mxu0 0
      %2319 = vmatmul.mubr.bf16.gmra.mxu0 %v1810
      %v2320 = vpop.f32.mrf.mxu0
      %v2321 = vadd.f32 %v1629, %v2320
      %v2322 = vpop.f32.mrf.mxu0
      %v2323 = vpop.f32.mrf.mxu0
      %v2324 = vadd.f32 %v1629, %v2323
      %v2325 = vpop.f32.mrf.mxu0
      %2326 = vmatprep.mubr.bf16.mxu0 0
      %2327 = vmatmul.mubr.bf16.gmra.mxu0 %v1813
      %v2328 = vpop.f32.mrf.mxu0
      %v2329 = vadd.f32 %v1629, %v2328
      %v2330 = vpop.f32.mrf.mxu0
      %v2331 = vpop.f32.mrf.mxu0
      %v2332 = vadd.f32 %v1629, %v2331
      %v2333 = vpop.f32.mrf.mxu0
      %2334 = vmatprep.mubr.bf16.mxu0 0
      %2335 = vmatmul.mubr.bf16.gmra.mxu0 %v1816
      %v2336 = vpop.f32.mrf.mxu0
      %v2337 = vadd.f32 %v1629, %v2336
      %v2338 = vpop.f32.mrf.mxu0
      %v2339 = vpop.f32.mrf.mxu0
      %v2340 = vadd.f32 %v1629, %v2339
      %v2341 = vpop.f32.mrf.mxu0
      %2342 = vmatprep.mubr.bf16.mxu0 0
      %2343 = vmatmul.mubr.bf16.gmra.mxu0 %v1819
      %v2344 = vpop.f32.mrf.mxu0
      %v2345 = vadd.f32 %v1629, %v2344
      %v2346 = vpop.f32.mrf.mxu0
      %v2347 = vpop.f32.mrf.mxu0
      %v2348 = vadd.f32 %v1629, %v2347
      %v2349 = vpop.f32.mrf.mxu0
      %2350 = vmatprep.mubr.bf16.mxu0 0
      %2351 = vmatmul.mubr.bf16.gmra.mxu0 %v1822
      %v2352 = vpop.f32.mrf.mxu0
      %v2353 = vadd.f32 %v1629, %v2352
      %v2354 = vpop.f32.mrf.mxu0
      %v2355 = vpop.f32.mrf.mxu0
      %v2356 = vadd.f32 %v1629, %v2355
      %v2357 = vpop.f32.mrf.mxu0
      %2358 = vmatprep.mubr.bf16.mxu0 0
      %2359 = vmatmul.mubr.bf16.gmra.mxu0 %v1825
      %v2360 = vpop.f32.mrf.mxu0
      %v2361 = vadd.f32 %v1629, %v2360
      %v2362 = vpop.f32.mrf.mxu0
      %v2363 = vpop.f32.mrf.mxu0
      %v2364 = vadd.f32 %v1629, %v2363
      %v2365 = vpop.f32.mrf.mxu0
      %2366 = vmatprep.mubr.bf16.mxu0 0
      %2367 = vmatmul.mubr.bf16.gmra.mxu0 %v1828
      %v2368 = vpop.f32.mrf.mxu0
      %v2369 = vadd.f32 %v1629, %v2368
      %v2370 = vpop.f32.mrf.mxu0
      %v2371 = vpop.f32.mrf.mxu0
      %v2372 = vadd.f32 %v1629, %v2371
      %v2373 = vpop.f32.mrf.mxu0
      %2374 = vdwg.mxu0
      %vm2375 = vcmask 261120
      %v2376 = vsel %vm2375, %v1865, -inf
      %v2377 = vsel %vm2375, %v1868, -inf
      %v2378 = vmax.f32 %v2376, %v2377
      %v2379 = vrot.slane %v2378, 4
      %v2380 = vmax.f32 %v2378, %v2379
      %v2381 = vrot.slane %v2380, 2
      %v2382 = vmax.f32 %v2380, %v2381
      %v2383 = vrot.slane %v2382, 1
      %v2384 = vmax.f32 %v2382, %v2383
      %v2385 = vsel %vm2375, %v1873, -inf
      %v2386 = vsel %vm2375, %v1876, -inf
      %v2387 = vmax.f32 %v2385, %v2386
      %v2388 = vrot.slane %v2387, 4
      %v2389 = vmax.f32 %v2387, %v2388
      %v2390 = vrot.slane %v2389, 2
      %v2391 = vmax.f32 %v2389, %v2390
      %v2392 = vrot.slane %v2391, 1
      %v2393 = vmax.f32 %v2391, %v2392
      %v2394 = vsel %vm2375, %v1881, -inf
      %v2395 = vsel %vm2375, %v1884, -inf
      %v2396 = vmax.f32 %v2394, %v2395
      %v2397 = vrot.slane %v2396, 4
      %v2398 = vmax.f32 %v2396, %v2397
      %v2399 = vrot.slane %v2398, 2
      %v2400 = vmax.f32 %v2398, %v2399
      %v2401 = vrot.slane %v2400, 1
      %v2402 = vmax.f32 %v2400, %v2401
      %v2403 = vsel %vm2375, %v1889, -inf
      %v2404 = vsel %vm2375, %v1892, -inf
      %v2405 = vmax.f32 %v2403, %v2404
      %v2406 = vrot.slane %v2405, 4
      %v2407 = vmax.f32 %v2405, %v2406
      %v2408 = vrot.slane %v2407, 2
      %v2409 = vmax.f32 %v2407, %v2408
      %v2410 = vrot.slane %v2409, 1
      %v2411 = vmax.f32 %v2409, %v2410
      %v2412 = vsel %vm2375, %v1897, -inf
      %v2413 = vsel %vm2375, %v1900, -inf
      %v2414 = vmax.f32 %v2412, %v2413
      %v2415 = vrot.slane %v2414, 4
      %v2416 = vmax.f32 %v2414, %v2415
      %v2417 = vrot.slane %v2416, 2
      %v2418 = vmax.f32 %v2416, %v2417
      %v2419 = vrot.slane %v2418, 1
      %v2420 = vmax.f32 %v2418, %v2419
      %v2421 = vsel %vm2375, %v1905, -inf
      %v2422 = vsel %vm2375, %v1908, -inf
      %v2423 = vmax.f32 %v2421, %v2422
      %v2424 = vrot.slane %v2423, 4
      %v2425 = vmax.f32 %v2423, %v2424
      %v2426 = vrot.slane %v2425, 2
      %v2427 = vmax.f32 %v2425, %v2426
      %v2428 = vrot.slane %v2427, 1
      %v2429 = vmax.f32 %v2427, %v2428
      %v2430 = vsel %vm2375, %v1913, -inf
      %v2431 = vsel %vm2375, %v1916, -inf
      %v2432 = vmax.f32 %v2430, %v2431
      %v2433 = vrot.slane %v2432, 4
      %v2434 = vmax.f32 %v2432, %v2433
      %v2435 = vrot.slane %v2434, 2
      %v2436 = vmax.f32 %v2434, %v2435
      %v2437 = vrot.slane %v2436, 1
      %v2438 = vmax.f32 %v2436, %v2437
      %v2439 = vsel %vm2375, %v1921, -inf
      %v2440 = vsel %vm2375, %v1924, -inf
      %v2441 = vmax.f32 %v2439, %v2440
      %v2442 = vrot.slane %v2441, 4
      %v2443 = vmax.f32 %v2441, %v2442
      %v2444 = vrot.slane %v2443, 2
      %v2445 = vmax.f32 %v2443, %v2444
      %v2446 = vrot.slane %v2445, 1
      %v2447 = vmax.f32 %v2445, %v2446
      %v2448 = vsel %vm2375, %v1929, -inf
      %v2449 = vsel %vm2375, %v1932, -inf
      %v2450 = vmax.f32 %v2448, %v2449
      %v2451 = vrot.slane %v2450, 4
      %v2452 = vmax.f32 %v2450, %v2451
      %v2453 = vrot.slane %v2452, 2
      %v2454 = vmax.f32 %v2452, %v2453
      %v2455 = vrot.slane %v2454, 1
      %v2456 = vmax.f32 %v2454, %v2455
      %v2457 = vsel %vm2375, %v1937, -inf
      %v2458 = vsel %vm2375, %v1940, -inf
      %v2459 = vmax.f32 %v2457, %v2458
      %v2460 = vrot.slane %v2459, 4
      %v2461 = vmax.f32 %v2459, %v2460
      %v2462 = vrot.slane %v2461, 2
      %v2463 = vmax.f32 %v2461, %v2462
      %v2464 = vrot.slane %v2463, 1
      %v2465 = vmax.f32 %v2463, %v2464
      %v2466 = vsel %vm2375, %v1945, -inf
      %v2467 = vsel %vm2375, %v1948, -inf
      %v2468 = vmax.f32 %v2466, %v2467
      %v2469 = vrot.slane %v2468, 4
      %v2470 = vmax.f32 %v2468, %v2469
      %v2471 = vrot.slane %v2470, 2
      %v2472 = vmax.f32 %v2470, %v2471
      %v2473 = vrot.slane %v2472, 1
      %v2474 = vmax.f32 %v2472, %v2473
      %v2475 = vsel %vm2375, %v1953, -inf
      %v2476 = vsel %vm2375, %v1956, -inf
      %v2477 = vmax.f32 %v2475, %v2476
      %v2478 = vrot.slane %v2477, 4
      %v2479 = vmax.f32 %v2477, %v2478
      %v2480 = vrot.slane %v2479, 2
      %v2481 = vmax.f32 %v2479, %v2480
      %v2482 = vrot.slane %v2481, 1
      %v2483 = vmax.f32 %v2481, %v2482
      %v2484 = vsel %vm2375, %v1961, -inf
      %v2485 = vsel %vm2375, %v1964, -inf
      %v2486 = vmax.f32 %v2484, %v2485
      %v2487 = vrot.slane %v2486, 4
      %v2488 = vmax.f32 %v2486, %v2487
      %v2489 = vrot.slane %v2488, 2
      %v2490 = vmax.f32 %v2488, %v2489
      %v2491 = vrot.slane %v2490, 1
      %v2492 = vmax.f32 %v2490, %v2491
      %v2493 = vsel %vm2375, %v1969, -inf
      %v2494 = vsel %vm2375, %v1972, -inf
      %v2495 = vmax.f32 %v2493, %v2494
      %v2496 = vrot.slane %v2495, 4
      %v2497 = vmax.f32 %v2495, %v2496
      %v2498 = vrot.slane %v2497, 2
      %v2499 = vmax.f32 %v2497, %v2498
      %v2500 = vrot.slane %v2499, 1
      %v2501 = vmax.f32 %v2499, %v2500
      %v2502 = vsel %vm2375, %v1977, -inf
      %v2503 = vsel %vm2375, %v1980, -inf
      %v2504 = vmax.f32 %v2502, %v2503
      %v2505 = vrot.slane %v2504, 4
      %v2506 = vmax.f32 %v2504, %v2505
      %v2507 = vrot.slane %v2506, 2
      %v2508 = vmax.f32 %v2506, %v2507
      %v2509 = vrot.slane %v2508, 1
      %v2510 = vmax.f32 %v2508, %v2509
      %v2511 = vsel %vm2375, %v1985, -inf
      %v2512 = vsel %vm2375, %v1988, -inf
      %v2513 = vmax.f32 %v2511, %v2512
      %v2514 = vrot.slane %v2513, 4
      %v2515 = vmax.f32 %v2513, %v2514
      %v2516 = vrot.slane %v2515, 2
      %v2517 = vmax.f32 %v2515, %v2516
      %v2518 = vrot.slane %v2517, 1
      %v2519 = vmax.f32 %v2517, %v2518
      %v2520 = vsel %vm2375, %v1993, -inf
      %v2521 = vsel %vm2375, %v1996, -inf
      %v2522 = vmax.f32 %v2520, %v2521
      %v2523 = vrot.slane %v2522, 4
      %v2524 = vmax.f32 %v2522, %v2523
      %v2525 = vrot.slane %v2524, 2
      %v2526 = vmax.f32 %v2524, %v2525
      %v2527 = vrot.slane %v2526, 1
      %v2528 = vmax.f32 %v2526, %v2527
      %v2529 = vsel %vm2375, %v2001, -inf
      %v2530 = vsel %vm2375, %v2004, -inf
      %v2531 = vmax.f32 %v2529, %v2530
      %v2532 = vrot.slane %v2531, 4
      %v2533 = vmax.f32 %v2531, %v2532
      %v2534 = vrot.slane %v2533, 2
      %v2535 = vmax.f32 %v2533, %v2534
      %v2536 = vrot.slane %v2535, 1
      %v2537 = vmax.f32 %v2535, %v2536
      %v2538 = vsel %vm2375, %v2009, -inf
      %v2539 = vsel %vm2375, %v2012, -inf
      %v2540 = vmax.f32 %v2538, %v2539
      %v2541 = vrot.slane %v2540, 4
      %v2542 = vmax.f32 %v2540, %v2541
      %v2543 = vrot.slane %v2542, 2
      %v2544 = vmax.f32 %v2542, %v2543
      %v2545 = vrot.slane %v2544, 1
      %v2546 = vmax.f32 %v2544, %v2545
      %v2547 = vsel %vm2375, %v2017, -inf
      %v2548 = vsel %vm2375, %v2020, -inf
      %v2549 = vmax.f32 %v2547, %v2548
      %v2550 = vrot.slane %v2549, 4
      %v2551 = vmax.f32 %v2549, %v2550
      %v2552 = vrot.slane %v2551, 2
      %v2553 = vmax.f32 %v2551, %v2552
      %v2554 = vrot.slane %v2553, 1
      %v2555 = vmax.f32 %v2553, %v2554
      %v2556 = vsel %vm2375, %v2025, -inf
      %v2557 = vsel %vm2375, %v2028, -inf
      %v2558 = vmax.f32 %v2556, %v2557
      %v2559 = vrot.slane %v2558, 4
      %v2560 = vmax.f32 %v2558, %v2559
      %v2561 = vrot.slane %v2560, 2
      %v2562 = vmax.f32 %v2560, %v2561
      %v2563 = vrot.slane %v2562, 1
      %v2564 = vmax.f32 %v2562, %v2563
      %v2565 = vsel %vm2375, %v2033, -inf
      %v2566 = vsel %vm2375, %v2036, -inf
      %v2567 = vmax.f32 %v2565, %v2566
      %v2568 = vrot.slane %v2567, 4
      %v2569 = vmax.f32 %v2567, %v2568
      %v2570 = vrot.slane %v2569, 2
      %v2571 = vmax.f32 %v2569, %v2570
      %v2572 = vrot.slane %v2571, 1
      %v2573 = vmax.f32 %v2571, %v2572
      %v2574 = vsel %vm2375, %v2041, -inf
      %v2575 = vsel %vm2375, %v2044, -inf
      %v2576 = vmax.f32 %v2574, %v2575
      %v2577 = vrot.slane %v2576, 4
      %v2578 = vmax.f32 %v2576, %v2577
      %v2579 = vrot.slane %v2578, 2
      %v2580 = vmax.f32 %v2578, %v2579
      %v2581 = vrot.slane %v2580, 1
      %v2582 = vmax.f32 %v2580, %v2581
      %v2583 = vsel %vm2375, %v2049, -inf
      %v2584 = vsel %vm2375, %v2052, -inf
      %v2585 = vmax.f32 %v2583, %v2584
      %v2586 = vrot.slane %v2585, 4
      %v2587 = vmax.f32 %v2585, %v2586
      %v2588 = vrot.slane %v2587, 2
      %v2589 = vmax.f32 %v2587, %v2588
      %v2590 = vrot.slane %v2589, 1
      %v2591 = vmax.f32 %v2589, %v2590
      %v2592 = vsel %vm2375, %v2057, -inf
      %v2593 = vsel %vm2375, %v2060, -inf
      %v2594 = vmax.f32 %v2592, %v2593
      %v2595 = vrot.slane %v2594, 4
      %v2596 = vmax.f32 %v2594, %v2595
      %v2597 = vrot.slane %v2596, 2
      %v2598 = vmax.f32 %v2596, %v2597
      %v2599 = vrot.slane %v2598, 1
      %v2600 = vmax.f32 %v2598, %v2599
      %v2601 = vsel %vm2375, %v2065, -inf
      %v2602 = vsel %vm2375, %v2068, -inf
      %v2603 = vmax.f32 %v2601, %v2602
      %v2604 = vrot.slane %v2603, 4
      %v2605 = vmax.f32 %v2603, %v2604
      %v2606 = vrot.slane %v2605, 2
      %v2607 = vmax.f32 %v2605, %v2606
      %v2608 = vrot.slane %v2607, 1
      %v2609 = vmax.f32 %v2607, %v2608
      %v2610 = vsel %vm2375, %v2073, -inf
      %v2611 = vsel %vm2375, %v2076, -inf
      %v2612 = vmax.f32 %v2610, %v2611
      %v2613 = vrot.slane %v2612, 4
      %v2614 = vmax.f32 %v2612, %v2613
      %v2615 = vrot.slane %v2614, 2
      %v2616 = vmax.f32 %v2614, %v2615
      %v2617 = vrot.slane %v2616, 1
      %v2618 = vmax.f32 %v2616, %v2617
      %v2619 = vsel %vm2375, %v2081, -inf
      %v2620 = vsel %vm2375, %v2084, -inf
      %v2621 = vmax.f32 %v2619, %v2620
      %v2622 = vrot.slane %v2621, 4
      %v2623 = vmax.f32 %v2621, %v2622
      %v2624 = vrot.slane %v2623, 2
      %v2625 = vmax.f32 %v2623, %v2624
      %v2626 = vrot.slane %v2625, 1
      %v2627 = vmax.f32 %v2625, %v2626
      %v2628 = vsel %vm2375, %v2089, -inf
      %v2629 = vsel %vm2375, %v2092, -inf
      %v2630 = vmax.f32 %v2628, %v2629
      %v2631 = vrot.slane %v2630, 4
      %v2632 = vmax.f32 %v2630, %v2631
      %v2633 = vrot.slane %v2632, 2
      %v2634 = vmax.f32 %v2632, %v2633
      %v2635 = vrot.slane %v2634, 1
      %v2636 = vmax.f32 %v2634, %v2635
      %v2637 = vsel %vm2375, %v2097, -inf
      %v2638 = vsel %vm2375, %v2100, -inf
      %v2639 = vmax.f32 %v2637, %v2638
      %v2640 = vrot.slane %v2639, 4
      %v2641 = vmax.f32 %v2639, %v2640
      %v2642 = vrot.slane %v2641, 2
      %v2643 = vmax.f32 %v2641, %v2642
      %v2644 = vrot.slane %v2643, 1
      %v2645 = vmax.f32 %v2643, %v2644
      %v2646 = vsel %vm2375, %v2105, -inf
      %v2647 = vsel %vm2375, %v2108, -inf
      %v2648 = vmax.f32 %v2646, %v2647
      %v2649 = vrot.slane %v2648, 4
      %v2650 = vmax.f32 %v2648, %v2649
      %v2651 = vrot.slane %v2650, 2
      %v2652 = vmax.f32 %v2650, %v2651
      %v2653 = vrot.slane %v2652, 1
      %v2654 = vmax.f32 %v2652, %v2653
      %v2655 = vsel %vm2375, %v2113, -inf
      %v2656 = vsel %vm2375, %v2116, -inf
      %v2657 = vmax.f32 %v2655, %v2656
      %v2658 = vrot.slane %v2657, 4
      %v2659 = vmax.f32 %v2657, %v2658
      %v2660 = vrot.slane %v2659, 2
      %v2661 = vmax.f32 %v2659, %v2660
      %v2662 = vrot.slane %v2661, 1
      %v2663 = vmax.f32 %v2661, %v2662
      %v2664 = vsel %vm2375, %v2121, -inf
      %v2665 = vsel %vm2375, %v2124, -inf
      %v2666 = vmax.f32 %v2664, %v2665
      %v2667 = vrot.slane %v2666, 4
      %v2668 = vmax.f32 %v2666, %v2667
      %v2669 = vrot.slane %v2668, 2
      %v2670 = vmax.f32 %v2668, %v2669
      %v2671 = vrot.slane %v2670, 1
      %v2672 = vmax.f32 %v2670, %v2671
      %v2673 = vsel %vm2375, %v2129, -inf
      %v2674 = vsel %vm2375, %v2132, -inf
      %v2675 = vmax.f32 %v2673, %v2674
      %v2676 = vrot.slane %v2675, 4
      %v2677 = vmax.f32 %v2675, %v2676
      %v2678 = vrot.slane %v2677, 2
      %v2679 = vmax.f32 %v2677, %v2678
      %v2680 = vrot.slane %v2679, 1
      %v2681 = vmax.f32 %v2679, %v2680
      %v2682 = vsel %vm2375, %v2137, -inf
      %v2683 = vsel %vm2375, %v2140, -inf
      %v2684 = vmax.f32 %v2682, %v2683
      %v2685 = vrot.slane %v2684, 4
      %v2686 = vmax.f32 %v2684, %v2685
      %v2687 = vrot.slane %v2686, 2
      %v2688 = vmax.f32 %v2686, %v2687
      %v2689 = vrot.slane %v2688, 1
      %v2690 = vmax.f32 %v2688, %v2689
      %v2691 = vsel %vm2375, %v2145, -inf
      %v2692 = vsel %vm2375, %v2148, -inf
      %v2693 = vmax.f32 %v2691, %v2692
      %v2694 = vrot.slane %v2693, 4
      %v2695 = vmax.f32 %v2693, %v2694
      %v2696 = vrot.slane %v2695, 2
      %v2697 = vmax.f32 %v2695, %v2696
      %v2698 = vrot.slane %v2697, 1
      %v2699 = vmax.f32 %v2697, %v2698
      %v2700 = vsel %vm2375, %v2153, -inf
      %v2701 = vsel %vm2375, %v2156, -inf
      %v2702 = vmax.f32 %v2700, %v2701
      %v2703 = vrot.slane %v2702, 4
      %v2704 = vmax.f32 %v2702, %v2703
      %v2705 = vrot.slane %v2704, 2
      %v2706 = vmax.f32 %v2704, %v2705
      %v2707 = vrot.slane %v2706, 1
      %v2708 = vmax.f32 %v2706, %v2707
      %v2709 = vsel %vm2375, %v2161, -inf
      %v2710 = vsel %vm2375, %v2164, -inf
      %v2711 = vmax.f32 %v2709, %v2710
      %v2712 = vrot.slane %v2711, 4
      %v2713 = vmax.f32 %v2711, %v2712
      %v2714 = vrot.slane %v2713, 2
      %v2715 = vmax.f32 %v2713, %v2714
      %v2716 = vrot.slane %v2715, 1
      %v2717 = vmax.f32 %v2715, %v2716
      %v2718 = vsel %vm2375, %v2169, -inf
      %v2719 = vsel %vm2375, %v2172, -inf
      %v2720 = vmax.f32 %v2718, %v2719
      %v2721 = vrot.slane %v2720, 4
      %v2722 = vmax.f32 %v2720, %v2721
      %v2723 = vrot.slane %v2722, 2
      %v2724 = vmax.f32 %v2722, %v2723
      %v2725 = vrot.slane %v2724, 1
      %v2726 = vmax.f32 %v2724, %v2725
      %v2727 = vsel %vm2375, %v2177, -inf
      %v2728 = vsel %vm2375, %v2180, -inf
      %v2729 = vmax.f32 %v2727, %v2728
      %v2730 = vrot.slane %v2729, 4
      %v2731 = vmax.f32 %v2729, %v2730
      %v2732 = vrot.slane %v2731, 2
      %v2733 = vmax.f32 %v2731, %v2732
      %v2734 = vrot.slane %v2733, 1
      %v2735 = vmax.f32 %v2733, %v2734
      %v2736 = vsel %vm2375, %v2185, -inf
      %v2737 = vsel %vm2375, %v2188, -inf
      %v2738 = vmax.f32 %v2736, %v2737
      %v2739 = vrot.slane %v2738, 4
      %v2740 = vmax.f32 %v2738, %v2739
      %v2741 = vrot.slane %v2740, 2
      %v2742 = vmax.f32 %v2740, %v2741
      %v2743 = vrot.slane %v2742, 1
      %v2744 = vmax.f32 %v2742, %v2743
      %v2745 = vsel %vm2375, %v2193, -inf
      %v2746 = vsel %vm2375, %v2196, -inf
      %v2747 = vmax.f32 %v2745, %v2746
      %v2748 = vrot.slane %v2747, 4
      %v2749 = vmax.f32 %v2747, %v2748
      %v2750 = vrot.slane %v2749, 2
      %v2751 = vmax.f32 %v2749, %v2750
      %v2752 = vrot.slane %v2751, 1
      %v2753 = vmax.f32 %v2751, %v2752
      %v2754 = vsel %vm2375, %v2201, -inf
      %v2755 = vsel %vm2375, %v2204, -inf
      %v2756 = vmax.f32 %v2754, %v2755
      %v2757 = vrot.slane %v2756, 4
      %v2758 = vmax.f32 %v2756, %v2757
      %v2759 = vrot.slane %v2758, 2
      %v2760 = vmax.f32 %v2758, %v2759
      %v2761 = vrot.slane %v2760, 1
      %v2762 = vmax.f32 %v2760, %v2761
      %v2763 = vsel %vm2375, %v2209, -inf
      %v2764 = vsel %vm2375, %v2212, -inf
      %v2765 = vmax.f32 %v2763, %v2764
      %v2766 = vrot.slane %v2765, 4
      %v2767 = vmax.f32 %v2765, %v2766
      %v2768 = vrot.slane %v2767, 2
      %v2769 = vmax.f32 %v2767, %v2768
      %v2770 = vrot.slane %v2769, 1
      %v2771 = vmax.f32 %v2769, %v2770
      %v2772 = vsel %vm2375, %v2217, -inf
      %v2773 = vsel %vm2375, %v2220, -inf
      %v2774 = vmax.f32 %v2772, %v2773
      %v2775 = vrot.slane %v2774, 4
      %v2776 = vmax.f32 %v2774, %v2775
      %v2777 = vrot.slane %v2776, 2
      %v2778 = vmax.f32 %v2776, %v2777
      %v2779 = vrot.slane %v2778, 1
      %v2780 = vmax.f32 %v2778, %v2779
      %v2781 = vsel %vm2375, %v2225, -inf
      %v2782 = vsel %vm2375, %v2228, -inf
      %v2783 = vmax.f32 %v2781, %v2782
      %v2784 = vrot.slane %v2783, 4
      %v2785 = vmax.f32 %v2783, %v2784
      %v2786 = vrot.slane %v2785, 2
      %v2787 = vmax.f32 %v2785, %v2786
      %v2788 = vrot.slane %v2787, 1
      %v2789 = vmax.f32 %v2787, %v2788
      %v2790 = vsel %vm2375, %v2233, -inf
      %v2791 = vsel %vm2375, %v2236, -inf
      %v2792 = vmax.f32 %v2790, %v2791
      %v2793 = vrot.slane %v2792, 4
      %v2794 = vmax.f32 %v2792, %v2793
      %v2795 = vrot.slane %v2794, 2
      %v2796 = vmax.f32 %v2794, %v2795
      %v2797 = vrot.slane %v2796, 1
      %v2798 = vmax.f32 %v2796, %v2797
      %v2799 = vsel %vm2375, %v2241, -inf
      %v2800 = vsel %vm2375, %v2244, -inf
      %v2801 = vmax.f32 %v2799, %v2800
      %v2802 = vrot.slane %v2801, 4
      %v2803 = vmax.f32 %v2801, %v2802
      %v2804 = vrot.slane %v2803, 2
      %v2805 = vmax.f32 %v2803, %v2804
      %v2806 = vrot.slane %v2805, 1
      %v2807 = vmax.f32 %v2805, %v2806
      %v2808 = vsel %vm2375, %v2249, -inf
      %v2809 = vsel %vm2375, %v2252, -inf
      %v2810 = vmax.f32 %v2808, %v2809
      %v2811 = vrot.slane %v2810, 4
      %v2812 = vmax.f32 %v2810, %v2811
      %v2813 = vrot.slane %v2812, 2
      %v2814 = vmax.f32 %v2812, %v2813
      %v2815 = vrot.slane %v2814, 1
      %v2816 = vmax.f32 %v2814, %v2815
      %v2817 = vsel %vm2375, %v2257, -inf
      %v2818 = vsel %vm2375, %v2260, -inf
      %v2819 = vmax.f32 %v2817, %v2818
      %v2820 = vrot.slane %v2819, 4
      %v2821 = vmax.f32 %v2819, %v2820
      %v2822 = vrot.slane %v2821, 2
      %v2823 = vmax.f32 %v2821, %v2822
      %v2824 = vrot.slane %v2823, 1
      %v2825 = vmax.f32 %v2823, %v2824
      %v2826 = vsel %vm2375, %v2265, -inf
      %v2827 = vsel %vm2375, %v2268, -inf
      %v2828 = vmax.f32 %v2826, %v2827
      %v2829 = vrot.slane %v2828, 4
      %v2830 = vmax.f32 %v2828, %v2829
      %v2831 = vrot.slane %v2830, 2
      %v2832 = vmax.f32 %v2830, %v2831
      %v2833 = vrot.slane %v2832, 1
      %v2834 = vmax.f32 %v2832, %v2833
      %v2835 = vsel %vm2375, %v2273, -inf
      %v2836 = vsel %vm2375, %v2276, -inf
      %v2837 = vmax.f32 %v2835, %v2836
      %v2838 = vrot.slane %v2837, 4
      %v2839 = vmax.f32 %v2837, %v2838
      %v2840 = vrot.slane %v2839, 2
      %v2841 = vmax.f32 %v2839, %v2840
      %v2842 = vrot.slane %v2841, 1
      %v2843 = vmax.f32 %v2841, %v2842
      %v2844 = vsel %vm2375, %v2281, -inf
      %v2845 = vsel %vm2375, %v2284, -inf
      %v2846 = vmax.f32 %v2844, %v2845
      %v2847 = vrot.slane %v2846, 4
      %v2848 = vmax.f32 %v2846, %v2847
      %v2849 = vrot.slane %v2848, 2
      %v2850 = vmax.f32 %v2848, %v2849
      %v2851 = vrot.slane %v2850, 1
      %v2852 = vmax.f32 %v2850, %v2851
      %v2853 = vsel %vm2375, %v2289, -inf
      %v2854 = vsel %vm2375, %v2292, -inf
      %v2855 = vmax.f32 %v2853, %v2854
      %v2856 = vrot.slane %v2855, 4
      %v2857 = vmax.f32 %v2855, %v2856
      %v2858 = vrot.slane %v2857, 2
      %v2859 = vmax.f32 %v2857, %v2858
      %v2860 = vrot.slane %v2859, 1
      %v2861 = vmax.f32 %v2859, %v2860
      %v2862 = vsel %vm2375, %v2297, -inf
      %v2863 = vsel %vm2375, %v2300, -inf
      %v2864 = vmax.f32 %v2862, %v2863
      %v2865 = vrot.slane %v2864, 4
      %v2866 = vmax.f32 %v2864, %v2865
      %v2867 = vrot.slane %v2866, 2
      %v2868 = vmax.f32 %v2866, %v2867
      %v2869 = vrot.slane %v2868, 1
      %v2870 = vmax.f32 %v2868, %v2869
      %v2871 = vsel %vm2375, %v2305, -inf
      %v2872 = vsel %vm2375, %v2308, -inf
      %v2873 = vmax.f32 %v2871, %v2872
      %v2874 = vrot.slane %v2873, 4
      %v2875 = vmax.f32 %v2873, %v2874
      %v2876 = vrot.slane %v2875, 2
      %v2877 = vmax.f32 %v2875, %v2876
      %v2878 = vrot.slane %v2877, 1
      %v2879 = vmax.f32 %v2877, %v2878
      %v2880 = vsel %vm2375, %v2313, -inf
      %v2881 = vsel %vm2375, %v2316, -inf
      %v2882 = vmax.f32 %v2880, %v2881
      %v2883 = vrot.slane %v2882, 4
      %v2884 = vmax.f32 %v2882, %v2883
      %v2885 = vrot.slane %v2884, 2
      %v2886 = vmax.f32 %v2884, %v2885
      %v2887 = vrot.slane %v2886, 1
      %v2888 = vmax.f32 %v2886, %v2887
      %v2889 = vsel %vm2375, %v2321, -inf
      %v2890 = vsel %vm2375, %v2324, -inf
      %v2891 = vmax.f32 %v2889, %v2890
      %v2892 = vrot.slane %v2891, 4
      %v2893 = vmax.f32 %v2891, %v2892
      %v2894 = vrot.slane %v2893, 2
      %v2895 = vmax.f32 %v2893, %v2894
      %v2896 = vrot.slane %v2895, 1
      %v2897 = vmax.f32 %v2895, %v2896
      %v2898 = vsel %vm2375, %v2329, -inf
      %v2899 = vsel %vm2375, %v2332, -inf
      %v2900 = vmax.f32 %v2898, %v2899
      %v2901 = vrot.slane %v2900, 4
      %v2902 = vmax.f32 %v2900, %v2901
      %v2903 = vrot.slane %v2902, 2
      %v2904 = vmax.f32 %v2902, %v2903
      %v2905 = vrot.slane %v2904, 1
      %v2906 = vmax.f32 %v2904, %v2905
      %v2907 = vsel %vm2375, %v2337, -inf
      %v2908 = vsel %vm2375, %v2340, -inf
      %v2909 = vmax.f32 %v2907, %v2908
      %v2910 = vrot.slane %v2909, 4
      %v2911 = vmax.f32 %v2909, %v2910
      %v2912 = vrot.slane %v2911, 2
      %v2913 = vmax.f32 %v2911, %v2912
      %v2914 = vrot.slane %v2913, 1
      %v2915 = vmax.f32 %v2913, %v2914
      %v2916 = vsel %vm2375, %v2345, -inf
      %v2917 = vsel %vm2375, %v2348, -inf
      %v2918 = vmax.f32 %v2916, %v2917
      %v2919 = vrot.slane %v2918, 4
      %v2920 = vmax.f32 %v2918, %v2919
      %v2921 = vrot.slane %v2920, 2
      %v2922 = vmax.f32 %v2920, %v2921
      %v2923 = vrot.slane %v2922, 1
      %v2924 = vmax.f32 %v2922, %v2923
      %v2925 = vsel %vm2375, %v2353, -inf
      %v2926 = vsel %vm2375, %v2356, -inf
      %v2927 = vmax.f32 %v2925, %v2926
      %v2928 = vrot.slane %v2927, 4
      %v2929 = vmax.f32 %v2927, %v2928
      %v2930 = vrot.slane %v2929, 2
      %v2931 = vmax.f32 %v2929, %v2930
      %v2932 = vrot.slane %v2931, 1
      %v2933 = vmax.f32 %v2931, %v2932
      %v2934 = vsel %vm2375, %v2361, -inf
      %v2935 = vsel %vm2375, %v2364, -inf
      %v2936 = vmax.f32 %v2934, %v2935
      %v2937 = vrot.slane %v2936, 4
      %v2938 = vmax.f32 %v2936, %v2937
      %v2939 = vrot.slane %v2938, 2
      %v2940 = vmax.f32 %v2938, %v2939
      %v2941 = vrot.slane %v2940, 1
      %v2942 = vmax.f32 %v2940, %v2941
      %v2943 = vsel %vm2375, %v2369, -inf
      %v2944 = vsel %vm2375, %v2372, -inf
      %v2945 = vmax.f32 %v2943, %v2944
      %v2946 = vrot.slane %v2945, 4
      %v2947 = vmax.f32 %v2945, %v2946
      %v2948 = vrot.slane %v2947, 2
      %v2949 = vmax.f32 %v2947, %v2948
      %v2950 = vrot.slane %v2949, 1
      %v2951 = vmax.f32 %v2949, %v2950
      %vm3016 = vcmask 1041409
      %v3017 = vsel %vm3016, %v2393, %v2384
      %vm3018 = vcmask 1042434
      %v3019 = vsel %vm3018, %v2402, %v3017
      %vm3020 = vcmask 1043459
      %v3021 = vsel %vm3020, %v2411, %v3019
      %vm3022 = vcmask 1044484
      %v3023 = vsel %vm3022, %v2420, %v3021
      %vm3024 = vcmask 1045509
      %v3025 = vsel %vm3024, %v2429, %v3023
      %vm3026 = vcmask 1046534
      %v3027 = vsel %vm3026, %v2438, %v3025
      %vm3028 = vcmask 1047559
      %v3029 = vsel %vm3028, %v2447, %v3027
      %v3030 = vsel %vm3016, %v2465, %v2456
      %v3031 = vsel %vm3018, %v2474, %v3030
      %v3032 = vsel %vm3020, %v2483, %v3031
      %v3033 = vsel %vm3022, %v2492, %v3032
      %v3034 = vsel %vm3024, %v2501, %v3033
      %v3035 = vsel %vm3026, %v2510, %v3034
      %v3036 = vsel %vm3028, %v2519, %v3035
      %v3037 = vsel %vm3016, %v2537, %v2528
      %v3038 = vsel %vm3018, %v2546, %v3037
      %v3039 = vsel %vm3020, %v2555, %v3038
      %v3040 = vsel %vm3022, %v2564, %v3039
      %v3041 = vsel %vm3024, %v2573, %v3040
      %v3042 = vsel %vm3026, %v2582, %v3041
      %v3043 = vsel %vm3028, %v2591, %v3042
      %v3044 = vsel %vm3016, %v2609, %v2600
      %v3045 = vsel %vm3018, %v2618, %v3044
      %v3046 = vsel %vm3020, %v2627, %v3045
      %v3047 = vsel %vm3022, %v2636, %v3046
      %v3048 = vsel %vm3024, %v2645, %v3047
      %v3049 = vsel %vm3026, %v2654, %v3048
      %v3050 = vsel %vm3028, %v2663, %v3049
      %v3051 = vsel %vm3016, %v2681, %v2672
      %v3052 = vsel %vm3018, %v2690, %v3051
      %v3053 = vsel %vm3020, %v2699, %v3052
      %v3054 = vsel %vm3022, %v2708, %v3053
      %v3055 = vsel %vm3024, %v2717, %v3054
      %v3056 = vsel %vm3026, %v2726, %v3055
      %v3057 = vsel %vm3028, %v2735, %v3056
      %v3058 = vsel %vm3016, %v2753, %v2744
      %v3059 = vsel %vm3018, %v2762, %v3058
      %v3060 = vsel %vm3020, %v2771, %v3059
      %v3061 = vsel %vm3022, %v2780, %v3060
      %v3062 = vsel %vm3024, %v2789, %v3061
      %v3063 = vsel %vm3026, %v2798, %v3062
      %v3064 = vsel %vm3028, %v2807, %v3063
      %v3065 = vsel %vm3016, %v2825, %v2816
      %v3066 = vsel %vm3018, %v2834, %v3065
      %v3067 = vsel %vm3020, %v2843, %v3066
      %v3068 = vsel %vm3022, %v2852, %v3067
      %v3069 = vsel %vm3024, %v2861, %v3068
      %v3070 = vsel %vm3026, %v2870, %v3069
      %v3071 = vsel %vm3028, %v2879, %v3070
      %v3072 = vsel %vm3016, %v2897, %v2888
      %v3073 = vsel %vm3018, %v2906, %v3072
      %v3074 = vsel %vm3020, %v2915, %v3073
      %v3075 = vsel %vm3022, %v2924, %v3074
      %v3076 = vsel %vm3024, %v2933, %v3075
      %v3077 = vsel %vm3026, %v2942, %v3076
      %v3078 = vsel %vm3028, %v2951, %v3077
      %3087 = vst.msk [vmem:[%s229] sm:$0xff] %vm2375, %v3029
      %3088 = vst.msk [vmem:[%s229 + $0x8] sm:$0xff] %vm2375, %v3036
      %3089 = vst.msk [vmem:[%s229 + $0x10] sm:$0xff] %vm2375, %v3043
      %3090 = vst.msk [vmem:[%s229 + $0x18] sm:$0xff] %vm2375, %v3050
      %3091 = vst.msk [vmem:[%s229 + $0x20] sm:$0xff] %vm2375, %v3057
      %3092 = vst.msk [vmem:[%s229 + $0x28] sm:$0xff] %vm2375, %v3064
      %3093 = vst.msk [vmem:[%s229 + $0x30] sm:$0xff] %vm2375, %v3071
      %3094 = vst.msk [vmem:[%s229 + $0x38] sm:$0xff] %vm2375, %v3078
      %s3095 = smul.u32 8, %s16
      %p3096 = scmp.lt.s32.totalorder %s3095, 15
      %s3097 = scalar_select %p3096, %s3095, 15
      %s3098 = smul.addr %s3097, 8
      %s3099 = scalar_lea.vmem %s5, %s3098
      // Predicated region
      $region41: #{rota_inv_net_forward.3} parent=39 // pred_check
        %p3100 = pneg %p144
      $region42: #{rota_inv_net_forward.3} parent=39 // pred_check_branch
        %3102 = sbr.rel (%p3100) target = $region44
      $region43: #{rota_inv_net_forward.3} parent=39 // pred_region
        %s3103 = smul.u32 8, %s16
      $region44: #{rota_inv_net_forward.3} parent=39 // pred_fallthru
        _
    $region40: #{rota_inv_net_forward.3} parent=5 // pred_fallthru
      _
    %p3104 = scmp.le.s32.totalorder 2, %s11
    // Predicated region
    $region45: #{rota_inv_net_forward.3} parent=5 // pred_check
      %p3105 = pneg %p3104
    $region46: #{rota_inv_net_forward.3} parent=5 // pred_check_branch
      %3107 = sbr.rel (%p3105) target = $region48
    $region47: #{rota_inv_net_forward.3} parent=5 // pred_region
      %s3108 = ssub.s32 %s11, 2
      // Predicated region
      $region49: #{rota_inv_net_forward.3} parent=47 // pred_check
        %p3109 = pneg %p150
      $region50: #{rota_inv_net_forward.3} parent=47 // pred_check_branch
        %3111 = sbr.rel (%p3109) target = $region52
      $region51: #{rota_inv_net_forward.3} parent=47 // pred_region
        %s3112 = smul.u32 8, %s17
        %p3113 = scmp.lt.s32.totalorder %s3112, 15
        %s3114 = scalar_select %p3113, %s3112, 15
        %s3115 = smul.addr %s3114, 8
        %s3116 = scalar_lea.vmem %s5, %s3115
      $region52: #{rota_inv_net_forward.3} parent=47 // pred_fallthru
        _
    $region48: #{rota_inv_net_forward.3} parent=5 // pred_fallthru
      _
  $region6: #{rota_inv_net_forward.3} parent=0 // loop_footer
    %s15 = sadd.s32 1, %s11
  $region7: #{rota_inv_net_forward.3} parent=0 // loop_footer_branch
    %10 = sbr.rel target = $region3
  $region8: #{rota_inv_net_forward.3} parent=0 // loop_exit
    _

// kernel: rota_inv_net_forward.5
$region0: #{rota_inv_net_forward.5}
  #allocation0 [shape = 'u32[]', space=smem, size = 0x4, offset = 0x4, fixed_abs, tag = 'smem constant byte address 0x4 - core index']
  #allocation1 [shape = 'u32[144,128]{1,0:T(1,128)}', space=vmem, size = 0x12000, scoped, tag = 'internal scratch']
  #allocation2 [shape = 'f32[1,128]{1,0:T(1,128)}', space=vmem, size = 0x200, scoped, tag = 'scratch operand']
  %s0 = inlined_call_operand.vmem [shape: f32[2,64,128], index: 0, kind: input, shape index: {}]
  %s1 = inlined_call_operand.vmem [shape: f32[128,10], index: 1, kind: input, shape index: {}]
  %s2 = inlined_call_operand.vmem [shape: f32[1,10], index: 2, kind: input, shape index: {}]
  %s3 = inlined_call_operand.hbm [shape: f32[2,1,10], index: 3, kind: output, shape index: {}]
  %s4 = sld [smem:[#allocation0]]
  $region53: #{rota_inv_net_forward.5} parent=0
    _
  %s6 = ssub.s32 1, %s4
  %s7 = scalar_select 0, %s6, %s4
  $region1: #{rota_inv_net_forward.5} parent=0
    #allocation3 [shape = 'u8[1024]{0}', space=vmem, size = 0x400, scoped, tag = 'output window, operand 0']
    #allocation4 [shape = 's32[2]{0}', space=sflag, size = 0x8, scoped, tag = 'scoped memory for rota_inv_net_forward.5']
    %8 = vsyncpa [#allocation4], 0
    %s9 = scalar_lea.sflag [#allocation4], 1
    %10 = vsyncpa %s9, 0
    loop: start=0, step=1, limit=6
    $region2: #{rota_inv_net_forward.5} parent=1 // loop_pre_header
      _
    $region3: #{rota_inv_net_forward.5} parent=1 // loop_header
      %s12 = sphi 0, %s16
      %p13 = scmp.ge.s32.totalorder %s12, 6
      %s19 = sphi 0, %s31
      %s20 = sphi 0, %s27
      %s21 = sphi 0, %s19
      %s22 = sphi 0, %s20
      %s23 = sphi 0, %s21
      %s24 = sphi 0, %s22
      %s36 = sphi 0, %s38
      %s39 = sphi 0, %s36
      %s40 = sphi 0, %s39
      %s56 = sphi 0, %s40
      %s60 = sphi 0, %s60
      %s62 = sphi 0, %s60
      %s63 = sphi 0, %s62
      %s77 = sphi 0, %s63
      %s81 = sphi 0, %s81
      %s83 = sphi 0, %s81
      %s84 = sphi 0, %s83
      %s98 = sphi 0, %s84
      %s104 = sphi 0, %s106
      %s107 = sphi 0, %s104
      %s108 = sphi 0, %s107
      %s124 = sphi 0, %s108
    $region4: #{rota_inv_net_forward.5} parent=1 // loop_header_branch
      %15 = sbr.rel (%p13) target = $region8
    $region5: #{rota_inv_net_forward.5} parent=1 // loop_body
      %s17 = ssub.s32 %s12, 1
      %s18 = ssub.s32 %s12, 2
      %s25 = sadd.s32 1, %s20
      %p26 = scmp.ge.s32.totalorder %s25, 2
      %s27 = scalar_select %p26, 0, %s25
      %s28 = sadd.s32 1, %s19
      %s29 = scalar_select %p26, %s28, %s19
      %p30 = scmp.ge.s32.totalorder %s29, 2
      %s31 = scalar_select %p30, 0, %s29
      %s32 = ssub.s32 %s19, %s31
      %s33 = ssub.s32 %s20, %s27
      %s34 = sor.u32 %s32, %s33
      %p35 = scmp.eq.s32.totalorder %s34, 0
      %s37 = sadd.s32 %s36, 1
      %s38 = scalar_select %p35, %s36, %s37
      %p41 = pneg %p35
      %p42 = scmp.eq.s32.totalorder %s12, 3
      %p43 = por %p41, %p42
      %p44 = scmp.ne.s32.totalorder %s36, %s39
      %p45 = scmp.eq.s32.totalorder %s12, 0
      %p46 = por %p44, %p45
      %p47 = scmp.ne.s32.totalorder %s36, %s39
      %p48 = scmp.eq.s32.totalorder %s17, 3
      %p49 = por %p47, %p48
      %p50 = scmp.ne.s32.totalorder %s39, %s40
      %p51 = scmp.eq.s32.totalorder %s17, 0
      %p52 = por %p50, %p51
      %p53 = scmp.ne.s32.totalorder %s39, %s40
      %p54 = scmp.eq.s32.totalorder %s18, 3
      %p55 = por %p53, %p54
      %p57 = scmp.ne.s32.totalorder %s40, %s56
      %p58 = scmp.eq.s32.totalorder %s18, 0
      %p59 = por %p57, %p58
      %s61 = sadd.s32 %s60, 1
      %p64 = scmp.eq.s32.totalorder %s12, 3
      %p65 = scmp.ne.s32.totalorder %s60, %s62
      %p66 = scmp.eq.s32.totalorder %s12, 0
      %p67 = por %p65, %p66
      %p68 = scmp.ne.s32.totalorder %s60, %s62
      %p69 = scmp.eq.s32.totalorder %s17, 3
      %p70 = por %p68, %p69
      %p71 = scmp.ne.s32.totalorder %s62, %s63
      %p72 = scmp.eq.s32.totalorder %s17, 0
      %p73 = por %p71, %p72
      %p74 = scmp.ne.s32.totalorder %s62, %s63
      %p75 = scmp.eq.s32.totalorder %s18, 3
      %p76 = por %p74, %p75
      %p78 = scmp.ne.s32.totalorder %s63, %s77
      %p79 = scmp.eq.s32.totalorder %s18, 0
      %p80 = por %p78, %p79
      %s82 = sadd.s32 %s81, 1
      %p85 = scmp.eq.s32.totalorder %s12, 3
      %p86 = scmp.ne.s32.totalorder %s81, %s83
      %p87 = scmp.eq.s32.totalorder %s12, 0
      %p88 = por %p86, %p87
      %p89 = scmp.ne.s32.totalorder %s81, %s83
      %p90 = scmp.eq.s32.totalorder %s17, 3
      %p91 = por %p89, %p90
      %p92 = scmp.ne.s32.totalorder %s83, %s84
      %p93 = scmp.eq.s32.totalorder %s17, 0
      %p94 = por %p92, %p93
      %p95 = scmp.ne.s32.totalorder %s83, %s84
      %p96 = scmp.eq.s32.totalorder %s18, 3
      %p97 = por %p95, %p96
      %p99 = scmp.ne.s32.totalorder %s84, %s98
      %p100 = scmp.eq.s32.totalorder %s18, 0
      %p101 = por %p99, %p100
      %s102 = ssub.s32 %s19, %s31
      %p103 = scmp.eq.s32.totalorder %s102, 0
      %s105 = sadd.s32 %s104, 1
      %s106 = scalar_select %p103, %s104, %s105
      %p109 = pneg %p103
      %p110 = scmp.eq.s32.totalorder %s12, 3
      %p111 = por %p109, %p110
      %p112 = scmp.ne.s32.totalorder %s104, %s107
      %p113 = scmp.eq.s32.totalorder %s12, 0
      %p114 = por %p112, %p113
      %p115 = scmp.ne.s32.totalorder %s104, %s107
      %p116 = scmp.eq.s32.totalorder %s17, 3
      %p117 = por %p115, %p116
      %p118 = scmp.ne.s32.totalorder %s107, %s108
      %p119 = scmp.eq.s32.totalorder %s17, 0
      %p120 = por %p118, %p119
      %p121 = scmp.ne.s32.totalorder %s107, %s108
      %p122 = scmp.eq.s32.totalorder %s18, 3
      %p123 = por %p121, %p122
      %p125 = scmp.ne.s32.totalorder %s108, %s124
      %p126 = scmp.eq.s32.totalorder %s18, 0
      %p127 = por %p125, %p126
      %p128 = scmp.le.s32.totalorder 1, %s12
      %p129 = scmp.lt.s32.totalorder %s12, 5
      %p130 = pnand %p128, %p129
      %p131 = pneg %p130
      // Predicated region
      $region9: #{rota_inv_net_forward.5} parent=5 // pred_check
        _
      $region10: #{rota_inv_net_forward.5} parent=5 // pred_check_branch
        %133 = sbr.rel (%p130) target = $region12
      $region11: #{rota_inv_net_forward.5} parent=5 // pred_region
        %s134 = ssub.s32 %s12, 1
        // Predicated region
        $region13: #{rota_inv_net_forward.5} parent=11 // pred_check
          %p135 = pneg %p73
        $region14: #{rota_inv_net_forward.5} parent=11 // pred_check_branch
          %137 = sbr.rel (%p135) target = $region16
        $region15: #{rota_inv_net_forward.5} parent=11 // pred_region
          _
        $region16: #{rota_inv_net_forward.5} parent=11 // pred_fallthru
          _
        // Predicated region
        $region17: #{rota_inv_net_forward.5} parent=11 // pred_check
          %p138 = pneg %p94
        $region18: #{rota_inv_net_forward.5} parent=11 // pred_check_branch
          %140 = sbr.rel (%p138) target = $region20
        $region19: #{rota_inv_net_forward.5} parent=11 // pred_region
          _
        $region20: #{rota_inv_net_forward.5} parent=11 // pred_fallthru
          _
      $region12: #{rota_inv_net_forward.5} parent=5 // pred_fallthru
        _
      %p141 = scmp.lt.s32.totalorder %s12, 4
      // Predicated region
      $region21: #{rota_inv_net_forward.5} parent=5 // pred_check
        %p142 = pneg %p141
      $region22: #{rota_inv_net_forward.5} parent=5 // pred_check_branch
        %144 = sbr.rel (%p142) target = $region24
      $region23: #{rota_inv_net_forward.5} parent=5 // pred_region
        // Predicated region
        $region25: #{rota_inv_net_forward.5} parent=23 // pred_check
          %p145 = pneg %p46
        $region26: #{rota_inv_net_forward.5} parent=23 // pred_check_branch
          %147 = sbr.rel (%p145) target = $region28
        $region27: #{rota_inv_net_forward.5} parent=23 // pred_region
          %s148 = smul.u32 4, %s20
          %p149 = scmp.lt.s32.totalorder %s19, 1
          %s150 = scalar_select %p149, %s19, 1
          %p151 = scmp.lt.s32.totalorder %s148, 7
          %s152 = scalar_select %p151, %s148, 7
          %s153 = smul.addr %s150, 8
          %s154 = sadd.s32 %s152, %s153
          %s155 = smul.addr %s154, 8
          %s156 = scalar_lea.vmem %s0, %s155
          %s157 = smul.u32 4, %s20
        $region28: #{rota_inv_net_forward.5} parent=23 // pred_fallthru
          _
      $region24: #{rota_inv_net_forward.5} parent=5 // pred_fallthru
        _
      %p158 = scmp.le.s32.totalorder 1, %s12
      %p159 = scmp.lt.s32.totalorder %s12, 5
      %p160 = pnand %p158, %p159
      %p161 = pneg %p160
      // Predicated region
      $region29: #{rota_inv_net_forward.5} parent=5 // pred_check
        _
      $region30: #{rota_inv_net_forward.5} parent=5 // pred_check_branch
        %163 = sbr.rel (%p160) target = $region32
      $region31: #{rota_inv_net_forward.5} parent=5 // pred_region
        %s164 = ssub.s32 %s12, 1
        %s165 = smul.u32 4, %s22
        %p166 = scmp.lt.s32.totalorder %s21, 1
        %s167 = scalar_select %p166, %s21, 1
        %p168 = scmp.lt.s32.totalorder %s165, 7
        %s169 = scalar_select %p168, %s165, 7
        %s170 = smul.addr %s167, 8
        %s171 = sadd.s32 %s169, %s170
        %s172 = smul.addr %s171, 8
        %s173 = scalar_lea.vmem %s0, %s172
        %p174 = pneg %p52
        %p175 = pneg %p49
        %p176 = pneg %p73
        %p177 = pneg %p70
        %p178 = pneg %p94
        %p179 = pneg %p91
        %p180 = pneg %p120
        %p181 = pneg %p117
        %s182 = sand.u32 %s107, 1
        %s183 = scalar_lea.sflag [#allocation4], %s182
        %s184 = sand.u32 %s107, 1
        %s185 = scalar_lea.vmem [#allocation3], %s184
        %s186 = smul.u32 4, %s22
        %p187 = scmp.lt.s32.totalorder %s21, 1
        %s188 = scalar_select %p187, %s21, 1
        %p189 = scmp.lt.s32.totalorder %s186, 7
        %s190 = scalar_select %p189, %s186, 7
        %s191 = smul.addr %s188, 8
        %s192 = sadd.s32 %s190, %s191
        %s193 = smul.addr %s192, 8
        %s194 = scalar_lea.vmem %s0, %s193
        %s195 = smul.u32 4, %s22
        %p196 = scmp.eq.s32.totalorder %s22, 0
        // Predicated region
        $region33: #{rota_inv_net_forward.5} parent=31 // pred_check
          %p197 = pneg %p196
        $region34: #{rota_inv_net_forward.5} parent=31 // pred_check_branch
          %199 = sbr.rel (%p197) target = $region36
        $region35: #{rota_inv_net_forward.5} parent=31 // pred_region
          %200 = vst [vmem:[#allocation2] sm:$0x1] -inf
        $region36: #{rota_inv_net_forward.5} parent=31 // pred_fallthru
          _
        %v201 = vld [vmem:[#allocation2] sm:$0x1]
        %v202 = vld [vmem:[%s194] sm:$0xff]
        %v203 = vld [vmem:[%s194 + $0x8] sm:$0xff]
        %v204 = vld [vmem:[%s194 + $0x10] sm:$0xff]
        %v205 = vld [vmem:[%s194 + $0x18] sm:$0xff]
        %v206 = vmax.f32 %v202, %v203
        %v207 = vmax.f32 %v204, %v205
        %v208 = vmax.f32 %v206, %v207
        %v209 = vrot.slane %v208, 4
        %v210 = vmax.f32 %v208, %v209
        %v211 = vrot.slane %v210, 2
        %v212 = vmax.f32 %v210, %v211
        %v213 = vrot.slane %v212, 1
        %v214 = vmax.f32 %v212, %v213
        %v215 = vmax.f32 %v201, %v214
        %216 = vst [vmem:[#allocation2] sm:$0x1] %v215
        %p217 = scmp.eq.s32.totalorder %s22, 1
        // Predicated region
        $region37: #{rota_inv_net_forward.5} parent=31 // pred_check
          %p218 = pneg %p217
        $region38: #{rota_inv_net_forward.5} parent=31 // pred_check_branch
          %220 = sbr.rel (%p218) target = $region40
        $region39: #{rota_inv_net_forward.5} parent=31 // pred_region
          %v221 = vld [vmem:[#allocation2] sm:$0x1]
          %v222 = vld [vmem:[%s1] sm:$0xff]
          %v223 = vld [vmem:[%s1 + $0x8] sm:$0xff]
          %v224 = vld [vmem:[%s1 + $0x10] sm:$0xff]
          %v225 = vld [vmem:[%s1 + $0x18] sm:$0xff]
          %v226 = vld [vmem:[%s1 + $0x20] sm:$0xff]
          %v227 = vld [vmem:[%s1 + $0x28] sm:$0xff]
          %v228 = vld [vmem:[%s1 + $0x30] sm:$0xff]
          %v229 = vld [vmem:[%s1 + $0x38] sm:$0xff]
          %v230 = vld [vmem:[%s1 + $0x40] sm:$0xff]
          %v231 = vld [vmem:[%s1 + $0x48] sm:$0xff]
          %v232 = vld [vmem:[%s1 + $0x50] sm:$0xff]
          %v233 = vld [vmem:[%s1 + $0x58] sm:$0xff]
          %v234 = vld [vmem:[%s1 + $0x60] sm:$0xff]
          %v235 = vld [vmem:[%s1 + $0x68] sm:$0xff]
          %v236 = vld [vmem:[%s1 + $0x70] sm:$0xff]
          %v237 = vld [vmem:[%s1 + $0x78] sm:$0xff]
          %v238 = vld [vmem:[%s2] sm:$0x1]
          %239 = vmatprep.subr.mxu0 0.0
          %240 = vmatpush1.msra.mxu0 %v237
          %241 = vmatprep.subr.mxu0 0.0
          %242 = vmatpush1.msra.mxu0 %v236
          %243 = vmatprep.subr.mxu0 0.0
          %244 = vmatpush1.msra.mxu0 %v235
          %245 = vmatprep.subr.mxu0 0.0
          %246 = vmatpush1.msra.mxu0 %v234
          %247 = vmatprep.subr.mxu0 0.0
          %248 = vmatpush1.msra.mxu0 %v233
          %249 = vmatprep.subr.mxu0 0.0
          %250 = vmatpush1.msra.mxu0 %v232
          %251 = vmatprep.subr.mxu0 0.0
          %252 = vmatpush1.msra.mxu0 %v231
          %253 = vmatprep.subr.mxu0 0.0
          %254 = vmatpush1.msra.mxu0 %v230
          %255 = vmatprep.subr.mxu0 0.0
          %256 = vmatpush1.msra.mxu0 %v229
          %257 = vmatprep.subr.mxu0 0.0
          %258 = vmatpush1.msra.mxu0 %v228
          %259 = vmatprep.subr.mxu0 0.0
          %260 = vmatpush1.msra.mxu0 %v227
          %261 = vmatprep.subr.mxu0 0.0
          %262 = vmatpush1.msra.mxu0 %v226
          %263 = vmatprep.subr.mxu0 0.0
          %264 = vmatpush1.msra.mxu0 %v225
          %265 = vmatprep.subr.mxu0 0.0
          %266 = vmatpush1.msra.mxu0 %v224
          %267 = vmatprep.subr.mxu0 0.0
          %268 = vmatpush1.msra.mxu0 %v223
          %269 = vmatprep.subr.mxu0 0.0
          %270 = vmatpush1.msra.mxu0 %v222
          %271 = vmatprep.subr.mxu0 0.0
          %272 = vmatpush2.msra.mxu0 0.0
          %273 = vmatprep.subr.mxu0 0.0
          %274 = vmatpush2.msra.mxu0 0.0
          %275 = vmatprep.subr.mxu0 0.0
          %276 = vmatpush2.msra.mxu0 0.0
          %277 = vmatprep.subr.mxu0 0.0
          %278 = vmatpush2.msra.mxu0 0.0
          %279 = vmatprep.subr.mxu0 0.0
          %280 = vmatpush2.msra.mxu0 0.0
          %281 = vmatprep.subr.mxu0 0.0
          %282 = vmatpush2.msra.mxu0 0.0
          %283 = vmatprep.subr.mxu0 0.0
          %284 = vmatpush2.msra.mxu0 0.0
          %285 = vmatprep.subr.mxu0 0.0
          %286 = vmatpush2.msra.mxu0 0.0
          %287 = vmatprep.subr.mxu0 0.0
          %288 = vmatpush2.msra.mxu0 0.0
          %289 = vmatprep.subr.mxu0 0.0
          %290 = vmatpush2.msra.mxu0 0.0
          %291 = vmatprep.subr.mxu0 0.0
          %292 = vmatpush2.msra.mxu0 0.0
          %293 = vmatprep.subr.mxu0 0.0
          %294 = vmatpush2.msra.mxu0 0.0
          %295 = vmatprep.subr.mxu0 0.0
          %296 = vmatpush2.msra.mxu0 0.0
          %297 = vmatprep.subr.mxu0 0.0
          %298 = vmatpush2.msra.mxu0 0.0
          %299 = vmatprep.subr.mxu0 0.0
          %300 = vmatpush2.msra.mxu0 0.0
          %301 = vmatprep.subr.mxu0 0.0
          %302 = vmatpush2.msra.mxu0 0.0
          %303 = vmatprep.mubr.f32.mxu0 0.0
          %304 = vmatmul.mubr.f32.gmra.mxu0 %v221
          %v305 = vpop.f32.mrf.mxu0
          %v306 = vadd.f32 %v238, %v305
          %v307 = vpop.f32.mrf.mxu0
          %308 = vdwg.mxu0
          %vm309 = vcmask 73728
          %310 = vst.msk [vmem:[%s185] sm:$0x1] %vm309, %v306
        $region40: #{rota_inv_net_forward.5} parent=31 // pred_fallthru
          _
        %s311 = sand.u32 %s107, 1
        %s312 = scalar_lea.sflag [#allocation4], %s311
        %s313 = sand.u32 %s107, 1
        %s314 = scalar_lea.vmem [#allocation3], %s313
        // Predicated region
        $region41: #{rota_inv_net_forward.5} parent=31 // pred_check
          %p315 = pneg %p117
        $region42: #{rota_inv_net_forward.5} parent=31 // pred_check_branch
          %317 = sbr.rel (%p315) target = $region44
        $region43: #{rota_inv_net_forward.5} parent=31 // pred_region
          %s319 = ssub.s32 16, 16
          %320 = vsyncadd %s312, %s319
          %s321 = smul.addr %s21, 16
          %s322 = scalar_lea.hbm %s3, %s321
          %s324 = sshll.u32 %s314, 4
          %s325 = int_to_ptr.vmem [resolvable:$true] %s324
          %327 = dma.vmem_to_hbm [thread:$0]  %s325, 16, %s322, %s312
        $region44: #{rota_inv_net_forward.5} parent=31 // pred_fallthru
          _
      $region32: #{rota_inv_net_forward.5} parent=5 // pred_fallthru
        _
      %p328 = scmp.le.s32.totalorder 2, %s12
      // Predicated region
      $region45: #{rota_inv_net_forward.5} parent=5 // pred_check
        %p329 = pneg %p328
      $region46: #{rota_inv_net_forward.5} parent=5 // pred_check_branch
        %331 = sbr.rel (%p329) target = $region48
      $region47: #{rota_inv_net_forward.5} parent=5 // pred_region
        %s332 = ssub.s32 %s12, 2
        // Predicated region
        $region49: #{rota_inv_net_forward.5} parent=47 // pred_check
          %p333 = pneg %p123
        $region50: #{rota_inv_net_forward.5} parent=47 // pred_check_branch
          %335 = sbr.rel (%p333) target = $region52
        $region51: #{rota_inv_net_forward.5} parent=47 // pred_region
          %s336 = sand.u32 %s108, 1
          %s337 = scalar_lea.sflag [#allocation4], %s336
          %s338 = sand.u32 %s108, 1
          %s339 = scalar_lea.vmem [#allocation3], %s338
          %340 = dma.done %s337, 16
        $region52: #{rota_inv_net_forward.5} parent=47 // pred_fallthru
          _
      $region48: #{rota_inv_net_forward.5} parent=5 // pred_fallthru
        _
    $region6: #{rota_inv_net_forward.5} parent=1 // loop_footer
      %s16 = sadd.s32 1, %s12
    $region7: #{rota_inv_net_forward.5} parent=1 // loop_footer_branch
      %11 = sbr.rel target = $region3
    $region8: #{rota_inv_net_forward.5} parent=1 // loop_exit
      _
    %341 = vsyncpa [#allocation4], 1
    %s342 = scalar_lea.sflag [#allocation4], 1
    %343 = vsyncpa %s342, 1

// kernel: rota_inv_net_forward.4
$region0: #{rota_inv_net_forward.4}
  #allocation0 [shape = 'u32[]', space=smem, size = 0x4, offset = 0x4, fixed_abs, tag = 'smem constant byte address 0x4 - core index']
  #allocation1 [shape = 'u32[144,128]{1,0:T(1,128)}', space=vmem, size = 0x12000, scoped, tag = 'internal scratch']
  %s0 = inlined_call_operand.vmem [shape: bf16[128,16,32], index: 0, kind: input, shape index: {}]
  %s1 = inlined_call_operand.vmem [shape: bf16[128,16,4], index: 1, kind: input, shape index: {}]
  %s2 = inlined_call_operand.vmem [shape: bf16[32,64], index: 2, kind: input, shape index: {}]
  %s3 = inlined_call_operand.vmem [shape: bf16[4,64], index: 3, kind: input, shape index: {}]
  %s4 = inlined_call_operand.vmem [shape: f32[1,64], index: 4, kind: input, shape index: {}]
  %s5 = inlined_call_operand.vmem [shape: bf16[64,128], index: 5, kind: input, shape index: {}]
  %s6 = inlined_call_operand.vmem [shape: f32[1,128], index: 6, kind: input, shape index: {}]
  %s7 = inlined_call_operand.vmem [shape: f32[128,128], index: 7, kind: output, shape index: {}]
  %s8 = sld [smem:[#allocation0]]
  $region61: #{rota_inv_net_forward.4} parent=0
    _
  %s10 = ssub.s32 1, %s8
  %s11 = scalar_select 0, %s10, %s8
  loop: start=0, step=1, limit=4
  $region2: #{rota_inv_net_forward.4} parent=0 // loop_pre_header
    _
  $region3: #{rota_inv_net_forward.4} parent=0 // loop_header
    %s13 = sphi 0, %s17
    %p14 = scmp.ge.s32.totalorder %s13, 4
    %s23 = sphi 0, %s25
    %s26 = sphi 0, %s23
    %s27 = sphi 0, %s26
    %s43 = sphi 0, %s27
    %s49 = sphi 0, %s51
    %s52 = sphi 0, %s49
    %s53 = sphi 0, %s52
    %s69 = sphi 0, %s53
    %s73 = sphi 0, %s73
    %s75 = sphi 0, %s73
    %s76 = sphi 0, %s75
    %s90 = sphi 0, %s76
    %s94 = sphi 0, %s94
    %s96 = sphi 0, %s94
    %s97 = sphi 0, %s96
    %s111 = sphi 0, %s97
    %s115 = sphi 0, %s115
    %s117 = sphi 0, %s115
    %s118 = sphi 0, %s117
    %s132 = sphi 0, %s118
    %s136 = sphi 0, %s136
    %s138 = sphi 0, %s136
    %s139 = sphi 0, %s138
    %s153 = sphi 0, %s139
    %s157 = sphi 0, %s157
    %s159 = sphi 0, %s157
    %s160 = sphi 0, %s159
    %s174 = sphi 0, %s160
    %s180 = sphi 0, %s182
    %s183 = sphi 0, %s180
    %s184 = sphi 0, %s183
    %s200 = sphi 0, %s184
  $region4: #{rota_inv_net_forward.4} parent=0 // loop_header_branch
    %16 = sbr.rel (%p14) target = $region8
  $region5: #{rota_inv_net_forward.4} parent=0 // loop_body
    %s18 = ssub.s32 %s13, 1
    %s19 = ssub.s32 %s13, 2
    %s20 = sadd.s32 %s13, 1
    %s21 = ssub.s32 %s13, %s20
    %p22 = scmp.eq.s32.totalorder %s21, 0
    %s24 = sadd.s32 %s23, 1
    %s25 = scalar_select %p22, %s23, %s24
    %p28 = pneg %p22
    %p29 = scmp.eq.s32.totalorder %s13, 1
    %p30 = por %p28, %p29
    %p31 = scmp.ne.s32.totalorder %s23, %s26
    %p32 = scmp.eq.s32.totalorder %s13, 0
    %p33 = por %p31, %p32
    %p34 = scmp.ne.s32.totalorder %s23, %s26
    %p35 = scmp.eq.s32.totalorder %s18, 1
    %p36 = por %p34, %p35
    %p37 = scmp.ne.s32.totalorder %s26, %s27
    %p38 = scmp.eq.s32.totalorder %s18, 0
    %p39 = por %p37, %p38
    %p40 = scmp.ne.s32.totalorder %s26, %s27
    %p41 = scmp.eq.s32.totalorder %s19, 1
    %p42 = por %p40, %p41
    %p44 = scmp.ne.s32.totalorder %s27, %s43
    %p45 = scmp.eq.s32.totalorder %s19, 0
    %p46 = por %p44, %p45
    %s47 = ssub.s32 %s13, %s20
    %p48 = scmp.eq.s32.totalorder %s47, 0
    %s50 = sadd.s32 %s49, 1
    %s51 = scalar_select %p48, %s49, %s50
    %p54 = pneg %p48
    %p55 = scmp.eq.s32.totalorder %s13, 1
    %p56 = por %p54, %p55
    %p57 = scmp.ne.s32.totalorder %s49, %s52
    %p58 = scmp.eq.s32.totalorder %s13, 0
    %p59 = por %p57, %p58
    %p60 = scmp.ne.s32.totalorder %s49, %s52
    %p61 = scmp.eq.s32.totalorder %s18, 1
    %p62 = por %p60, %p61
    %p63 = scmp.ne.s32.totalorder %s52, %s53
    %p64 = scmp.eq.s32.totalorder %s18, 0
    %p65 = por %p63, %p64
    %p66 = scmp.ne.s32.totalorder %s52, %s53
    %p67 = scmp.eq.s32.totalorder %s19, 1
    %p68 = por %p66, %p67
    %p70 = scmp.ne.s32.totalorder %s53, %s69
    %p71 = scmp.eq.s32.totalorder %s19, 0
    %p72 = por %p70, %p71
    %s74 = sadd.s32 %s73, 1
    %p77 = scmp.eq.s32.totalorder %s13, 1
    %p78 = scmp.ne.s32.totalorder %s73, %s75
    %p79 = scmp.eq.s32.totalorder %s13, 0
    %p80 = por %p78, %p79
    %p81 = scmp.ne.s32.totalorder %s73, %s75
    %p82 = scmp.eq.s32.totalorder %s18, 1
    %p83 = por %p81, %p82
    %p84 = scmp.ne.s32.totalorder %s75, %s76
    %p85 = scmp.eq.s32.totalorder %s18, 0
    %p86 = por %p84, %p85
    %p87 = scmp.ne.s32.totalorder %s75, %s76
    %p88 = scmp.eq.s32.totalorder %s19, 1
    %p89 = por %p87, %p88
    %p91 = scmp.ne.s32.totalorder %s76, %s90
    %p92 = scmp.eq.s32.totalorder %s19, 0
    %p93 = por %p91, %p92
    %s95 = sadd.s32 %s94, 1
    %p98 = scmp.eq.s32.totalorder %s13, 1
    %p99 = scmp.ne.s32.totalorder %s94, %s96
    %p100 = scmp.eq.s32.totalorder %s13, 0
    %p101 = por %p99, %p100
    %p102 = scmp.ne.s32.totalorder %s94, %s96
    %p103 = scmp.eq.s32.totalorder %s18, 1
    %p104 = por %p102, %p103
    %p105 = scmp.ne.s32.totalorder %s96, %s97
    %p106 = scmp.eq.s32.totalorder %s18, 0
    %p107 = por %p105, %p106
    %p108 = scmp.ne.s32.totalorder %s96, %s97
    %p109 = scmp.eq.s32.totalorder %s19, 1
    %p110 = por %p108, %p109
    %p112 = scmp.ne.s32.totalorder %s97, %s111
    %p113 = scmp.eq.s32.totalorder %s19, 0
    %p114 = por %p112, %p113
    %s116 = sadd.s32 %s115, 1
    %p119 = scmp.eq.s32.totalorder %s13, 1
    %p120 = scmp.ne.s32.totalorder %s115, %s117
    %p121 = scmp.eq.s32.totalorder %s13, 0
    %p122 = por %p120, %p121
    %p123 = scmp.ne.s32.totalorder %s115, %s117
    %p124 = scmp.eq.s32.totalorder %s18, 1
    %p125 = por %p123, %p124
    %p126 = scmp.ne.s32.totalorder %s117, %s118
    %p127 = scmp.eq.s32.totalorder %s18, 0
    %p128 = por %p126, %p127
    %p129 = scmp.ne.s32.totalorder %s117, %s118
    %p130 = scmp.eq.s32.totalorder %s19, 1
    %p131 = por %p129, %p130
    %p133 = scmp.ne.s32.totalorder %s118, %s132
    %p134 = scmp.eq.s32.totalorder %s19, 0
    %p135 = por %p133, %p134
    %s137 = sadd.s32 %s136, 1
    %p140 = scmp.eq.s32.totalorder %s13, 1
    %p141 = scmp.ne.s32.totalorder %s136, %s138
    %p142 = scmp.eq.s32.totalorder %s13, 0
    %p143 = por %p141, %p142
    %p144 = scmp.ne.s32.totalorder %s136, %s138
    %p145 = scmp.eq.s32.totalorder %s18, 1
    %p146 = por %p144, %p145
    %p147 = scmp.ne.s32.totalorder %s138, %s139
    %p148 = scmp.eq.s32.totalorder %s18, 0
    %p149 = por %p147, %p148
    %p150 = scmp.ne.s32.totalorder %s138, %s139
    %p151 = scmp.eq.s32.totalorder %s19, 1
    %p152 = por %p150, %p151
    %p154 = scmp.ne.s32.totalorder %s139, %s153
    %p155 = scmp.eq.s32.totalorder %s19, 0
    %p156 = por %p154, %p155
    %s158 = sadd.s32 %s157, 1
    %p161 = scmp.eq.s32.totalorder %s13, 1
    %p162 = scmp.ne.s32.totalorder %s157, %s159
    %p163 = scmp.eq.s32.totalorder %s13, 0
    %p164 = por %p162, %p163
    %p165 = scmp.ne.s32.totalorder %s157, %s159
    %p166 = scmp.eq.s32.totalorder %s18, 1
    %p167 = por %p165, %p166
    %p168 = scmp.ne.s32.totalorder %s159, %s160
    %p169 = scmp.eq.s32.totalorder %s18, 0
    %p170 = por %p168, %p169
    %p171 = scmp.ne.s32.totalorder %s159, %s160
    %p172 = scmp.eq.s32.totalorder %s19, 1
    %p173 = por %p171, %p172
    %p175 = scmp.ne.s32.totalorder %s160, %s174
    %p176 = scmp.eq.s32.totalorder %s19, 0
    %p177 = por %p175, %p176
    %s178 = ssub.s32 %s13, %s20
    %p179 = scmp.eq.s32.totalorder %s178, 0
    %s181 = sadd.s32 %s180, 1
    %s182 = scalar_select %p179, %s180, %s181
    %p185 = pneg %p179
    %p186 = scmp.eq.s32.totalorder %s13, 1
    %p187 = por %p185, %p186
    %p188 = scmp.ne.s32.totalorder %s180, %s183
    %p189 = scmp.eq.s32.totalorder %s13, 0
    %p190 = por %p188, %p189
    %p191 = scmp.ne.s32.totalorder %s180, %s183
    %p192 = scmp.eq.s32.totalorder %s18, 1
    %p193 = por %p191, %p192
    %p194 = scmp.ne.s32.totalorder %s183, %s184
    %p195 = scmp.eq.s32.totalorder %s18, 0
    %p196 = por %p194, %p195
    %p197 = scmp.ne.s32.totalorder %s183, %s184
    %p198 = scmp.eq.s32.totalorder %s19, 1
    %p199 = por %p197, %p198
    %p201 = scmp.ne.s32.totalorder %s184, %s200
    %p202 = scmp.eq.s32.totalorder %s19, 0
    %p203 = por %p201, %p202
    %p204 = scmp.le.s32.totalorder 1, %s13
    %p205 = scmp.lt.s32.totalorder %s13, 3
    %p206 = pnand %p204, %p205
    %p207 = pneg %p206
    // Predicated region
    $region9: #{rota_inv_net_forward.4} parent=5 // pred_check
      _
    $region10: #{rota_inv_net_forward.4} parent=5 // pred_check_branch
      %209 = sbr.rel (%p206) target = $region12
    $region11: #{rota_inv_net_forward.4} parent=5 // pred_region
      %s210 = ssub.s32 %s13, 1
      // Predicated region
      $region13: #{rota_inv_net_forward.4} parent=11 // pred_check
        %p211 = pneg %p86
      $region14: #{rota_inv_net_forward.4} parent=11 // pred_check_branch
        %213 = sbr.rel (%p211) target = $region16
      $region15: #{rota_inv_net_forward.4} parent=11 // pred_region
        _
      $region16: #{rota_inv_net_forward.4} parent=11 // pred_fallthru
        _
      // Predicated region
      $region17: #{rota_inv_net_forward.4} parent=11 // pred_check
        %p214 = pneg %p107
      $region18: #{rota_inv_net_forward.4} parent=11 // pred_check_branch
        %216 = sbr.rel (%p214) target = $region20
      $region19: #{rota_inv_net_forward.4} parent=11 // pred_region
        _
      $region20: #{rota_inv_net_forward.4} parent=11 // pred_fallthru
        _
      // Predicated region
      $region21: #{rota_inv_net_forward.4} parent=11 // pred_check
        %p217 = pneg %p128
      $region22: #{rota_inv_net_forward.4} parent=11 // pred_check_branch
        %219 = sbr.rel (%p217) target = $region24
      $region23: #{rota_inv_net_forward.4} parent=11 // pred_region
        _
      $region24: #{rota_inv_net_forward.4} parent=11 // pred_fallthru
        _
      // Predicated region
      $region25: #{rota_inv_net_forward.4} parent=11 // pred_check
        %p220 = pneg %p149
      $region26: #{rota_inv_net_forward.4} parent=11 // pred_check_branch
        %222 = sbr.rel (%p220) target = $region28
      $region27: #{rota_inv_net_forward.4} parent=11 // pred_region
        _
      $region28: #{rota_inv_net_forward.4} parent=11 // pred_fallthru
        _
      // Predicated region
      $region29: #{rota_inv_net_forward.4} parent=11 // pred_check
        %p223 = pneg %p170
      $region30: #{rota_inv_net_forward.4} parent=11 // pred_check_branch
        %225 = sbr.rel (%p223) target = $region32
      $region31: #{rota_inv_net_forward.4} parent=11 // pred_region
        _
      $region32: #{rota_inv_net_forward.4} parent=11 // pred_fallthru
        _
    $region12: #{rota_inv_net_forward.4} parent=5 // pred_fallthru
      _
    %p226 = scmp.lt.s32.totalorder %s13, 2
    // Predicated region
    $region33: #{rota_inv_net_forward.4} parent=5 // pred_check
      %p227 = pneg %p226
    $region34: #{rota_inv_net_forward.4} parent=5 // pred_check_branch
      %229 = sbr.rel (%p227) target = $region36
    $region35: #{rota_inv_net_forward.4} parent=5 // pred_region
      // Predicated region
      $region37: #{rota_inv_net_forward.4} parent=35 // pred_check
        %p230 = pneg %p33
      $region38: #{rota_inv_net_forward.4} parent=35 // pred_check_branch
        %232 = sbr.rel (%p230) target = $region40
      $region39: #{rota_inv_net_forward.4} parent=35 // pred_region
        %s233 = smul.u32 64, %s13
        %p234 = scmp.lt.s32.totalorder %s233, 127
        %s235 = scalar_select %p234, %s233, 127
        %s236 = smul.addr %s235, 2
        %s237 = smul.addr %s236, 4
        %s238 = scalar_lea.vmem %s0, %s237
        %s239 = smul.u32 64, %s13
      $region40: #{rota_inv_net_forward.4} parent=35 // pred_fallthru
        _
      // Predicated region
      $region41: #{rota_inv_net_forward.4} parent=35 // pred_check
        %p240 = pneg %p59
      $region42: #{rota_inv_net_forward.4} parent=35 // pred_check_branch
        %242 = sbr.rel (%p240) target = $region44
      $region43: #{rota_inv_net_forward.4} parent=35 // pred_region
        %s243 = smul.u32 64, %s13
        %p244 = scmp.lt.s32.totalorder %s243, 127
        %s245 = scalar_select %p244, %s243, 127
        %s246 = smul.addr %s245, 2
        %s247 = smul.addr %s246, 4
        %s248 = scalar_lea.vmem %s1, %s247
        %s249 = smul.u32 64, %s13
      $region44: #{rota_inv_net_forward.4} parent=35 // pred_fallthru
        _
    $region36: #{rota_inv_net_forward.4} parent=5 // pred_fallthru
      _
    %p250 = scmp.le.s32.totalorder 1, %s13
    %p251 = scmp.lt.s32.totalorder %s13, 3
    %p252 = pnand %p250, %p251
    %p253 = pneg %p252
    // Predicated region
    $region45: #{rota_inv_net_forward.4} parent=5 // pred_check
      _
    $region46: #{rota_inv_net_forward.4} parent=5 // pred_check_branch
      %255 = sbr.rel (%p252) target = $region48
    $region47: #{rota_inv_net_forward.4} parent=5 // pred_region
      %s256 = ssub.s32 %s13, 1
      %s257 = smul.u32 64, %s18
      %p258 = scmp.lt.s32.totalorder %s257, 127
      %s259 = scalar_select %p258, %s257, 127
      %s260 = smul.addr %s259, 2
      %s261 = smul.addr %s260, 4
      %s262 = scalar_lea.vmem %s0, %s261
      %p263 = pneg %p39
      %p264 = pneg %p36
      %s265 = smul.u32 64, %s18
      %p266 = scmp.lt.s32.totalorder %s265, 127
      %s267 = scalar_select %p266, %s265, 127
      %s268 = smul.addr %s267, 2
      %s269 = smul.addr %s268, 4
      %s270 = scalar_lea.vmem %s1, %s269
      %p271 = pneg %p65
      %p272 = pneg %p62
      %p273 = pneg %p86
      %p274 = pneg %p83
      %p275 = pneg %p107
      %p276 = pneg %p104
      %p277 = pneg %p128
      %p278 = pneg %p125
      %p279 = pneg %p149
      %p280 = pneg %p146
      %p281 = pneg %p170
      %p282 = pneg %p167
      %p283 = pneg %p196
      %p284 = pneg %p193
      %s285 = smul.u32 8, %s18
      %p286 = scmp.lt.s32.totalorder %s285, 15
      %s287 = scalar_select %p286, %s285, 15
      %s288 = smul.addr %s287, 8
      %s289 = scalar_lea.vmem %s7, %s288
      %s290 = smul.u32 64, %s18
      %p291 = scmp.lt.s32.totalorder %s290, 127
      %s292 = scalar_select %p291, %s290, 127
      %s293 = smul.addr %s292, 2
      %s294 = smul.addr %s293, 4
      %s295 = scalar_lea.vmem %s0, %s294
      %s296 = smul.u32 64, %s18
      %s297 = smul.u32 64, %s18
      %p298 = scmp.lt.s32.totalorder %s297, 127
      %s299 = scalar_select %p298, %s297, 127
      %s300 = smul.addr %s299, 2
      %s301 = smul.addr %s300, 4
      %s302 = scalar_lea.vmem %s1, %s301
      %s303 = smul.u32 64, %s18
      %s304 = smul.u32 8, %s18
      %p305 = scmp.lt.s32.totalorder %s304, 15
      %s306 = scalar_select %p305, %s304, 15
      %s307 = smul.addr %s306, 8
      %s308 = scalar_lea.vmem %s7, %s307
      %s309 = smul.u32 8, %s18
      %v311 = vld [vmem:[%s295] sm:$0xf]
      %v312 = vld [vmem:[%s295 + $0x4] sm:$0xf]
      %v313 = vld [vmem:[%s295 + $0x8] sm:$0xf]
      %v314 = vld [vmem:[%s295 + $0xc] sm:$0xf]
      %v315 = vld [vmem:[%s295 + $0x10] sm:$0xf]
      %v316 = vld [vmem:[%s295 + $0x14] sm:$0xf]
      %v317 = vld [vmem:[%s295 + $0x18] sm:$0xf]
      %v318 = vld [vmem:[%s295 + $0x1c] sm:$0xf]
      %v319 = vld [vmem:[%s295 + $0x20] sm:$0xf]
      %v320 = vld [vmem:[%s295 + $0x24] sm:$0xf]
      %v321 = vld [vmem:[%s295 + $0x28] sm:$0xf]
      %v322 = vld [vmem:[%s295 + $0x2c] sm:$0xf]
      %v323 = vld [vmem:[%s295 + $0x30] sm:$0xf]
      %v324 = vld [vmem:[%s295 + $0x34] sm:$0xf]
      %v325 = vld [vmem:[%s295 + $0x38] sm:$0xf]
      %v326 = vld [vmem:[%s295 + $0x3c] sm:$0xf]
      %v327 = vld [vmem:[%s295 + $0x40] sm:$0xf]
      %v328 = vld [vmem:[%s295 + $0x44] sm:$0xf]
      %v329 = vld [vmem:[%s295 + $0x48] sm:$0xf]
      %v330 = vld [vmem:[%s295 + $0x4c] sm:$0xf]
      %v331 = vld [vmem:[%s295 + $0x50] sm:$0xf]
      %v332 = vld [vmem:[%s295 + $0x54] sm:$0xf]
      %v333 = vld [vmem:[%s295 + $0x58] sm:$0xf]
      %v334 = vld [vmem:[%s295 + $0x5c] sm:$0xf]
      %v335 = vld [vmem:[%s295 + $0x60] sm:$0xf]
      %v336 = vld [vmem:[%s295 + $0x64] sm:$0xf]
      %v337 = vld [vmem:[%s295 + $0x68] sm:$0xf]
      %v338 = vld [vmem:[%s295 + $0x6c] sm:$0xf]
      %v339 = vld [vmem:[%s295 + $0x70] sm:$0xf]
      %v340 = vld [vmem:[%s295 + $0x74] sm:$0xf]
      %v341 = vld [vmem:[%s295 + $0x78] sm:$0xf]
      %v342 = vld [vmem:[%s295 + $0x7c] sm:$0xf]
      %v343 = vld [vmem:[%s295 + $0x80] sm:$0xf]
      %v344 = vld [vmem:[%s295 + $0x84] sm:$0xf]
      %v345 = vld [vmem:[%s295 + $0x88] sm:$0xf]
      %v346 = vld [vmem:[%s295 + $0x8c] sm:$0xf]
      %v347 = vld [vmem:[%s295 + $0x90] sm:$0xf]
      %v348 = vld [vmem:[%s295 + $0x94] sm:$0xf]
      %v349 = vld [vmem:[%s295 + $0x98] sm:$0xf]
      %v350 = vld [vmem:[%s295 + $0x9c] sm:$0xf]
      %v351 = vld [vmem:[%s295 + $0xa0] sm:$0xf]
      %v352 = vld [vmem:[%s295 + $0xa4] sm:$0xf]
      %v353 = vld [vmem:[%s295 + $0xa8] sm:$0xf]
      %v354 = vld [vmem:[%s295 + $0xac] sm:$0xf]
      %v355 = vld [vmem:[%s295 + $0xb0] sm:$0xf]
      %v356 = vld [vmem:[%s295 + $0xb4] sm:$0xf]
      %v357 = vld [vmem:[%s295 + $0xb8] sm:$0xf]
      %v358 = vld [vmem:[%s295 + $0xbc] sm:$0xf]
      %v359 = vld [vmem:[%s295 + $0xc0] sm:$0xf]
      %v360 = vld [vmem:[%s295 + $0xc4] sm:$0xf]
      %v361 = vld [vmem:[%s295 + $0xc8] sm:$0xf]
      %v362 = vld [vmem:[%s295 + $0xcc] sm:$0xf]
      %v363 = vld [vmem:[%s295 + $0xd0] sm:$0xf]
      %v364 = vld [vmem:[%s295 + $0xd4] sm:$0xf]
      %v365 = vld [vmem:[%s295 + $0xd8] sm:$0xf]
      %v366 = vld [vmem:[%s295 + $0xdc] sm:$0xf]
      %v367 = vld [vmem:[%s295 + $0xe0] sm:$0xf]
      %v368 = vld [vmem:[%s295 + $0xe4] sm:$0xf]
      %v369 = vld [vmem:[%s295 + $0xe8] sm:$0xf]
      %v370 = vld [vmem:[%s295 + $0xec] sm:$0xf]
      %v371 = vld [vmem:[%s295 + $0xf0] sm:$0xf]
      %v372 = vld [vmem:[%s295 + $0xf4] sm:$0xf]
      %v373 = vld [vmem:[%s295 + $0xf8] sm:$0xf]
      %v374 = vld [vmem:[%s295 + $0xfc] sm:$0xf]
      %v375 = vld [vmem:[%s295 + $0x100] sm:$0xf]
      %v376 = vld [vmem:[%s295 + $0x104] sm:$0xf]
      %v377 = vld [vmem:[%s295 + $0x108] sm:$0xf]
      %v378 = vld [vmem:[%s295 + $0x10c] sm:$0xf]
      %v379 = vld [vmem:[%s295 + $0x110] sm:$0xf]
      %v380 = vld [vmem:[%s295 + $0x114] sm:$0xf]
      %v381 = vld [vmem:[%s295 + $0x118] sm:$0xf]
      %v382 = vld [vmem:[%s295 + $0x11c] sm:$0xf]
      %v383 = vld [vmem:[%s295 + $0x120] sm:$0xf]
      %v384 = vld [vmem:[%s295 + $0x124] sm:$0xf]
      %v385 = vld [vmem:[%s295 + $0x128] sm:$0xf]
      %v386 = vld [vmem:[%s295 + $0x12c] sm:$0xf]
      %v387 = vld [vmem:[%s295 + $0x130] sm:$0xf]
      %v388 = vld [vmem:[%s295 + $0x134] sm:$0xf]
      %v389 = vld [vmem:[%s295 + $0x138] sm:$0xf]
      %v390 = vld [vmem:[%s295 + $0x13c] sm:$0xf]
      %v391 = vld [vmem:[%s295 + $0x140] sm:$0xf]
      %v392 = vld [vmem:[%s295 + $0x144] sm:$0xf]
      %v393 = vld [vmem:[%s295 + $0x148] sm:$0xf]
      %v394 = vld [vmem:[%s295 + $0x14c] sm:$0xf]
      %v395 = vld [vmem:[%s295 + $0x150] sm:$0xf]
      %v396 = vld [vmem:[%s295 + $0x154] sm:$0xf]
      %v397 = vld [vmem:[%s295 + $0x158] sm:$0xf]
      %v398 = vld [vmem:[%s295 + $0x15c] sm:$0xf]
      %v399 = vld [vmem:[%s295 + $0x160] sm:$0xf]
      %v400 = vld [vmem:[%s295 + $0x164] sm:$0xf]
      %v401 = vld [vmem:[%s295 + $0x168] sm:$0xf]
      %v402 = vld [vmem:[%s295 + $0x16c] sm:$0xf]
      %v403 = vld [vmem:[%s295 + $0x170] sm:$0xf]
      %v404 = vld [vmem:[%s295 + $0x174] sm:$0xf]
      %v405 = vld [vmem:[%s295 + $0x178] sm:$0xf]
      %v406 = vld [vmem:[%s295 + $0x17c] sm:$0xf]
      %v407 = vld [vmem:[%s295 + $0x180] sm:$0xf]
      %v408 = vld [vmem:[%s295 + $0x184] sm:$0xf]
      %v409 = vld [vmem:[%s295 + $0x188] sm:$0xf]
      %v410 = vld [vmem:[%s295 + $0x18c] sm:$0xf]
      %v411 = vld [vmem:[%s295 + $0x190] sm:$0xf]
      %v412 = vld [vmem:[%s295 + $0x194] sm:$0xf]
      %v413 = vld [vmem:[%s295 + $0x198] sm:$0xf]
      %v414 = vld [vmem:[%s295 + $0x19c] sm:$0xf]
      %v415 = vld [vmem:[%s295 + $0x1a0] sm:$0xf]
      %v416 = vld [vmem:[%s295 + $0x1a4] sm:$0xf]
      %v417 = vld [vmem:[%s295 + $0x1a8] sm:$0xf]
      %v418 = vld [vmem:[%s295 + $0x1ac] sm:$0xf]
      %v419 = vld [vmem:[%s295 + $0x1b0] sm:$0xf]
      %v420 = vld [vmem:[%s295 + $0x1b4] sm:$0xf]
      %v421 = vld [vmem:[%s295 + $0x1b8] sm:$0xf]
      %v422 = vld [vmem:[%s295 + $0x1bc] sm:$0xf]
      %v423 = vld [vmem:[%s295 + $0x1c0] sm:$0xf]
      %v424 = vld [vmem:[%s295 + $0x1c4] sm:$0xf]
      %v425 = vld [vmem:[%s295 + $0x1c8] sm:$0xf]
      %v426 = vld [vmem:[%s295 + $0x1cc] sm:$0xf]
      %v427 = vld [vmem:[%s295 + $0x1d0] sm:$0xf]
      %v428 = vld [vmem:[%s295 + $0x1d4] sm:$0xf]
      %v429 = vld [vmem:[%s295 + $0x1d8] sm:$0xf]
      %v430 = vld [vmem:[%s295 + $0x1dc] sm:$0xf]
      %v431 = vld [vmem:[%s295 + $0x1e0] sm:$0xf]
      %v432 = vld [vmem:[%s295 + $0x1e4] sm:$0xf]
      %v433 = vld [vmem:[%s295 + $0x1e8] sm:$0xf]
      %v434 = vld [vmem:[%s295 + $0x1ec] sm:$0xf]
      %v435 = vld [vmem:[%s295 + $0x1f0] sm:$0xf]
      %v436 = vld [vmem:[%s295 + $0x1f4] sm:$0xf]
      %v437 = vld [vmem:[%s295 + $0x1f8] sm:$0xf]
      %v438 = vld [vmem:[%s295 + $0x1fc] sm:$0xf]
      %v439 = vld [vmem:[%s302] sm:$0xf]
      %v440 = vld [vmem:[%s302 + $0x4] sm:$0xf]
      %v441 = vld [vmem:[%s302 + $0x8] sm:$0xf]
      %v442 = vld [vmem:[%s302 + $0xc] sm:$0xf]
      %v443 = vld [vmem:[%s302 + $0x10] sm:$0xf]
      %v444 = vld [vmem:[%s302 + $0x14] sm:$0xf]
      %v445 = vld [vmem:[%s302 + $0x18] sm:$0xf]
      %v446 = vld [vmem:[%s302 + $0x1c] sm:$0xf]
      %v447 = vld [vmem:[%s302 + $0x20] sm:$0xf]
      %v448 = vld [vmem:[%s302 + $0x24] sm:$0xf]
      %v449 = vld [vmem:[%s302 + $0x28] sm:$0xf]
      %v450 = vld [vmem:[%s302 + $0x2c] sm:$0xf]
      %v451 = vld [vmem:[%s302 + $0x30] sm:$0xf]
      %v452 = vld [vmem:[%s302 + $0x34] sm:$0xf]
      %v453 = vld [vmem:[%s302 + $0x38] sm:$0xf]
      %v454 = vld [vmem:[%s302 + $0x3c] sm:$0xf]
      %v455 = vld [vmem:[%s302 + $0x40] sm:$0xf]
      %v456 = vld [vmem:[%s302 + $0x44] sm:$0xf]
      %v457 = vld [vmem:[%s302 + $0x48] sm:$0xf]
      %v458 = vld [vmem:[%s302 + $0x4c] sm:$0xf]
      %v459 = vld [vmem:[%s302 + $0x50] sm:$0xf]
      %v460 = vld [vmem:[%s302 + $0x54] sm:$0xf]
      %v461 = vld [vmem:[%s302 + $0x58] sm:$0xf]
      %v462 = vld [vmem:[%s302 + $0x5c] sm:$0xf]
      %v463 = vld [vmem:[%s302 + $0x60] sm:$0xf]
      %v464 = vld [vmem:[%s302 + $0x64] sm:$0xf]
      %v465 = vld [vmem:[%s302 + $0x68] sm:$0xf]
      %v466 = vld [vmem:[%s302 + $0x6c] sm:$0xf]
      %v467 = vld [vmem:[%s302 + $0x70] sm:$0xf]
      %v468 = vld [vmem:[%s302 + $0x74] sm:$0xf]
      %v469 = vld [vmem:[%s302 + $0x78] sm:$0xf]
      %v470 = vld [vmem:[%s302 + $0x7c] sm:$0xf]
      %v471 = vld [vmem:[%s302 + $0x80] sm:$0xf]
      %v472 = vld [vmem:[%s302 + $0x84] sm:$0xf]
      %v473 = vld [vmem:[%s302 + $0x88] sm:$0xf]
      %v474 = vld [vmem:[%s302 + $0x8c] sm:$0xf]
      %v475 = vld [vmem:[%s302 + $0x90] sm:$0xf]
      %v476 = vld [vmem:[%s302 + $0x94] sm:$0xf]
      %v477 = vld [vmem:[%s302 + $0x98] sm:$0xf]
      %v478 = vld [vmem:[%s302 + $0x9c] sm:$0xf]
      %v479 = vld [vmem:[%s302 + $0xa0] sm:$0xf]
      %v480 = vld [vmem:[%s302 + $0xa4] sm:$0xf]
      %v481 = vld [vmem:[%s302 + $0xa8] sm:$0xf]
      %v482 = vld [vmem:[%s302 + $0xac] sm:$0xf]
      %v483 = vld [vmem:[%s302 + $0xb0] sm:$0xf]
      %v484 = vld [vmem:[%s302 + $0xb4] sm:$0xf]
      %v485 = vld [vmem:[%s302 + $0xb8] sm:$0xf]
      %v486 = vld [vmem:[%s302 + $0xbc] sm:$0xf]
      %v487 = vld [vmem:[%s302 + $0xc0] sm:$0xf]
      %v488 = vld [vmem:[%s302 + $0xc4] sm:$0xf]
      %v489 = vld [vmem:[%s302 + $0xc8] sm:$0xf]
      %v490 = vld [vmem:[%s302 + $0xcc] sm:$0xf]
      %v491 = vld [vmem:[%s302 + $0xd0] sm:$0xf]
      %v492 = vld [vmem:[%s302 + $0xd4] sm:$0xf]
      %v493 = vld [vmem:[%s302 + $0xd8] sm:$0xf]
      %v494 = vld [vmem:[%s302 + $0xdc] sm:$0xf]
      %v495 = vld [vmem:[%s302 + $0xe0] sm:$0xf]
      %v496 = vld [vmem:[%s302 + $0xe4] sm:$0xf]
      %v497 = vld [vmem:[%s302 + $0xe8] sm:$0xf]
      %v498 = vld [vmem:[%s302 + $0xec] sm:$0xf]
      %v499 = vld [vmem:[%s302 + $0xf0] sm:$0xf]
      %v500 = vld [vmem:[%s302 + $0xf4] sm:$0xf]
      %v501 = vld [vmem:[%s302 + $0xf8] sm:$0xf]
      %v502 = vld [vmem:[%s302 + $0xfc] sm:$0xf]
      %v503 = vld [vmem:[%s302 + $0x100] sm:$0xf]
      %v504 = vld [vmem:[%s302 + $0x104] sm:$0xf]
      %v505 = vld [vmem:[%s302 + $0x108] sm:$0xf]
      %v506 = vld [vmem:[%s302 + $0x10c] sm:$0xf]
      %v507 = vld [vmem:[%s302 + $0x110] sm:$0xf]
      %v508 = vld [vmem:[%s302 + $0x114] sm:$0xf]
      %v509 = vld [vmem:[%s302 + $0x118] sm:$0xf]
      %v510 = vld [vmem:[%s302 + $0x11c] sm:$0xf]
      %v511 = vld [vmem:[%s302 + $0x120] sm:$0xf]
      %v512 = vld [vmem:[%s302 + $0x124] sm:$0xf]
      %v513 = vld [vmem:[%s302 + $0x128] sm:$0xf]
      %v514 = vld [vmem:[%s302 + $0x12c] sm:$0xf]
      %v515 = vld [vmem:[%s302 + $0x130] sm:$0xf]
      %v516 = vld [vmem:[%s302 + $0x134] sm:$0xf]
      %v517 = vld [vmem:[%s302 + $0x138] sm:$0xf]
      %v518 = vld [vmem:[%s302 + $0x13c] sm:$0xf]
      %v519 = vld [vmem:[%s302 + $0x140] sm:$0xf]
      %v520 = vld [vmem:[%s302 + $0x144] sm:$0xf]
      %v521 = vld [vmem:[%s302 + $0x148] sm:$0xf]
      %v522 = vld [vmem:[%s302 + $0x14c] sm:$0xf]
      %v523 = vld [vmem:[%s302 + $0x150] sm:$0xf]
      %v524 = vld [vmem:[%s302 + $0x154] sm:$0xf]
      %v525 = vld [vmem:[%s302 + $0x158] sm:$0xf]
      %v526 = vld [vmem:[%s302 + $0x15c] sm:$0xf]
      %v527 = vld [vmem:[%s302 + $0x160] sm:$0xf]
      %v528 = vld [vmem:[%s302 + $0x164] sm:$0xf]
      %v529 = vld [vmem:[%s302 + $0x168] sm:$0xf]
      %v530 = vld [vmem:[%s302 + $0x16c] sm:$0xf]
      %v531 = vld [vmem:[%s302 + $0x170] sm:$0xf]
      %v532 = vld [vmem:[%s302 + $0x174] sm:$0xf]
      %v533 = vld [vmem:[%s302 + $0x178] sm:$0xf]
      %v534 = vld [vmem:[%s302 + $0x17c] sm:$0xf]
      %v535 = vld [vmem:[%s302 + $0x180] sm:$0xf]
      %v536 = vld [vmem:[%s302 + $0x184] sm:$0xf]
      %v537 = vld [vmem:[%s302 + $0x188] sm:$0xf]
      %v538 = vld [vmem:[%s302 + $0x18c] sm:$0xf]
      %v539 = vld [vmem:[%s302 + $0x190] sm:$0xf]
      %v540 = vld [vmem:[%s302 + $0x194] sm:$0xf]
      %v541 = vld [vmem:[%s302 + $0x198] sm:$0xf]
      %v542 = vld [vmem:[%s302 + $0x19c] sm:$0xf]
      %v543 = vld [vmem:[%s302 + $0x1a0] sm:$0xf]
      %v544 = vld [vmem:[%s302 + $0x1a4] sm:$0xf]
      %v545 = vld [vmem:[%s302 + $0x1a8] sm:$0xf]
      %v546 = vld [vmem:[%s302 + $0x1ac] sm:$0xf]
      %v547 = vld [vmem:[%s302 + $0x1b0] sm:$0xf]
      %v548 = vld [vmem:[%s302 + $0x1b4] sm:$0xf]
      %v549 = vld [vmem:[%s302 + $0x1b8] sm:$0xf]
      %v550 = vld [vmem:[%s302 + $0x1bc] sm:$0xf]
      %v551 = vld [vmem:[%s302 + $0x1c0] sm:$0xf]
      %v552 = vld [vmem:[%s302 + $0x1c4] sm:$0xf]
      %v553 = vld [vmem:[%s302 + $0x1c8] sm:$0xf]
      %v554 = vld [vmem:[%s302 + $0x1cc] sm:$0xf]
      %v555 = vld [vmem:[%s302 + $0x1d0] sm:$0xf]
      %v556 = vld [vmem:[%s302 + $0x1d4] sm:$0xf]
      %v557 = vld [vmem:[%s302 + $0x1d8] sm:$0xf]
      %v558 = vld [vmem:[%s302 + $0x1dc] sm:$0xf]
      %v559 = vld [vmem:[%s302 + $0x1e0] sm:$0xf]
      %v560 = vld [vmem:[%s302 + $0x1e4] sm:$0xf]
      %v561 = vld [vmem:[%s302 + $0x1e8] sm:$0xf]
      %v562 = vld [vmem:[%s302 + $0x1ec] sm:$0xf]
      %v563 = vld [vmem:[%s302 + $0x1f0] sm:$0xf]
      %v564 = vld [vmem:[%s302 + $0x1f4] sm:$0xf]
      %v565 = vld [vmem:[%s302 + $0x1f8] sm:$0xf]
      %v566 = vld [vmem:[%s302 + $0x1fc] sm:$0xf]
      %v567 = vld [vmem:[%s2] sm:$0xf]
      %v568 = vld [vmem:[%s2 + $0x4] sm:$0xf]
      %v569 = vld [vmem:[%s2 + $0x8] sm:$0xf]
      %v570 = vld [vmem:[%s2 + $0xc] sm:$0xf]
      %v571 = vld [vmem:[%s3] sm:$0x3]
      %v700 = vunpack.c.l.b16 %v439
      %v701 = vunpack.c.l.b16 %v440
      %v702 = vunpack.c.l.b16 %v441
      %v703 = vunpack.c.l.b16 %v442
      %v704 = vunpack.c.l.b16 %v443
      %v705 = vunpack.c.l.b16 %v444
      %v706 = vunpack.c.l.b16 %v445
      %v707 = vunpack.c.l.b16 %v446
      %v708 = vunpack.c.l.b16 %v447
      %v709 = vunpack.c.l.b16 %v448
      %v710 = vunpack.c.l.b16 %v449
      %v711 = vunpack.c.l.b16 %v450
      %v712 = vunpack.c.l.b16 %v451
      %v713 = vunpack.c.l.b16 %v452
      %v714 = vunpack.c.l.b16 %v453
      %v715 = vunpack.c.l.b16 %v454
      %v716 = vunpack.c.l.b16 %v455
      %v717 = vunpack.c.l.b16 %v456
      %v718 = vunpack.c.l.b16 %v457
      %v719 = vunpack.c.l.b16 %v458
      %v720 = vunpack.c.l.b16 %v459
      %v721 = vunpack.c.l.b16 %v460
      %v722 = vunpack.c.l.b16 %v461
      %v723 = vunpack.c.l.b16 %v462
      %v724 = vunpack.c.l.b16 %v463
      %v725 = vunpack.c.l.b16 %v464
      %v726 = vunpack.c.l.b16 %v465
      %v727 = vunpack.c.l.b16 %v466
      %v728 = vunpack.c.l.b16 %v467
      %v729 = vunpack.c.l.b16 %v468
      %v730 = vunpack.c.l.b16 %v469
      %v731 = vunpack.c.l.b16 %v470
      %v732 = vunpack.c.l.b16 %v471
      %v733 = vunpack.c.l.b16 %v472
      %v734 = vunpack.c.l.b16 %v473
      %v735 = vunpack.c.l.b16 %v474
      %v736 = vunpack.c.l.b16 %v475
      %v737 = vunpack.c.l.b16 %v476
      %v738 = vunpack.c.l.b16 %v477
      %v739 = vunpack.c.l.b16 %v478
      %v740 = vunpack.c.l.b16 %v479
      %v741 = vunpack.c.l.b16 %v480
      %v742 = vunpack.c.l.b16 %v481
      %v743 = vunpack.c.l.b16 %v482
      %v744 = vunpack.c.l.b16 %v483
      %v745 = vunpack.c.l.b16 %v484
      %v746 = vunpack.c.l.b16 %v485
      %v747 = vunpack.c.l.b16 %v486
      %v748 = vunpack.c.l.b16 %v487
      %v749 = vunpack.c.l.b16 %v488
      %v750 = vunpack.c.l.b16 %v489
      %v751 = vunpack.c.l.b16 %v490
      %v752 = vunpack.c.l.b16 %v491
      %v753 = vunpack.c.l.b16 %v492
      %v754 = vunpack.c.l.b16 %v493
      %v755 = vunpack.c.l.b16 %v494
      %v756 = vunpack.c.l.b16 %v495
      %v757 = vunpack.c.l.b16 %v496
      %v758 = vunpack.c.l.b16 %v497
      %v759 = vunpack.c.l.b16 %v498
      %v760 = vunpack.c.l.b16 %v499
      %v761 = vunpack.c.l.b16 %v500
      %v762 = vunpack.c.l.b16 %v501
      %v763 = vunpack.c.l.b16 %v502
      %v764 = vunpack.c.l.b16 %v503
      %v765 = vunpack.c.l.b16 %v504
      %v766 = vunpack.c.l.b16 %v505
      %v767 = vunpack.c.l.b16 %v506
      %v768 = vunpack.c.l.b16 %v507
      %v769 = vunpack.c.l.b16 %v508
      %v770 = vunpack.c.l.b16 %v509
      %v771 = vunpack.c.l.b16 %v510
      %v772 = vunpack.c.l.b16 %v511
      %v773 = vunpack.c.l.b16 %v512
      %v774 = vunpack.c.l.b16 %v513
      %v775 = vunpack.c.l.b16 %v514
      %v776 = vunpack.c.l.b16 %v515
      %v777 = vunpack.c.l.b16 %v516
      %v778 = vunpack.c.l.b16 %v517
      %v779 = vunpack.c.l.b16 %v518
      %v780 = vunpack.c.l.b16 %v519
      %v781 = vunpack.c.l.b16 %v520
      %v782 = vunpack.c.l.b16 %v521
      %v783 = vunpack.c.l.b16 %v522
      %v784 = vunpack.c.l.b16 %v523
      %v785 = vunpack.c.l.b16 %v524
      %v786 = vunpack.c.l.b16 %v525
      %v787 = vunpack.c.l.b16 %v526
      %v788 = vunpack.c.l.b16 %v527
      %v789 = vunpack.c.l.b16 %v528
      %v790 = vunpack.c.l.b16 %v529
      %v791 = vunpack.c.l.b16 %v530
      %v792 = vunpack.c.l.b16 %v531
      %v793 = vunpack.c.l.b16 %v532
      %v794 = vunpack.c.l.b16 %v533
      %v795 = vunpack.c.l.b16 %v534
      %v796 = vunpack.c.l.b16 %v535
      %v797 = vunpack.c.l.b16 %v536
      %v798 = vunpack.c.l.b16 %v537
      %v799 = vunpack.c.l.b16 %v538
      %v800 = vunpack.c.l.b16 %v539
      %v801 = vunpack.c.l.b16 %v540
      %v802 = vunpack.c.l.b16 %v541
      %v803 = vunpack.c.l.b16 %v542
      %v804 = vunpack.c.l.b16 %v543
      %v805 = vunpack.c.l.b16 %v544
      %v806 = vunpack.c.l.b16 %v545
      %v807 = vunpack.c.l.b16 %v546
      %v808 = vunpack.c.l.b16 %v547
      %v809 = vunpack.c.l.b16 %v548
      %v810 = vunpack.c.l.b16 %v549
      %v811 = vunpack.c.l.b16 %v550
      %v812 = vunpack.c.l.b16 %v551
      %v813 = vunpack.c.l.b16 %v552
      %v814 = vunpack.c.l.b16 %v553
      %v815 = vunpack.c.l.b16 %v554
      %v816 = vunpack.c.l.b16 %v555
      %v817 = vunpack.c.l.b16 %v556
      %v818 = vunpack.c.l.b16 %v557
      %v819 = vunpack.c.l.b16 %v558
      %v820 = vunpack.c.l.b16 %v559
      %v821 = vunpack.c.l.b16 %v560
      %v822 = vunpack.c.l.b16 %v561
      %v823 = vunpack.c.l.b16 %v562
      %v824 = vunpack.c.l.b16 %v563
      %v825 = vunpack.c.l.b16 %v564
      %v826 = vunpack.c.l.b16 %v565
      %v827 = vunpack.c.l.b16 %v566
      %v828 = vpack.c.b16 %v701, %v700
      %v829 = vpack.c.b16 %v703, %v702
      %v830 = vpack.c.b16 %v705, %v704
      %v831 = vpack.c.b16 %v707, %v706
      %v832 = vpack.c.b16 %v709, %v708
      %v833 = vpack.c.b16 %v711, %v710
      %v834 = vpack.c.b16 %v713, %v712
      %v835 = vpack.c.b16 %v715, %v714
      %v836 = vpack.c.b16 %v717, %v716
      %v837 = vpack.c.b16 %v719, %v718
      %v838 = vpack.c.b16 %v721, %v720
      %v839 = vpack.c.b16 %v723, %v722
      %v840 = vpack.c.b16 %v725, %v724
      %v841 = vpack.c.b16 %v727, %v726
      %v842 = vpack.c.b16 %v729, %v728
      %v843 = vpack.c.b16 %v731, %v730
      %v844 = vpack.c.b16 %v733, %v732
      %v845 = vpack.c.b16 %v735, %v734
      %v846 = vpack.c.b16 %v737, %v736
      %v847 = vpack.c.b16 %v739, %v738
      %v848 = vpack.c.b16 %v741, %v740
      %v849 = vpack.c.b16 %v743, %v742
      %v850 = vpack.c.b16 %v745, %v744
      %v851 = vpack.c.b16 %v747, %v746
      %v852 = vpack.c.b16 %v749, %v748
      %v853 = vpack.c.b16 %v751, %v750
      %v854 = vpack.c.b16 %v753, %v752
      %v855 = vpack.c.b16 %v755, %v754
      %v856 = vpack.c.b16 %v757, %v756
      %v857 = vpack.c.b16 %v759, %v758
      %v858 = vpack.c.b16 %v761, %v760
      %v859 = vpack.c.b16 %v763, %v762
      %v860 = vpack.c.b16 %v765, %v764
      %v861 = vpack.c.b16 %v767, %v766
      %v862 = vpack.c.b16 %v769, %v768
      %v863 = vpack.c.b16 %v771, %v770
      %v864 = vpack.c.b16 %v773, %v772
      %v865 = vpack.c.b16 %v775, %v774
      %v866 = vpack.c.b16 %v777, %v776
      %v867 = vpack.c.b16 %v779, %v778
      %v868 = vpack.c.b16 %v781, %v780
      %v869 = vpack.c.b16 %v783, %v782
      %v870 = vpack.c.b16 %v785, %v784
      %v871 = vpack.c.b16 %v787, %v786
      %v872 = vpack.c.b16 %v789, %v788
      %v873 = vpack.c.b16 %v791, %v790
      %v874 = vpack.c.b16 %v793, %v792
      %v875 = vpack.c.b16 %v795, %v794
      %v876 = vpack.c.b16 %v797, %v796
      %v877 = vpack.c.b16 %v799, %v798
      %v878 = vpack.c.b16 %v801, %v800
      %v879 = vpack.c.b16 %v803, %v802
      %v880 = vpack.c.b16 %v805, %v804
      %v881 = vpack.c.b16 %v807, %v806
      %v882 = vpack.c.b16 %v809, %v808
      %v883 = vpack.c.b16 %v811, %v810
      %v884 = vpack.c.b16 %v813, %v812
      %v885 = vpack.c.b16 %v815, %v814
      %v886 = vpack.c.b16 %v817, %v816
      %v887 = vpack.c.b16 %v819, %v818
      %v888 = vpack.c.b16 %v821, %v820
      %v889 = vpack.c.b16 %v823, %v822
      %v890 = vpack.c.b16 %v825, %v824
      %v891 = vpack.c.b16 %v827, %v826
      %vm892 = vcmask 31744
      %v894 = vsel %vm892, %v828, 0
      %v897 = vsel %vm892, %v829, 0
      %v900 = vsel %vm892, %v830, 0
      %v903 = vsel %vm892, %v831, 0
      %v906 = vsel %vm892, %v832, 0
      %v909 = vsel %vm892, %v833, 0
      %v912 = vsel %vm892, %v834, 0
      %v915 = vsel %vm892, %v835, 0
      %v918 = vsel %vm892, %v836, 0
      %v921 = vsel %vm892, %v837, 0
      %v924 = vsel %vm892, %v838, 0
      %v927 = vsel %vm892, %v839, 0
      %v930 = vsel %vm892, %v840, 0
      %v933 = vsel %vm892, %v841, 0
      %v936 = vsel %vm892, %v842, 0
      %v939 = vsel %vm892, %v843, 0
      %v942 = vsel %vm892, %v844, 0
      %v945 = vsel %vm892, %v845, 0
      %v948 = vsel %vm892, %v846, 0
      %v951 = vsel %vm892, %v847, 0
      %v954 = vsel %vm892, %v848, 0
      %v957 = vsel %vm892, %v849, 0
      %v960 = vsel %vm892, %v850, 0
      %v963 = vsel %vm892, %v851, 0
      %v966 = vsel %vm892, %v852, 0
      %v969 = vsel %vm892, %v853, 0
      %v972 = vsel %vm892, %v854, 0
      %v975 = vsel %vm892, %v855, 0
      %v978 = vsel %vm892, %v856, 0
      %v981 = vsel %vm892, %v857, 0
      %v984 = vsel %vm892, %v858, 0
      %v987 = vsel %vm892, %v859, 0
      %v990 = vsel %vm892, %v860, 0
      %v993 = vsel %vm892, %v861, 0
      %v996 = vsel %vm892, %v862, 0
      %v999 = vsel %vm892, %v863, 0
      %v1002 = vsel %vm892, %v864, 0
      %v1005 = vsel %vm892, %v865, 0
      %v1008 = vsel %vm892, %v866, 0
      %v1011 = vsel %vm892, %v867, 0
      %v1014 = vsel %vm892, %v868, 0
      %v1017 = vsel %vm892, %v869, 0
      %v1020 = vsel %vm892, %v870, 0
      %v1023 = vsel %vm892, %v871, 0
      %v1026 = vsel %vm892, %v872, 0
      %v1029 = vsel %vm892, %v873, 0
      %v1032 = vsel %vm892, %v874, 0
      %v1035 = vsel %vm892, %v875, 0
      %v1038 = vsel %vm892, %v876, 0
      %v1041 = vsel %vm892, %v877, 0
      %v1044 = vsel %vm892, %v878, 0
      %v1047 = vsel %vm892, %v879, 0
      %v1050 = vsel %vm892, %v880, 0
      %v1053 = vsel %vm892, %v881, 0
      %v1056 = vsel %vm892, %v882, 0
      %v1059 = vsel %vm892, %v883, 0
      %v1062 = vsel %vm892, %v884, 0
      %v1065 = vsel %vm892, %v885, 0
      %v1068 = vsel %vm892, %v886, 0
      %v1071 = vsel %vm892, %v887, 0
      %v1074 = vsel %vm892, %v888, 0
      %v1077 = vsel %vm892, %v889, 0
      %v1080 = vsel %vm892, %v890, 0
      %v1083 = vsel %vm892, %v891, 0
      %vm1085 = vcmask 1041408
      %v1087 = vsel %vm1085, %v571, 0
      %1089 = vmatprep.subr.bf16.mxu0 0
      %1090 = vmatpush1.bf16.msra.mxu0 0
      %1091 = vmatprep.subr.bf16.mxu0 0
      %1092 = vmatpush1.bf16.msra.mxu0 0
      %1093 = vmatprep.subr.bf16.mxu0 0
      %1094 = vmatpush1.bf16.msra.mxu0 0
      %1095 = vmatprep.subr.bf16.mxu0 0
      %1096 = vmatpush1.bf16.msra.mxu0 0
      %1097 = vmatprep.subr.bf16.mxu0 0
      %1098 = vmatpush1.bf16.msra.mxu0 0
      %1099 = vmatprep.subr.bf16.mxu0 0
      %1100 = vmatpush1.bf16.msra.mxu0 0
      %1101 = vmatprep.subr.bf16.mxu0 0
      %1102 = vmatpush1.bf16.msra.mxu0 0
      %1103 = vmatprep.subr.bf16.mxu0 0
      %1104 = vmatpush1.bf16.msra.mxu0 %v1087
      %1105 = vmatprep.subr.bf16.mxu0 0
      %1106 = vmatpush2.bf16.msra.mxu0 0
      %1107 = vmatprep.subr.bf16.mxu0 0
      %1108 = vmatpush2.bf16.msra.mxu0 0
      %1109 = vmatprep.subr.bf16.mxu0 0
      %1110 = vmatpush2.bf16.msra.mxu0 0
      %1111 = vmatprep.subr.bf16.mxu0 0
      %1112 = vmatpush2.bf16.msra.mxu0 0
      %1113 = vmatprep.subr.bf16.mxu0 0
      %1114 = vmatpush2.bf16.msra.mxu0 0
      %1115 = vmatprep.subr.bf16.mxu0 0
      %1116 = vmatpush2.bf16.msra.mxu0 0
      %1117 = vmatprep.subr.bf16.mxu0 0
      %1118 = vmatpush2.bf16.msra.mxu0 0
      %1119 = vmatprep.subr.bf16.mxu0 0
      %1120 = vmatpush2.bf16.msra.mxu0 0
      %1121 = vmatprep.mubr.bf16.mxu0 0
      %1122 = vmatmul.mubr.bf16.gmra.mxu0 %v894
      %v1123 = vpop.f32.mrf.mxu0
      %v1124 = vadd.f32 0.0, %v1123
      %v1125 = vpop.f32.mrf.mxu0
      %v1126 = vpop.f32.mrf.mxu0
      %v1127 = vadd.f32 0.0, %v1126
      %v1128 = vpop.f32.mrf.mxu0
      %1129 = vmatprep.mubr.bf16.mxu0 0
      %1130 = vmatmul.mubr.bf16.gmra.mxu0 %v897
      %v1131 = vpop.f32.mrf.mxu0
      %v1132 = vadd.f32 0.0, %v1131
      %v1133 = vpop.f32.mrf.mxu0
      %v1134 = vpop.f32.mrf.mxu0
      %v1135 = vadd.f32 0.0, %v1134
      %v1136 = vpop.f32.mrf.mxu0
      %1137 = vmatprep.mubr.bf16.mxu0 0
      %1138 = vmatmul.mubr.bf16.gmra.mxu0 %v900
      %v1139 = vpop.f32.mrf.mxu0
      %v1140 = vadd.f32 0.0, %v1139
      %v1141 = vpop.f32.mrf.mxu0
      %v1142 = vpop.f32.mrf.mxu0
      %v1143 = vadd.f32 0.0, %v1142
      %v1144 = vpop.f32.mrf.mxu0
      %1145 = vmatprep.mubr.bf16.mxu0 0
      %1146 = vmatmul.mubr.bf16.gmra.mxu0 %v903
      %v1147 = vpop.f32.mrf.mxu0
      %v1148 = vadd.f32 0.0, %v1147
      %v1149 = vpop.f32.mrf.mxu0
      %v1150 = vpop.f32.mrf.mxu0
      %v1151 = vadd.f32 0.0, %v1150
      %v1152 = vpop.f32.mrf.mxu0
      %1153 = vmatprep.mubr.bf16.mxu0 0
      %1154 = vmatmul.mubr.bf16.gmra.mxu0 %v906
      %v1155 = vpop.f32.mrf.mxu0
      %v1156 = vadd.f32 0.0, %v1155
      %v1157 = vpop.f32.mrf.mxu0
      %v1158 = vpop.f32.mrf.mxu0
      %v1159 = vadd.f32 0.0, %v1158
      %v1160 = vpop.f32.mrf.mxu0
      %1161 = vmatprep.mubr.bf16.mxu0 0
      %1162 = vmatmul.mubr.bf16.gmra.mxu0 %v909
      %v1163 = vpop.f32.mrf.mxu0
      %v1164 = vadd.f32 0.0, %v1163
      %v1165 = vpop.f32.mrf.mxu0
      %v1166 = vpop.f32.mrf.mxu0
      %v1167 = vadd.f32 0.0, %v1166
      %v1168 = vpop.f32.mrf.mxu0
      %1169 = vmatprep.mubr.bf16.mxu0 0
      %1170 = vmatmul.mubr.bf16.gmra.mxu0 %v912
      %v1171 = vpop.f32.mrf.mxu0
      %v1172 = vadd.f32 0.0, %v1171
      %v1173 = vpop.f32.mrf.mxu0
      %v1174 = vpop.f32.mrf.mxu0
      %v1175 = vadd.f32 0.0, %v1174
      %v1176 = vpop.f32.mrf.mxu0
      %1177 = vmatprep.mubr.bf16.mxu0 0
      %1178 = vmatmul.mubr.bf16.gmra.mxu0 %v915
      %v1179 = vpop.f32.mrf.mxu0
      %v1180 = vadd.f32 0.0, %v1179
      %v1181 = vpop.f32.mrf.mxu0
      %v1182 = vpop.f32.mrf.mxu0
      %v1183 = vadd.f32 0.0, %v1182
      %v1184 = vpop.f32.mrf.mxu0
      %1185 = vmatprep.mubr.bf16.mxu0 0
      %1186 = vmatmul.mubr.bf16.gmra.mxu0 %v918
      %v1187 = vpop.f32.mrf.mxu0
      %v1188 = vadd.f32 0.0, %v1187
      %v1189 = vpop.f32.mrf.mxu0
      %v1190 = vpop.f32.mrf.mxu0
      %v1191 = vadd.f32 0.0, %v1190
      %v1192 = vpop.f32.mrf.mxu0
      %1193 = vmatprep.mubr.bf16.mxu0 0
      %1194 = vmatmul.mubr.bf16.gmra.mxu0 %v921
      %v1195 = vpop.f32.mrf.mxu0
      %v1196 = vadd.f32 0.0, %v1195
      %v1197 = vpop.f32.mrf.mxu0
      %v1198 = vpop.f32.mrf.mxu0
      %v1199 = vadd.f32 0.0, %v1198
      %v1200 = vpop.f32.mrf.mxu0
      %1201 = vmatprep.mubr.bf16.mxu0 0
      %1202 = vmatmul.mubr.bf16.gmra.mxu0 %v924
      %v1203 = vpop.f32.mrf.mxu0
      %v1204 = vadd.f32 0.0, %v1203
      %v1205 = vpop.f32.mrf.mxu0
      %v1206 = vpop.f32.mrf.mxu0
      %v1207 = vadd.f32 0.0, %v1206
      %v1208 = vpop.f32.mrf.mxu0
      %1209 = vmatprep.mubr.bf16.mxu0 0
      %1210 = vmatmul.mubr.bf16.gmra.mxu0 %v927
      %v1211 = vpop.f32.mrf.mxu0
      %v1212 = vadd.f32 0.0, %v1211
      %v1213 = vpop.f32.mrf.mxu0
      %v1214 = vpop.f32.mrf.mxu0
      %v1215 = vadd.f32 0.0, %v1214
      %v1216 = vpop.f32.mrf.mxu0
      %1217 = vmatprep.mubr.bf16.mxu0 0
      %1218 = vmatmul.mubr.bf16.gmra.mxu0 %v930
      %v1219 = vpop.f32.mrf.mxu0
      %v1220 = vadd.f32 0.0, %v1219
      %v1221 = vpop.f32.mrf.mxu0
      %v1222 = vpop.f32.mrf.mxu0
      %v1223 = vadd.f32 0.0, %v1222
      %v1224 = vpop.f32.mrf.mxu0
      %1225 = vmatprep.mubr.bf16.mxu0 0
      %1226 = vmatmul.mubr.bf16.gmra.mxu0 %v933
      %v1227 = vpop.f32.mrf.mxu0
      %v1228 = vadd.f32 0.0, %v1227
      %v1229 = vpop.f32.mrf.mxu0
      %v1230 = vpop.f32.mrf.mxu0
      %v1231 = vadd.f32 0.0, %v1230
      %v1232 = vpop.f32.mrf.mxu0
      %1233 = vmatprep.mubr.bf16.mxu0 0
      %1234 = vmatmul.mubr.bf16.gmra.mxu0 %v936
      %v1235 = vpop.f32.mrf.mxu0
      %v1236 = vadd.f32 0.0, %v1235
      %v1237 = vpop.f32.mrf.mxu0
      %v1238 = vpop.f32.mrf.mxu0
      %v1239 = vadd.f32 0.0, %v1238
      %v1240 = vpop.f32.mrf.mxu0
      %1241 = vmatprep.mubr.bf16.mxu0 0
      %1242 = vmatmul.mubr.bf16.gmra.mxu0 %v939
      %v1243 = vpop.f32.mrf.mxu0
      %v1244 = vadd.f32 0.0, %v1243
      %v1245 = vpop.f32.mrf.mxu0
      %v1246 = vpop.f32.mrf.mxu0
      %v1247 = vadd.f32 0.0, %v1246
      %v1248 = vpop.f32.mrf.mxu0
      %1249 = vmatprep.mubr.bf16.mxu0 0
      %1250 = vmatmul.mubr.bf16.gmra.mxu0 %v942
      %v1251 = vpop.f32.mrf.mxu0
      %v1252 = vadd.f32 0.0, %v1251
      %v1253 = vpop.f32.mrf.mxu0
      %v1254 = vpop.f32.mrf.mxu0
      %v1255 = vadd.f32 0.0, %v1254
      %v1256 = vpop.f32.mrf.mxu0
      %1257 = vmatprep.mubr.bf16.mxu0 0
      %1258 = vmatmul.mubr.bf16.gmra.mxu0 %v945
      %v1259 = vpop.f32.mrf.mxu0
      %v1260 = vadd.f32 0.0, %v1259
      %v1261 = vpop.f32.mrf.mxu0
      %v1262 = vpop.f32.mrf.mxu0
      %v1263 = vadd.f32 0.0, %v1262
      %v1264 = vpop.f32.mrf.mxu0
      %1265 = vmatprep.mubr.bf16.mxu0 0
      %1266 = vmatmul.mubr.bf16.gmra.mxu0 %v948
      %v1267 = vpop.f32.mrf.mxu0
      %v1268 = vadd.f32 0.0, %v1267
      %v1269 = vpop.f32.mrf.mxu0
      %v1270 = vpop.f32.mrf.mxu0
      %v1271 = vadd.f32 0.0, %v1270
      %v1272 = vpop.f32.mrf.mxu0
      %1273 = vmatprep.mubr.bf16.mxu0 0
      %1274 = vmatmul.mubr.bf16.gmra.mxu0 %v951
      %v1275 = vpop.f32.mrf.mxu0
      %v1276 = vadd.f32 0.0, %v1275
      %v1277 = vpop.f32.mrf.mxu0
      %v1278 = vpop.f32.mrf.mxu0
      %v1279 = vadd.f32 0.0, %v1278
      %v1280 = vpop.f32.mrf.mxu0
      %1281 = vmatprep.mubr.bf16.mxu0 0
      %1282 = vmatmul.mubr.bf16.gmra.mxu0 %v954
      %v1283 = vpop.f32.mrf.mxu0
      %v1284 = vadd.f32 0.0, %v1283
      %v1285 = vpop.f32.mrf.mxu0
      %v1286 = vpop.f32.mrf.mxu0
      %v1287 = vadd.f32 0.0, %v1286
      %v1288 = vpop.f32.mrf.mxu0
      %1289 = vmatprep.mubr.bf16.mxu0 0
      %1290 = vmatmul.mubr.bf16.gmra.mxu0 %v957
      %v1291 = vpop.f32.mrf.mxu0
      %v1292 = vadd.f32 0.0, %v1291
      %v1293 = vpop.f32.mrf.mxu0
      %v1294 = vpop.f32.mrf.mxu0
      %v1295 = vadd.f32 0.0, %v1294
      %v1296 = vpop.f32.mrf.mxu0
      %1297 = vmatprep.mubr.bf16.mxu0 0
      %1298 = vmatmul.mubr.bf16.gmra.mxu0 %v960
      %v1299 = vpop.f32.mrf.mxu0
      %v1300 = vadd.f32 0.0, %v1299
      %v1301 = vpop.f32.mrf.mxu0
      %v1302 = vpop.f32.mrf.mxu0
      %v1303 = vadd.f32 0.0, %v1302
      %v1304 = vpop.f32.mrf.mxu0
      %1305 = vmatprep.mubr.bf16.mxu0 0
      %1306 = vmatmul.mubr.bf16.gmra.mxu0 %v963
      %v1307 = vpop.f32.mrf.mxu0
      %v1308 = vadd.f32 0.0, %v1307
      %v1309 = vpop.f32.mrf.mxu0
      %v1310 = vpop.f32.mrf.mxu0
      %v1311 = vadd.f32 0.0, %v1310
      %v1312 = vpop.f32.mrf.mxu0
      %1313 = vmatprep.mubr.bf16.mxu0 0
      %1314 = vmatmul.mubr.bf16.gmra.mxu0 %v966
      %v1315 = vpop.f32.mrf.mxu0
      %v1316 = vadd.f32 0.0, %v1315
      %v1317 = vpop.f32.mrf.mxu0
      %v1318 = vpop.f32.mrf.mxu0
      %v1319 = vadd.f32 0.0, %v1318
      %v1320 = vpop.f32.mrf.mxu0
      %1321 = vmatprep.mubr.bf16.mxu0 0
      %1322 = vmatmul.mubr.bf16.gmra.mxu0 %v969
      %v1323 = vpop.f32.mrf.mxu0
      %v1324 = vadd.f32 0.0, %v1323
      %v1325 = vpop.f32.mrf.mxu0
      %v1326 = vpop.f32.mrf.mxu0
      %v1327 = vadd.f32 0.0, %v1326
      %v1328 = vpop.f32.mrf.mxu0
      %1329 = vmatprep.mubr.bf16.mxu0 0
      %1330 = vmatmul.mubr.bf16.gmra.mxu0 %v972
      %v1331 = vpop.f32.mrf.mxu0
      %v1332 = vadd.f32 0.0, %v1331
      %v1333 = vpop.f32.mrf.mxu0
      %v1334 = vpop.f32.mrf.mxu0
      %v1335 = vadd.f32 0.0, %v1334
      %v1336 = vpop.f32.mrf.mxu0
      %1337 = vmatprep.mubr.bf16.mxu0 0
      %1338 = vmatmul.mubr.bf16.gmra.mxu0 %v975
      %v1339 = vpop.f32.mrf.mxu0
      %v1340 = vadd.f32 0.0, %v1339
      %v1341 = vpop.f32.mrf.mxu0
      %v1342 = vpop.f32.mrf.mxu0
      %v1343 = vadd.f32 0.0, %v1342
      %v1344 = vpop.f32.mrf.mxu0
      %1345 = vmatprep.mubr.bf16.mxu0 0
      %1346 = vmatmul.mubr.bf16.gmra.mxu0 %v978
      %v1347 = vpop.f32.mrf.mxu0
      %v1348 = vadd.f32 0.0, %v1347
      %v1349 = vpop.f32.mrf.mxu0
      %v1350 = vpop.f32.mrf.mxu0
      %v1351 = vadd.f32 0.0, %v1350
      %v1352 = vpop.f32.mrf.mxu0
      %1353 = vmatprep.mubr.bf16.mxu0 0
      %1354 = vmatmul.mubr.bf16.gmra.mxu0 %v981
      %v1355 = vpop.f32.mrf.mxu0
      %v1356 = vadd.f32 0.0, %v1355
      %v1357 = vpop.f32.mrf.mxu0
      %v1358 = vpop.f32.mrf.mxu0
      %v1359 = vadd.f32 0.0, %v1358
      %v1360 = vpop.f32.mrf.mxu0
      %1361 = vmatprep.mubr.bf16.mxu0 0
      %1362 = vmatmul.mubr.bf16.gmra.mxu0 %v984
      %v1363 = vpop.f32.mrf.mxu0
      %v1364 = vadd.f32 0.0, %v1363
      %v1365 = vpop.f32.mrf.mxu0
      %v1366 = vpop.f32.mrf.mxu0
      %v1367 = vadd.f32 0.0, %v1366
      %v1368 = vpop.f32.mrf.mxu0
      %1369 = vmatprep.mubr.bf16.mxu0 0
      %1370 = vmatmul.mubr.bf16.gmra.mxu0 %v987
      %v1371 = vpop.f32.mrf.mxu0
      %v1372 = vadd.f32 0.0, %v1371
      %v1373 = vpop.f32.mrf.mxu0
      %v1374 = vpop.f32.mrf.mxu0
      %v1375 = vadd.f32 0.0, %v1374
      %v1376 = vpop.f32.mrf.mxu0
      %1377 = vmatprep.mubr.bf16.mxu0 0
      %1378 = vmatmul.mubr.bf16.gmra.mxu0 %v990
      %v1379 = vpop.f32.mrf.mxu0
      %v1380 = vadd.f32 0.0, %v1379
      %v1381 = vpop.f32.mrf.mxu0
      %v1382 = vpop.f32.mrf.mxu0
      %v1383 = vadd.f32 0.0, %v1382
      %v1384 = vpop.f32.mrf.mxu0
      %1385 = vmatprep.mubr.bf16.mxu0 0
      %1386 = vmatmul.mubr.bf16.gmra.mxu0 %v993
      %v1387 = vpop.f32.mrf.mxu0
      %v1388 = vadd.f32 0.0, %v1387
      %v1389 = vpop.f32.mrf.mxu0
      %v1390 = vpop.f32.mrf.mxu0
      %v1391 = vadd.f32 0.0, %v1390
      %v1392 = vpop.f32.mrf.mxu0
      %1393 = vmatprep.mubr.bf16.mxu0 0
      %1394 = vmatmul.mubr.bf16.gmra.mxu0 %v996
      %v1395 = vpop.f32.mrf.mxu0
      %v1396 = vadd.f32 0.0, %v1395
      %v1397 = vpop.f32.mrf.mxu0
      %v1398 = vpop.f32.mrf.mxu0
      %v1399 = vadd.f32 0.0, %v1398
      %v1400 = vpop.f32.mrf.mxu0
      %1401 = vmatprep.mubr.bf16.mxu0 0
      %1402 = vmatmul.mubr.bf16.gmra.mxu0 %v999
      %v1403 = vpop.f32.mrf.mxu0
      %v1404 = vadd.f32 0.0, %v1403
      %v1405 = vpop.f32.mrf.mxu0
      %v1406 = vpop.f32.mrf.mxu0
      %v1407 = vadd.f32 0.0, %v1406
      %v1408 = vpop.f32.mrf.mxu0
      %1409 = vmatprep.mubr.bf16.mxu0 0
      %1410 = vmatmul.mubr.bf16.gmra.mxu0 %v1002
      %v1411 = vpop.f32.mrf.mxu0
      %v1412 = vadd.f32 0.0, %v1411
      %v1413 = vpop.f32.mrf.mxu0
      %v1414 = vpop.f32.mrf.mxu0
      %v1415 = vadd.f32 0.0, %v1414
      %v1416 = vpop.f32.mrf.mxu0
      %1417 = vmatprep.mubr.bf16.mxu0 0
      %1418 = vmatmul.mubr.bf16.gmra.mxu0 %v1005
      %v1419 = vpop.f32.mrf.mxu0
      %v1420 = vadd.f32 0.0, %v1419
      %v1421 = vpop.f32.mrf.mxu0
      %v1422 = vpop.f32.mrf.mxu0
      %v1423 = vadd.f32 0.0, %v1422
      %v1424 = vpop.f32.mrf.mxu0
      %1425 = vmatprep.mubr.bf16.mxu0 0
      %1426 = vmatmul.mubr.bf16.gmra.mxu0 %v1008
      %v1427 = vpop.f32.mrf.mxu0
      %v1428 = vadd.f32 0.0, %v1427
      %v1429 = vpop.f32.mrf.mxu0
      %v1430 = vpop.f32.mrf.mxu0
      %v1431 = vadd.f32 0.0, %v1430
      %v1432 = vpop.f32.mrf.mxu0
      %1433 = vmatprep.mubr.bf16.mxu0 0
      %1434 = vmatmul.mubr.bf16.gmra.mxu0 %v1011
      %v1435 = vpop.f32.mrf.mxu0
      %v1436 = vadd.f32 0.0, %v1435
      %v1437 = vpop.f32.mrf.mxu0
      %v1438 = vpop.f32.mrf.mxu0
      %v1439 = vadd.f32 0.0, %v1438
      %v1440 = vpop.f32.mrf.mxu0
      %1441 = vmatprep.mubr.bf16.mxu0 0
      %1442 = vmatmul.mubr.bf16.gmra.mxu0 %v1014
      %v1443 = vpop.f32.mrf.mxu0
      %v1444 = vadd.f32 0.0, %v1443
      %v1445 = vpop.f32.mrf.mxu0
      %v1446 = vpop.f32.mrf.mxu0
      %v1447 = vadd.f32 0.0, %v1446
      %v1448 = vpop.f32.mrf.mxu0
      %1449 = vmatprep.mubr.bf16.mxu0 0
      %1450 = vmatmul.mubr.bf16.gmra.mxu0 %v1017
      %v1451 = vpop.f32.mrf.mxu0
      %v1452 = vadd.f32 0.0, %v1451
      %v1453 = vpop.f32.mrf.mxu0
      %v1454 = vpop.f32.mrf.mxu0
      %v1455 = vadd.f32 0.0, %v1454
      %v1456 = vpop.f32.mrf.mxu0
      %1457 = vmatprep.mubr.bf16.mxu0 0
      %1458 = vmatmul.mubr.bf16.gmra.mxu0 %v1020
      %v1459 = vpop.f32.mrf.mxu0
      %v1460 = vadd.f32 0.0, %v1459
      %v1461 = vpop.f32.mrf.mxu0
      %v1462 = vpop.f32.mrf.mxu0
      %v1463 = vadd.f32 0.0, %v1462
      %v1464 = vpop.f32.mrf.mxu0
      %1465 = vmatprep.mubr.bf16.mxu0 0
      %1466 = vmatmul.mubr.bf16.gmra.mxu0 %v1023
      %v1467 = vpop.f32.mrf.mxu0
      %v1468 = vadd.f32 0.0, %v1467
      %v1469 = vpop.f32.mrf.mxu0
      %v1470 = vpop.f32.mrf.mxu0
      %v1471 = vadd.f32 0.0, %v1470
      %v1472 = vpop.f32.mrf.mxu0
      %1473 = vmatprep.mubr.bf16.mxu0 0
      %1474 = vmatmul.mubr.bf16.gmra.mxu0 %v1026
      %v1475 = vpop.f32.mrf.mxu0
      %v1476 = vadd.f32 0.0, %v1475
      %v1477 = vpop.f32.mrf.mxu0
      %v1478 = vpop.f32.mrf.mxu0
      %v1479 = vadd.f32 0.0, %v1478
      %v1480 = vpop.f32.mrf.mxu0
      %1481 = vmatprep.mubr.bf16.mxu0 0
      %1482 = vmatmul.mubr.bf16.gmra.mxu0 %v1029
      %v1483 = vpop.f32.mrf.mxu0
      %v1484 = vadd.f32 0.0, %v1483
      %v1485 = vpop.f32.mrf.mxu0
      %v1486 = vpop.f32.mrf.mxu0
      %v1487 = vadd.f32 0.0, %v1486
      %v1488 = vpop.f32.mrf.mxu0
      %1489 = vmatprep.mubr.bf16.mxu0 0
      %1490 = vmatmul.mubr.bf16.gmra.mxu0 %v1032
      %v1491 = vpop.f32.mrf.mxu0
      %v1492 = vadd.f32 0.0, %v1491
      %v1493 = vpop.f32.mrf.mxu0
      %v1494 = vpop.f32.mrf.mxu0
      %v1495 = vadd.f32 0.0, %v1494
      %v1496 = vpop.f32.mrf.mxu0
      %1497 = vmatprep.mubr.bf16.mxu0 0
      %1498 = vmatmul.mubr.bf16.gmra.mxu0 %v1035
      %v1499 = vpop.f32.mrf.mxu0
      %v1500 = vadd.f32 0.0, %v1499
      %v1501 = vpop.f32.mrf.mxu0
      %v1502 = vpop.f32.mrf.mxu0
      %v1503 = vadd.f32 0.0, %v1502
      %v1504 = vpop.f32.mrf.mxu0
      %1505 = vmatprep.mubr.bf16.mxu0 0
      %1506 = vmatmul.mubr.bf16.gmra.mxu0 %v1038
      %v1507 = vpop.f32.mrf.mxu0
      %v1508 = vadd.f32 0.0, %v1507
      %v1509 = vpop.f32.mrf.mxu0
      %v1510 = vpop.f32.mrf.mxu0
      %v1511 = vadd.f32 0.0, %v1510
      %v1512 = vpop.f32.mrf.mxu0
      %1513 = vmatprep.mubr.bf16.mxu0 0
      %1514 = vmatmul.mubr.bf16.gmra.mxu0 %v1041
      %v1515 = vpop.f32.mrf.mxu0
      %v1516 = vadd.f32 0.0, %v1515
      %v1517 = vpop.f32.mrf.mxu0
      %v1518 = vpop.f32.mrf.mxu0
      %v1519 = vadd.f32 0.0, %v1518
      %v1520 = vpop.f32.mrf.mxu0
      %1521 = vmatprep.mubr.bf16.mxu0 0
      %1522 = vmatmul.mubr.bf16.gmra.mxu0 %v1044
      %v1523 = vpop.f32.mrf.mxu0
      %v1524 = vadd.f32 0.0, %v1523
      %v1525 = vpop.f32.mrf.mxu0
      %v1526 = vpop.f32.mrf.mxu0
      %v1527 = vadd.f32 0.0, %v1526
      %v1528 = vpop.f32.mrf.mxu0
      %1529 = vmatprep.mubr.bf16.mxu0 0
      %1530 = vmatmul.mubr.bf16.gmra.mxu0 %v1047
      %v1531 = vpop.f32.mrf.mxu0
      %v1532 = vadd.f32 0.0, %v1531
      %v1533 = vpop.f32.mrf.mxu0
      %v1534 = vpop.f32.mrf.mxu0
      %v1535 = vadd.f32 0.0, %v1534
      %v1536 = vpop.f32.mrf.mxu0
      %1537 = vmatprep.mubr.bf16.mxu0 0
      %1538 = vmatmul.mubr.bf16.gmra.mxu0 %v1050
      %v1539 = vpop.f32.mrf.mxu0
      %v1540 = vadd.f32 0.0, %v1539
      %v1541 = vpop.f32.mrf.mxu0
      %v1542 = vpop.f32.mrf.mxu0
      %v1543 = vadd.f32 0.0, %v1542
      %v1544 = vpop.f32.mrf.mxu0
      %1545 = vmatprep.mubr.bf16.mxu0 0
      %1546 = vmatmul.mubr.bf16.gmra.mxu0 %v1053
      %v1547 = vpop.f32.mrf.mxu0
      %v1548 = vadd.f32 0.0, %v1547
      %v1549 = vpop.f32.mrf.mxu0
      %v1550 = vpop.f32.mrf.mxu0
      %v1551 = vadd.f32 0.0, %v1550
      %v1552 = vpop.f32.mrf.mxu0
      %1553 = vmatprep.mubr.bf16.mxu0 0
      %1554 = vmatmul.mubr.bf16.gmra.mxu0 %v1056
      %v1555 = vpop.f32.mrf.mxu0
      %v1556 = vadd.f32 0.0, %v1555
      %v1557 = vpop.f32.mrf.mxu0
      %v1558 = vpop.f32.mrf.mxu0
      %v1559 = vadd.f32 0.0, %v1558
      %v1560 = vpop.f32.mrf.mxu0
      %1561 = vmatprep.mubr.bf16.mxu0 0
      %1562 = vmatmul.mubr.bf16.gmra.mxu0 %v1059
      %v1563 = vpop.f32.mrf.mxu0
      %v1564 = vadd.f32 0.0, %v1563
      %v1565 = vpop.f32.mrf.mxu0
      %v1566 = vpop.f32.mrf.mxu0
      %v1567 = vadd.f32 0.0, %v1566
      %v1568 = vpop.f32.mrf.mxu0
      %1569 = vmatprep.mubr.bf16.mxu0 0
      %1570 = vmatmul.mubr.bf16.gmra.mxu0 %v1062
      %v1571 = vpop.f32.mrf.mxu0
      %v1572 = vadd.f32 0.0, %v1571
      %v1573 = vpop.f32.mrf.mxu0
      %v1574 = vpop.f32.mrf.mxu0
      %v1575 = vadd.f32 0.0, %v1574
      %v1576 = vpop.f32.mrf.mxu0
      %1577 = vmatprep.mubr.bf16.mxu0 0
      %1578 = vmatmul.mubr.bf16.gmra.mxu0 %v1065
      %v1579 = vpop.f32.mrf.mxu0
      %v1580 = vadd.f32 0.0, %v1579
      %v1581 = vpop.f32.mrf.mxu0
      %v1582 = vpop.f32.mrf.mxu0
      %v1583 = vadd.f32 0.0, %v1582
      %v1584 = vpop.f32.mrf.mxu0
      %1585 = vmatprep.mubr.bf16.mxu0 0
      %1586 = vmatmul.mubr.bf16.gmra.mxu0 %v1068
      %v1587 = vpop.f32.mrf.mxu0
      %v1588 = vadd.f32 0.0, %v1587
      %v1589 = vpop.f32.mrf.mxu0
      %v1590 = vpop.f32.mrf.mxu0
      %v1591 = vadd.f32 0.0, %v1590
      %v1592 = vpop.f32.mrf.mxu0
      %1593 = vmatprep.mubr.bf16.mxu0 0
      %1594 = vmatmul.mubr.bf16.gmra.mxu0 %v1071
      %v1595 = vpop.f32.mrf.mxu0
      %v1596 = vadd.f32 0.0, %v1595
      %v1597 = vpop.f32.mrf.mxu0
      %v1598 = vpop.f32.mrf.mxu0
      %v1599 = vadd.f32 0.0, %v1598
      %v1600 = vpop.f32.mrf.mxu0
      %1601 = vmatprep.mubr.bf16.mxu0 0
      %1602 = vmatmul.mubr.bf16.gmra.mxu0 %v1074
      %v1603 = vpop.f32.mrf.mxu0
      %v1604 = vadd.f32 0.0, %v1603
      %v1605 = vpop.f32.mrf.mxu0
      %v1606 = vpop.f32.mrf.mxu0
      %v1607 = vadd.f32 0.0, %v1606
      %v1608 = vpop.f32.mrf.mxu0
      %1609 = vmatprep.mubr.bf16.mxu0 0
      %1610 = vmatmul.mubr.bf16.gmra.mxu0 %v1077
      %v1611 = vpop.f32.mrf.mxu0
      %v1612 = vadd.f32 0.0, %v1611
      %v1613 = vpop.f32.mrf.mxu0
      %v1614 = vpop.f32.mrf.mxu0
      %v1615 = vadd.f32 0.0, %v1614
      %v1616 = vpop.f32.mrf.mxu0
      %1617 = vmatprep.mubr.bf16.mxu0 0
      %1618 = vmatmul.mubr.bf16.gmra.mxu0 %v1080
      %v1619 = vpop.f32.mrf.mxu0
      %v1620 = vadd.f32 0.0, %v1619
      %v1621 = vpop.f32.mrf.mxu0
      %v1622 = vpop.f32.mrf.mxu0
      %v1623 = vadd.f32 0.0, %v1622
      %v1624 = vpop.f32.mrf.mxu0
      %1625 = vmatprep.mubr.bf16.mxu0 0
      %1626 = vmatmul.mubr.bf16.gmra.mxu0 %v1083
      %v1627 = vpop.f32.mrf.mxu0
      %v1628 = vadd.f32 0.0, %v1627
      %v1629 = vpop.f32.mrf.mxu0
      %v1630 = vpop.f32.mrf.mxu0
      %v1631 = vadd.f32 0.0, %v1630
      %v1632 = vpop.f32.mrf.mxu0
      %1633 = vdwg.mxu0
      %v1762 = vunpack.c.l.b16 %v311
      %v1763 = vunpack.c.l.b16 %v312
      %v1764 = vunpack.c.l.b16 %v313
      %v1765 = vunpack.c.l.b16 %v314
      %v1766 = vunpack.c.l.b16 %v315
      %v1767 = vunpack.c.l.b16 %v316
      %v1768 = vunpack.c.l.b16 %v317
      %v1769 = vunpack.c.l.b16 %v318
      %v1770 = vunpack.c.l.b16 %v319
      %v1771 = vunpack.c.l.b16 %v320
      %v1772 = vunpack.c.l.b16 %v321
      %v1773 = vunpack.c.l.b16 %v322
      %v1774 = vunpack.c.l.b16 %v323
      %v1775 = vunpack.c.l.b16 %v324
      %v1776 = vunpack.c.l.b16 %v325
      %v1777 = vunpack.c.l.b16 %v326
      %v1778 = vunpack.c.l.b16 %v327
      %v1779 = vunpack.c.l.b16 %v328
      %v1780 = vunpack.c.l.b16 %v329
      %v1781 = vunpack.c.l.b16 %v330
      %v1782 = vunpack.c.l.b16 %v331
      %v1783 = vunpack.c.l.b16 %v332
      %v1784 = vunpack.c.l.b16 %v333
      %v1785 = vunpack.c.l.b16 %v334
      %v1786 = vunpack.c.l.b16 %v335
      %v1787 = vunpack.c.l.b16 %v336
      %v1788 = vunpack.c.l.b16 %v337
      %v1789 = vunpack.c.l.b16 %v338
      %v1790 = vunpack.c.l.b16 %v339
      %v1791 = vunpack.c.l.b16 %v340
      %v1792 = vunpack.c.l.b16 %v341
      %v1793 = vunpack.c.l.b16 %v342
      %v1794 = vunpack.c.l.b16 %v343
      %v1795 = vunpack.c.l.b16 %v344
      %v1796 = vunpack.c.l.b16 %v345
      %v1797 = vunpack.c.l.b16 %v346
      %v1798 = vunpack.c.l.b16 %v347
      %v1799 = vunpack.c.l.b16 %v348
      %v1800 = vunpack.c.l.b16 %v349
      %v1801 = vunpack.c.l.b16 %v350
      %v1802 = vunpack.c.l.b16 %v351
      %v1803 = vunpack.c.l.b16 %v352
      %v1804 = vunpack.c.l.b16 %v353
      %v1805 = vunpack.c.l.b16 %v354
      %v1806 = vunpack.c.l.b16 %v355
      %v1807 = vunpack.c.l.b16 %v356
      %v1808 = vunpack.c.l.b16 %v357
      %v1809 = vunpack.c.l.b16 %v358
      %v1810 = vunpack.c.l.b16 %v359
      %v1811 = vunpack.c.l.b16 %v360
      %v1812 = vunpack.c.l.b16 %v361
      %v1813 = vunpack.c.l.b16 %v362
      %v1814 = vunpack.c.l.b16 %v363
      %v1815 = vunpack.c.l.b16 %v364
      %v1816 = vunpack.c.l.b16 %v365
      %v1817 = vunpack.c.l.b16 %v366
      %v1818 = vunpack.c.l.b16 %v367
      %v1819 = vunpack.c.l.b16 %v368
      %v1820 = vunpack.c.l.b16 %v369
      %v1821 = vunpack.c.l.b16 %v370
      %v1822 = vunpack.c.l.b16 %v371
      %v1823 = vunpack.c.l.b16 %v372
      %v1824 = vunpack.c.l.b16 %v373
      %v1825 = vunpack.c.l.b16 %v374
      %v1826 = vunpack.c.l.b16 %v375
      %v1827 = vunpack.c.l.b16 %v376
      %v1828 = vunpack.c.l.b16 %v377
      %v1829 = vunpack.c.l.b16 %v378
      %v1830 = vunpack.c.l.b16 %v379
      %v1831 = vunpack.c.l.b16 %v380
      %v1832 = vunpack.c.l.b16 %v381
      %v1833 = vunpack.c.l.b16 %v382
      %v1834 = vunpack.c.l.b16 %v383
      %v1835 = vunpack.c.l.b16 %v384
      %v1836 = vunpack.c.l.b16 %v385
      %v1837 = vunpack.c.l.b16 %v386
      %v1838 = vunpack.c.l.b16 %v387
      %v1839 = vunpack.c.l.b16 %v388
      %v1840 = vunpack.c.l.b16 %v389
      %v1841 = vunpack.c.l.b16 %v390
      %v1842 = vunpack.c.l.b16 %v391
      %v1843 = vunpack.c.l.b16 %v392
      %v1844 = vunpack.c.l.b16 %v393
      %v1845 = vunpack.c.l.b16 %v394
      %v1846 = vunpack.c.l.b16 %v395
      %v1847 = vunpack.c.l.b16 %v396
      %v1848 = vunpack.c.l.b16 %v397
      %v1849 = vunpack.c.l.b16 %v398
      %v1850 = vunpack.c.l.b16 %v399
      %v1851 = vunpack.c.l.b16 %v400
      %v1852 = vunpack.c.l.b16 %v401
      %v1853 = vunpack.c.l.b16 %v402
      %v1854 = vunpack.c.l.b16 %v403
      %v1855 = vunpack.c.l.b16 %v404
      %v1856 = vunpack.c.l.b16 %v405
      %v1857 = vunpack.c.l.b16 %v406
      %v1858 = vunpack.c.l.b16 %v407
      %v1859 = vunpack.c.l.b16 %v408
      %v1860 = vunpack.c.l.b16 %v409
      %v1861 = vunpack.c.l.b16 %v410
      %v1862 = vunpack.c.l.b16 %v411
      %v1863 = vunpack.c.l.b16 %v412
      %v1864 = vunpack.c.l.b16 %v413
      %v1865 = vunpack.c.l.b16 %v414
      %v1866 = vunpack.c.l.b16 %v415
      %v1867 = vunpack.c.l.b16 %v416
      %v1868 = vunpack.c.l.b16 %v417
      %v1869 = vunpack.c.l.b16 %v418
      %v1870 = vunpack.c.l.b16 %v419
      %v1871 = vunpack.c.l.b16 %v420
      %v1872 = vunpack.c.l.b16 %v421
      %v1873 = vunpack.c.l.b16 %v422
      %v1874 = vunpack.c.l.b16 %v423
      %v1875 = vunpack.c.l.b16 %v424
      %v1876 = vunpack.c.l.b16 %v425
      %v1877 = vunpack.c.l.b16 %v426
      %v1878 = vunpack.c.l.b16 %v427
      %v1879 = vunpack.c.l.b16 %v428
      %v1880 = vunpack.c.l.b16 %v429
      %v1881 = vunpack.c.l.b16 %v430
      %v1882 = vunpack.c.l.b16 %v431
      %v1883 = vunpack.c.l.b16 %v432
      %v1884 = vunpack.c.l.b16 %v433
      %v1885 = vunpack.c.l.b16 %v434
      %v1886 = vunpack.c.l.b16 %v435
      %v1887 = vunpack.c.l.b16 %v436
      %v1888 = vunpack.c.l.b16 %v437
      %v1889 = vunpack.c.l.b16 %v438
      %v1890 = vpack.c.b16 %v1763, %v1762
      %v1891 = vpack.c.b16 %v1765, %v1764
      %v1892 = vpack.c.b16 %v1767, %v1766
      %v1893 = vpack.c.b16 %v1769, %v1768
      %v1894 = vpack.c.b16 %v1771, %v1770
      %v1895 = vpack.c.b16 %v1773, %v1772
      %v1896 = vpack.c.b16 %v1775, %v1774
      %v1897 = vpack.c.b16 %v1777, %v1776
      %v1898 = vpack.c.b16 %v1779, %v1778
      %v1899 = vpack.c.b16 %v1781, %v1780
      %v1900 = vpack.c.b16 %v1783, %v1782
      %v1901 = vpack.c.b16 %v1785, %v1784
      %v1902 = vpack.c.b16 %v1787, %v1786
      %v1903 = vpack.c.b16 %v1789, %v1788
      %v1904 = vpack.c.b16 %v1791, %v1790
      %v1905 = vpack.c.b16 %v1793, %v1792
      %v1906 = vpack.c.b16 %v1795, %v1794
      %v1907 = vpack.c.b16 %v1797, %v1796
      %v1908 = vpack.c.b16 %v1799, %v1798
      %v1909 = vpack.c.b16 %v1801, %v1800
      %v1910 = vpack.c.b16 %v1803, %v1802
      %v1911 = vpack.c.b16 %v1805, %v1804
      %v1912 = vpack.c.b16 %v1807, %v1806
      %v1913 = vpack.c.b16 %v1809, %v1808
      %v1914 = vpack.c.b16 %v1811, %v1810
      %v1915 = vpack.c.b16 %v1813, %v1812
      %v1916 = vpack.c.b16 %v1815, %v1814
      %v1917 = vpack.c.b16 %v1817, %v1816
      %v1918 = vpack.c.b16 %v1819, %v1818
      %v1919 = vpack.c.b16 %v1821, %v1820
      %v1920 = vpack.c.b16 %v1823, %v1822
      %v1921 = vpack.c.b16 %v1825, %v1824
      %v1922 = vpack.c.b16 %v1827, %v1826
      %v1923 = vpack.c.b16 %v1829, %v1828
      %v1924 = vpack.c.b16 %v1831, %v1830
      %v1925 = vpack.c.b16 %v1833, %v1832
      %v1926 = vpack.c.b16 %v1835, %v1834
      %v1927 = vpack.c.b16 %v1837, %v1836
      %v1928 = vpack.c.b16 %v1839, %v1838
      %v1929 = vpack.c.b16 %v1841, %v1840
      %v1930 = vpack.c.b16 %v1843, %v1842
      %v1931 = vpack.c.b16 %v1845, %v1844
      %v1932 = vpack.c.b16 %v1847, %v1846
      %v1933 = vpack.c.b16 %v1849, %v1848
      %v1934 = vpack.c.b16 %v1851, %v1850
      %v1935 = vpack.c.b16 %v1853, %v1852
      %v1936 = vpack.c.b16 %v1855, %v1854
      %v1937 = vpack.c.b16 %v1857, %v1856
      %v1938 = vpack.c.b16 %v1859, %v1858
      %v1939 = vpack.c.b16 %v1861, %v1860
      %v1940 = vpack.c.b16 %v1863, %v1862
      %v1941 = vpack.c.b16 %v1865, %v1864
      %v1942 = vpack.c.b16 %v1867, %v1866
      %v1943 = vpack.c.b16 %v1869, %v1868
      %v1944 = vpack.c.b16 %v1871, %v1870
      %v1945 = vpack.c.b16 %v1873, %v1872
      %v1946 = vpack.c.b16 %v1875, %v1874
      %v1947 = vpack.c.b16 %v1877, %v1876
      %v1948 = vpack.c.b16 %v1879, %v1878
      %v1949 = vpack.c.b16 %v1881, %v1880
      %v1950 = vpack.c.b16 %v1883, %v1882
      %v1951 = vpack.c.b16 %v1885, %v1884
      %v1952 = vpack.c.b16 %v1887, %v1886
      %v1953 = vpack.c.b16 %v1889, %v1888
      %v1958 = vunpack.c.l.b16 %v567
      %v1959 = vunpack.c.l.b16 %v568
      %v1960 = vunpack.c.l.b16 %v569
      %v1961 = vunpack.c.l.b16 %v570
      %v1962 = vpack.c.b16 %v1959, %v1958
      %v1963 = vpack.c.b16 %v1961, %v1960
      %vm1966 = vcmask 261120
      %v1968 = vsel %vm1966, %v1890, 0
      %v1971 = vsel %vm1966, %v1891, 0
      %v1974 = vsel %vm1966, %v1892, 0
      %v1977 = vsel %vm1966, %v1893, 0
      %v1980 = vsel %vm1966, %v1894, 0
      %v1983 = vsel %vm1966, %v1895, 0
      %v1986 = vsel %vm1966, %v1896, 0
      %v1989 = vsel %vm1966, %v1897, 0
      %v1992 = vsel %vm1966, %v1898, 0
      %v1995 = vsel %vm1966, %v1899, 0
      %v1998 = vsel %vm1966, %v1900, 0
      %v2001 = vsel %vm1966, %v1901, 0
      %v2004 = vsel %vm1966, %v1902, 0
      %v2007 = vsel %vm1966, %v1903, 0
      %v2010 = vsel %vm1966, %v1904, 0
      %v2013 = vsel %vm1966, %v1905, 0
      %v2016 = vsel %vm1966, %v1906, 0
      %v2019 = vsel %vm1966, %v1907, 0
      %v2022 = vsel %vm1966, %v1908, 0
      %v2025 = vsel %vm1966, %v1909, 0
      %v2028 = vsel %vm1966, %v1910, 0
      %v2031 = vsel %vm1966, %v1911, 0
      %v2034 = vsel %vm1966, %v1912, 0
      %v2037 = vsel %vm1966, %v1913, 0
      %v2040 = vsel %vm1966, %v1914, 0
      %v2043 = vsel %vm1966, %v1915, 0
      %v2046 = vsel %vm1966, %v1916, 0
      %v2049 = vsel %vm1966, %v1917, 0
      %v2052 = vsel %vm1966, %v1918, 0
      %v2055 = vsel %vm1966, %v1919, 0
      %v2058 = vsel %vm1966, %v1920, 0
      %v2061 = vsel %vm1966, %v1921, 0
      %v2064 = vsel %vm1966, %v1922, 0
      %v2067 = vsel %vm1966, %v1923, 0
      %v2070 = vsel %vm1966, %v1924, 0
      %v2073 = vsel %vm1966, %v1925, 0
      %v2076 = vsel %vm1966, %v1926, 0
      %v2079 = vsel %vm1966, %v1927, 0
      %v2082 = vsel %vm1966, %v1928, 0
      %v2085 = vsel %vm1966, %v1929, 0
      %v2088 = vsel %vm1966, %v1930, 0
      %v2091 = vsel %vm1966, %v1931, 0
      %v2094 = vsel %vm1966, %v1932, 0
      %v2097 = vsel %vm1966, %v1933, 0
      %v2100 = vsel %vm1966, %v1934, 0
      %v2103 = vsel %vm1966, %v1935, 0
      %v2106 = vsel %vm1966, %v1936, 0
      %v2109 = vsel %vm1966, %v1937, 0
      %v2112 = vsel %vm1966, %v1938, 0
      %v2115 = vsel %vm1966, %v1939, 0
      %v2118 = vsel %vm1966, %v1940, 0
      %v2121 = vsel %vm1966, %v1941, 0
      %v2124 = vsel %vm1966, %v1942, 0
      %v2127 = vsel %vm1966, %v1943, 0
      %v2130 = vsel %vm1966, %v1944, 0
      %v2133 = vsel %vm1966, %v1945, 0
      %v2136 = vsel %vm1966, %v1946, 0
      %v2139 = vsel %vm1966, %v1947, 0
      %v2142 = vsel %vm1966, %v1948, 0
      %v2145 = vsel %vm1966, %v1949, 0
      %v2148 = vsel %vm1966, %v1950, 0
      %v2151 = vsel %vm1966, %v1951, 0
      %v2154 = vsel %vm1966, %v1952, 0
      %v2157 = vsel %vm1966, %v1953, 0
      %2159 = vmatprep.subr.bf16.mxu0 0
      %2160 = vmatpush1.bf16.msra.mxu0 0
      %2161 = vmatprep.subr.bf16.mxu0 0
      %2162 = vmatpush1.bf16.msra.mxu0 0
      %2163 = vmatprep.subr.bf16.mxu0 0
      %2164 = vmatpush1.bf16.msra.mxu0 0
      %2165 = vmatprep.subr.bf16.mxu0 0
      %2166 = vmatpush1.bf16.msra.mxu0 0
      %2167 = vmatprep.subr.bf16.mxu0 0
      %2168 = vmatpush1.bf16.msra.mxu0 0
      %2169 = vmatprep.subr.bf16.mxu0 0
      %2170 = vmatpush1.bf16.msra.mxu0 0
      %2171 = vmatprep.subr.bf16.mxu0 0
      %2172 = vmatpush1.bf16.msra.mxu0 %v1963
      %2173 = vmatprep.subr.bf16.mxu0 0
      %2174 = vmatpush1.bf16.msra.mxu0 %v1962
      %2175 = vmatprep.subr.bf16.mxu0 0
      %2176 = vmatpush2.bf16.msra.mxu0 0
      %2177 = vmatprep.subr.bf16.mxu0 0
      %2178 = vmatpush2.bf16.msra.mxu0 0
      %2179 = vmatprep.subr.bf16.mxu0 0
      %2180 = vmatpush2.bf16.msra.mxu0 0
      %2181 = vmatprep.subr.bf16.mxu0 0
      %2182 = vmatpush2.bf16.msra.mxu0 0
      %2183 = vmatprep.subr.bf16.mxu0 0
      %2184 = vmatpush2.bf16.msra.mxu0 0
      %2185 = vmatprep.subr.bf16.mxu0 0
      %2186 = vmatpush2.bf16.msra.mxu0 0
      %2187 = vmatprep.subr.bf16.mxu0 0
      %2188 = vmatpush2.bf16.msra.mxu0 0
      %2189 = vmatprep.subr.bf16.mxu0 0
      %2190 = vmatpush2.bf16.msra.mxu0 0
      %2191 = vmatprep.mubr.bf16.mxu0 0
      %2192 = vmatmul.mubr.bf16.gmra.mxu0 %v1968
      %v2193 = vpop.f32.mrf.mxu0
      %v2194 = vadd.f32 %v1124, %v2193
      %v2195 = vpop.f32.mrf.mxu0
      %v2196 = vpop.f32.mrf.mxu0
      %v2197 = vadd.f32 %v1127, %v2196
      %v2198 = vpop.f32.mrf.mxu0
      %2199 = vmatprep.mubr.bf16.mxu0 0
      %2200 = vmatmul.mubr.bf16.gmra.mxu0 %v1971
      %v2201 = vpop.f32.mrf.mxu0
      %v2202 = vadd.f32 %v1132, %v2201
      %v2203 = vpop.f32.mrf.mxu0
      %v2204 = vpop.f32.mrf.mxu0
      %v2205 = vadd.f32 %v1135, %v2204
      %v2206 = vpop.f32.mrf.mxu0
      %2207 = vmatprep.mubr.bf16.mxu0 0
      %2208 = vmatmul.mubr.bf16.gmra.mxu0 %v1974
      %v2209 = vpop.f32.mrf.mxu0
      %v2210 = vadd.f32 %v1140, %v2209
      %v2211 = vpop.f32.mrf.mxu0
      %v2212 = vpop.f32.mrf.mxu0
      %v2213 = vadd.f32 %v1143, %v2212
      %v2214 = vpop.f32.mrf.mxu0
      %2215 = vmatprep.mubr.bf16.mxu0 0
      %2216 = vmatmul.mubr.bf16.gmra.mxu0 %v1977
      %v2217 = vpop.f32.mrf.mxu0
      %v2218 = vadd.f32 %v1148, %v2217
      %v2219 = vpop.f32.mrf.mxu0
      %v2220 = vpop.f32.mrf.mxu0
      %v2221 = vadd.f32 %v1151, %v2220
      %v2222 = vpop.f32.mrf.mxu0
      %2223 = vmatprep.mubr.bf16.mxu0 0
      %2224 = vmatmul.mubr.bf16.gmra.mxu0 %v1980
      %v2225 = vpop.f32.mrf.mxu0
      %v2226 = vadd.f32 %v1156, %v2225
      %v2227 = vpop.f32.mrf.mxu0
      %v2228 = vpop.f32.mrf.mxu0
      %v2229 = vadd.f32 %v1159, %v2228
      %v2230 = vpop.f32.mrf.mxu0
      %2231 = vmatprep.mubr.bf16.mxu0 0
      %2232 = vmatmul.mubr.bf16.gmra.mxu0 %v1983
      %v2233 = vpop.f32.mrf.mxu0
      %v2234 = vadd.f32 %v1164, %v2233
      %v2235 = vpop.f32.mrf.mxu0
      %v2236 = vpop.f32.mrf.mxu0
      %v2237 = vadd.f32 %v1167, %v2236
      %v2238 = vpop.f32.mrf.mxu0
      %2239 = vmatprep.mubr.bf16.mxu0 0
      %2240 = vmatmul.mubr.bf16.gmra.mxu0 %v1986
      %v2241 = vpop.f32.mrf.mxu0
      %v2242 = vadd.f32 %v1172, %v2241
      %v2243 = vpop.f32.mrf.mxu0
      %v2244 = vpop.f32.mrf.mxu0
      %v2245 = vadd.f32 %v1175, %v2244
      %v2246 = vpop.f32.mrf.mxu0
      %2247 = vmatprep.mubr.bf16.mxu0 0
      %2248 = vmatmul.mubr.bf16.gmra.mxu0 %v1989
      %v2249 = vpop.f32.mrf.mxu0
      %v2250 = vadd.f32 %v1180, %v2249
      %v2251 = vpop.f32.mrf.mxu0
      %v2252 = vpop.f32.mrf.mxu0
      %v2253 = vadd.f32 %v1183, %v2252
      %v2254 = vpop.f32.mrf.mxu0
      %2255 = vmatprep.mubr.bf16.mxu0 0
      %2256 = vmatmul.mubr.bf16.gmra.mxu0 %v1992
      %v2257 = vpop.f32.mrf.mxu0
      %v2258 = vadd.f32 %v1188, %v2257
      %v2259 = vpop.f32.mrf.mxu0
      %v2260 = vpop.f32.mrf.mxu0
      %v2261 = vadd.f32 %v1191, %v2260
      %v2262 = vpop.f32.mrf.mxu0
      %2263 = vmatprep.mubr.bf16.mxu0 0
      %2264 = vmatmul.mubr.bf16.gmra.mxu0 %v1995
      %v2265 = vpop.f32.mrf.mxu0
      %v2266 = vadd.f32 %v1196, %v2265
      %v2267 = vpop.f32.mrf.mxu0
      %v2268 = vpop.f32.mrf.mxu0
      %v2269 = vadd.f32 %v1199, %v2268
      %v2270 = vpop.f32.mrf.mxu0
      %2271 = vmatprep.mubr.bf16.mxu0 0
      %2272 = vmatmul.mubr.bf16.gmra.mxu0 %v1998
      %v2273 = vpop.f32.mrf.mxu0
      %v2274 = vadd.f32 %v1204, %v2273
      %v2275 = vpop.f32.mrf.mxu0
      %v2276 = vpop.f32.mrf.mxu0
      %v2277 = vadd.f32 %v1207, %v2276
      %v2278 = vpop.f32.mrf.mxu0
      %2279 = vmatprep.mubr.bf16.mxu0 0
      %2280 = vmatmul.mubr.bf16.gmra.mxu0 %v2001
      %v2281 = vpop.f32.mrf.mxu0
      %v2282 = vadd.f32 %v1212, %v2281
      %v2283 = vpop.f32.mrf.mxu0
      %v2284 = vpop.f32.mrf.mxu0
      %v2285 = vadd.f32 %v1215, %v2284
      %v2286 = vpop.f32.mrf.mxu0
      %2287 = vmatprep.mubr.bf16.mxu0 0
      %2288 = vmatmul.mubr.bf16.gmra.mxu0 %v2004
      %v2289 = vpop.f32.mrf.mxu0
      %v2290 = vadd.f32 %v1220, %v2289
      %v2291 = vpop.f32.mrf.mxu0
      %v2292 = vpop.f32.mrf.mxu0
      %v2293 = vadd.f32 %v1223, %v2292
      %v2294 = vpop.f32.mrf.mxu0
      %2295 = vmatprep.mubr.bf16.mxu0 0
      %2296 = vmatmul.mubr.bf16.gmra.mxu0 %v2007
      %v2297 = vpop.f32.mrf.mxu0
      %v2298 = vadd.f32 %v1228, %v2297
      %v2299 = vpop.f32.mrf.mxu0
      %v2300 = vpop.f32.mrf.mxu0
      %v2301 = vadd.f32 %v1231, %v2300
      %v2302 = vpop.f32.mrf.mxu0
      %2303 = vmatprep.mubr.bf16.mxu0 0
      %2304 = vmatmul.mubr.bf16.gmra.mxu0 %v2010
      %v2305 = vpop.f32.mrf.mxu0
      %v2306 = vadd.f32 %v1236, %v2305
      %v2307 = vpop.f32.mrf.mxu0
      %v2308 = vpop.f32.mrf.mxu0
      %v2309 = vadd.f32 %v1239, %v2308
      %v2310 = vpop.f32.mrf.mxu0
      %2311 = vmatprep.mubr.bf16.mxu0 0
      %2312 = vmatmul.mubr.bf16.gmra.mxu0 %v2013
      %v2313 = vpop.f32.mrf.mxu0
      %v2314 = vadd.f32 %v1244, %v2313
      %v2315 = vpop.f32.mrf.mxu0
      %v2316 = vpop.f32.mrf.mxu0
      %v2317 = vadd.f32 %v1247, %v2316
      %v2318 = vpop.f32.mrf.mxu0
      %2319 = vmatprep.mubr.bf16.mxu0 0
      %2320 = vmatmul.mubr.bf16.gmra.mxu0 %v2016
      %v2321 = vpop.f32.mrf.mxu0
      %v2322 = vadd.f32 %v1252, %v2321
      %v2323 = vpop.f32.mrf.mxu0
      %v2324 = vpop.f32.mrf.mxu0
      %v2325 = vadd.f32 %v1255, %v2324
      %v2326 = vpop.f32.mrf.mxu0
      %2327 = vmatprep.mubr.bf16.mxu0 0
      %2328 = vmatmul.mubr.bf16.gmra.mxu0 %v2019
      %v2329 = vpop.f32.mrf.mxu0
      %v2330 = vadd.f32 %v1260, %v2329
      %v2331 = vpop.f32.mrf.mxu0
      %v2332 = vpop.f32.mrf.mxu0
      %v2333 = vadd.f32 %v1263, %v2332
      %v2334 = vpop.f32.mrf.mxu0
      %2335 = vmatprep.mubr.bf16.mxu0 0
      %2336 = vmatmul.mubr.bf16.gmra.mxu0 %v2022
      %v2337 = vpop.f32.mrf.mxu0
      %v2338 = vadd.f32 %v1268, %v2337
      %v2339 = vpop.f32.mrf.mxu0
      %v2340 = vpop.f32.mrf.mxu0
      %v2341 = vadd.f32 %v1271, %v2340
      %v2342 = vpop.f32.mrf.mxu0
      %2343 = vmatprep.mubr.bf16.mxu0 0
      %2344 = vmatmul.mubr.bf16.gmra.mxu0 %v2025
      %v2345 = vpop.f32.mrf.mxu0
      %v2346 = vadd.f32 %v1276, %v2345
      %v2347 = vpop.f32.mrf.mxu0
      %v2348 = vpop.f32.mrf.mxu0
      %v2349 = vadd.f32 %v1279, %v2348
      %v2350 = vpop.f32.mrf.mxu0
      %2351 = vmatprep.mubr.bf16.mxu0 0
      %2352 = vmatmul.mubr.bf16.gmra.mxu0 %v2028
      %v2353 = vpop.f32.mrf.mxu0
      %v2354 = vadd.f32 %v1284, %v2353
      %v2355 = vpop.f32.mrf.mxu0
      %v2356 = vpop.f32.mrf.mxu0
      %v2357 = vadd.f32 %v1287, %v2356
      %v2358 = vpop.f32.mrf.mxu0
      %2359 = vmatprep.mubr.bf16.mxu0 0
      %2360 = vmatmul.mubr.bf16.gmra.mxu0 %v2031
      %v2361 = vpop.f32.mrf.mxu0
      %v2362 = vadd.f32 %v1292, %v2361
      %v2363 = vpop.f32.mrf.mxu0
      %v2364 = vpop.f32.mrf.mxu0
      %v2365 = vadd.f32 %v1295, %v2364
      %v2366 = vpop.f32.mrf.mxu0
      %2367 = vmatprep.mubr.bf16.mxu0 0
      %2368 = vmatmul.mubr.bf16.gmra.mxu0 %v2034
      %v2369 = vpop.f32.mrf.mxu0
      %v2370 = vadd.f32 %v1300, %v2369
      %v2371 = vpop.f32.mrf.mxu0
      %v2372 = vpop.f32.mrf.mxu0
      %v2373 = vadd.f32 %v1303, %v2372
      %v2374 = vpop.f32.mrf.mxu0
      %2375 = vmatprep.mubr.bf16.mxu0 0
      %2376 = vmatmul.mubr.bf16.gmra.mxu0 %v2037
      %v2377 = vpop.f32.mrf.mxu0
      %v2378 = vadd.f32 %v1308, %v2377
      %v2379 = vpop.f32.mrf.mxu0
      %v2380 = vpop.f32.mrf.mxu0
      %v2381 = vadd.f32 %v1311, %v2380
      %v2382 = vpop.f32.mrf.mxu0
      %2383 = vmatprep.mubr.bf16.mxu0 0
      %2384 = vmatmul.mubr.bf16.gmra.mxu0 %v2040
      %v2385 = vpop.f32.mrf.mxu0
      %v2386 = vadd.f32 %v1316, %v2385
      %v2387 = vpop.f32.mrf.mxu0
      %v2388 = vpop.f32.mrf.mxu0
      %v2389 = vadd.f32 %v1319, %v2388
      %v2390 = vpop.f32.mrf.mxu0
      %2391 = vmatprep.mubr.bf16.mxu0 0
      %2392 = vmatmul.mubr.bf16.gmra.mxu0 %v2043
      %v2393 = vpop.f32.mrf.mxu0
      %v2394 = vadd.f32 %v1324, %v2393
      %v2395 = vpop.f32.mrf.mxu0
      %v2396 = vpop.f32.mrf.mxu0
      %v2397 = vadd.f32 %v1327, %v2396
      %v2398 = vpop.f32.mrf.mxu0
      %2399 = vmatprep.mubr.bf16.mxu0 0
      %2400 = vmatmul.mubr.bf16.gmra.mxu0 %v2046
      %v2401 = vpop.f32.mrf.mxu0
      %v2402 = vadd.f32 %v1332, %v2401
      %v2403 = vpop.f32.mrf.mxu0
      %v2404 = vpop.f32.mrf.mxu0
      %v2405 = vadd.f32 %v1335, %v2404
      %v2406 = vpop.f32.mrf.mxu0
      %2407 = vmatprep.mubr.bf16.mxu0 0
      %2408 = vmatmul.mubr.bf16.gmra.mxu0 %v2049
      %v2409 = vpop.f32.mrf.mxu0
      %v2410 = vadd.f32 %v1340, %v2409
      %v2411 = vpop.f32.mrf.mxu0
      %v2412 = vpop.f32.mrf.mxu0
      %v2413 = vadd.f32 %v1343, %v2412
      %v2414 = vpop.f32.mrf.mxu0
      %2415 = vmatprep.mubr.bf16.mxu0 0
      %2416 = vmatmul.mubr.bf16.gmra.mxu0 %v2052
      %v2417 = vpop.f32.mrf.mxu0
      %v2418 = vadd.f32 %v1348, %v2417
      %v2419 = vpop.f32.mrf.mxu0
      %v2420 = vpop.f32.mrf.mxu0
      %v2421 = vadd.f32 %v1351, %v2420
      %v2422 = vpop.f32.mrf.mxu0
      %2423 = vmatprep.mubr.bf16.mxu0 0
      %2424 = vmatmul.mubr.bf16.gmra.mxu0 %v2055
      %v2425 = vpop.f32.mrf.mxu0
      %v2426 = vadd.f32 %v1356, %v2425
      %v2427 = vpop.f32.mrf.mxu0
      %v2428 = vpop.f32.mrf.mxu0
      %v2429 = vadd.f32 %v1359, %v2428
      %v2430 = vpop.f32.mrf.mxu0
      %2431 = vmatprep.mubr.bf16.mxu0 0
      %2432 = vmatmul.mubr.bf16.gmra.mxu0 %v2058
      %v2433 = vpop.f32.mrf.mxu0
      %v2434 = vadd.f32 %v1364, %v2433
      %v2435 = vpop.f32.mrf.mxu0
      %v2436 = vpop.f32.mrf.mxu0
      %v2437 = vadd.f32 %v1367, %v2436
      %v2438 = vpop.f32.mrf.mxu0
      %2439 = vmatprep.mubr.bf16.mxu0 0
      %2440 = vmatmul.mubr.bf16.gmra.mxu0 %v2061
      %v2441 = vpop.f32.mrf.mxu0
      %v2442 = vadd.f32 %v1372, %v2441
      %v2443 = vpop.f32.mrf.mxu0
      %v2444 = vpop.f32.mrf.mxu0
      %v2445 = vadd.f32 %v1375, %v2444
      %v2446 = vpop.f32.mrf.mxu0
      %2447 = vmatprep.mubr.bf16.mxu0 0
      %2448 = vmatmul.mubr.bf16.gmra.mxu0 %v2064
      %v2449 = vpop.f32.mrf.mxu0
      %v2450 = vadd.f32 %v1380, %v2449
      %v2451 = vpop.f32.mrf.mxu0
      %v2452 = vpop.f32.mrf.mxu0
      %v2453 = vadd.f32 %v1383, %v2452
      %v2454 = vpop.f32.mrf.mxu0
      %2455 = vmatprep.mubr.bf16.mxu0 0
      %2456 = vmatmul.mubr.bf16.gmra.mxu0 %v2067
      %v2457 = vpop.f32.mrf.mxu0
      %v2458 = vadd.f32 %v1388, %v2457
      %v2459 = vpop.f32.mrf.mxu0
      %v2460 = vpop.f32.mrf.mxu0
      %v2461 = vadd.f32 %v1391, %v2460
      %v2462 = vpop.f32.mrf.mxu0
      %2463 = vmatprep.mubr.bf16.mxu0 0
      %2464 = vmatmul.mubr.bf16.gmra.mxu0 %v2070
      %v2465 = vpop.f32.mrf.mxu0
      %v2466 = vadd.f32 %v1396, %v2465
      %v2467 = vpop.f32.mrf.mxu0
      %v2468 = vpop.f32.mrf.mxu0
      %v2469 = vadd.f32 %v1399, %v2468
      %v2470 = vpop.f32.mrf.mxu0
      %2471 = vmatprep.mubr.bf16.mxu0 0
      %2472 = vmatmul.mubr.bf16.gmra.mxu0 %v2073
      %v2473 = vpop.f32.mrf.mxu0
      %v2474 = vadd.f32 %v1404, %v2473
      %v2475 = vpop.f32.mrf.mxu0
      %v2476 = vpop.f32.mrf.mxu0
      %v2477 = vadd.f32 %v1407, %v2476
      %v2478 = vpop.f32.mrf.mxu0
      %2479 = vmatprep.mubr.bf16.mxu0 0
      %2480 = vmatmul.mubr.bf16.gmra.mxu0 %v2076
      %v2481 = vpop.f32.mrf.mxu0
      %v2482 = vadd.f32 %v1412, %v2481
      %v2483 = vpop.f32.mrf.mxu0
      %v2484 = vpop.f32.mrf.mxu0
      %v2485 = vadd.f32 %v1415, %v2484
      %v2486 = vpop.f32.mrf.mxu0
      %2487 = vmatprep.mubr.bf16.mxu0 0
      %2488 = vmatmul.mubr.bf16.gmra.mxu0 %v2079
      %v2489 = vpop.f32.mrf.mxu0
      %v2490 = vadd.f32 %v1420, %v2489
      %v2491 = vpop.f32.mrf.mxu0
      %v2492 = vpop.f32.mrf.mxu0
      %v2493 = vadd.f32 %v1423, %v2492
      %v2494 = vpop.f32.mrf.mxu0
      %2495 = vmatprep.mubr.bf16.mxu0 0
      %2496 = vmatmul.mubr.bf16.gmra.mxu0 %v2082
      %v2497 = vpop.f32.mrf.mxu0
      %v2498 = vadd.f32 %v1428, %v2497
      %v2499 = vpop.f32.mrf.mxu0
      %v2500 = vpop.f32.mrf.mxu0
      %v2501 = vadd.f32 %v1431, %v2500
      %v2502 = vpop.f32.mrf.mxu0
      %2503 = vmatprep.mubr.bf16.mxu0 0
      %2504 = vmatmul.mubr.bf16.gmra.mxu0 %v2085
      %v2505 = vpop.f32.mrf.mxu0
      %v2506 = vadd.f32 %v1436, %v2505
      %v2507 = vpop.f32.mrf.mxu0
      %v2508 = vpop.f32.mrf.mxu0
      %v2509 = vadd.f32 %v1439, %v2508
      %v2510 = vpop.f32.mrf.mxu0
      %2511 = vmatprep.mubr.bf16.mxu0 0
      %2512 = vmatmul.mubr.bf16.gmra.mxu0 %v2088
      %v2513 = vpop.f32.mrf.mxu0
      %v2514 = vadd.f32 %v1444, %v2513
      %v2515 = vpop.f32.mrf.mxu0
      %v2516 = vpop.f32.mrf.mxu0
      %v2517 = vadd.f32 %v1447, %v2516
      %v2518 = vpop.f32.mrf.mxu0
      %2519 = vmatprep.mubr.bf16.mxu0 0
      %2520 = vmatmul.mubr.bf16.gmra.mxu0 %v2091
      %v2521 = vpop.f32.mrf.mxu0
      %v2522 = vadd.f32 %v1452, %v2521
      %v2523 = vpop.f32.mrf.mxu0
      %v2524 = vpop.f32.mrf.mxu0
      %v2525 = vadd.f32 %v1455, %v2524
      %v2526 = vpop.f32.mrf.mxu0
      %2527 = vmatprep.mubr.bf16.mxu0 0
      %2528 = vmatmul.mubr.bf16.gmra.mxu0 %v2094
      %v2529 = vpop.f32.mrf.mxu0
      %v2530 = vadd.f32 %v1460, %v2529
      %v2531 = vpop.f32.mrf.mxu0
      %v2532 = vpop.f32.mrf.mxu0
      %v2533 = vadd.f32 %v1463, %v2532
      %v2534 = vpop.f32.mrf.mxu0
      %2535 = vmatprep.mubr.bf16.mxu0 0
      %2536 = vmatmul.mubr.bf16.gmra.mxu0 %v2097
      %v2537 = vpop.f32.mrf.mxu0
      %v2538 = vadd.f32 %v1468, %v2537
      %v2539 = vpop.f32.mrf.mxu0
      %v2540 = vpop.f32.mrf.mxu0
      %v2541 = vadd.f32 %v1471, %v2540
      %v2542 = vpop.f32.mrf.mxu0
      %2543 = vmatprep.mubr.bf16.mxu0 0
      %2544 = vmatmul.mubr.bf16.gmra.mxu0 %v2100
      %v2545 = vpop.f32.mrf.mxu0
      %v2546 = vadd.f32 %v1476, %v2545
      %v2547 = vpop.f32.mrf.mxu0
      %v2548 = vpop.f32.mrf.mxu0
      %v2549 = vadd.f32 %v1479, %v2548
      %v2550 = vpop.f32.mrf.mxu0
      %2551 = vmatprep.mubr.bf16.mxu0 0
      %2552 = vmatmul.mubr.bf16.gmra.mxu0 %v2103
      %v2553 = vpop.f32.mrf.mxu0
      %v2554 = vadd.f32 %v1484, %v2553
      %v2555 = vpop.f32.mrf.mxu0
      %v2556 = vpop.f32.mrf.mxu0
      %v2557 = vadd.f32 %v1487, %v2556
      %v2558 = vpop.f32.mrf.mxu0
      %2559 = vmatprep.mubr.bf16.mxu0 0
      %2560 = vmatmul.mubr.bf16.gmra.mxu0 %v2106
      %v2561 = vpop.f32.mrf.mxu0
      %v2562 = vadd.f32 %v1492, %v2561
      %v2563 = vpop.f32.mrf.mxu0
      %v2564 = vpop.f32.mrf.mxu0
      %v2565 = vadd.f32 %v1495, %v2564
      %v2566 = vpop.f32.mrf.mxu0
      %2567 = vmatprep.mubr.bf16.mxu0 0
      %2568 = vmatmul.mubr.bf16.gmra.mxu0 %v2109
      %v2569 = vpop.f32.mrf.mxu0
      %v2570 = vadd.f32 %v1500, %v2569
      %v2571 = vpop.f32.mrf.mxu0
      %v2572 = vpop.f32.mrf.mxu0
      %v2573 = vadd.f32 %v1503, %v2572
      %v2574 = vpop.f32.mrf.mxu0
      %2575 = vmatprep.mubr.bf16.mxu0 0
      %2576 = vmatmul.mubr.bf16.gmra.mxu0 %v2112
      %v2577 = vpop.f32.mrf.mxu0
      %v2578 = vadd.f32 %v1508, %v2577
      %v2579 = vpop.f32.mrf.mxu0
      %v2580 = vpop.f32.mrf.mxu0
      %v2581 = vadd.f32 %v1511, %v2580
      %v2582 = vpop.f32.mrf.mxu0
      %2583 = vmatprep.mubr.bf16.mxu0 0
      %2584 = vmatmul.mubr.bf16.gmra.mxu0 %v2115
      %v2585 = vpop.f32.mrf.mxu0
      %v2586 = vadd.f32 %v1516, %v2585
      %v2587 = vpop.f32.mrf.mxu0
      %v2588 = vpop.f32.mrf.mxu0
      %v2589 = vadd.f32 %v1519, %v2588
      %v2590 = vpop.f32.mrf.mxu0
      %2591 = vmatprep.mubr.bf16.mxu0 0
      %2592 = vmatmul.mubr.bf16.gmra.mxu0 %v2118
      %v2593 = vpop.f32.mrf.mxu0
      %v2594 = vadd.f32 %v1524, %v2593
      %v2595 = vpop.f32.mrf.mxu0
      %v2596 = vpop.f32.mrf.mxu0
      %v2597 = vadd.f32 %v1527, %v2596
      %v2598 = vpop.f32.mrf.mxu0
      %2599 = vmatprep.mubr.bf16.mxu0 0
      %2600 = vmatmul.mubr.bf16.gmra.mxu0 %v2121
      %v2601 = vpop.f32.mrf.mxu0
      %v2602 = vadd.f32 %v1532, %v2601
      %v2603 = vpop.f32.mrf.mxu0
      %v2604 = vpop.f32.mrf.mxu0
      %v2605 = vadd.f32 %v1535, %v2604
      %v2606 = vpop.f32.mrf.mxu0
      %2607 = vmatprep.mubr.bf16.mxu0 0
      %2608 = vmatmul.mubr.bf16.gmra.mxu0 %v2124
      %v2609 = vpop.f32.mrf.mxu0
      %v2610 = vadd.f32 %v1540, %v2609
      %v2611 = vpop.f32.mrf.mxu0
      %v2612 = vpop.f32.mrf.mxu0
      %v2613 = vadd.f32 %v1543, %v2612
      %v2614 = vpop.f32.mrf.mxu0
      %2615 = vmatprep.mubr.bf16.mxu0 0
      %2616 = vmatmul.mubr.bf16.gmra.mxu0 %v2127
      %v2617 = vpop.f32.mrf.mxu0
      %v2618 = vadd.f32 %v1548, %v2617
      %v2619 = vpop.f32.mrf.mxu0
      %v2620 = vpop.f32.mrf.mxu0
      %v2621 = vadd.f32 %v1551, %v2620
      %v2622 = vpop.f32.mrf.mxu0
      %2623 = vmatprep.mubr.bf16.mxu0 0
      %2624 = vmatmul.mubr.bf16.gmra.mxu0 %v2130
      %v2625 = vpop.f32.mrf.mxu0
      %v2626 = vadd.f32 %v1556, %v2625
      %v2627 = vpop.f32.mrf.mxu0
      %v2628 = vpop.f32.mrf.mxu0
      %v2629 = vadd.f32 %v1559, %v2628
      %v2630 = vpop.f32.mrf.mxu0
      %2631 = vmatprep.mubr.bf16.mxu0 0
      %2632 = vmatmul.mubr.bf16.gmra.mxu0 %v2133
      %v2633 = vpop.f32.mrf.mxu0
      %v2634 = vadd.f32 %v1564, %v2633
      %v2635 = vpop.f32.mrf.mxu0
      %v2636 = vpop.f32.mrf.mxu0
      %v2637 = vadd.f32 %v1567, %v2636
      %v2638 = vpop.f32.mrf.mxu0
      %2639 = vmatprep.mubr.bf16.mxu0 0
      %2640 = vmatmul.mubr.bf16.gmra.mxu0 %v2136
      %v2641 = vpop.f32.mrf.mxu0
      %v2642 = vadd.f32 %v1572, %v2641
      %v2643 = vpop.f32.mrf.mxu0
      %v2644 = vpop.f32.mrf.mxu0
      %v2645 = vadd.f32 %v1575, %v2644
      %v2646 = vpop.f32.mrf.mxu0
      %2647 = vmatprep.mubr.bf16.mxu0 0
      %2648 = vmatmul.mubr.bf16.gmra.mxu0 %v2139
      %v2649 = vpop.f32.mrf.mxu0
      %v2650 = vadd.f32 %v1580, %v2649
      %v2651 = vpop.f32.mrf.mxu0
      %v2652 = vpop.f32.mrf.mxu0
      %v2653 = vadd.f32 %v1583, %v2652
      %v2654 = vpop.f32.mrf.mxu0
      %2655 = vmatprep.mubr.bf16.mxu0 0
      %2656 = vmatmul.mubr.bf16.gmra.mxu0 %v2142
      %v2657 = vpop.f32.mrf.mxu0
      %v2658 = vadd.f32 %v1588, %v2657
      %v2659 = vpop.f32.mrf.mxu0
      %v2660 = vpop.f32.mrf.mxu0
      %v2661 = vadd.f32 %v1591, %v2660
      %v2662 = vpop.f32.mrf.mxu0
      %2663 = vmatprep.mubr.bf16.mxu0 0
      %2664 = vmatmul.mubr.bf16.gmra.mxu0 %v2145
      %v2665 = vpop.f32.mrf.mxu0
      %v2666 = vadd.f32 %v1596, %v2665
      %v2667 = vpop.f32.mrf.mxu0
      %v2668 = vpop.f32.mrf.mxu0
      %v2669 = vadd.f32 %v1599, %v2668
      %v2670 = vpop.f32.mrf.mxu0
      %2671 = vmatprep.mubr.bf16.mxu0 0
      %2672 = vmatmul.mubr.bf16.gmra.mxu0 %v2148
      %v2673 = vpop.f32.mrf.mxu0
      %v2674 = vadd.f32 %v1604, %v2673
      %v2675 = vpop.f32.mrf.mxu0
      %v2676 = vpop.f32.mrf.mxu0
      %v2677 = vadd.f32 %v1607, %v2676
      %v2678 = vpop.f32.mrf.mxu0
      %2679 = vmatprep.mubr.bf16.mxu0 0
      %2680 = vmatmul.mubr.bf16.gmra.mxu0 %v2151
      %v2681 = vpop.f32.mrf.mxu0
      %v2682 = vadd.f32 %v1612, %v2681
      %v2683 = vpop.f32.mrf.mxu0
      %v2684 = vpop.f32.mrf.mxu0
      %v2685 = vadd.f32 %v1615, %v2684
      %v2686 = vpop.f32.mrf.mxu0
      %2687 = vmatprep.mubr.bf16.mxu0 0
      %2688 = vmatmul.mubr.bf16.gmra.mxu0 %v2154
      %v2689 = vpop.f32.mrf.mxu0
      %v2690 = vadd.f32 %v1620, %v2689
      %v2691 = vpop.f32.mrf.mxu0
      %v2692 = vpop.f32.mrf.mxu0
      %v2693 = vadd.f32 %v1623, %v2692
      %v2694 = vpop.f32.mrf.mxu0
      %2695 = vmatprep.mubr.bf16.mxu0 0
      %2696 = vmatmul.mubr.bf16.gmra.mxu0 %v2157
      %v2697 = vpop.f32.mrf.mxu0
      %v2698 = vadd.f32 %v1628, %v2697
      %v2699 = vpop.f32.mrf.mxu0
      %v2700 = vpop.f32.mrf.mxu0
      %v2701 = vadd.f32 %v1631, %v2700
      %v2702 = vpop.f32.mrf.mxu0
      %2703 = vdwg.mxu0
      %v2704 = vld [vmem:[%s4] sm:$0x1]
      %v2706 = vlaneseq
      %v2707 = vshrl.u32 %v2706, 7
      %v2708 = vsub.s32 0, %v2707
      %v2709 = vrot.slane %v2704, %v2708
      %v2711 = vadd.f32 %v2194, %v2709
      %v2712 = vadd.f32 %v2197, %v2709
      %v2713 = vadd.f32 %v2202, %v2709
      %v2714 = vadd.f32 %v2205, %v2709
      %v2715 = vadd.f32 %v2210, %v2709
      %v2716 = vadd.f32 %v2213, %v2709
      %v2717 = vadd.f32 %v2218, %v2709
      %v2718 = vadd.f32 %v2221, %v2709
      %v2719 = vadd.f32 %v2226, %v2709
      %v2720 = vadd.f32 %v2229, %v2709
      %v2721 = vadd.f32 %v2234, %v2709
      %v2722 = vadd.f32 %v2237, %v2709
      %v2723 = vadd.f32 %v2242, %v2709
      %v2724 = vadd.f32 %v2245, %v2709
      %v2725 = vadd.f32 %v2250, %v2709
      %v2726 = vadd.f32 %v2253, %v2709
      %v2727 = vadd.f32 %v2258, %v2709
      %v2728 = vadd.f32 %v2261, %v2709
      %v2729 = vadd.f32 %v2266, %v2709
      %v2730 = vadd.f32 %v2269, %v2709
      %v2731 = vadd.f32 %v2274, %v2709
      %v2732 = vadd.f32 %v2277, %v2709
      %v2733 = vadd.f32 %v2282, %v2709
      %v2734 = vadd.f32 %v2285, %v2709
      %v2735 = vadd.f32 %v2290, %v2709
      %v2736 = vadd.f32 %v2293, %v2709
      %v2737 = vadd.f32 %v2298, %v2709
      %v2738 = vadd.f32 %v2301, %v2709
      %v2739 = vadd.f32 %v2306, %v2709
      %v2740 = vadd.f32 %v2309, %v2709
      %v2741 = vadd.f32 %v2314, %v2709
      %v2742 = vadd.f32 %v2317, %v2709
      %v2743 = vadd.f32 %v2322, %v2709
      %v2744 = vadd.f32 %v2325, %v2709
      %v2745 = vadd.f32 %v2330, %v2709
      %v2746 = vadd.f32 %v2333, %v2709
      %v2747 = vadd.f32 %v2338, %v2709
      %v2748 = vadd.f32 %v2341, %v2709
      %v2749 = vadd.f32 %v2346, %v2709
      %v2750 = vadd.f32 %v2349, %v2709
      %v2751 = vadd.f32 %v2354, %v2709
      %v2752 = vadd.f32 %v2357, %v2709
      %v2753 = vadd.f32 %v2362, %v2709
      %v2754 = vadd.f32 %v2365, %v2709
      %v2755 = vadd.f32 %v2370, %v2709
      %v2756 = vadd.f32 %v2373, %v2709
      %v2757 = vadd.f32 %v2378, %v2709
      %v2758 = vadd.f32 %v2381, %v2709
      %v2759 = vadd.f32 %v2386, %v2709
      %v2760 = vadd.f32 %v2389, %v2709
      %v2761 = vadd.f32 %v2394, %v2709
      %v2762 = vadd.f32 %v2397, %v2709
      %v2763 = vadd.f32 %v2402, %v2709
      %v2764 = vadd.f32 %v2405, %v2709
      %v2765 = vadd.f32 %v2410, %v2709
      %v2766 = vadd.f32 %v2413, %v2709
      %v2767 = vadd.f32 %v2418, %v2709
      %v2768 = vadd.f32 %v2421, %v2709
      %v2769 = vadd.f32 %v2426, %v2709
      %v2770 = vadd.f32 %v2429, %v2709
      %v2771 = vadd.f32 %v2434, %v2709
      %v2772 = vadd.f32 %v2437, %v2709
      %v2773 = vadd.f32 %v2442, %v2709
      %v2774 = vadd.f32 %v2445, %v2709
      %v2775 = vadd.f32 %v2450, %v2709
      %v2776 = vadd.f32 %v2453, %v2709
      %v2777 = vadd.f32 %v2458, %v2709
      %v2778 = vadd.f32 %v2461, %v2709
      %v2779 = vadd.f32 %v2466, %v2709
      %v2780 = vadd.f32 %v2469, %v2709
      %v2781 = vadd.f32 %v2474, %v2709
      %v2782 = vadd.f32 %v2477, %v2709
      %v2783 = vadd.f32 %v2482, %v2709
      %v2784 = vadd.f32 %v2485, %v2709
      %v2785 = vadd.f32 %v2490, %v2709
      %v2786 = vadd.f32 %v2493, %v2709
      %v2787 = vadd.f32 %v2498, %v2709
      %v2788 = vadd.f32 %v2501, %v2709
      %v2789 = vadd.f32 %v2506, %v2709
      %v2790 = vadd.f32 %v2509, %v2709
      %v2791 = vadd.f32 %v2514, %v2709
      %v2792 = vadd.f32 %v2517, %v2709
      %v2793 = vadd.f32 %v2522, %v2709
      %v2794 = vadd.f32 %v2525, %v2709
      %v2795 = vadd.f32 %v2530, %v2709
      %v2796 = vadd.f32 %v2533, %v2709
      %v2797 = vadd.f32 %v2538, %v2709
      %v2798 = vadd.f32 %v2541, %v2709
      %v2799 = vadd.f32 %v2546, %v2709
      %v2800 = vadd.f32 %v2549, %v2709
      %v2801 = vadd.f32 %v2554, %v2709
      %v2802 = vadd.f32 %v2557, %v2709
      %v2803 = vadd.f32 %v2562, %v2709
      %v2804 = vadd.f32 %v2565, %v2709
      %v2805 = vadd.f32 %v2570, %v2709
      %v2806 = vadd.f32 %v2573, %v2709
      %v2807 = vadd.f32 %v2578, %v2709
      %v2808 = vadd.f32 %v2581, %v2709
      %v2809 = vadd.f32 %v2586, %v2709
      %v2810 = vadd.f32 %v2589, %v2709
      %v2811 = vadd.f32 %v2594, %v2709
      %v2812 = vadd.f32 %v2597, %v2709
      %v2813 = vadd.f32 %v2602, %v2709
      %v2814 = vadd.f32 %v2605, %v2709
      %v2815 = vadd.f32 %v2610, %v2709
      %v2816 = vadd.f32 %v2613, %v2709
      %v2817 = vadd.f32 %v2618, %v2709
      %v2818 = vadd.f32 %v2621, %v2709
      %v2819 = vadd.f32 %v2626, %v2709
      %v2820 = vadd.f32 %v2629, %v2709
      %v2821 = vadd.f32 %v2634, %v2709
      %v2822 = vadd.f32 %v2637, %v2709
      %v2823 = vadd.f32 %v2642, %v2709
      %v2824 = vadd.f32 %v2645, %v2709
      %v2825 = vadd.f32 %v2650, %v2709
      %v2826 = vadd.f32 %v2653, %v2709
      %v2827 = vadd.f32 %v2658, %v2709
      %v2828 = vadd.f32 %v2661, %v2709
      %v2829 = vadd.f32 %v2666, %v2709
      %v2830 = vadd.f32 %v2669, %v2709
      %v2831 = vadd.f32 %v2674, %v2709
      %v2832 = vadd.f32 %v2677, %v2709
      %v2833 = vadd.f32 %v2682, %v2709
      %v2834 = vadd.f32 %v2685, %v2709
      %v2835 = vadd.f32 %v2690, %v2709
      %v2836 = vadd.f32 %v2693, %v2709
      %v2837 = vadd.f32 %v2698, %v2709
      %v2838 = vadd.f32 %v2701, %v2709
      %v2839 = vmax.f32 %v2711, 0.0
      %v2840 = vmax.f32 %v2712, 0.0
      %v2841 = vmax.f32 %v2713, 0.0
      %v2842 = vmax.f32 %v2714, 0.0
      %v2843 = vmax.f32 %v2715, 0.0
      %v2844 = vmax.f32 %v2716, 0.0
      %v2845 = vmax.f32 %v2717, 0.0
      %v2846 = vmax.f32 %v2718, 0.0
      %v2847 = vmax.f32 %v2719, 0.0
      %v2848 = vmax.f32 %v2720, 0.0
      %v2849 = vmax.f32 %v2721, 0.0
      %v2850 = vmax.f32 %v2722, 0.0
      %v2851 = vmax.f32 %v2723, 0.0
      %v2852 = vmax.f32 %v2724, 0.0
      %v2853 = vmax.f32 %v2725, 0.0
      %v2854 = vmax.f32 %v2726, 0.0
      %v2855 = vmax.f32 %v2727, 0.0
      %v2856 = vmax.f32 %v2728, 0.0
      %v2857 = vmax.f32 %v2729, 0.0
      %v2858 = vmax.f32 %v2730, 0.0
      %v2859 = vmax.f32 %v2731, 0.0
      %v2860 = vmax.f32 %v2732, 0.0
      %v2861 = vmax.f32 %v2733, 0.0
      %v2862 = vmax.f32 %v2734, 0.0
      %v2863 = vmax.f32 %v2735, 0.0
      %v2864 = vmax.f32 %v2736, 0.0
      %v2865 = vmax.f32 %v2737, 0.0
      %v2866 = vmax.f32 %v2738, 0.0
      %v2867 = vmax.f32 %v2739, 0.0
      %v2868 = vmax.f32 %v2740, 0.0
      %v2869 = vmax.f32 %v2741, 0.0
      %v2870 = vmax.f32 %v2742, 0.0
      %v2871 = vmax.f32 %v2743, 0.0
      %v2872 = vmax.f32 %v2744, 0.0
      %v2873 = vmax.f32 %v2745, 0.0
      %v2874 = vmax.f32 %v2746, 0.0
      %v2875 = vmax.f32 %v2747, 0.0
      %v2876 = vmax.f32 %v2748, 0.0
      %v2877 = vmax.f32 %v2749, 0.0
      %v2878 = vmax.f32 %v2750, 0.0
      %v2879 = vmax.f32 %v2751, 0.0
      %v2880 = vmax.f32 %v2752, 0.0
      %v2881 = vmax.f32 %v2753, 0.0
      %v2882 = vmax.f32 %v2754, 0.0
      %v2883 = vmax.f32 %v2755, 0.0
      %v2884 = vmax.f32 %v2756, 0.0
      %v2885 = vmax.f32 %v2757, 0.0
      %v2886 = vmax.f32 %v2758, 0.0
      %v2887 = vmax.f32 %v2759, 0.0
      %v2888 = vmax.f32 %v2760, 0.0
      %v2889 = vmax.f32 %v2761, 0.0
      %v2890 = vmax.f32 %v2762, 0.0
      %v2891 = vmax.f32 %v2763, 0.0
      %v2892 = vmax.f32 %v2764, 0.0
      %v2893 = vmax.f32 %v2765, 0.0
      %v2894 = vmax.f32 %v2766, 0.0
      %v2895 = vmax.f32 %v2767, 0.0
      %v2896 = vmax.f32 %v2768, 0.0
      %v2897 = vmax.f32 %v2769, 0.0
      %v2898 = vmax.f32 %v2770, 0.0
      %v2899 = vmax.f32 %v2771, 0.0
      %v2900 = vmax.f32 %v2772, 0.0
      %v2901 = vmax.f32 %v2773, 0.0
      %v2902 = vmax.f32 %v2774, 0.0
      %v2903 = vmax.f32 %v2775, 0.0
      %v2904 = vmax.f32 %v2776, 0.0
      %v2905 = vmax.f32 %v2777, 0.0
      %v2906 = vmax.f32 %v2778, 0.0
      %v2907 = vmax.f32 %v2779, 0.0
      %v2908 = vmax.f32 %v2780, 0.0
      %v2909 = vmax.f32 %v2781, 0.0
      %v2910 = vmax.f32 %v2782, 0.0
      %v2911 = vmax.f32 %v2783, 0.0
      %v2912 = vmax.f32 %v2784, 0.0
      %v2913 = vmax.f32 %v2785, 0.0
      %v2914 = vmax.f32 %v2786, 0.0
      %v2915 = vmax.f32 %v2787, 0.0
      %v2916 = vmax.f32 %v2788, 0.0
      %v2917 = vmax.f32 %v2789, 0.0
      %v2918 = vmax.f32 %v2790, 0.0
      %v2919 = vmax.f32 %v2791, 0.0
      %v2920 = vmax.f32 %v2792, 0.0
      %v2921 = vmax.f32 %v2793, 0.0
      %v2922 = vmax.f32 %v2794, 0.0
      %v2923 = vmax.f32 %v2795, 0.0
      %v2924 = vmax.f32 %v2796, 0.0
      %v2925 = vmax.f32 %v2797, 0.0
      %v2926 = vmax.f32 %v2798, 0.0
      %v2927 = vmax.f32 %v2799, 0.0
      %v2928 = vmax.f32 %v2800, 0.0
      %v2929 = vmax.f32 %v2801, 0.0
      %v2930 = vmax.f32 %v2802, 0.0
      %v2931 = vmax.f32 %v2803, 0.0
      %v2932 = vmax.f32 %v2804, 0.0
      %v2933 = vmax.f32 %v2805, 0.0
      %v2934 = vmax.f32 %v2806, 0.0
      %v2935 = vmax.f32 %v2807, 0.0
      %v2936 = vmax.f32 %v2808, 0.0
      %v2937 = vmax.f32 %v2809, 0.0
      %v2938 = vmax.f32 %v2810, 0.0
      %v2939 = vmax.f32 %v2811, 0.0
      %v2940 = vmax.f32 %v2812, 0.0
      %v2941 = vmax.f32 %v2813, 0.0
      %v2942 = vmax.f32 %v2814, 0.0
      %v2943 = vmax.f32 %v2815, 0.0
      %v2944 = vmax.f32 %v2816, 0.0
      %v2945 = vmax.f32 %v2817, 0.0
      %v2946 = vmax.f32 %v2818, 0.0
      %v2947 = vmax.f32 %v2819, 0.0
      %v2948 = vmax.f32 %v2820, 0.0
      %v2949 = vmax.f32 %v2821, 0.0
      %v2950 = vmax.f32 %v2822, 0.0
      %v2951 = vmax.f32 %v2823, 0.0
      %v2952 = vmax.f32 %v2824, 0.0
      %v2953 = vmax.f32 %v2825, 0.0
      %v2954 = vmax.f32 %v2826, 0.0
      %v2955 = vmax.f32 %v2827, 0.0
      %v2956 = vmax.f32 %v2828, 0.0
      %v2957 = vmax.f32 %v2829, 0.0
      %v2958 = vmax.f32 %v2830, 0.0
      %v2959 = vmax.f32 %v2831, 0.0
      %v2960 = vmax.f32 %v2832, 0.0
      %v2961 = vmax.f32 %v2833, 0.0
      %v2962 = vmax.f32 %v2834, 0.0
      %v2963 = vmax.f32 %v2835, 0.0
      %v2964 = vmax.f32 %v2836, 0.0
      %v2965 = vmax.f32 %v2837, 0.0
      %v2966 = vmax.f32 %v2838, 0.0
      %v2967 = vpack.c.bf16 %v2840, %v2839
      %v2968 = vpack.c.bf16 %v2842, %v2841
      %v2969 = vpack.c.bf16 %v2844, %v2843
      %v2970 = vpack.c.bf16 %v2846, %v2845
      %v2971 = vpack.c.bf16 %v2848, %v2847
      %v2972 = vpack.c.bf16 %v2850, %v2849
      %v2973 = vpack.c.bf16 %v2852, %v2851
      %v2974 = vpack.c.bf16 %v2854, %v2853
      %v2975 = vpack.c.bf16 %v2856, %v2855
      %v2976 = vpack.c.bf16 %v2858, %v2857
      %v2977 = vpack.c.bf16 %v2860, %v2859
      %v2978 = vpack.c.bf16 %v2862, %v2861
      %v2979 = vpack.c.bf16 %v2864, %v2863
      %v2980 = vpack.c.bf16 %v2866, %v2865
      %v2981 = vpack.c.bf16 %v2868, %v2867
      %v2982 = vpack.c.bf16 %v2870, %v2869
      %v2983 = vpack.c.bf16 %v2872, %v2871
      %v2984 = vpack.c.bf16 %v2874, %v2873
      %v2985 = vpack.c.bf16 %v2876, %v2875
      %v2986 = vpack.c.bf16 %v2878, %v2877
      %v2987 = vpack.c.bf16 %v2880, %v2879
      %v2988 = vpack.c.bf16 %v2882, %v2881
      %v2989 = vpack.c.bf16 %v2884, %v2883
      %v2990 = vpack.c.bf16 %v2886, %v2885
      %v2991 = vpack.c.bf16 %v2888, %v2887
      %v2992 = vpack.c.bf16 %v2890, %v2889
      %v2993 = vpack.c.bf16 %v2892, %v2891
      %v2994 = vpack.c.bf16 %v2894, %v2893
      %v2995 = vpack.c.bf16 %v2896, %v2895
      %v2996 = vpack.c.bf16 %v2898, %v2897
      %v2997 = vpack.c.bf16 %v2900, %v2899
      %v2998 = vpack.c.bf16 %v2902, %v2901
      %v2999 = vpack.c.bf16 %v2904, %v2903
      %v3000 = vpack.c.bf16 %v2906, %v2905
      %v3001 = vpack.c.bf16 %v2908, %v2907
      %v3002 = vpack.c.bf16 %v2910, %v2909
      %v3003 = vpack.c.bf16 %v2912, %v2911
      %v3004 = vpack.c.bf16 %v2914, %v2913
      %v3005 = vpack.c.bf16 %v2916, %v2915
      %v3006 = vpack.c.bf16 %v2918, %v2917
      %v3007 = vpack.c.bf16 %v2920, %v2919
      %v3008 = vpack.c.bf16 %v2922, %v2921
      %v3009 = vpack.c.bf16 %v2924, %v2923
      %v3010 = vpack.c.bf16 %v2926, %v2925
      %v3011 = vpack.c.bf16 %v2928, %v2927
      %v3012 = vpack.c.bf16 %v2930, %v2929
      %v3013 = vpack.c.bf16 %v2932, %v2931
      %v3014 = vpack.c.bf16 %v2934, %v2933
      %v3015 = vpack.c.bf16 %v2936, %v2935
      %v3016 = vpack.c.bf16 %v2938, %v2937
      %v3017 = vpack.c.bf16 %v2940, %v2939
      %v3018 = vpack.c.bf16 %v2942, %v2941
      %v3019 = vpack.c.bf16 %v2944, %v2943
      %v3020 = vpack.c.bf16 %v2946, %v2945
      %v3021 = vpack.c.bf16 %v2948, %v2947
      %v3022 = vpack.c.bf16 %v2950, %v2949
      %v3023 = vpack.c.bf16 %v2952, %v2951
      %v3024 = vpack.c.bf16 %v2954, %v2953
      %v3025 = vpack.c.bf16 %v2956, %v2955
      %v3026 = vpack.c.bf16 %v2958, %v2957
      %v3027 = vpack.c.bf16 %v2960, %v2959
      %v3028 = vpack.c.bf16 %v2962, %v2961
      %v3029 = vpack.c.bf16 %v2964, %v2963
      %v3030 = vpack.c.bf16 %v2966, %v2965
      %v3031 = vld [vmem:[%s5] sm:$0xf]
      %v3032 = vld [vmem:[%s5 + $0x4] sm:$0xf]
      %v3033 = vld [vmem:[%s5 + $0x8] sm:$0xf]
      %v3034 = vld [vmem:[%s5 + $0xc] sm:$0xf]
      %v3035 = vld [vmem:[%s5 + $0x10] sm:$0xf]
      %v3036 = vld [vmem:[%s5 + $0x14] sm:$0xf]
      %v3037 = vld [vmem:[%s5 + $0x18] sm:$0xf]
      %v3038 = vld [vmem:[%s5 + $0x1c] sm:$0xf]
      %v3039 = vld [vmem:[%s6] sm:$0x1]
      %v3041 = vlaneseq
      %v3042 = vshrl.u32 %v3041, 7
      %v3043 = vsub.s32 0, %v3042
      %v3044 = vrot.slane %v3039, %v3043
      %v3054 = vunpack.c.l.b16 %v3031
      %v3055 = vunpack.c.l.b16 %v3032
      %v3056 = vunpack.c.l.b16 %v3033
      %v3057 = vunpack.c.l.b16 %v3034
      %v3058 = vunpack.c.l.b16 %v3035
      %v3059 = vunpack.c.l.b16 %v3036
      %v3060 = vunpack.c.l.b16 %v3037
      %v3061 = vunpack.c.l.b16 %v3038
      %v3062 = vpack.c.b16 %v3055, %v3054
      %v3063 = vpack.c.b16 %v3057, %v3056
      %v3064 = vpack.c.b16 %v3059, %v3058
      %v3065 = vpack.c.b16 %v3061, %v3060
      %vm3070 = vcmask 523264
      %v3072 = vsel %vm3070, %v2967, 0
      %v3075 = vsel %vm3070, %v2968, 0
      %v3078 = vsel %vm3070, %v2969, 0
      %v3081 = vsel %vm3070, %v2970, 0
      %v3084 = vsel %vm3070, %v2971, 0
      %v3087 = vsel %vm3070, %v2972, 0
      %v3090 = vsel %vm3070, %v2973, 0
      %v3093 = vsel %vm3070, %v2974, 0
      %v3096 = vsel %vm3070, %v2975, 0
      %v3099 = vsel %vm3070, %v2976, 0
      %v3102 = vsel %vm3070, %v2977, 0
      %v3105 = vsel %vm3070, %v2978, 0
      %v3108 = vsel %vm3070, %v2979, 0
      %v3111 = vsel %vm3070, %v2980, 0
      %v3114 = vsel %vm3070, %v2981, 0
      %v3117 = vsel %vm3070, %v2982, 0
      %v3120 = vsel %vm3070, %v2983, 0
      %v3123 = vsel %vm3070, %v2984, 0
      %v3126 = vsel %vm3070, %v2985, 0
      %v3129 = vsel %vm3070, %v2986, 0
      %v3132 = vsel %vm3070, %v2987, 0
      %v3135 = vsel %vm3070, %v2988, 0
      %v3138 = vsel %vm3070, %v2989, 0
      %v3141 = vsel %vm3070, %v2990, 0
      %v3144 = vsel %vm3070, %v2991, 0
      %v3147 = vsel %vm3070, %v2992, 0
      %v3150 = vsel %vm3070, %v2993, 0
      %v3153 = vsel %vm3070, %v2994, 0
      %v3156 = vsel %vm3070, %v2995, 0
      %v3159 = vsel %vm3070, %v2996, 0
      %v3162 = vsel %vm3070, %v2997, 0
      %v3165 = vsel %vm3070, %v2998, 0
      %v3168 = vsel %vm3070, %v2999, 0
      %v3171 = vsel %vm3070, %v3000, 0
      %v3174 = vsel %vm3070, %v3001, 0
      %v3177 = vsel %vm3070, %v3002, 0
      %v3180 = vsel %vm3070, %v3003, 0
      %v3183 = vsel %vm3070, %v3004, 0
      %v3186 = vsel %vm3070, %v3005, 0
      %v3189 = vsel %vm3070, %v3006, 0
      %v3192 = vsel %vm3070, %v3007, 0
      %v3195 = vsel %vm3070, %v3008, 0
      %v3198 = vsel %vm3070, %v3009, 0
      %v3201 = vsel %vm3070, %v3010, 0
      %v3204 = vsel %vm3070, %v3011, 0
      %v3207 = vsel %vm3070, %v3012, 0
      %v3210 = vsel %vm3070, %v3013, 0
      %v3213 = vsel %vm3070, %v3014, 0
      %v3216 = vsel %vm3070, %v3015, 0
      %v3219 = vsel %vm3070, %v3016, 0
      %v3222 = vsel %vm3070, %v3017, 0
      %v3225 = vsel %vm3070, %v3018, 0
      %v3228 = vsel %vm3070, %v3019, 0
      %v3231 = vsel %vm3070, %v3020, 0
      %v3234 = vsel %vm3070, %v3021, 0
      %v3237 = vsel %vm3070, %v3022, 0
      %v3240 = vsel %vm3070, %v3023, 0
      %v3243 = vsel %vm3070, %v3024, 0
      %v3246 = vsel %vm3070, %v3025, 0
      %v3249 = vsel %vm3070, %v3026, 0
      %v3252 = vsel %vm3070, %v3027, 0
      %v3255 = vsel %vm3070, %v3028, 0
      %v3258 = vsel %vm3070, %v3029, 0
      %v3261 = vsel %vm3070, %v3030, 0
      %3263 = vmatprep.subr.bf16.mxu0 0
      %3264 = vmatpush1.bf16.msra.mxu0 0
      %3265 = vmatprep.subr.bf16.mxu0 0
      %3266 = vmatpush1.bf16.msra.mxu0 0
      %3267 = vmatprep.subr.bf16.mxu0 0
      %3268 = vmatpush1.bf16.msra.mxu0 0
      %3269 = vmatprep.subr.bf16.mxu0 0
      %3270 = vmatpush1.bf16.msra.mxu0 0
      %3271 = vmatprep.subr.bf16.mxu0 0
      %3272 = vmatpush1.bf16.msra.mxu0 %v3065
      %3273 = vmatprep.subr.bf16.mxu0 0
      %3274 = vmatpush1.bf16.msra.mxu0 %v3064
      %3275 = vmatprep.subr.bf16.mxu0 0
      %3276 = vmatpush1.bf16.msra.mxu0 %v3063
      %3277 = vmatprep.subr.bf16.mxu0 0
      %3278 = vmatpush1.bf16.msra.mxu0 %v3062
      %3279 = vmatprep.subr.bf16.mxu0 0
      %3280 = vmatpush2.bf16.msra.mxu0 0
      %3281 = vmatprep.subr.bf16.mxu0 0
      %3282 = vmatpush2.bf16.msra.mxu0 0
      %3283 = vmatprep.subr.bf16.mxu0 0
      %3284 = vmatpush2.bf16.msra.mxu0 0
      %3285 = vmatprep.subr.bf16.mxu0 0
      %3286 = vmatpush2.bf16.msra.mxu0 0
      %3287 = vmatprep.subr.bf16.mxu0 0
      %3288 = vmatpush2.bf16.msra.mxu0 0
      %3289 = vmatprep.subr.bf16.mxu0 0
      %3290 = vmatpush2.bf16.msra.mxu0 0
      %3291 = vmatprep.subr.bf16.mxu0 0
      %3292 = vmatpush2.bf16.msra.mxu0 0
      %3293 = vmatprep.subr.bf16.mxu0 0
      %3294 = vmatpush2.bf16.msra.mxu0 0
      %3295 = vmatprep.mubr.bf16.mxu0 0
      %3296 = vmatmul.mubr.bf16.gmra.mxu0 %v3072
      %v3297 = vpop.f32.mrf.mxu0
      %v3298 = vadd.f32 %v3044, %v3297
      %v3299 = vpop.f32.mrf.mxu0
      %v3300 = vpop.f32.mrf.mxu0
      %v3301 = vadd.f32 %v3044, %v3300
      %v3302 = vpop.f32.mrf.mxu0
      %3303 = vmatprep.mubr.bf16.mxu0 0
      %3304 = vmatmul.mubr.bf16.gmra.mxu0 %v3075
      %v3305 = vpop.f32.mrf.mxu0
      %v3306 = vadd.f32 %v3044, %v3305
      %v3307 = vpop.f32.mrf.mxu0
      %v3308 = vpop.f32.mrf.mxu0
      %v3309 = vadd.f32 %v3044, %v3308
      %v3310 = vpop.f32.mrf.mxu0
      %3311 = vmatprep.mubr.bf16.mxu0 0
      %3312 = vmatmul.mubr.bf16.gmra.mxu0 %v3078
      %v3313 = vpop.f32.mrf.mxu0
      %v3314 = vadd.f32 %v3044, %v3313
      %v3315 = vpop.f32.mrf.mxu0
      %v3316 = vpop.f32.mrf.mxu0
      %v3317 = vadd.f32 %v3044, %v3316
      %v3318 = vpop.f32.mrf.mxu0
      %3319 = vmatprep.mubr.bf16.mxu0 0
      %3320 = vmatmul.mubr.bf16.gmra.mxu0 %v3081
      %v3321 = vpop.f32.mrf.mxu0
      %v3322 = vadd.f32 %v3044, %v3321
      %v3323 = vpop.f32.mrf.mxu0
      %v3324 = vpop.f32.mrf.mxu0
      %v3325 = vadd.f32 %v3044, %v3324
      %v3326 = vpop.f32.mrf.mxu0
      %3327 = vmatprep.mubr.bf16.mxu0 0
      %3328 = vmatmul.mubr.bf16.gmra.mxu0 %v3084
      %v3329 = vpop.f32.mrf.mxu0
      %v3330 = vadd.f32 %v3044, %v3329
      %v3331 = vpop.f32.mrf.mxu0
      %v3332 = vpop.f32.mrf.mxu0
      %v3333 = vadd.f32 %v3044, %v3332
      %v3334 = vpop.f32.mrf.mxu0
      %3335 = vmatprep.mubr.bf16.mxu0 0
      %3336 = vmatmul.mubr.bf16.gmra.mxu0 %v3087
      %v3337 = vpop.f32.mrf.mxu0
      %v3338 = vadd.f32 %v3044, %v3337
      %v3339 = vpop.f32.mrf.mxu0
      %v3340 = vpop.f32.mrf.mxu0
      %v3341 = vadd.f32 %v3044, %v3340
      %v3342 = vpop.f32.mrf.mxu0
      %3343 = vmatprep.mubr.bf16.mxu0 0
      %3344 = vmatmul.mubr.bf16.gmra.mxu0 %v3090
      %v3345 = vpop.f32.mrf.mxu0
      %v3346 = vadd.f32 %v3044, %v3345
      %v3347 = vpop.f32.mrf.mxu0
      %v3348 = vpop.f32.mrf.mxu0
      %v3349 = vadd.f32 %v3044, %v3348
      %v3350 = vpop.f32.mrf.mxu0
      %3351 = vmatprep.mubr.bf16.mxu0 0
      %3352 = vmatmul.mubr.bf16.gmra.mxu0 %v3093
      %v3353 = vpop.f32.mrf.mxu0
      %v3354 = vadd.f32 %v3044, %v3353
      %v3355 = vpop.f32.mrf.mxu0
      %v3356 = vpop.f32.mrf.mxu0
      %v3357 = vadd.f32 %v3044, %v3356
      %v3358 = vpop.f32.mrf.mxu0
      %3359 = vmatprep.mubr.bf16.mxu0 0
      %3360 = vmatmul.mubr.bf16.gmra.mxu0 %v3096
      %v3361 = vpop.f32.mrf.mxu0
      %v3362 = vadd.f32 %v3044, %v3361
      %v3363 = vpop.f32.mrf.mxu0
      %v3364 = vpop.f32.mrf.mxu0
      %v3365 = vadd.f32 %v3044, %v3364
      %v3366 = vpop.f32.mrf.mxu0
      %3367 = vmatprep.mubr.bf16.mxu0 0
      %3368 = vmatmul.mubr.bf16.gmra.mxu0 %v3099
      %v3369 = vpop.f32.mrf.mxu0
      %v3370 = vadd.f32 %v3044, %v3369
      %v3371 = vpop.f32.mrf.mxu0
      %v3372 = vpop.f32.mrf.mxu0
      %v3373 = vadd.f32 %v3044, %v3372
      %v3374 = vpop.f32.mrf.mxu0
      %3375 = vmatprep.mubr.bf16.mxu0 0
      %3376 = vmatmul.mubr.bf16.gmra.mxu0 %v3102
      %v3377 = vpop.f32.mrf.mxu0
      %v3378 = vadd.f32 %v3044, %v3377
      %v3379 = vpop.f32.mrf.mxu0
      %v3380 = vpop.f32.mrf.mxu0
      %v3381 = vadd.f32 %v3044, %v3380
      %v3382 = vpop.f32.mrf.mxu0
      %3383 = vmatprep.mubr.bf16.mxu0 0
      %3384 = vmatmul.mubr.bf16.gmra.mxu0 %v3105
      %v3385 = vpop.f32.mrf.mxu0
      %v3386 = vadd.f32 %v3044, %v3385
      %v3387 = vpop.f32.mrf.mxu0
      %v3388 = vpop.f32.mrf.mxu0
      %v3389 = vadd.f32 %v3044, %v3388
      %v3390 = vpop.f32.mrf.mxu0
      %3391 = vmatprep.mubr.bf16.mxu0 0
      %3392 = vmatmul.mubr.bf16.gmra.mxu0 %v3108
      %v3393 = vpop.f32.mrf.mxu0
      %v3394 = vadd.f32 %v3044, %v3393
      %v3395 = vpop.f32.mrf.mxu0
      %v3396 = vpop.f32.mrf.mxu0
      %v3397 = vadd.f32 %v3044, %v3396
      %v3398 = vpop.f32.mrf.mxu0
      %3399 = vmatprep.mubr.bf16.mxu0 0
      %3400 = vmatmul.mubr.bf16.gmra.mxu0 %v3111
      %v3401 = vpop.f32.mrf.mxu0
      %v3402 = vadd.f32 %v3044, %v3401
      %v3403 = vpop.f32.mrf.mxu0
      %v3404 = vpop.f32.mrf.mxu0
      %v3405 = vadd.f32 %v3044, %v3404
      %v3406 = vpop.f32.mrf.mxu0
      %3407 = vmatprep.mubr.bf16.mxu0 0
      %3408 = vmatmul.mubr.bf16.gmra.mxu0 %v3114
      %v3409 = vpop.f32.mrf.mxu0
      %v3410 = vadd.f32 %v3044, %v3409
      %v3411 = vpop.f32.mrf.mxu0
      %v3412 = vpop.f32.mrf.mxu0
      %v3413 = vadd.f32 %v3044, %v3412
      %v3414 = vpop.f32.mrf.mxu0
      %3415 = vmatprep.mubr.bf16.mxu0 0
      %3416 = vmatmul.mubr.bf16.gmra.mxu0 %v3117
      %v3417 = vpop.f32.mrf.mxu0
      %v3418 = vadd.f32 %v3044, %v3417
      %v3419 = vpop.f32.mrf.mxu0
      %v3420 = vpop.f32.mrf.mxu0
      %v3421 = vadd.f32 %v3044, %v3420
      %v3422 = vpop.f32.mrf.mxu0
      %3423 = vmatprep.mubr.bf16.mxu0 0
      %3424 = vmatmul.mubr.bf16.gmra.mxu0 %v3120
      %v3425 = vpop.f32.mrf.mxu0
      %v3426 = vadd.f32 %v3044, %v3425
      %v3427 = vpop.f32.mrf.mxu0
      %v3428 = vpop.f32.mrf.mxu0
      %v3429 = vadd.f32 %v3044, %v3428
      %v3430 = vpop.f32.mrf.mxu0
      %3431 = vmatprep.mubr.bf16.mxu0 0
      %3432 = vmatmul.mubr.bf16.gmra.mxu0 %v3123
      %v3433 = vpop.f32.mrf.mxu0
      %v3434 = vadd.f32 %v3044, %v3433
      %v3435 = vpop.f32.mrf.mxu0
      %v3436 = vpop.f32.mrf.mxu0
      %v3437 = vadd.f32 %v3044, %v3436
      %v3438 = vpop.f32.mrf.mxu0
      %3439 = vmatprep.mubr.bf16.mxu0 0
      %3440 = vmatmul.mubr.bf16.gmra.mxu0 %v3126
      %v3441 = vpop.f32.mrf.mxu0
      %v3442 = vadd.f32 %v3044, %v3441
      %v3443 = vpop.f32.mrf.mxu0
      %v3444 = vpop.f32.mrf.mxu0
      %v3445 = vadd.f32 %v3044, %v3444
      %v3446 = vpop.f32.mrf.mxu0
      %3447 = vmatprep.mubr.bf16.mxu0 0
      %3448 = vmatmul.mubr.bf16.gmra.mxu0 %v3129
      %v3449 = vpop.f32.mrf.mxu0
      %v3450 = vadd.f32 %v3044, %v3449
      %v3451 = vpop.f32.mrf.mxu0
      %v3452 = vpop.f32.mrf.mxu0
      %v3453 = vadd.f32 %v3044, %v3452
      %v3454 = vpop.f32.mrf.mxu0
      %3455 = vmatprep.mubr.bf16.mxu0 0
      %3456 = vmatmul.mubr.bf16.gmra.mxu0 %v3132
      %v3457 = vpop.f32.mrf.mxu0
      %v3458 = vadd.f32 %v3044, %v3457
      %v3459 = vpop.f32.mrf.mxu0
      %v3460 = vpop.f32.mrf.mxu0
      %v3461 = vadd.f32 %v3044, %v3460
      %v3462 = vpop.f32.mrf.mxu0
      %3463 = vmatprep.mubr.bf16.mxu0 0
      %3464 = vmatmul.mubr.bf16.gmra.mxu0 %v3135
      %v3465 = vpop.f32.mrf.mxu0
      %v3466 = vadd.f32 %v3044, %v3465
      %v3467 = vpop.f32.mrf.mxu0
      %v3468 = vpop.f32.mrf.mxu0
      %v3469 = vadd.f32 %v3044, %v3468
      %v3470 = vpop.f32.mrf.mxu0
      %3471 = vmatprep.mubr.bf16.mxu0 0
      %3472 = vmatmul.mubr.bf16.gmra.mxu0 %v3138
      %v3473 = vpop.f32.mrf.mxu0
      %v3474 = vadd.f32 %v3044, %v3473
      %v3475 = vpop.f32.mrf.mxu0
      %v3476 = vpop.f32.mrf.mxu0
      %v3477 = vadd.f32 %v3044, %v3476
      %v3478 = vpop.f32.mrf.mxu0
      %3479 = vmatprep.mubr.bf16.mxu0 0
      %3480 = vmatmul.mubr.bf16.gmra.mxu0 %v3141
      %v3481 = vpop.f32.mrf.mxu0
      %v3482 = vadd.f32 %v3044, %v3481
      %v3483 = vpop.f32.mrf.mxu0
      %v3484 = vpop.f32.mrf.mxu0
      %v3485 = vadd.f32 %v3044, %v3484
      %v3486 = vpop.f32.mrf.mxu0
      %3487 = vmatprep.mubr.bf16.mxu0 0
      %3488 = vmatmul.mubr.bf16.gmra.mxu0 %v3144
      %v3489 = vpop.f32.mrf.mxu0
      %v3490 = vadd.f32 %v3044, %v3489
      %v3491 = vpop.f32.mrf.mxu0
      %v3492 = vpop.f32.mrf.mxu0
      %v3493 = vadd.f32 %v3044, %v3492
      %v3494 = vpop.f32.mrf.mxu0
      %3495 = vmatprep.mubr.bf16.mxu0 0
      %3496 = vmatmul.mubr.bf16.gmra.mxu0 %v3147
      %v3497 = vpop.f32.mrf.mxu0
      %v3498 = vadd.f32 %v3044, %v3497
      %v3499 = vpop.f32.mrf.mxu0
      %v3500 = vpop.f32.mrf.mxu0
      %v3501 = vadd.f32 %v3044, %v3500
      %v3502 = vpop.f32.mrf.mxu0
      %3503 = vmatprep.mubr.bf16.mxu0 0
      %3504 = vmatmul.mubr.bf16.gmra.mxu0 %v3150
      %v3505 = vpop.f32.mrf.mxu0
      %v3506 = vadd.f32 %v3044, %v3505
      %v3507 = vpop.f32.mrf.mxu0
      %v3508 = vpop.f32.mrf.mxu0
      %v3509 = vadd.f32 %v3044, %v3508
      %v3510 = vpop.f32.mrf.mxu0
      %3511 = vmatprep.mubr.bf16.mxu0 0
      %3512 = vmatmul.mubr.bf16.gmra.mxu0 %v3153
      %v3513 = vpop.f32.mrf.mxu0
      %v3514 = vadd.f32 %v3044, %v3513
      %v3515 = vpop.f32.mrf.mxu0
      %v3516 = vpop.f32.mrf.mxu0
      %v3517 = vadd.f32 %v3044, %v3516
      %v3518 = vpop.f32.mrf.mxu0
      %3519 = vmatprep.mubr.bf16.mxu0 0
      %3520 = vmatmul.mubr.bf16.gmra.mxu0 %v3156
      %v3521 = vpop.f32.mrf.mxu0
      %v3522 = vadd.f32 %v3044, %v3521
      %v3523 = vpop.f32.mrf.mxu0
      %v3524 = vpop.f32.mrf.mxu0
      %v3525 = vadd.f32 %v3044, %v3524
      %v3526 = vpop.f32.mrf.mxu0
      %3527 = vmatprep.mubr.bf16.mxu0 0
      %3528 = vmatmul.mubr.bf16.gmra.mxu0 %v3159
      %v3529 = vpop.f32.mrf.mxu0
      %v3530 = vadd.f32 %v3044, %v3529
      %v3531 = vpop.f32.mrf.mxu0
      %v3532 = vpop.f32.mrf.mxu0
      %v3533 = vadd.f32 %v3044, %v3532
      %v3534 = vpop.f32.mrf.mxu0
      %3535 = vmatprep.mubr.bf16.mxu0 0
      %3536 = vmatmul.mubr.bf16.gmra.mxu0 %v3162
      %v3537 = vpop.f32.mrf.mxu0
      %v3538 = vadd.f32 %v3044, %v3537
      %v3539 = vpop.f32.mrf.mxu0
      %v3540 = vpop.f32.mrf.mxu0
      %v3541 = vadd.f32 %v3044, %v3540
      %v3542 = vpop.f32.mrf.mxu0
      %3543 = vmatprep.mubr.bf16.mxu0 0
      %3544 = vmatmul.mubr.bf16.gmra.mxu0 %v3165
      %v3545 = vpop.f32.mrf.mxu0
      %v3546 = vadd.f32 %v3044, %v3545
      %v3547 = vpop.f32.mrf.mxu0
      %v3548 = vpop.f32.mrf.mxu0
      %v3549 = vadd.f32 %v3044, %v3548
      %v3550 = vpop.f32.mrf.mxu0
      %3551 = vmatprep.mubr.bf16.mxu0 0
      %3552 = vmatmul.mubr.bf16.gmra.mxu0 %v3168
      %v3553 = vpop.f32.mrf.mxu0
      %v3554 = vadd.f32 %v3044, %v3553
      %v3555 = vpop.f32.mrf.mxu0
      %v3556 = vpop.f32.mrf.mxu0
      %v3557 = vadd.f32 %v3044, %v3556
      %v3558 = vpop.f32.mrf.mxu0
      %3559 = vmatprep.mubr.bf16.mxu0 0
      %3560 = vmatmul.mubr.bf16.gmra.mxu0 %v3171
      %v3561 = vpop.f32.mrf.mxu0
      %v3562 = vadd.f32 %v3044, %v3561
      %v3563 = vpop.f32.mrf.mxu0
      %v3564 = vpop.f32.mrf.mxu0
      %v3565 = vadd.f32 %v3044, %v3564
      %v3566 = vpop.f32.mrf.mxu0
      %3567 = vmatprep.mubr.bf16.mxu0 0
      %3568 = vmatmul.mubr.bf16.gmra.mxu0 %v3174
      %v3569 = vpop.f32.mrf.mxu0
      %v3570 = vadd.f32 %v3044, %v3569
      %v3571 = vpop.f32.mrf.mxu0
      %v3572 = vpop.f32.mrf.mxu0
      %v3573 = vadd.f32 %v3044, %v3572
      %v3574 = vpop.f32.mrf.mxu0
      %3575 = vmatprep.mubr.bf16.mxu0 0
      %3576 = vmatmul.mubr.bf16.gmra.mxu0 %v3177
      %v3577 = vpop.f32.mrf.mxu0
      %v3578 = vadd.f32 %v3044, %v3577
      %v3579 = vpop.f32.mrf.mxu0
      %v3580 = vpop.f32.mrf.mxu0
      %v3581 = vadd.f32 %v3044, %v3580
      %v3582 = vpop.f32.mrf.mxu0
      %3583 = vmatprep.mubr.bf16.mxu0 0
      %3584 = vmatmul.mubr.bf16.gmra.mxu0 %v3180
      %v3585 = vpop.f32.mrf.mxu0
      %v3586 = vadd.f32 %v3044, %v3585
      %v3587 = vpop.f32.mrf.mxu0
      %v3588 = vpop.f32.mrf.mxu0
      %v3589 = vadd.f32 %v3044, %v3588
      %v3590 = vpop.f32.mrf.mxu0
      %3591 = vmatprep.mubr.bf16.mxu0 0
      %3592 = vmatmul.mubr.bf16.gmra.mxu0 %v3183
      %v3593 = vpop.f32.mrf.mxu0
      %v3594 = vadd.f32 %v3044, %v3593
      %v3595 = vpop.f32.mrf.mxu0
      %v3596 = vpop.f32.mrf.mxu0
      %v3597 = vadd.f32 %v3044, %v3596
      %v3598 = vpop.f32.mrf.mxu0
      %3599 = vmatprep.mubr.bf16.mxu0 0
      %3600 = vmatmul.mubr.bf16.gmra.mxu0 %v3186
      %v3601 = vpop.f32.mrf.mxu0
      %v3602 = vadd.f32 %v3044, %v3601
      %v3603 = vpop.f32.mrf.mxu0
      %v3604 = vpop.f32.mrf.mxu0
      %v3605 = vadd.f32 %v3044, %v3604
      %v3606 = vpop.f32.mrf.mxu0
      %3607 = vmatprep.mubr.bf16.mxu0 0
      %3608 = vmatmul.mubr.bf16.gmra.mxu0 %v3189
      %v3609 = vpop.f32.mrf.mxu0
      %v3610 = vadd.f32 %v3044, %v3609
      %v3611 = vpop.f32.mrf.mxu0
      %v3612 = vpop.f32.mrf.mxu0
      %v3613 = vadd.f32 %v3044, %v3612
      %v3614 = vpop.f32.mrf.mxu0
      %3615 = vmatprep.mubr.bf16.mxu0 0
      %3616 = vmatmul.mubr.bf16.gmra.mxu0 %v3192
      %v3617 = vpop.f32.mrf.mxu0
      %v3618 = vadd.f32 %v3044, %v3617
      %v3619 = vpop.f32.mrf.mxu0
      %v3620 = vpop.f32.mrf.mxu0
      %v3621 = vadd.f32 %v3044, %v3620
      %v3622 = vpop.f32.mrf.mxu0
      %3623 = vmatprep.mubr.bf16.mxu0 0
      %3624 = vmatmul.mubr.bf16.gmra.mxu0 %v3195
      %v3625 = vpop.f32.mrf.mxu0
      %v3626 = vadd.f32 %v3044, %v3625
      %v3627 = vpop.f32.mrf.mxu0
      %v3628 = vpop.f32.mrf.mxu0
      %v3629 = vadd.f32 %v3044, %v3628
      %v3630 = vpop.f32.mrf.mxu0
      %3631 = vmatprep.mubr.bf16.mxu0 0
      %3632 = vmatmul.mubr.bf16.gmra.mxu0 %v3198
      %v3633 = vpop.f32.mrf.mxu0
      %v3634 = vadd.f32 %v3044, %v3633
      %v3635 = vpop.f32.mrf.mxu0
      %v3636 = vpop.f32.mrf.mxu0
      %v3637 = vadd.f32 %v3044, %v3636
      %v3638 = vpop.f32.mrf.mxu0
      %3639 = vmatprep.mubr.bf16.mxu0 0
      %3640 = vmatmul.mubr.bf16.gmra.mxu0 %v3201
      %v3641 = vpop.f32.mrf.mxu0
      %v3642 = vadd.f32 %v3044, %v3641
      %v3643 = vpop.f32.mrf.mxu0
      %v3644 = vpop.f32.mrf.mxu0
      %v3645 = vadd.f32 %v3044, %v3644
      %v3646 = vpop.f32.mrf.mxu0
      %3647 = vmatprep.mubr.bf16.mxu0 0
      %3648 = vmatmul.mubr.bf16.gmra.mxu0 %v3204
      %v3649 = vpop.f32.mrf.mxu0
      %v3650 = vadd.f32 %v3044, %v3649
      %v3651 = vpop.f32.mrf.mxu0
      %v3652 = vpop.f32.mrf.mxu0
      %v3653 = vadd.f32 %v3044, %v3652
      %v3654 = vpop.f32.mrf.mxu0
      %3655 = vmatprep.mubr.bf16.mxu0 0
      %3656 = vmatmul.mubr.bf16.gmra.mxu0 %v3207
      %v3657 = vpop.f32.mrf.mxu0
      %v3658 = vadd.f32 %v3044, %v3657
      %v3659 = vpop.f32.mrf.mxu0
      %v3660 = vpop.f32.mrf.mxu0
      %v3661 = vadd.f32 %v3044, %v3660
      %v3662 = vpop.f32.mrf.mxu0
      %3663 = vmatprep.mubr.bf16.mxu0 0
      %3664 = vmatmul.mubr.bf16.gmra.mxu0 %v3210
      %v3665 = vpop.f32.mrf.mxu0
      %v3666 = vadd.f32 %v3044, %v3665
      %v3667 = vpop.f32.mrf.mxu0
      %v3668 = vpop.f32.mrf.mxu0
      %v3669 = vadd.f32 %v3044, %v3668
      %v3670 = vpop.f32.mrf.mxu0
      %3671 = vmatprep.mubr.bf16.mxu0 0
      %3672 = vmatmul.mubr.bf16.gmra.mxu0 %v3213
      %v3673 = vpop.f32.mrf.mxu0
      %v3674 = vadd.f32 %v3044, %v3673
      %v3675 = vpop.f32.mrf.mxu0
      %v3676 = vpop.f32.mrf.mxu0
      %v3677 = vadd.f32 %v3044, %v3676
      %v3678 = vpop.f32.mrf.mxu0
      %3679 = vmatprep.mubr.bf16.mxu0 0
      %3680 = vmatmul.mubr.bf16.gmra.mxu0 %v3216
      %v3681 = vpop.f32.mrf.mxu0
      %v3682 = vadd.f32 %v3044, %v3681
      %v3683 = vpop.f32.mrf.mxu0
      %v3684 = vpop.f32.mrf.mxu0
      %v3685 = vadd.f32 %v3044, %v3684
      %v3686 = vpop.f32.mrf.mxu0
      %3687 = vmatprep.mubr.bf16.mxu0 0
      %3688 = vmatmul.mubr.bf16.gmra.mxu0 %v3219
      %v3689 = vpop.f32.mrf.mxu0
      %v3690 = vadd.f32 %v3044, %v3689
      %v3691 = vpop.f32.mrf.mxu0
      %v3692 = vpop.f32.mrf.mxu0
      %v3693 = vadd.f32 %v3044, %v3692
      %v3694 = vpop.f32.mrf.mxu0
      %3695 = vmatprep.mubr.bf16.mxu0 0
      %3696 = vmatmul.mubr.bf16.gmra.mxu0 %v3222
      %v3697 = vpop.f32.mrf.mxu0
      %v3698 = vadd.f32 %v3044, %v3697
      %v3699 = vpop.f32.mrf.mxu0
      %v3700 = vpop.f32.mrf.mxu0
      %v3701 = vadd.f32 %v3044, %v3700
      %v3702 = vpop.f32.mrf.mxu0
      %3703 = vmatprep.mubr.bf16.mxu0 0
      %3704 = vmatmul.mubr.bf16.gmra.mxu0 %v3225
      %v3705 = vpop.f32.mrf.mxu0
      %v3706 = vadd.f32 %v3044, %v3705
      %v3707 = vpop.f32.mrf.mxu0
      %v3708 = vpop.f32.mrf.mxu0
      %v3709 = vadd.f32 %v3044, %v3708
      %v3710 = vpop.f32.mrf.mxu0
      %3711 = vmatprep.mubr.bf16.mxu0 0
      %3712 = vmatmul.mubr.bf16.gmra.mxu0 %v3228
      %v3713 = vpop.f32.mrf.mxu0
      %v3714 = vadd.f32 %v3044, %v3713
      %v3715 = vpop.f32.mrf.mxu0
      %v3716 = vpop.f32.mrf.mxu0
      %v3717 = vadd.f32 %v3044, %v3716
      %v3718 = vpop.f32.mrf.mxu0
      %3719 = vmatprep.mubr.bf16.mxu0 0
      %3720 = vmatmul.mubr.bf16.gmra.mxu0 %v3231
      %v3721 = vpop.f32.mrf.mxu0
      %v3722 = vadd.f32 %v3044, %v3721
      %v3723 = vpop.f32.mrf.mxu0
      %v3724 = vpop.f32.mrf.mxu0
      %v3725 = vadd.f32 %v3044, %v3724
      %v3726 = vpop.f32.mrf.mxu0
      %3727 = vmatprep.mubr.bf16.mxu0 0
      %3728 = vmatmul.mubr.bf16.gmra.mxu0 %v3234
      %v3729 = vpop.f32.mrf.mxu0
      %v3730 = vadd.f32 %v3044, %v3729
      %v3731 = vpop.f32.mrf.mxu0
      %v3732 = vpop.f32.mrf.mxu0
      %v3733 = vadd.f32 %v3044, %v3732
      %v3734 = vpop.f32.mrf.mxu0
      %3735 = vmatprep.mubr.bf16.mxu0 0
      %3736 = vmatmul.mubr.bf16.gmra.mxu0 %v3237
      %v3737 = vpop.f32.mrf.mxu0
      %v3738 = vadd.f32 %v3044, %v3737
      %v3739 = vpop.f32.mrf.mxu0
      %v3740 = vpop.f32.mrf.mxu0
      %v3741 = vadd.f32 %v3044, %v3740
      %v3742 = vpop.f32.mrf.mxu0
      %3743 = vmatprep.mubr.bf16.mxu0 0
      %3744 = vmatmul.mubr.bf16.gmra.mxu0 %v3240
      %v3745 = vpop.f32.mrf.mxu0
      %v3746 = vadd.f32 %v3044, %v3745
      %v3747 = vpop.f32.mrf.mxu0
      %v3748 = vpop.f32.mrf.mxu0
      %v3749 = vadd.f32 %v3044, %v3748
      %v3750 = vpop.f32.mrf.mxu0
      %3751 = vmatprep.mubr.bf16.mxu0 0
      %3752 = vmatmul.mubr.bf16.gmra.mxu0 %v3243
      %v3753 = vpop.f32.mrf.mxu0
      %v3754 = vadd.f32 %v3044, %v3753
      %v3755 = vpop.f32.mrf.mxu0
      %v3756 = vpop.f32.mrf.mxu0
      %v3757 = vadd.f32 %v3044, %v3756
      %v3758 = vpop.f32.mrf.mxu0
      %3759 = vmatprep.mubr.bf16.mxu0 0
      %3760 = vmatmul.mubr.bf16.gmra.mxu0 %v3246
      %v3761 = vpop.f32.mrf.mxu0
      %v3762 = vadd.f32 %v3044, %v3761
      %v3763 = vpop.f32.mrf.mxu0
      %v3764 = vpop.f32.mrf.mxu0
      %v3765 = vadd.f32 %v3044, %v3764
      %v3766 = vpop.f32.mrf.mxu0
      %3767 = vmatprep.mubr.bf16.mxu0 0
      %3768 = vmatmul.mubr.bf16.gmra.mxu0 %v3249
      %v3769 = vpop.f32.mrf.mxu0
      %v3770 = vadd.f32 %v3044, %v3769
      %v3771 = vpop.f32.mrf.mxu0
      %v3772 = vpop.f32.mrf.mxu0
      %v3773 = vadd.f32 %v3044, %v3772
      %v3774 = vpop.f32.mrf.mxu0
      %3775 = vmatprep.mubr.bf16.mxu0 0
      %3776 = vmatmul.mubr.bf16.gmra.mxu0 %v3252
      %v3777 = vpop.f32.mrf.mxu0
      %v3778 = vadd.f32 %v3044, %v3777
      %v3779 = vpop.f32.mrf.mxu0
      %v3780 = vpop.f32.mrf.mxu0
      %v3781 = vadd.f32 %v3044, %v3780
      %v3782 = vpop.f32.mrf.mxu0
      %3783 = vmatprep.mubr.bf16.mxu0 0
      %3784 = vmatmul.mubr.bf16.gmra.mxu0 %v3255
      %v3785 = vpop.f32.mrf.mxu0
      %v3786 = vadd.f32 %v3044, %v3785
      %v3787 = vpop.f32.mrf.mxu0
      %v3788 = vpop.f32.mrf.mxu0
      %v3789 = vadd.f32 %v3044, %v3788
      %v3790 = vpop.f32.mrf.mxu0
      %3791 = vmatprep.mubr.bf16.mxu0 0
      %3792 = vmatmul.mubr.bf16.gmra.mxu0 %v3258
      %v3793 = vpop.f32.mrf.mxu0
      %v3794 = vadd.f32 %v3044, %v3793
      %v3795 = vpop.f32.mrf.mxu0
      %v3796 = vpop.f32.mrf.mxu0
      %v3797 = vadd.f32 %v3044, %v3796
      %v3798 = vpop.f32.mrf.mxu0
      %3799 = vmatprep.mubr.bf16.mxu0 0
      %3800 = vmatmul.mubr.bf16.gmra.mxu0 %v3261
      %v3801 = vpop.f32.mrf.mxu0
      %v3802 = vadd.f32 %v3044, %v3801
      %v3803 = vpop.f32.mrf.mxu0
      %v3804 = vpop.f32.mrf.mxu0
      %v3805 = vadd.f32 %v3044, %v3804
      %v3806 = vpop.f32.mrf.mxu0
      %3807 = vdwg.mxu0
      %v3808 = vmax.f32 %v3298, %v3301
      %v3809 = vrot.slane %v3808, 4
      %v3810 = vmax.f32 %v3808, %v3809
      %v3811 = vrot.slane %v3810, 2
      %v3812 = vmax.f32 %v3810, %v3811
      %v3813 = vrot.slane %v3812, 1
      %v3814 = vmax.f32 %v3812, %v3813
      %v3815 = vmax.f32 %v3306, %v3309
      %v3816 = vrot.slane %v3815, 4
      %v3817 = vmax.f32 %v3815, %v3816
      %v3818 = vrot.slane %v3817, 2
      %v3819 = vmax.f32 %v3817, %v3818
      %v3820 = vrot.slane %v3819, 1
      %v3821 = vmax.f32 %v3819, %v3820
      %v3822 = vmax.f32 %v3314, %v3317
      %v3823 = vrot.slane %v3822, 4
      %v3824 = vmax.f32 %v3822, %v3823
      %v3825 = vrot.slane %v3824, 2
      %v3826 = vmax.f32 %v3824, %v3825
      %v3827 = vrot.slane %v3826, 1
      %v3828 = vmax.f32 %v3826, %v3827
      %v3829 = vmax.f32 %v3322, %v3325
      %v3830 = vrot.slane %v3829, 4
      %v3831 = vmax.f32 %v3829, %v3830
      %v3832 = vrot.slane %v3831, 2
      %v3833 = vmax.f32 %v3831, %v3832
      %v3834 = vrot.slane %v3833, 1
      %v3835 = vmax.f32 %v3833, %v3834
      %v3836 = vmax.f32 %v3330, %v3333
      %v3837 = vrot.slane %v3836, 4
      %v3838 = vmax.f32 %v3836, %v3837
      %v3839 = vrot.slane %v3838, 2
      %v3840 = vmax.f32 %v3838, %v3839
      %v3841 = vrot.slane %v3840, 1
      %v3842 = vmax.f32 %v3840, %v3841
      %v3843 = vmax.f32 %v3338, %v3341
      %v3844 = vrot.slane %v3843, 4
      %v3845 = vmax.f32 %v3843, %v3844
      %v3846 = vrot.slane %v3845, 2
      %v3847 = vmax.f32 %v3845, %v3846
      %v3848 = vrot.slane %v3847, 1
      %v3849 = vmax.f32 %v3847, %v3848
      %v3850 = vmax.f32 %v3346, %v3349
      %v3851 = vrot.slane %v3850, 4
      %v3852 = vmax.f32 %v3850, %v3851
      %v3853 = vrot.slane %v3852, 2
      %v3854 = vmax.f32 %v3852, %v3853
      %v3855 = vrot.slane %v3854, 1
      %v3856 = vmax.f32 %v3854, %v3855
      %v3857 = vmax.f32 %v3354, %v3357
      %v3858 = vrot.slane %v3857, 4
      %v3859 = vmax.f32 %v3857, %v3858
      %v3860 = vrot.slane %v3859, 2
      %v3861 = vmax.f32 %v3859, %v3860
      %v3862 = vrot.slane %v3861, 1
      %v3863 = vmax.f32 %v3861, %v3862
      %v3864 = vmax.f32 %v3362, %v3365
      %v3865 = vrot.slane %v3864, 4
      %v3866 = vmax.f32 %v3864, %v3865
      %v3867 = vrot.slane %v3866, 2
      %v3868 = vmax.f32 %v3866, %v3867
      %v3869 = vrot.slane %v3868, 1
      %v3870 = vmax.f32 %v3868, %v3869
      %v3871 = vmax.f32 %v3370, %v3373
      %v3872 = vrot.slane %v3871, 4
      %v3873 = vmax.f32 %v3871, %v3872
      %v3874 = vrot.slane %v3873, 2
      %v3875 = vmax.f32 %v3873, %v3874
      %v3876 = vrot.slane %v3875, 1
      %v3877 = vmax.f32 %v3875, %v3876
      %v3878 = vmax.f32 %v3378, %v3381
      %v3879 = vrot.slane %v3878, 4
      %v3880 = vmax.f32 %v3878, %v3879
      %v3881 = vrot.slane %v3880, 2
      %v3882 = vmax.f32 %v3880, %v3881
      %v3883 = vrot.slane %v3882, 1
      %v3884 = vmax.f32 %v3882, %v3883
      %v3885 = vmax.f32 %v3386, %v3389
      %v3886 = vrot.slane %v3885, 4
      %v3887 = vmax.f32 %v3885, %v3886
      %v3888 = vrot.slane %v3887, 2
      %v3889 = vmax.f32 %v3887, %v3888
      %v3890 = vrot.slane %v3889, 1
      %v3891 = vmax.f32 %v3889, %v3890
      %v3892 = vmax.f32 %v3394, %v3397
      %v3893 = vrot.slane %v3892, 4
      %v3894 = vmax.f32 %v3892, %v3893
      %v3895 = vrot.slane %v3894, 2
      %v3896 = vmax.f32 %v3894, %v3895
      %v3897 = vrot.slane %v3896, 1
      %v3898 = vmax.f32 %v3896, %v3897
      %v3899 = vmax.f32 %v3402, %v3405
      %v3900 = vrot.slane %v3899, 4
      %v3901 = vmax.f32 %v3899, %v3900
      %v3902 = vrot.slane %v3901, 2
      %v3903 = vmax.f32 %v3901, %v3902
      %v3904 = vrot.slane %v3903, 1
      %v3905 = vmax.f32 %v3903, %v3904
      %v3906 = vmax.f32 %v3410, %v3413
      %v3907 = vrot.slane %v3906, 4
      %v3908 = vmax.f32 %v3906, %v3907
      %v3909 = vrot.slane %v3908, 2
      %v3910 = vmax.f32 %v3908, %v3909
      %v3911 = vrot.slane %v3910, 1
      %v3912 = vmax.f32 %v3910, %v3911
      %v3913 = vmax.f32 %v3418, %v3421
      %v3914 = vrot.slane %v3913, 4
      %v3915 = vmax.f32 %v3913, %v3914
      %v3916 = vrot.slane %v3915, 2
      %v3917 = vmax.f32 %v3915, %v3916
      %v3918 = vrot.slane %v3917, 1
      %v3919 = vmax.f32 %v3917, %v3918
      %v3920 = vmax.f32 %v3426, %v3429
      %v3921 = vrot.slane %v3920, 4
      %v3922 = vmax.f32 %v3920, %v3921
      %v3923 = vrot.slane %v3922, 2
      %v3924 = vmax.f32 %v3922, %v3923
      %v3925 = vrot.slane %v3924, 1
      %v3926 = vmax.f32 %v3924, %v3925
      %v3927 = vmax.f32 %v3434, %v3437
      %v3928 = vrot.slane %v3927, 4
      %v3929 = vmax.f32 %v3927, %v3928
      %v3930 = vrot.slane %v3929, 2
      %v3931 = vmax.f32 %v3929, %v3930
      %v3932 = vrot.slane %v3931, 1
      %v3933 = vmax.f32 %v3931, %v3932
      %v3934 = vmax.f32 %v3442, %v3445
      %v3935 = vrot.slane %v3934, 4
      %v3936 = vmax.f32 %v3934, %v3935
      %v3937 = vrot.slane %v3936, 2
      %v3938 = vmax.f32 %v3936, %v3937
      %v3939 = vrot.slane %v3938, 1
      %v3940 = vmax.f32 %v3938, %v3939
      %v3941 = vmax.f32 %v3450, %v3453
      %v3942 = vrot.slane %v3941, 4
      %v3943 = vmax.f32 %v3941, %v3942
      %v3944 = vrot.slane %v3943, 2
      %v3945 = vmax.f32 %v3943, %v3944
      %v3946 = vrot.slane %v3945, 1
      %v3947 = vmax.f32 %v3945, %v3946
      %v3948 = vmax.f32 %v3458, %v3461
      %v3949 = vrot.slane %v3948, 4
      %v3950 = vmax.f32 %v3948, %v3949
      %v3951 = vrot.slane %v3950, 2
      %v3952 = vmax.f32 %v3950, %v3951
      %v3953 = vrot.slane %v3952, 1
      %v3954 = vmax.f32 %v3952, %v3953
      %v3955 = vmax.f32 %v3466, %v3469
      %v3956 = vrot.slane %v3955, 4
      %v3957 = vmax.f32 %v3955, %v3956
      %v3958 = vrot.slane %v3957, 2
      %v3959 = vmax.f32 %v3957, %v3958
      %v3960 = vrot.slane %v3959, 1
      %v3961 = vmax.f32 %v3959, %v3960
      %v3962 = vmax.f32 %v3474, %v3477
      %v3963 = vrot.slane %v3962, 4
      %v3964 = vmax.f32 %v3962, %v3963
      %v3965 = vrot.slane %v3964, 2
      %v3966 = vmax.f32 %v3964, %v3965
      %v3967 = vrot.slane %v3966, 1
      %v3968 = vmax.f32 %v3966, %v3967
      %v3969 = vmax.f32 %v3482, %v3485
      %v3970 = vrot.slane %v3969, 4
      %v3971 = vmax.f32 %v3969, %v3970
      %v3972 = vrot.slane %v3971, 2
      %v3973 = vmax.f32 %v3971, %v3972
      %v3974 = vrot.slane %v3973, 1
      %v3975 = vmax.f32 %v3973, %v3974
      %v3976 = vmax.f32 %v3490, %v3493
      %v3977 = vrot.slane %v3976, 4
      %v3978 = vmax.f32 %v3976, %v3977
      %v3979 = vrot.slane %v3978, 2
      %v3980 = vmax.f32 %v3978, %v3979
      %v3981 = vrot.slane %v3980, 1
      %v3982 = vmax.f32 %v3980, %v3981
      %v3983 = vmax.f32 %v3498, %v3501
      %v3984 = vrot.slane %v3983, 4
      %v3985 = vmax.f32 %v3983, %v3984
      %v3986 = vrot.slane %v3985, 2
      %v3987 = vmax.f32 %v3985, %v3986
      %v3988 = vrot.slane %v3987, 1
      %v3989 = vmax.f32 %v3987, %v3988
      %v3990 = vmax.f32 %v3506, %v3509
      %v3991 = vrot.slane %v3990, 4
      %v3992 = vmax.f32 %v3990, %v3991
      %v3993 = vrot.slane %v3992, 2
      %v3994 = vmax.f32 %v3992, %v3993
      %v3995 = vrot.slane %v3994, 1
      %v3996 = vmax.f32 %v3994, %v3995
      %v3997 = vmax.f32 %v3514, %v3517
      %v3998 = vrot.slane %v3997, 4
      %v3999 = vmax.f32 %v3997, %v3998
      %v4000 = vrot.slane %v3999, 2
      %v4001 = vmax.f32 %v3999, %v4000
      %v4002 = vrot.slane %v4001, 1
      %v4003 = vmax.f32 %v4001, %v4002
      %v4004 = vmax.f32 %v3522, %v3525
      %v4005 = vrot.slane %v4004, 4
      %v4006 = vmax.f32 %v4004, %v4005
      %v4007 = vrot.slane %v4006, 2
      %v4008 = vmax.f32 %v4006, %v4007
      %v4009 = vrot.slane %v4008, 1
      %v4010 = vmax.f32 %v4008, %v4009
      %v4011 = vmax.f32 %v3530, %v3533
      %v4012 = vrot.slane %v4011, 4
      %v4013 = vmax.f32 %v4011, %v4012
      %v4014 = vrot.slane %v4013, 2
      %v4015 = vmax.f32 %v4013, %v4014
      %v4016 = vrot.slane %v4015, 1
      %v4017 = vmax.f32 %v4015, %v4016
      %v4018 = vmax.f32 %v3538, %v3541
      %v4019 = vrot.slane %v4018, 4
      %v4020 = vmax.f32 %v4018, %v4019
      %v4021 = vrot.slane %v4020, 2
      %v4022 = vmax.f32 %v4020, %v4021
      %v4023 = vrot.slane %v4022, 1
      %v4024 = vmax.f32 %v4022, %v4023
      %v4025 = vmax.f32 %v3546, %v3549
      %v4026 = vrot.slane %v4025, 4
      %v4027 = vmax.f32 %v4025, %v4026
      %v4028 = vrot.slane %v4027, 2
      %v4029 = vmax.f32 %v4027, %v4028
      %v4030 = vrot.slane %v4029, 1
      %v4031 = vmax.f32 %v4029, %v4030
      %v4032 = vmax.f32 %v3554, %v3557
      %v4033 = vrot.slane %v4032, 4
      %v4034 = vmax.f32 %v4032, %v4033
      %v4035 = vrot.slane %v4034, 2
      %v4036 = vmax.f32 %v4034, %v4035
      %v4037 = vrot.slane %v4036, 1
      %v4038 = vmax.f32 %v4036, %v4037
      %v4039 = vmax.f32 %v3562, %v3565
      %v4040 = vrot.slane %v4039, 4
      %v4041 = vmax.f32 %v4039, %v4040
      %v4042 = vrot.slane %v4041, 2
      %v4043 = vmax.f32 %v4041, %v4042
      %v4044 = vrot.slane %v4043, 1
      %v4045 = vmax.f32 %v4043, %v4044
      %v4046 = vmax.f32 %v3570, %v3573
      %v4047 = vrot.slane %v4046, 4
      %v4048 = vmax.f32 %v4046, %v4047
      %v4049 = vrot.slane %v4048, 2
      %v4050 = vmax.f32 %v4048, %v4049
      %v4051 = vrot.slane %v4050, 1
      %v4052 = vmax.f32 %v4050, %v4051
      %v4053 = vmax.f32 %v3578, %v3581
      %v4054 = vrot.slane %v4053, 4
      %v4055 = vmax.f32 %v4053, %v4054
      %v4056 = vrot.slane %v4055, 2
      %v4057 = vmax.f32 %v4055, %v4056
      %v4058 = vrot.slane %v4057, 1
      %v4059 = vmax.f32 %v4057, %v4058
      %v4060 = vmax.f32 %v3586, %v3589
      %v4061 = vrot.slane %v4060, 4
      %v4062 = vmax.f32 %v4060, %v4061
      %v4063 = vrot.slane %v4062, 2
      %v4064 = vmax.f32 %v4062, %v4063
      %v4065 = vrot.slane %v4064, 1
      %v4066 = vmax.f32 %v4064, %v4065
      %v4067 = vmax.f32 %v3594, %v3597
      %v4068 = vrot.slane %v4067, 4
      %v4069 = vmax.f32 %v4067, %v4068
      %v4070 = vrot.slane %v4069, 2
      %v4071 = vmax.f32 %v4069, %v4070
      %v4072 = vrot.slane %v4071, 1
      %v4073 = vmax.f32 %v4071, %v4072
      %v4074 = vmax.f32 %v3602, %v3605
      %v4075 = vrot.slane %v4074, 4
      %v4076 = vmax.f32 %v4074, %v4075
      %v4077 = vrot.slane %v4076, 2
      %v4078 = vmax.f32 %v4076, %v4077
      %v4079 = vrot.slane %v4078, 1
      %v4080 = vmax.f32 %v4078, %v4079
      %v4081 = vmax.f32 %v3610, %v3613
      %v4082 = vrot.slane %v4081, 4
      %v4083 = vmax.f32 %v4081, %v4082
      %v4084 = vrot.slane %v4083, 2
      %v4085 = vmax.f32 %v4083, %v4084
      %v4086 = vrot.slane %v4085, 1
      %v4087 = vmax.f32 %v4085, %v4086
      %v4088 = vmax.f32 %v3618, %v3621
      %v4089 = vrot.slane %v4088, 4
      %v4090 = vmax.f32 %v4088, %v4089
      %v4091 = vrot.slane %v4090, 2
      %v4092 = vmax.f32 %v4090, %v4091
      %v4093 = vrot.slane %v4092, 1
      %v4094 = vmax.f32 %v4092, %v4093
      %v4095 = vmax.f32 %v3626, %v3629
      %v4096 = vrot.slane %v4095, 4
      %v4097 = vmax.f32 %v4095, %v4096
      %v4098 = vrot.slane %v4097, 2
      %v4099 = vmax.f32 %v4097, %v4098
      %v4100 = vrot.slane %v4099, 1
      %v4101 = vmax.f32 %v4099, %v4100
      %v4102 = vmax.f32 %v3634, %v3637
      %v4103 = vrot.slane %v4102, 4
      %v4104 = vmax.f32 %v4102, %v4103
      %v4105 = vrot.slane %v4104, 2
      %v4106 = vmax.f32 %v4104, %v4105
      %v4107 = vrot.slane %v4106, 1
      %v4108 = vmax.f32 %v4106, %v4107
      %v4109 = vmax.f32 %v3642, %v3645
      %v4110 = vrot.slane %v4109, 4
      %v4111 = vmax.f32 %v4109, %v4110
      %v4112 = vrot.slane %v4111, 2
      %v4113 = vmax.f32 %v4111, %v4112
      %v4114 = vrot.slane %v4113, 1
      %v4115 = vmax.f32 %v4113, %v4114
      %v4116 = vmax.f32 %v3650, %v3653
      %v4117 = vrot.slane %v4116, 4
      %v4118 = vmax.f32 %v4116, %v4117
      %v4119 = vrot.slane %v4118, 2
      %v4120 = vmax.f32 %v4118, %v4119
      %v4121 = vrot.slane %v4120, 1
      %v4122 = vmax.f32 %v4120, %v4121
      %v4123 = vmax.f32 %v3658, %v3661
      %v4124 = vrot.slane %v4123, 4
      %v4125 = vmax.f32 %v4123, %v4124
      %v4126 = vrot.slane %v4125, 2
      %v4127 = vmax.f32 %v4125, %v4126
      %v4128 = vrot.slane %v4127, 1
      %v4129 = vmax.f32 %v4127, %v4128
      %v4130 = vmax.f32 %v3666, %v3669
      %v4131 = vrot.slane %v4130, 4
      %v4132 = vmax.f32 %v4130, %v4131
      %v4133 = vrot.slane %v4132, 2
      %v4134 = vmax.f32 %v4132, %v4133
      %v4135 = vrot.slane %v4134, 1
      %v4136 = vmax.f32 %v4134, %v4135
      %v4137 = vmax.f32 %v3674, %v3677
      %v4138 = vrot.slane %v4137, 4
      %v4139 = vmax.f32 %v4137, %v4138
      %v4140 = vrot.slane %v4139, 2
      %v4141 = vmax.f32 %v4139, %v4140
      %v4142 = vrot.slane %v4141, 1
      %v4143 = vmax.f32 %v4141, %v4142
      %v4144 = vmax.f32 %v3682, %v3685
      %v4145 = vrot.slane %v4144, 4
      %v4146 = vmax.f32 %v4144, %v4145
      %v4147 = vrot.slane %v4146, 2
      %v4148 = vmax.f32 %v4146, %v4147
      %v4149 = vrot.slane %v4148, 1
      %v4150 = vmax.f32 %v4148, %v4149
      %v4151 = vmax.f32 %v3690, %v3693
      %v4152 = vrot.slane %v4151, 4
      %v4153 = vmax.f32 %v4151, %v4152
      %v4154 = vrot.slane %v4153, 2
      %v4155 = vmax.f32 %v4153, %v4154
      %v4156 = vrot.slane %v4155, 1
      %v4157 = vmax.f32 %v4155, %v4156
      %v4158 = vmax.f32 %v3698, %v3701
      %v4159 = vrot.slane %v4158, 4
      %v4160 = vmax.f32 %v4158, %v4159
      %v4161 = vrot.slane %v4160, 2
      %v4162 = vmax.f32 %v4160, %v4161
      %v4163 = vrot.slane %v4162, 1
      %v4164 = vmax.f32 %v4162, %v4163
      %v4165 = vmax.f32 %v3706, %v3709
      %v4166 = vrot.slane %v4165, 4
      %v4167 = vmax.f32 %v4165, %v4166
      %v4168 = vrot.slane %v4167, 2
      %v4169 = vmax.f32 %v4167, %v4168
      %v4170 = vrot.slane %v4169, 1
      %v4171 = vmax.f32 %v4169, %v4170
      %v4172 = vmax.f32 %v3714, %v3717
      %v4173 = vrot.slane %v4172, 4
      %v4174 = vmax.f32 %v4172, %v4173
      %v4175 = vrot.slane %v4174, 2
      %v4176 = vmax.f32 %v4174, %v4175
      %v4177 = vrot.slane %v4176, 1
      %v4178 = vmax.f32 %v4176, %v4177
      %v4179 = vmax.f32 %v3722, %v3725
      %v4180 = vrot.slane %v4179, 4
      %v4181 = vmax.f32 %v4179, %v4180
      %v4182 = vrot.slane %v4181, 2
      %v4183 = vmax.f32 %v4181, %v4182
      %v4184 = vrot.slane %v4183, 1
      %v4185 = vmax.f32 %v4183, %v4184
      %v4186 = vmax.f32 %v3730, %v3733
      %v4187 = vrot.slane %v4186, 4
      %v4188 = vmax.f32 %v4186, %v4187
      %v4189 = vrot.slane %v4188, 2
      %v4190 = vmax.f32 %v4188, %v4189
      %v4191 = vrot.slane %v4190, 1
      %v4192 = vmax.f32 %v4190, %v4191
      %v4193 = vmax.f32 %v3738, %v3741
      %v4194 = vrot.slane %v4193, 4
      %v4195 = vmax.f32 %v4193, %v4194
      %v4196 = vrot.slane %v4195, 2
      %v4197 = vmax.f32 %v4195, %v4196
      %v4198 = vrot.slane %v4197, 1
      %v4199 = vmax.f32 %v4197, %v4198
      %v4200 = vmax.f32 %v3746, %v3749
      %v4201 = vrot.slane %v4200, 4
      %v4202 = vmax.f32 %v4200, %v4201
      %v4203 = vrot.slane %v4202, 2
      %v4204 = vmax.f32 %v4202, %v4203
      %v4205 = vrot.slane %v4204, 1
      %v4206 = vmax.f32 %v4204, %v4205
      %v4207 = vmax.f32 %v3754, %v3757
      %v4208 = vrot.slane %v4207, 4
      %v4209 = vmax.f32 %v4207, %v4208
      %v4210 = vrot.slane %v4209, 2
      %v4211 = vmax.f32 %v4209, %v4210
      %v4212 = vrot.slane %v4211, 1
      %v4213 = vmax.f32 %v4211, %v4212
      %v4214 = vmax.f32 %v3762, %v3765
      %v4215 = vrot.slane %v4214, 4
      %v4216 = vmax.f32 %v4214, %v4215
      %v4217 = vrot.slane %v4216, 2
      %v4218 = vmax.f32 %v4216, %v4217
      %v4219 = vrot.slane %v4218, 1
      %v4220 = vmax.f32 %v4218, %v4219
      %v4221 = vmax.f32 %v3770, %v3773
      %v4222 = vrot.slane %v4221, 4
      %v4223 = vmax.f32 %v4221, %v4222
      %v4224 = vrot.slane %v4223, 2
      %v4225 = vmax.f32 %v4223, %v4224
      %v4226 = vrot.slane %v4225, 1
      %v4227 = vmax.f32 %v4225, %v4226
      %v4228 = vmax.f32 %v3778, %v3781
      %v4229 = vrot.slane %v4228, 4
      %v4230 = vmax.f32 %v4228, %v4229
      %v4231 = vrot.slane %v4230, 2
      %v4232 = vmax.f32 %v4230, %v4231
      %v4233 = vrot.slane %v4232, 1
      %v4234 = vmax.f32 %v4232, %v4233
      %v4235 = vmax.f32 %v3786, %v3789
      %v4236 = vrot.slane %v4235, 4
      %v4237 = vmax.f32 %v4235, %v4236
      %v4238 = vrot.slane %v4237, 2
      %v4239 = vmax.f32 %v4237, %v4238
      %v4240 = vrot.slane %v4239, 1
      %v4241 = vmax.f32 %v4239, %v4240
      %v4242 = vmax.f32 %v3794, %v3797
      %v4243 = vrot.slane %v4242, 4
      %v4244 = vmax.f32 %v4242, %v4243
      %v4245 = vrot.slane %v4244, 2
      %v4246 = vmax.f32 %v4244, %v4245
      %v4247 = vrot.slane %v4246, 1
      %v4248 = vmax.f32 %v4246, %v4247
      %v4249 = vmax.f32 %v3802, %v3805
      %v4250 = vrot.slane %v4249, 4
      %v4251 = vmax.f32 %v4249, %v4250
      %v4252 = vrot.slane %v4251, 2
      %v4253 = vmax.f32 %v4251, %v4252
      %v4254 = vrot.slane %v4253, 1
      %v4255 = vmax.f32 %v4253, %v4254
      %vm4320 = vcmask 1041409
      %v4321 = vsel %vm4320, %v3821, %v3814
      %vm4322 = vcmask 1042434
      %v4323 = vsel %vm4322, %v3828, %v4321
      %vm4324 = vcmask 1043459
      %v4325 = vsel %vm4324, %v3835, %v4323
      %vm4326 = vcmask 1044484
      %v4327 = vsel %vm4326, %v3842, %v4325
      %vm4328 = vcmask 1045509
      %v4329 = vsel %vm4328, %v3849, %v4327
      %vm4330 = vcmask 1046534
      %v4331 = vsel %vm4330, %v3856, %v4329
      %vm4332 = vcmask 1047559
      %v4333 = vsel %vm4332, %v3863, %v4331
      %v4334 = vsel %vm4320, %v3877, %v3870
      %v4335 = vsel %vm4322, %v3884, %v4334
      %v4336 = vsel %vm4324, %v3891, %v4335
      %v4337 = vsel %vm4326, %v3898, %v4336
      %v4338 = vsel %vm4328, %v3905, %v4337
      %v4339 = vsel %vm4330, %v3912, %v4338
      %v4340 = vsel %vm4332, %v3919, %v4339
      %v4341 = vsel %vm4320, %v3933, %v3926
      %v4342 = vsel %vm4322, %v3940, %v4341
      %v4343 = vsel %vm4324, %v3947, %v4342
      %v4344 = vsel %vm4326, %v3954, %v4343
      %v4345 = vsel %vm4328, %v3961, %v4344
      %v4346 = vsel %vm4330, %v3968, %v4345
      %v4347 = vsel %vm4332, %v3975, %v4346
      %v4348 = vsel %vm4320, %v3989, %v3982
      %v4349 = vsel %vm4322, %v3996, %v4348
      %v4350 = vsel %vm4324, %v4003, %v4349
      %v4351 = vsel %vm4326, %v4010, %v4350
      %v4352 = vsel %vm4328, %v4017, %v4351
      %v4353 = vsel %vm4330, %v4024, %v4352
      %v4354 = vsel %vm4332, %v4031, %v4353
      %v4355 = vsel %vm4320, %v4045, %v4038
      %v4356 = vsel %vm4322, %v4052, %v4355
      %v4357 = vsel %vm4324, %v4059, %v4356
      %v4358 = vsel %vm4326, %v4066, %v4357
      %v4359 = vsel %vm4328, %v4073, %v4358
      %v4360 = vsel %vm4330, %v4080, %v4359
      %v4361 = vsel %vm4332, %v4087, %v4360
      %v4362 = vsel %vm4320, %v4101, %v4094
      %v4363 = vsel %vm4322, %v4108, %v4362
      %v4364 = vsel %vm4324, %v4115, %v4363
      %v4365 = vsel %vm4326, %v4122, %v4364
      %v4366 = vsel %vm4328, %v4129, %v4365
      %v4367 = vsel %vm4330, %v4136, %v4366
      %v4368 = vsel %vm4332, %v4143, %v4367
      %v4369 = vsel %vm4320, %v4157, %v4150
      %v4370 = vsel %vm4322, %v4164, %v4369
      %v4371 = vsel %vm4324, %v4171, %v4370
      %v4372 = vsel %vm4326, %v4178, %v4371
      %v4373 = vsel %vm4328, %v4185, %v4372
      %v4374 = vsel %vm4330, %v4192, %v4373
      %v4375 = vsel %vm4332, %v4199, %v4374
      %v4376 = vsel %vm4320, %v4213, %v4206
      %v4377 = vsel %vm4322, %v4220, %v4376
      %v4378 = vsel %vm4324, %v4227, %v4377
      %v4379 = vsel %vm4326, %v4234, %v4378
      %v4380 = vsel %vm4328, %v4241, %v4379
      %v4381 = vsel %vm4330, %v4248, %v4380
      %v4382 = vsel %vm4332, %v4255, %v4381
      %4391 = vst [vmem:[%s308] sm:$0xff] %v4333
      %4392 = vst [vmem:[%s308 + $0x8] sm:$0xff] %v4340
      %4393 = vst [vmem:[%s308 + $0x10] sm:$0xff] %v4347
      %4394 = vst [vmem:[%s308 + $0x18] sm:$0xff] %v4354
      %4395 = vst [vmem:[%s308 + $0x20] sm:$0xff] %v4361
      %4396 = vst [vmem:[%s308 + $0x28] sm:$0xff] %v4368
      %4397 = vst [vmem:[%s308 + $0x30] sm:$0xff] %v4375
      %4398 = vst [vmem:[%s308 + $0x38] sm:$0xff] %v4382
      %s4399 = smul.u32 8, %s18
      %p4400 = scmp.lt.s32.totalorder %s4399, 15
      %s4401 = scalar_select %p4400, %s4399, 15
      %s4402 = smul.addr %s4401, 8
      %s4403 = scalar_lea.vmem %s7, %s4402
      // Predicated region
      $region49: #{rota_inv_net_forward.4} parent=47 // pred_check
        %p4404 = pneg %p193
      $region50: #{rota_inv_net_forward.4} parent=47 // pred_check_branch
        %4406 = sbr.rel (%p4404) target = $region52
      $region51: #{rota_inv_net_forward.4} parent=47 // pred_region
        %s4407 = smul.u32 8, %s18
      $region52: #{rota_inv_net_forward.4} parent=47 // pred_fallthru
        _
    $region48: #{rota_inv_net_forward.4} parent=5 // pred_fallthru
      _
    %p4408 = scmp.le.s32.totalorder 2, %s13
    // Predicated region
    $region53: #{rota_inv_net_forward.4} parent=5 // pred_check
      %p4409 = pneg %p4408
    $region54: #{rota_inv_net_forward.4} parent=5 // pred_check_branch
      %4411 = sbr.rel (%p4409) target = $region56
    $region55: #{rota_inv_net_forward.4} parent=5 // pred_region
      %s4412 = ssub.s32 %s13, 2
      // Predicated region
      $region57: #{rota_inv_net_forward.4} parent=55 // pred_check
        %p4413 = pneg %p199
      $region58: #{rota_inv_net_forward.4} parent=55 // pred_check_branch
        %4415 = sbr.rel (%p4413) target = $region60
      $region59: #{rota_inv_net_forward.4} parent=55 // pred_region
        %s4416 = smul.u32 8, %s19
        %p4417 = scmp.lt.s32.totalorder %s4416, 15
        %s4418 = scalar_select %p4417, %s4416, 15
        %s4419 = smul.addr %s4418, 8
        %s4420 = scalar_lea.vmem %s7, %s4419
      $region60: #{rota_inv_net_forward.4} parent=55 // pred_fallthru
        _
    $region56: #{rota_inv_net_forward.4} parent=5 // pred_fallthru
      _
  $region6: #{rota_inv_net_forward.4} parent=0 // loop_footer
    %s17 = sadd.s32 1, %s13
  $region7: #{rota_inv_net_forward.4} parent=0 // loop_footer_branch
    %12 = sbr.rel target = $region3
  $region8: #{rota_inv_net_forward.4} parent=0 // loop_exit
    _

</llo_original>
